<compile_context>
chip_gen: v7x
topology: tpu7x:2x2x1
jax: 0.10.0
libtpu: 0.0.40
codegen_flags: <defaults>
</compile_context>

<pallas_src>
import numpy as np

import jax
import jax.numpy as jnp
from jax.experimental import pallas as pl
from jax.experimental.pallas import tpu as pltpu


def _pad8(c):
    return max(8, ((c + 7) // 8) * 8)


def _build_tap_masks(D, H, W):
    """(27, D*H*W) float32 validity mask per conv tap ('same' zero padding)."""
    d = np.arange(D)[:, None, None]
    h = np.arange(H)[None, :, None]
    w = np.arange(W)[None, None, :]
    masks = []
    for kd in (-1, 0, 1):
        for kh in (-1, 0, 1):
            for kw in (-1, 0, 1):
                m = ((d + kd >= 0) & (d + kd < D) &
                     (h + kh >= 0) & (h + kh < H) &
                     (w + kw >= 0) & (w + kw < W))
                masks.append(np.broadcast_to(m, (D, H, W)).reshape(-1))
    return jnp.asarray(np.stack(masks).astype(np.float32))


# ------------------------------------------------------------------ conv kernel
def _make_conv_kernel(D, H, W, cpin, cpout, apply_act, add_residual, emit_stats):
    HW = H * W
    DHW = D * HW

    def kernel(*refs):
        i = 0
        x_ref = refs[i]; i += 1                    # (cpin, DHW)  f32
        w_ref = refs[i]; i += 1                    # (3, cpout, 9*cpin) bf16
        b_ref = refs[i]; i += 1                    # (cpout, 1)   f32
        m_ref = refs[i]; i += 1                    # (27, DHW)    f32 boundary masks
        if apply_act:
            scale_ref = refs[i]; shift_ref = refs[i + 1]; i += 2   # (cpin, 1) f32
        if add_residual:
            r_ref = refs[i]; i += 1                # (cpout, DHW) f32
        o_ref = refs[i]; i += 1                    # (cpout, DHW) f32
        if emit_stats:
            s_ref = refs[i]; q_ref = refs[i + 1]; i += 2           # (cpout, 1) f32
        p_slots = (refs[i], refs[i + 1])           # 2 x (9*cpin, DHW) bf16 scratch

        # fused BatchNorm-apply + SiLU of the previous layer (f32, once per element)
        a = x_ref[...]
        if apply_act:
            z = a * scale_ref[...] + shift_ref[...]
            a = z * jax.nn.sigmoid(z)

        # 3x3x3 'same' conv = 3 accumulating im2col matmuls (one per kd chunk).
        # Depth + spatial share the lane axis, so every tap is a single lane roll
        # (XLU) + precomputed boundary mask; bf16 patch halves scratch + store
        # traffic, f32 accumulation keeps BN statistics exact.
        acc = None
        for kd in range(3):
            p_ref = p_slots[kd % 2]   # alternate slots: chunk k+1 stores overlap chunk k dot
            for kh in range(3):
                for kw in range(3):
                    t9 = kh * 3 + kw
                    t27 = kd * 9 + t9
                    off = (kd - 1) * HW + (kh - 1) * W + (kw - 1)
                    shifted = a if off == 0 else pltpu.roll(
                        a, shift=(-off) % DHW, axis=1)
                    tap = shifted * m_ref[pl.ds(t27, 1), :]
                    p_ref[pl.ds(t9 * cpin, cpin), :] = tap.astype(p_ref.dtype)
            part = jnp.dot(w_ref[kd], p_ref[...],
                           preferred_element_type=jnp.float32)
            acc = part if acc is None else acc + part

        conv_out = acc + b_ref[...]

        if emit_stats:
            # BatchNorm batch-statistic partials for this sample (finished in XLA)
            s_ref[...] = jnp.sum(conv_out, axis=1, keepdims=True)
            q_ref[...] = jnp.sum(conv_out * conv_out, axis=1, keepdims=True)

        out = conv_out + r_ref[...] if add_residual else conv_out
        o_ref[...] = out.astype(o_ref.dtype)

    return kernel


def conv3d_same(x, w3, b_col, masks, D, H, W,
                scale=None, shift=None, residual=None, emit_stats=False):
    """3x3x3 'same' conv on channel-padded, depth*spatial-flattened activations.

    x:           (N, Cin_pad, D*H*W) f32
    w3:          (3, Cout_pad, 9*Cin_pad) bf16
    b_col:       (Cout_pad, 1) f32
    masks:       (27, D*H*W) f32 tap validity masks
    scale/shift: optional (Cin_pad, 1) f32 — fused BN-affine + SiLU applied to x first
    residual:    optional (N, Cout_pad, D*H*W) f32 added to the conv output
    returns:     y  or  (y, chan_sum, chan_sumsq) if emit_stats
    """
    N, cpin, DHW = x.shape
    _, cpout, kc = w3.shape
    assert DHW == D * H * W and kc == 9 * cpin

    apply_act = scale is not None
    add_residual = residual is not None

    in_specs = [
        pl.BlockSpec((None, cpin, DHW), lambda n: (n, 0, 0)),
        pl.BlockSpec((3, cpout, 9 * cpin), lambda n: (0, 0, 0)),
        pl.BlockSpec((cpout, 1), lambda n: (0, 0)),
        pl.BlockSpec((27, DHW), lambda n: (0, 0)),
    ]
    args = [x, w3, b_col, masks]
    if apply_act:
        in_specs += [pl.BlockSpec((cpin, 1), lambda n: (0, 0)),
                     pl.BlockSpec((cpin, 1), lambda n: (0, 0))]
        args += [scale, shift]
    if add_residual:
        in_specs.append(pl.BlockSpec((None, cpout, DHW), lambda n: (n, 0, 0)))
        args.append(residual)

    out_shapes = [jax.ShapeDtypeStruct((N, cpout, DHW), jnp.float32)]
    out_specs = [pl.BlockSpec((None, cpout, DHW), lambda n: (n, 0, 0))]
    if emit_stats:
        out_shapes += [jax.ShapeDtypeStruct((N, cpout, 1), jnp.float32)] * 2
        out_specs += [pl.BlockSpec((None, cpout, 1), lambda n: (n, 0, 0))] * 2

    # VMEM budget sized from the actual blocks (double-buffered inputs/outputs,
    # masks, weights, 2 bf16 patch slots) + headroom, under the v7x 64 MiB cap.
    est = (4 * DHW * 2 * (cpin + cpout + (cpout if add_residual else 0))
           + 4 * 2 * 27 * DHW + 4 * 2 * 3 * cpout * 9 * cpin
           + 2 * 2 * 9 * cpin * DHW + (1 << 20))
    vmem_limit = int(min(60 * 2**20, max(2 * est, 16 * 2**20)))

    kernel = _make_conv_kernel(D, H, W, cpin, cpout,
                               apply_act, add_residual, emit_stats)
    outs = pl.pallas_call(
        kernel,
        out_shape=tuple(out_shapes),
        grid=(N,),
        in_specs=in_specs,
        out_specs=tuple(out_specs),
        scratch_shapes=[pltpu.VMEM((9 * cpin, DHW), jnp.bfloat16),
                        pltpu.VMEM((9 * cpin, DHW), jnp.bfloat16)],
        compiler_params=pltpu.CompilerParams(
            dimension_semantics=("parallel",),
            vmem_limit_bytes=vmem_limit),
    )(*args)
    return outs if emit_stats else outs[0]


# ----------------------------------------------------------------- module glue
def _to_w3(w, cpi, cpo):
    # (3,3,3,Cin,Cout) -> (3, Cout_pad, 9*Cin_pad) bf16; column = (kh*3+kw)*Cin_pad + cin
    _, _, _, cin, cout = w.shape
    wp = jnp.pad(w, ((0, 0), (0, 0), (0, 0), (0, cpi - cin), (0, cpo - cout)))
    return jnp.transpose(wp.reshape(3, 9 * cpi, cpo), (0, 2, 1)).astype(jnp.bfloat16)


def init_params(key, in_ch, out_ch, hidden_dim, num_hl):
    dims = [(in_ch, hidden_dim)] + [(hidden_dim, hidden_dim)] * num_hl \
        + [(hidden_dim, out_ch)]
    convs, bns = [], []
    for ci, co in dims:
        key, k1, k2 = jax.random.split(key, 3)
        w = jax.random.normal(k1, (3, 3, 3, ci, co), jnp.float32) * (1.0 / (27.0 * ci)) ** 0.5
        b = jax.random.normal(k2, (co,), jnp.float32) * 0.01
        convs.append((w, b))
    for _ in range(1 + num_hl):
        key, k1, k2 = jax.random.split(key, 3)
        g = 1.0 + 0.1 * jax.random.normal(k1, (hidden_dim,), jnp.float32)
        bb = 0.1 * jax.random.normal(k2, (hidden_dim,), jnp.float32)
        bns.append((g, bb))
    # mapLayer weights kept only for shape fidelity (unused: in_ch == out_ch path)
    key, k1 = jax.random.split(key)
    map_w = jax.random.normal(k1, (3, 3, 3, in_ch, out_ch), jnp.float32) * 0.05
    map_b = jnp.zeros((out_ch,), jnp.float32)
    return {"convs": convs, "bns": bns, "map": (map_w, map_b)}


def residual_block_3d(x_ncdhw, params):
    convs, bns = params["convs"], params["bns"]
    N, in_ch, D, H, W = x_ncdhw.shape
    out_ch = convs[-1][0].shape[-1]
    if in_ch != out_ch:
        raise NotImplementedError(
            "in_ch != out_ch path shape-mismatches in the original module")

    DHW = D * H * W
    assert DHW % 128 == 0, "demo assumes D*H*W is a multiple of 128"

    cp0 = _pad8(in_ch)
    # NCDHW -> (N, Cpad, D*H*W): channels on sublanes, depth*spatial on lanes.
    x = jnp.pad(x_ncdhw.reshape(N, in_ch, DHW), ((0, 0), (0, cp0 - in_ch), (0, 0)))
    residual = x
    masks = _build_tap_masks(D, H, W)

    h = x
    scale = shift = None
    out = None
    count = float(N * DHW)
    n_layers = len(convs)
    for i, (w, b) in enumerate(convs):
        cin, cout = w.shape[3], w.shape[4]
        cpi, cpo = _pad8(cin), _pad8(cout)
        w3 = _to_w3(w, cpi, cpo)
        b_col = jnp.pad(b, (0, cpo - cout)).reshape(cpo, 1)
        if i == n_layers - 1:
            out = conv3d_same(h, w3, b_col, masks, D, H, W,
                              scale=scale, shift=shift, residual=residual)
            break
        y, psum, psq = conv3d_same(h, w3, b_col, masks, D, H, W,
                                   scale=scale, shift=shift, emit_stats=True)
        # Finish BatchNorm3d training-mode batch statistics from the fused
        # per-sample partials (activations are never re-read from HBM for stats).
        tot = jnp.sum(psum, axis=0)                     # (cpo, 1)
        totq = jnp.sum(psq, axis=0)
        mean = tot / count
        var = jnp.maximum(totq / count - mean * mean, 0.0)
        gamma, beta = bns[i]
        gamma_p = jnp.pad(gamma, (0, cpo - gamma.shape[0])).reshape(cpo, 1)
        beta_p = jnp.pad(beta, (0, cpo - beta.shape[0])).reshape(cpo, 1)
        inv = jax.lax.rsqrt(var + 1e-5)
        scale = gamma_p * inv                           # BN-apply (+SiLU) fused into
        shift = beta_p - mean * gamma_p * inv           # the next conv's prologue
        h = y

    # (N, Cpad, D*H*W) -> NCDHW, drop channel padding
    return out.reshape(N, -1, D, H, W)[:, :out_ch]


# --------------------------------------------------------------- pure-JAX reference
def _ref_forward(x_ncdhw, params):
    x = jnp.transpose(x_ncdhw, (0, 2, 3, 4, 1))

    def conv(h, w, b):
        y = jax.lax.conv_general_dilated(
            h, w, window_strides=(1, 1, 1), padding="SAME",
            dimension_numbers=("NDHWC", "DHWIO", "NDHWC"))
        return y + b

    def bn_silu(h, g, bb):
        mean = jnp.mean(h, axis=(0, 1, 2, 3), keepdims=True)
        var = jnp.mean(jnp.square(h - mean), axis=(0, 1, 2, 3), keepdims=True)
        z = (h - mean) * jax.lax.rsqrt(var + 1e-5) * g + bb
        return z * jax.nn.sigmoid(z)

    convs, bns = params["convs"], params["bns"]
    residual = x
    h = x
    for i in range(len(convs) - 1):
        h = bn_silu(conv(h, *convs[i]), *bns[i])
    h = conv(h, *convs[-1])
    return jnp.transpose(residual + h, (0, 4, 1, 2, 3))


if __name__ == "__main__":
    key = jax.random.PRNGKey(0)
    N, D, H, W = 2, 8, 16, 16
    in_ch = out_ch = 4
    hidden_dim, num_hl = 8, 1

    kx, kp = jax.random.split(key)
    x = jax.random.normal(kx, (N, in_ch, D, H, W), jnp.float32)  # PyTorch NCDHW input
    params = init_params(kp, in_ch, out_ch, hidden_dim, num_hl)

    out = jax.block_until_ready(residual_block_3d(x, params))
    assert out.shape == (N, out_ch, D, H, W), out.shape

    ref = jax.block_until_ready(_ref_forward(x, params))
    # bf16 im2col patch / weights with f32 accumulation -> small relative error
    np.testing.assert_allclose(np.asarray(out), np.asarray(ref), rtol=3e-2, atol=3e-2)

    print("KERNEL_OK")
</pallas_src>

<mosaic_0001>
module attributes {stable_mosaic.version = 11 : i64} {
  func.func @kernel(%arg0: i32, %arg1: memref<1x8x2048xf32, #tpu.memory_space<vmem>>, %arg2: memref<3x8x72xbf16, #tpu.memory_space<vmem>>, %arg3: memref<8x1xf32, #tpu.memory_space<vmem>>, %arg4: memref<27x2048xf32, #tpu.memory_space<vmem>>, %arg5: memref<1x8x2048xf32, #tpu.memory_space<vmem>>, %arg6: memref<1x8x1xf32, #tpu.memory_space<vmem>>, %arg7: memref<1x8x1xf32, #tpu.memory_space<vmem>>, %arg8: memref<72x2048xbf16, #tpu.memory_space<vmem>>, %arg9: memref<72x2048xbf16, #tpu.memory_space<vmem>>) attributes {dimension_semantics = [#tpu.dimension_semantics<parallel>], iteration_bounds = array<i64: 2>, scalar_prefetch = 0 : i64, scratch_operands = 2 : i64, tpu.core_type = #tpu.core_type<tc>, window_params = [{transform_indices = @transform_0, window_bounds = array<i64: 1, 8, 2048>}, {pipeline_mode = #tpu.pipeline_mode<synchronous>, transform_indices = @transform_1, window_bounds = array<i64: 3, 8, 72>}, {pipeline_mode = #tpu.pipeline_mode<synchronous>, transform_indices = @transform_2, window_bounds = array<i64: 8, 1>}, {pipeline_mode = #tpu.pipeline_mode<synchronous>, transform_indices = @transform_3, window_bounds = array<i64: 27, 2048>}, {transform_indices = @transform_4, window_bounds = array<i64: 1, 8, 2048>}, {transform_indices = @transform_5, window_bounds = array<i64: 1, 8, 1>}, {transform_indices = @transform_6, window_bounds = array<i64: 1, 8, 1>}]} {
    %c0 = arith.constant 0 : index
    %c0_0 = arith.constant 0 : index
    %c0_1 = arith.constant 0 : index
    %0 = vector.load %arg1[%c0, %c0_0, %c0_1] : memref<1x8x2048xf32, #tpu.memory_space<vmem>>, vector<1x8x2048xf32>
    %1 = vector.shape_cast %0 : vector<1x8x2048xf32> to vector<8x2048xf32>
    %c273_i32 = arith.constant 273 : i32
    %2 = tpu.dynamic_rotate %1 by %c273_i32 dim 1 : vector<8x2048xf32>, i32 -> vector<8x2048xf32>
    %c0_2 = arith.constant 0 : index
    %c0_3 = arith.constant 0 : index
    %3 = vector.load %arg4[%c0_2, %c0_3] : memref<27x2048xf32, #tpu.memory_space<vmem>>, vector<1x2048xf32>
    %4 = vector.broadcast %3 : vector<1x2048xf32> to vector<8x2048xf32>
    %5 = arith.mulf %2, %4 : vector<8x2048xf32>
    %6 = arith.truncf %5 : vector<8x2048xf32> to vector<8x2048xbf16>
    %c0_4 = arith.constant 0 : index
    %c0_5 = arith.constant 0 : index
    %7 = vector.load %arg8[%c0_4, %c0_5] : memref<72x2048xbf16, #tpu.memory_space<vmem>>, vector<8x2048xbf16>
    tpu.vector_store %arg8[%c0_4, %c0_5], %6 {strides = array<i32>} : memref<72x2048xbf16, #tpu.memory_space<vmem>>, vector<8x2048xbf16>,
    %c272_i32 = arith.constant 272 : i32
    %8 = tpu.dynamic_rotate %1 by %c272_i32 dim 1 : vector<8x2048xf32>, i32 -> vector<8x2048xf32>
    %c1 = arith.constant 1 : index
    %c0_6 = arith.constant 0 : index
    %9 = vector.load %arg4[%c1, %c0_6] : memref<27x2048xf32, #tpu.memory_space<vmem>>, vector<1x2048xf32>
    %10 = vector.broadcast %9 : vector<1x2048xf32> to vector<8x2048xf32>
    %11 = arith.mulf %8, %10 : vector<8x2048xf32>
    %12 = arith.truncf %11 : vector<8x2048xf32> to vector<8x2048xbf16>
    %c8 = arith.constant 8 : index
    %c0_7 = arith.constant 0 : index
    %13 = vector.load %arg8[%c8, %c0_7] : memref<72x2048xbf16, #tpu.memory_space<vmem>>, vector<8x2048xbf16>
    tpu.vector_store %arg8[%c8, %c0_7], %12 {strides = array<i32>} : memref<72x2048xbf16, #tpu.memory_space<vmem>>, vector<8x2048xbf16>,
    %c271_i32 = arith.constant 271 : i32
    %14 = tpu.dynamic_rotate %1 by %c271_i32 dim 1 : vector<8x2048xf32>, i32 -> vector<8x2048xf32>
    %c2 = arith.constant 2 : index
    %c0_8 = arith.constant 0 : index
    %15 = vector.load %arg4[%c2, %c0_8] : memref<27x2048xf32, #tpu.memory_space<vmem>>, vector<1x2048xf32>
    %16 = vector.broadcast %15 : vector<1x2048xf32> to vector<8x2048xf32>
    %17 = arith.mulf %14, %16 : vector<8x2048xf32>
    %18 = arith.truncf %17 : vector<8x2048xf32> to vector<8x2048xbf16>
    %c16 = arith.constant 16 : index
    %c0_9 = arith.constant 0 : index
    %19 = vector.load %arg8[%c16, %c0_9] : memref<72x2048xbf16, #tpu.memory_space<vmem>>, vector<8x2048xbf16>
    tpu.vector_store %arg8[%c16, %c0_9], %18 {strides = array<i32>} : memref<72x2048xbf16, #tpu.memory_space<vmem>>, vector<8x2048xbf16>,
    %c257_i32 = arith.constant 257 : i32
    %20 = tpu.dynamic_rotate %1 by %c257_i32 dim 1 : vector<8x2048xf32>, i32 -> vector<8x2048xf32>
    %c3 = arith.constant 3 : index
    %c0_10 = arith.constant 0 : index
    %21 = vector.load %arg4[%c3, %c0_10] : memref<27x2048xf32, #tpu.memory_space<vmem>>, vector<1x2048xf32>
    %22 = vector.broadcast %21 : vector<1x2048xf32> to vector<8x2048xf32>
    %23 = arith.mulf %20, %22 : vector<8x2048xf32>
    %24 = arith.truncf %23 : vector<8x2048xf32> to vector<8x2048xbf16>
    %c24 = arith.constant 24 : index
    %c0_11 = arith.constant 0 : index
    %25 = vector.load %arg8[%c24, %c0_11] : memref<72x2048xbf16, #tpu.memory_space<vmem>>, vector<8x2048xbf16>
    tpu.vector_store %arg8[%c24, %c0_11], %24 {strides = array<i32>} : memref<72x2048xbf16, #tpu.memory_space<vmem>>, vector<8x2048xbf16>,
    %c256_i32 = arith.constant 256 : i32
    %26 = tpu.dynamic_rotate %1 by %c256_i32 dim 1 : vector<8x2048xf32>, i32 -> vector<8x2048xf32>
    %c4 = arith.constant 4 : index
    %c0_12 = arith.constant 0 : index
    %27 = vector.load %arg4[%c4, %c0_12] : memref<27x2048xf32, #tpu.memory_space<vmem>>, vector<1x2048xf32>
    %28 = vector.broadcast %27 : vector<1x2048xf32> to vector<8x2048xf32>
    %29 = arith.mulf %26, %28 : vector<8x2048xf32>
    %30 = arith.truncf %29 : vector<8x2048xf32> to vector<8x2048xbf16>
    %c32 = arith.constant 32 : index
    %c0_13 = arith.constant 0 : index
    %31 = vector.load %arg8[%c32, %c0_13] : memref<72x2048xbf16, #tpu.memory_space<vmem>>, vector<8x2048xbf16>
    tpu.vector_store %arg8[%c32, %c0_13], %30 {strides = array<i32>} : memref<72x2048xbf16, #tpu.memory_space<vmem>>, vector<8x2048xbf16>,
    %c255_i32 = arith.constant 255 : i32
    %32 = tpu.dynamic_rotate %1 by %c255_i32 dim 1 : vector<8x2048xf32>, i32 -> vector<8x2048xf32>
    %c5 = arith.constant 5 : index
    %c0_14 = arith.constant 0 : index
    %33 = vector.load %arg4[%c5, %c0_14] : memref<27x2048xf32, #tpu.memory_space<vmem>>, vector<1x2048xf32>
    %34 = vector.broadcast %33 : vector<1x2048xf32> to vector<8x2048xf32>
    %35 = arith.mulf %32, %34 : vector<8x2048xf32>
    %36 = arith.truncf %35 : vector<8x2048xf32> to vector<8x2048xbf16>
    %c40 = arith.constant 40 : index
    %c0_15 = arith.constant 0 : index
    %37 = vector.load %arg8[%c40, %c0_15] : memref<72x2048xbf16, #tpu.memory_space<vmem>>, vector<8x2048xbf16>
    tpu.vector_store %arg8[%c40, %c0_15], %36 {strides = array<i32>} : memref<72x2048xbf16, #tpu.memory_space<vmem>>, vector<8x2048xbf16>,
    %c241_i32 = arith.constant 241 : i32
    %38 = tpu.dynamic_rotate %1 by %c241_i32 dim 1 : vector<8x2048xf32>, i32 -> vector<8x2048xf32>
    %c6 = arith.constant 6 : index
    %c0_16 = arith.constant 0 : index
    %39 = vector.load %arg4[%c6, %c0_16] : memref<27x2048xf32, #tpu.memory_space<vmem>>, vector<1x2048xf32>
    %40 = vector.broadcast %39 : vector<1x2048xf32> to vector<8x2048xf32>
    %41 = arith.mulf %38, %40 : vector<8x2048xf32>
    %42 = arith.truncf %41 : vector<8x2048xf32> to vector<8x2048xbf16>
    %c48 = arith.constant 48 : index
    %c0_17 = arith.constant 0 : index
    %43 = vector.load %arg8[%c48, %c0_17] : memref<72x2048xbf16, #tpu.memory_space<vmem>>, vector<8x2048xbf16>
    tpu.vector_store %arg8[%c48, %c0_17], %42 {strides = array<i32>} : memref<72x2048xbf16, #tpu.memory_space<vmem>>, vector<8x2048xbf16>,
    %c240_i32 = arith.constant 240 : i32
    %44 = tpu.dynamic_rotate %1 by %c240_i32 dim 1 : vector<8x2048xf32>, i32 -> vector<8x2048xf32>
    %c7 = arith.constant 7 : index
    %c0_18 = arith.constant 0 : index
    %45 = vector.load %arg4[%c7, %c0_18] : memref<27x2048xf32, #tpu.memory_space<vmem>>, vector<1x2048xf32>
    %46 = vector.broadcast %45 : vector<1x2048xf32> to vector<8x2048xf32>
    %47 = arith.mulf %44, %46 : vector<8x2048xf32>
    %48 = arith.truncf %47 : vector<8x2048xf32> to vector<8x2048xbf16>
    %c56 = arith.constant 56 : index
    %c0_19 = arith.constant 0 : index
    %49 = vector.load %arg8[%c56, %c0_19] : memref<72x2048xbf16, #tpu.memory_space<vmem>>, vector<8x2048xbf16>
    tpu.vector_store %arg8[%c56, %c0_19], %48 {strides = array<i32>} : memref<72x2048xbf16, #tpu.memory_space<vmem>>, vector<8x2048xbf16>,
    %c239_i32 = arith.constant 239 : i32
    %50 = tpu.dynamic_rotate %1 by %c239_i32 dim 1 : vector<8x2048xf32>, i32 -> vector<8x2048xf32>
    %c8_20 = arith.constant 8 : index
    %c0_21 = arith.constant 0 : index
    %51 = vector.load %arg4[%c8_20, %c0_21] : memref<27x2048xf32, #tpu.memory_space<vmem>>, vector<1x2048xf32>
    %52 = vector.broadcast %51 : vector<1x2048xf32> to vector<8x2048xf32>
    %53 = arith.mulf %50, %52 : vector<8x2048xf32>
    %54 = arith.truncf %53 : vector<8x2048xf32> to vector<8x2048xbf16>
    %c64 = arith.constant 64 : index
    %c0_22 = arith.constant 0 : index
    %55 = vector.load %arg8[%c64, %c0_22] : memref<72x2048xbf16, #tpu.memory_space<vmem>>, vector<8x2048xbf16>
    tpu.vector_store %arg8[%c64, %c0_22], %54 {strides = array<i32>} : memref<72x2048xbf16, #tpu.memory_space<vmem>>, vector<8x2048xbf16>,
    %c0_23 = arith.constant 0 : index
    %c0_24 = arith.constant 0 : index
    %c0_25 = arith.constant 0 : index
    %56 = vector.load %arg2[%c0_23, %c0_24, %c0_25] : memref<3x8x72xbf16, #tpu.memory_space<vmem>>, vector<1x8x72xbf16>
    %57 = vector.shape_cast %56 : vector<1x8x72xbf16> to vector<8x72xbf16>
    %c0_26 = arith.constant 0 : index
    %c0_27 = arith.constant 0 : index
    %58 = vector.load %arg8[%c0_26, %c0_27] : memref<72x2048xbf16, #tpu.memory_space<vmem>>, vector<72x2048xbf16>
    %cst = arith.constant dense<0.000000e+00> : vector<8x2048xf32>
    %59 = tpu.matmul %57, %58, %cst {dimension_numbers = #tpu.dot_dimension_numbers<[1], [0], [0], [1], [0, 0, 1, 1], [], []>} : vector<8x72xbf16>, vector<72x2048xbf16>, vector<8x2048xf32> -> vector<8x2048xf32>
    %c17_i32 = arith.constant 17 : i32
    %60 = tpu.dynamic_rotate %1 by %c17_i32 dim 1 : vector<8x2048xf32>, i32 -> vector<8x2048xf32>
    %c9 = arith.constant 9 : index
    %c0_28 = arith.constant 0 : index
    %61 = vector.load %arg4[%c9, %c0_28] : memref<27x2048xf32, #tpu.memory_space<vmem>>, vector<1x2048xf32>
    %62 = vector.broadcast %61 : vector<1x2048xf32> to vector<8x2048xf32>
    %63 = arith.mulf %60, %62 : vector<8x2048xf32>
    %64 = arith.truncf %63 : vector<8x2048xf32> to vector<8x2048xbf16>
    %c0_29 = arith.constant 0 : index
    %c0_30 = arith.constant 0 : index
    %65 = vector.load %arg9[%c0_29, %c0_30] : memref<72x2048xbf16, #tpu.memory_space<vmem>>, vector<8x2048xbf16>
    tpu.vector_store %arg9[%c0_29, %c0_30], %64 {strides = array<i32>} : memref<72x2048xbf16, #tpu.memory_space<vmem>>, vector<8x2048xbf16>,
    %c16_i32 = arith.constant 16 : i32
    %66 = tpu.dynamic_rotate %1 by %c16_i32 dim 1 : vector<8x2048xf32>, i32 -> vector<8x2048xf32>
    %c10 = arith.constant 10 : index
    %c0_31 = arith.constant 0 : index
    %67 = vector.load %arg4[%c10, %c0_31] : memref<27x2048xf32, #tpu.memory_space<vmem>>, vector<1x2048xf32>
    %68 = vector.broadcast %67 : vector<1x2048xf32> to vector<8x2048xf32>
    %69 = arith.mulf %66, %68 : vector<8x2048xf32>
    %70 = arith.truncf %69 : vector<8x2048xf32> to vector<8x2048xbf16>
    %c8_32 = arith.constant 8 : index
    %c0_33 = arith.constant 0 : index
    %71 = vector.load %arg9[%c8_32, %c0_33] : memref<72x2048xbf16, #tpu.memory_space<vmem>>, vector<8x2048xbf16>
    tpu.vector_store %arg9[%c8_32, %c0_33], %70 {strides = array<i32>} : memref<72x2048xbf16, #tpu.memory_space<vmem>>, vector<8x2048xbf16>,
    %c15_i32 = arith.constant 15 : i32
    %72 = tpu.dynamic_rotate %1 by %c15_i32 dim 1 : vector<8x2048xf32>, i32 -> vector<8x2048xf32>
    %c11 = arith.constant 11 : index
    %c0_34 = arith.constant 0 : index
    %73 = vector.load %arg4[%c11, %c0_34] : memref<27x2048xf32, #tpu.memory_space<vmem>>, vector<1x2048xf32>
    %74 = vector.broadcast %73 : vector<1x2048xf32> to vector<8x2048xf32>
    %75 = arith.mulf %72, %74 : vector<8x2048xf32>
    %76 = arith.truncf %75 : vector<8x2048xf32> to vector<8x2048xbf16>
    %c16_35 = arith.constant 16 : index
    %c0_36 = arith.constant 0 : index
    %77 = vector.load %arg9[%c16_35, %c0_36] : memref<72x2048xbf16, #tpu.memory_space<vmem>>, vector<8x2048xbf16>
    tpu.vector_store %arg9[%c16_35, %c0_36], %76 {strides = array<i32>} : memref<72x2048xbf16, #tpu.memory_space<vmem>>, vector<8x2048xbf16>,
    %c1_i32 = arith.constant 1 : i32
    %78 = tpu.dynamic_rotate %1 by %c1_i32 dim 1 : vector<8x2048xf32>, i32 -> vector<8x2048xf32>
    %c12 = arith.constant 12 : index
    %c0_37 = arith.constant 0 : index
    %79 = vector.load %arg4[%c12, %c0_37] : memref<27x2048xf32, #tpu.memory_space<vmem>>, vector<1x2048xf32>
    %80 = vector.broadcast %79 : vector<1x2048xf32> to vector<8x2048xf32>
    %81 = arith.mulf %78, %80 : vector<8x2048xf32>
    %82 = arith.truncf %81 : vector<8x2048xf32> to vector<8x2048xbf16>
    %c24_38 = arith.constant 24 : index
    %c0_39 = arith.constant 0 : index
    %83 = vector.load %arg9[%c24_38, %c0_39] : memref<72x2048xbf16, #tpu.memory_space<vmem>>, vector<8x2048xbf16>
    tpu.vector_store %arg9[%c24_38, %c0_39], %82 {strides = array<i32>} : memref<72x2048xbf16, #tpu.memory_space<vmem>>, vector<8x2048xbf16>,
    %c13 = arith.constant 13 : index
    %c0_40 = arith.constant 0 : index
    %84 = vector.load %arg4[%c13, %c0_40] : memref<27x2048xf32, #tpu.memory_space<vmem>>, vector<1x2048xf32>
    %85 = vector.broadcast %84 : vector<1x2048xf32> to vector<8x2048xf32>
    %86 = arith.mulf %1, %85 : vector<8x2048xf32>
    %87 = arith.truncf %86 : vector<8x2048xf32> to vector<8x2048xbf16>
    %c32_41 = arith.constant 32 : index
    %c0_42 = arith.constant 0 : index
    %88 = vector.load %arg9[%c32_41, %c0_42] : memref<72x2048xbf16, #tpu.memory_space<vmem>>, vector<8x2048xbf16>
    tpu.vector_store %arg9[%c32_41, %c0_42], %87 {strides = array<i32>} : memref<72x2048xbf16, #tpu.memory_space<vmem>>, vector<8x2048xbf16>,
    %c2047_i32 = arith.constant 2047 : i32
    %89 = tpu.dynamic_rotate %1 by %c2047_i32 dim 1 : vector<8x2048xf32>, i32 -> vector<8x2048xf32>
    %c14 = arith.constant 14 : index
    %c0_43 = arith.constant 0 : index
    %90 = vector.load %arg4[%c14, %c0_43] : memref<27x2048xf32, #tpu.memory_space<vmem>>, vector<1x2048xf32>
    %91 = vector.broadcast %90 : vector<1x2048xf32> to vector<8x2048xf32>
    %92 = arith.mulf %89, %91 : vector<8x2048xf32>
    %93 = arith.truncf %92 : vector<8x2048xf32> to vector<8x2048xbf16>
    %c40_44 = arith.constant 40 : index
    %c0_45 = arith.constant 0 : index
    %94 = vector.load %arg9[%c40_44, %c0_45] : memref<72x2048xbf16, #tpu.memory_space<vmem>>, vector<8x2048xbf16>
    tpu.vector_store %arg9[%c40_44, %c0_45], %93 {strides = array<i32>} : memref<72x2048xbf16, #tpu.memory_space<vmem>>, vector<8x2048xbf16>,
    %c2033_i32 = arith.constant 2033 : i32
    %95 = tpu.dynamic_rotate %1 by %c2033_i32 dim 1 : vector<8x2048xf32>, i32 -> vector<8x2048xf32>
    %c15 = arith.constant 15 : index
    %c0_46 = arith.constant 0 : index
    %96 = vector.load %arg4[%c15, %c0_46] : memref<27x2048xf32, #tpu.memory_space<vmem>>, vector<1x2048xf32>
    %97 = vector.broadcast %96 : vector<1x2048xf32> to vector<8x2048xf32>
    %98 = arith.mulf %95, %97 : vector<8x2048xf32>
    %99 = arith.truncf %98 : vector<8x2048xf32> to vector<8x2048xbf16>
    %c48_47 = arith.constant 48 : index
    %c0_48 = arith.constant 0 : index
    %100 = vector.load %arg9[%c48_47, %c0_48] : memref<72x2048xbf16, #tpu.memory_space<vmem>>, vector<8x2048xbf16>
    tpu.vector_store %arg9[%c48_47, %c0_48], %99 {strides = array<i32>} : memref<72x2048xbf16, #tpu.memory_space<vmem>>, vector<8x2048xbf16>,
    %c2032_i32 = arith.constant 2032 : i32
    %101 = tpu.dynamic_rotate %1 by %c2032_i32 dim 1 : vector<8x2048xf32>, i32 -> vector<8x2048xf32>
    %c16_49 = arith.constant 16 : index
    %c0_50 = arith.constant 0 : index
    %102 = vector.load %arg4[%c16_49, %c0_50] : memref<27x2048xf32, #tpu.memory_space<vmem>>, vector<1x2048xf32>
    %103 = vector.broadcast %102 : vector<1x2048xf32> to vector<8x2048xf32>
    %104 = arith.mulf %101, %103 : vector<8x2048xf32>
    %105 = arith.truncf %104 : vector<8x2048xf32> to vector<8x2048xbf16>
    %c56_51 = arith.constant 56 : index
    %c0_52 = arith.constant 0 : index
    %106 = vector.load %arg9[%c56_51, %c0_52] : memref<72x2048xbf16, #tpu.memory_space<vmem>>, vector<8x2048xbf16>
    tpu.vector_store %arg9[%c56_51, %c0_52], %105 {strides = array<i32>} : memref<72x2048xbf16, #tpu.memory_space<vmem>>, vector<8x2048xbf16>,
    %c2031_i32 = arith.constant 2031 : i32
    %107 = tpu.dynamic_rotate %1 by %c2031_i32 dim 1 : vector<8x2048xf32>, i32 -> vector<8x2048xf32>
    %c17 = arith.constant 17 : index
    %c0_53 = arith.constant 0 : index
    %108 = vector.load %arg4[%c17, %c0_53] : memref<27x2048xf32, #tpu.memory_space<vmem>>, vector<1x2048xf32>
    %109 = vector.broadcast %108 : vector<1x2048xf32> to vector<8x2048xf32>
    %110 = arith.mulf %107, %109 : vector<8x2048xf32>
    %111 = arith.truncf %110 : vector<8x2048xf32> to vector<8x2048xbf16>
    %c64_54 = arith.constant 64 : index
    %c0_55 = arith.constant 0 : index
    %112 = vector.load %arg9[%c64_54, %c0_55] : memref<72x2048xbf16, #tpu.memory_space<vmem>>, vector<8x2048xbf16>
    tpu.vector_store %arg9[%c64_54, %c0_55], %111 {strides = array<i32>} : memref<72x2048xbf16, #tpu.memory_space<vmem>>, vector<8x2048xbf16>,
    %c1_56 = arith.constant 1 : index
    %c0_57 = arith.constant 0 : index
    %c0_58 = arith.constant 0 : index
    %113 = vector.load %arg2[%c1_56, %c0_57, %c0_58] : memref<3x8x72xbf16, #tpu.memory_space<vmem>>, vector<1x8x72xbf16>
    %114 = vector.shape_cast %113 : vector<1x8x72xbf16> to vector<8x72xbf16>
    %c0_59 = arith.constant 0 : index
    %c0_60 = arith.constant 0 : index
    %115 = vector.load %arg9[%c0_59, %c0_60] : memref<72x2048xbf16, #tpu.memory_space<vmem>>, vector<72x2048xbf16>
    %cst_61 = arith.constant dense<0.000000e+00> : vector<8x2048xf32>
    %116 = tpu.matmul %114, %115, %cst_61 {dimension_numbers = #tpu.dot_dimension_numbers<[1], [0], [0], [1], [0, 0, 1, 1], [], []>} : vector<8x72xbf16>, vector<72x2048xbf16>, vector<8x2048xf32> -> vector<8x2048xf32>
    %117 = arith.addf %59, %116 : vector<8x2048xf32>
    %c1809_i32 = arith.constant 1809 : i32
    %118 = tpu.dynamic_rotate %1 by %c1809_i32 dim 1 : vector<8x2048xf32>, i32 -> vector<8x2048xf32>
    %c18 = arith.constant 18 : index
    %c0_62 = arith.constant 0 : index
    %119 = vector.load %arg4[%c18, %c0_62] : memref<27x2048xf32, #tpu.memory_space<vmem>>, vector<1x2048xf32>
    %120 = vector.broadcast %119 : vector<1x2048xf32> to vector<8x2048xf32>
    %121 = arith.mulf %118, %120 : vector<8x2048xf32>
    %122 = arith.truncf %121 : vector<8x2048xf32> to vector<8x2048xbf16>
    %c0_63 = arith.constant 0 : index
    %c0_64 = arith.constant 0 : index
    %123 = vector.load %arg8[%c0_63, %c0_64] : memref<72x2048xbf16, #tpu.memory_space<vmem>>, vector<8x2048xbf16>
    tpu.vector_store %arg8[%c0_63, %c0_64], %122 {strides = array<i32>} : memref<72x2048xbf16, #tpu.memory_space<vmem>>, vector<8x2048xbf16>,
    %c1808_i32 = arith.constant 1808 : i32
    %124 = tpu.dynamic_rotate %1 by %c1808_i32 dim 1 : vector<8x2048xf32>, i32 -> vector<8x2048xf32>
    %c19 = arith.constant 19 : index
    %c0_65 = arith.constant 0 : index
    %125 = vector.load %arg4[%c19, %c0_65] : memref<27x2048xf32, #tpu.memory_space<vmem>>, vector<1x2048xf32>
    %126 = vector.broadcast %125 : vector<1x2048xf32> to vector<8x2048xf32>
    %127 = arith.mulf %124, %126 : vector<8x2048xf32>
    %128 = arith.truncf %127 : vector<8x2048xf32> to vector<8x2048xbf16>
    %c8_66 = arith.constant 8 : index
    %c0_67 = arith.constant 0 : index
    %129 = vector.load %arg8[%c8_66, %c0_67] : memref<72x2048xbf16, #tpu.memory_space<vmem>>, vector<8x2048xbf16>
    tpu.vector_store %arg8[%c8_66, %c0_67], %128 {strides = array<i32>} : memref<72x2048xbf16, #tpu.memory_space<vmem>>, vector<8x2048xbf16>,
    %c1807_i32 = arith.constant 1807 : i32
    %130 = tpu.dynamic_rotate %1 by %c1807_i32 dim 1 : vector<8x2048xf32>, i32 -> vector<8x2048xf32>
    %c20 = arith.constant 20 : index
    %c0_68 = arith.constant 0 : index
    %131 = vector.load %arg4[%c20, %c0_68] : memref<27x2048xf32, #tpu.memory_space<vmem>>, vector<1x2048xf32>
    %132 = vector.broadcast %131 : vector<1x2048xf32> to vector<8x2048xf32>
    %133 = arith.mulf %130, %132 : vector<8x2048xf32>
    %134 = arith.truncf %133 : vector<8x2048xf32> to vector<8x2048xbf16>
    %c16_69 = arith.constant 16 : index
    %c0_70 = arith.constant 0 : index
    %135 = vector.load %arg8[%c16_69, %c0_70] : memref<72x2048xbf16, #tpu.memory_space<vmem>>, vector<8x2048xbf16>
    tpu.vector_store %arg8[%c16_69, %c0_70], %134 {strides = array<i32>} : memref<72x2048xbf16, #tpu.memory_space<vmem>>, vector<8x2048xbf16>,
    %c1793_i32 = arith.constant 1793 : i32
    %136 = tpu.dynamic_rotate %1 by %c1793_i32 dim 1 : vector<8x2048xf32>, i32 -> vector<8x2048xf32>
    %c21 = arith.constant 21 : index
    %c0_71 = arith.constant 0 : index
    %137 = vector.load %arg4[%c21, %c0_71] : memref<27x2048xf32, #tpu.memory_space<vmem>>, vector<1x2048xf32>
    %138 = vector.broadcast %137 : vector<1x2048xf32> to vector<8x2048xf32>
    %139 = arith.mulf %136, %138 : vector<8x2048xf32>
    %140 = arith.truncf %139 : vector<8x2048xf32> to vector<8x2048xbf16>
    %c24_72 = arith.constant 24 : index
    %c0_73 = arith.constant 0 : index
    %141 = vector.load %arg8[%c24_72, %c0_73] : memref<72x2048xbf16, #tpu.memory_space<vmem>>, vector<8x2048xbf16>
    tpu.vector_store %arg8[%c24_72, %c0_73], %140 {strides = array<i32>} : memref<72x2048xbf16, #tpu.memory_space<vmem>>, vector<8x2048xbf16>,
    %c1792_i32 = arith.constant 1792 : i32
    %142 = tpu.dynamic_rotate %1 by %c1792_i32 dim 1 : vector<8x2048xf32>, i32 -> vector<8x2048xf32>
    %c22 = arith.constant 22 : index
    %c0_74 = arith.constant 0 : index
    %143 = vector.load %arg4[%c22, %c0_74] : memref<27x2048xf32, #tpu.memory_space<vmem>>, vector<1x2048xf32>
    %144 = vector.broadcast %143 : vector<1x2048xf32> to vector<8x2048xf32>
    %145 = arith.mulf %142, %144 : vector<8x2048xf32>
    %146 = arith.truncf %145 : vector<8x2048xf32> to vector<8x2048xbf16>
    %c32_75 = arith.constant 32 : index
    %c0_76 = arith.constant 0 : index
    %147 = vector.load %arg8[%c32_75, %c0_76] : memref<72x2048xbf16, #tpu.memory_space<vmem>>, vector<8x2048xbf16>
    tpu.vector_store %arg8[%c32_75, %c0_76], %146 {strides = array<i32>} : memref<72x2048xbf16, #tpu.memory_space<vmem>>, vector<8x2048xbf16>,
    %c1791_i32 = arith.constant 1791 : i32
    %148 = tpu.dynamic_rotate %1 by %c1791_i32 dim 1 : vector<8x2048xf32>, i32 -> vector<8x2048xf32>
    %c23 = arith.constant 23 : index
    %c0_77 = arith.constant 0 : index
    %149 = vector.load %arg4[%c23, %c0_77] : memref<27x2048xf32, #tpu.memory_space<vmem>>, vector<1x2048xf32>
    %150 = vector.broadcast %149 : vector<1x2048xf32> to vector<8x2048xf32>
    %151 = arith.mulf %148, %150 : vector<8x2048xf32>
    %152 = arith.truncf %151 : vector<8x2048xf32> to vector<8x2048xbf16>
    %c40_78 = arith.constant 40 : index
    %c0_79 = arith.constant 0 : index
    %153 = vector.load %arg8[%c40_78, %c0_79] : memref<72x2048xbf16, #tpu.memory_space<vmem>>, vector<8x2048xbf16>
    tpu.vector_store %arg8[%c40_78, %c0_79], %152 {strides = array<i32>} : memref<72x2048xbf16, #tpu.memory_space<vmem>>, vector<8x2048xbf16>,
    %c1777_i32 = arith.constant 1777 : i32
    %154 = tpu.dynamic_rotate %1 by %c1777_i32 dim 1 : vector<8x2048xf32>, i32 -> vector<8x2048xf32>
    %c24_80 = arith.constant 24 : index
    %c0_81 = arith.constant 0 : index
    %155 = vector.load %arg4[%c24_80, %c0_81] : memref<27x2048xf32, #tpu.memory_space<vmem>>, vector<1x2048xf32>
    %156 = vector.broadcast %155 : vector<1x2048xf32> to vector<8x2048xf32>
    %157 = arith.mulf %154, %156 : vector<8x2048xf32>
    %158 = arith.truncf %157 : vector<8x2048xf32> to vector<8x2048xbf16>
    %c48_82 = arith.constant 48 : index
    %c0_83 = arith.constant 0 : index
    %159 = vector.load %arg8[%c48_82, %c0_83] : memref<72x2048xbf16, #tpu.memory_space<vmem>>, vector<8x2048xbf16>
    tpu.vector_store %arg8[%c48_82, %c0_83], %158 {strides = array<i32>} : memref<72x2048xbf16, #tpu.memory_space<vmem>>, vector<8x2048xbf16>,
    %c1776_i32 = arith.constant 1776 : i32
    %160 = tpu.dynamic_rotate %1 by %c1776_i32 dim 1 : vector<8x2048xf32>, i32 -> vector<8x2048xf32>
    %c25 = arith.constant 25 : index
    %c0_84 = arith.constant 0 : index
    %161 = vector.load %arg4[%c25, %c0_84] : memref<27x2048xf32, #tpu.memory_space<vmem>>, vector<1x2048xf32>
    %162 = vector.broadcast %161 : vector<1x2048xf32> to vector<8x2048xf32>
    %163 = arith.mulf %160, %162 : vector<8x2048xf32>
    %164 = arith.truncf %163 : vector<8x2048xf32> to vector<8x2048xbf16>
    %c56_85 = arith.constant 56 : index
    %c0_86 = arith.constant 0 : index
    %165 = vector.load %arg8[%c56_85, %c0_86] : memref<72x2048xbf16, #tpu.memory_space<vmem>>, vector<8x2048xbf16>
    tpu.vector_store %arg8[%c56_85, %c0_86], %164 {strides = array<i32>} : memref<72x2048xbf16, #tpu.memory_space<vmem>>, vector<8x2048xbf16>,
    %c1775_i32 = arith.constant 1775 : i32
    %166 = tpu.dynamic_rotate %1 by %c1775_i32 dim 1 : vector<8x2048xf32>, i32 -> vector<8x2048xf32>
    %c26 = arith.constant 26 : index
    %c0_87 = arith.constant 0 : index
    %167 = vector.load %arg4[%c26, %c0_87] : memref<27x2048xf32, #tpu.memory_space<vmem>>, vector<1x2048xf32>
    %168 = vector.broadcast %167 : vector<1x2048xf32> to vector<8x2048xf32>
    %169 = arith.mulf %166, %168 : vector<8x2048xf32>
    %170 = arith.truncf %169 : vector<8x2048xf32> to vector<8x2048xbf16>
    %c64_88 = arith.constant 64 : index
    %c0_89 = arith.constant 0 : index
    %171 = vector.load %arg8[%c64_88, %c0_89] : memref<72x2048xbf16, #tpu.memory_space<vmem>>, vector<8x2048xbf16>
    tpu.vector_store %arg8[%c64_88, %c0_89], %170 {strides = array<i32>} : memref<72x2048xbf16, #tpu.memory_space<vmem>>, vector<8x2048xbf16>,
    %c2_90 = arith.constant 2 : index
    %c0_91 = arith.constant 0 : index
    %c0_92 = arith.constant 0 : index
    %172 = vector.load %arg2[%c2_90, %c0_91, %c0_92] : memref<3x8x72xbf16, #tpu.memory_space<vmem>>, vector<1x8x72xbf16>
    %173 = vector.shape_cast %172 : vector<1x8x72xbf16> to vector<8x72xbf16>
    %c0_93 = arith.constant 0 : index
    %c0_94 = arith.constant 0 : index
    %174 = vector.load %arg8[%c0_93, %c0_94] : memref<72x2048xbf16, #tpu.memory_space<vmem>>, vector<72x2048xbf16>
    %cst_95 = arith.constant dense<0.000000e+00> : vector<8x2048xf32>
    %175 = tpu.matmul %173, %174, %cst_95 {dimension_numbers = #tpu.dot_dimension_numbers<[1], [0], [0], [1], [0, 0, 1, 1], [], []>} : vector<8x72xbf16>, vector<72x2048xbf16>, vector<8x2048xf32> -> vector<8x2048xf32>
    %176 = arith.addf %117, %175 : vector<8x2048xf32>
    %c0_96 = arith.constant 0 : index
    %c0_97 = arith.constant 0 : index
    %177 = vector.load %arg3[%c0_96, %c0_97] : memref<8x1xf32, #tpu.memory_space<vmem>>, vector<8x1xf32>
    %178 = vector.broadcast %177 : vector<8x1xf32> to vector<8x2048xf32>
    %179 = arith.addf %176, %178 : vector<8x2048xf32>
    %cst_98 = arith.constant dense<0.000000e+00> : vector<8xf32>
    %180 = vector.multi_reduction <add>, %179, %cst_98 [1] : vector<8x2048xf32> to vector<8xf32>
    %181 = vector.shape_cast %180 : vector<8xf32> to vector<8x1xf32>
    %c0_99 = arith.constant 0 : index
    %c0_100 = arith.constant 0 : index
    %c0_101 = arith.constant 0 : index
    %182 = vector.load %arg6[%c0_99, %c0_100, %c0_101] : memref<1x8x1xf32, #tpu.memory_space<vmem>>, vector<1x8x1xf32>
    %183 = vector.shape_cast %182 : vector<1x8x1xf32> to vector<8x1xf32>
    %184 = vector.shape_cast %181 : vector<8x1xf32> to vector<1x8x1xf32>
    tpu.vector_store %arg6[%c0_99, %c0_100, %c0_101], %184 {strides = array<i32>} : memref<1x8x1xf32, #tpu.memory_space<vmem>>, vector<1x8x1xf32>,
    %185 = arith.mulf %179, %179 : vector<8x2048xf32>
    %cst_102 = arith.constant dense<0.000000e+00> : vector<8xf32>
    %186 = vector.multi_reduction <add>, %185, %cst_102 [1] : vector<8x2048xf32> to vector<8xf32>
    %187 = vector.shape_cast %186 : vector<8xf32> to vector<8x1xf32>
    %c0_103 = arith.constant 0 : index
    %c0_104 = arith.constant 0 : index
    %c0_105 = arith.constant 0 : index
    %188 = vector.load %arg7[%c0_103, %c0_104, %c0_105] : memref<1x8x1xf32, #tpu.memory_space<vmem>>, vector<1x8x1xf32>
    %189 = vector.shape_cast %188 : vector<1x8x1xf32> to vector<8x1xf32>
    %190 = vector.shape_cast %187 : vector<8x1xf32> to vector<1x8x1xf32>
    tpu.vector_store %arg7[%c0_103, %c0_104, %c0_105], %190 {strides = array<i32>} : memref<1x8x1xf32, #tpu.memory_space<vmem>>, vector<1x8x1xf32>,
    %c0_106 = arith.constant 0 : index
    %c0_107 = arith.constant 0 : index
    %c0_108 = arith.constant 0 : index
    %191 = vector.load %arg5[%c0_106, %c0_107, %c0_108] : memref<1x8x2048xf32, #tpu.memory_space<vmem>>, vector<1x8x2048xf32>
    %192 = vector.shape_cast %191 : vector<1x8x2048xf32> to vector<8x2048xf32>
    %193 = vector.shape_cast %179 : vector<8x2048xf32> to vector<1x8x2048xf32>
    tpu.vector_store %arg5[%c0_106, %c0_107, %c0_108], %193 {strides = array<i32>} : memref<1x8x2048xf32, #tpu.memory_space<vmem>>, vector<1x8x2048xf32>,
    return
  }
  func.func @transform_0(%arg0: i32) -> (i32, i32, i32) {
    %c0_i32 = arith.constant 0 : i32
    %c0_i32_0 = arith.constant 0 : i32
    %c0_i32_1 = arith.constant 0 : i32
    return %arg0, %c0_i32, %c0_i32_0 : i32, i32, i32
  }
  func.func @transform_1(%arg0: i32) -> (i32, i32, i32) {
    %c0_i32 = arith.constant 0 : i32
    %c0_i32_0 = arith.constant 0 : i32
    %c0_i32_1 = arith.constant 0 : i32
    %c0_i32_2 = arith.constant 0 : i32
    return %c0_i32, %c0_i32_0, %c0_i32_1 : i32, i32, i32
  }
  func.func @transform_2(%arg0: i32) -> (i32, i32) {
    %c0_i32 = arith.constant 0 : i32
    %c0_i32_0 = arith.constant 0 : i32
    %c0_i32_1 = arith.constant 0 : i32
    return %c0_i32, %c0_i32_0 : i32, i32
  }
  func.func @transform_3(%arg0: i32) -> (i32, i32) {
    %c0_i32 = arith.constant 0 : i32
    %c0_i32_0 = arith.constant 0 : i32
    %c0_i32_1 = arith.constant 0 : i32
    return %c0_i32, %c0_i32_0 : i32, i32
  }
  func.func @transform_4(%arg0: i32) -> (i32, i32, i32) {
    %c0_i32 = arith.constant 0 : i32
    %c0_i32_0 = arith.constant 0 : i32
    %c0_i32_1 = arith.constant 0 : i32
    return %arg0, %c0_i32, %c0_i32_0 : i32, i32, i32
  }
  func.func @transform_5(%arg0: i32) -> (i32, i32, i32) {
    %c0_i32 = arith.constant 0 : i32
    %c0_i32_0 = arith.constant 0 : i32
    %c0_i32_1 = arith.constant 0 : i32
    return %arg0, %c0_i32, %c0_i32_0 : i32, i32, i32
  }
  func.func @transform_6(%arg0: i32) -> (i32, i32, i32) {
    %c0_i32 = arith.constant 0 : i32
    %c0_i32_0 = arith.constant 0 : i32
    %c0_i32_1 = arith.constant 0 : i32
    return %arg0, %c0_i32, %c0_i32_0 : i32, i32, i32
  }
}

</mosaic_0001>

<llo_original>
// kernel: tpu_custom_call.1
$region0: #{tpu_custom_call.1}
  #allocation0 [shape = 'u32[]', space=smem, size = 0x4, offset = 0x4, fixed_abs, tag = 'smem constant byte address 0x4 - core index']
  #allocation1 [shape = 'u32[144,128]{1,0:T(1,128)}', space=vmem, size = 0x12000, scoped, tag = 'internal scratch']
  #allocation2 [shape = 'bf16[72,2048]{1,0:T(8,128)(2,1)}', space=vmem, size = 0x48000, scoped, tag = 'scratch operand']
  #allocation3 [shape = 'bf16[72,2048]{1,0:T(8,128)(2,1)}', space=vmem, size = 0x48000, scoped, tag = 'scratch operand']
  %s0 = inlined_call_operand.hbm [shape: f32[2,8,2048], index: 0, kind: input, shape index: {}]
  %s1 = inlined_call_operand.vmem [shape: bf16[3,8,72], index: 1, kind: input, shape index: {}]
  %s2 = inlined_call_operand.vmem [shape: f32[8,1], index: 2, kind: input, shape index: {}]
  %s3 = inlined_call_operand.hbm [shape: f32[27,2048], index: 3, kind: input, shape index: {}]
  %s4 = inlined_call_operand.hbm [shape: f32[2,8,2048], index: 4, kind: output, shape index: {0}]
  %s5 = inlined_call_operand.vmem [shape: f32[2,8,1], index: 5, kind: output, shape index: {1}]
  %s6 = inlined_call_operand.vmem [shape: f32[2,8,1], index: 6, kind: output, shape index: {2}]
  %7 = xla_tuple %s4, %s5, %s6
  %s8 = sld [smem:[#allocation0]]
  $region73: #{tpu_custom_call.1} parent=0
    _
  %s10 = ssub.s32 1, %s8
  %s11 = scalar_select 0, %s10, %s8
  $region1: #{tpu_custom_call.1} parent=0
    #allocation4 [shape = 'u8[131072]{0}', space=vmem, size = 0x20000, scoped, tag = 'input window, operand 0']
    #allocation5 [shape = 's32[2]{0}', space=sflag, size = 0x8, scoped, tag = 'scoped memory for tpu_custom_call.1']
    #allocation6 [shape = 's32[2]{0}', space=sflag, size = 0x8, scoped, tag = 'scoped memory for tpu_custom_call.1']
    #allocation7 [shape = 'u8[262144]{0}', space=vmem, size = 0x40000, scoped, tag = 'input window, operand 3, single buffered']
    #allocation8 [shape = 's32[1]{0}', space=sflag, size = 0x4, scoped, tag = 'scoped memory for tpu_custom_call.1']
    #allocation9 [shape = 'u8[131072]{0}', space=vmem, size = 0x20000, scoped, tag = 'output window, operand 0']
    %12 = vsyncpa [#allocation5], 0
    %s13 = scalar_lea.sflag [#allocation5], 1
    %14 = vsyncpa %s13, 0
    %15 = vsyncpa [#allocation8], 0
    %16 = vsyncpa [#allocation6], 0
    %s17 = scalar_lea.sflag [#allocation6], 1
    %18 = vsyncpa %s17, 0
    loop: start=0, step=1, limit=4
    $region2: #{tpu_custom_call.1} parent=1 // loop_pre_header
      _
    $region3: #{tpu_custom_call.1} parent=1 // loop_header
      %s20 = sphi 0, %s24
      %p21 = scmp.ge.s32.totalorder %s20, 4
      %s30 = sphi 0, %s32
      %s33 = sphi 0, %s30
      %s34 = sphi 0, %s33
      %s50 = sphi 0, %s34
      %s54 = sphi 0, %s54
      %s56 = sphi 0, %s54
      %s57 = sphi 0, %s56
      %s71 = sphi 0, %s57
      %s75 = sphi 0, %s75
      %s77 = sphi 0, %s75
      %s78 = sphi 0, %s77
      %s92 = sphi 0, %s78
      %s96 = sphi 0, %s96
      %s98 = sphi 0, %s96
      %s99 = sphi 0, %s98
      %s113 = sphi 0, %s99
      %s119 = sphi 0, %s121
      %s122 = sphi 0, %s119
      %s123 = sphi 0, %s122
      %s139 = sphi 0, %s123
      %s145 = sphi 0, %s147
      %s148 = sphi 0, %s145
      %s149 = sphi 0, %s148
      %s165 = sphi 0, %s149
      %s171 = sphi 0, %s173
      %s174 = sphi 0, %s171
      %s175 = sphi 0, %s174
      %s191 = sphi 0, %s175
    $region4: #{tpu_custom_call.1} parent=1 // loop_header_branch
      %23 = sbr.rel (%p21) target = $region8
    $region5: #{tpu_custom_call.1} parent=1 // loop_body
      %s25 = ssub.s32 %s20, 1
      %s26 = ssub.s32 %s20, 2
      %s27 = sadd.s32 %s20, 1
      %s28 = ssub.s32 %s20, %s27
      %p29 = scmp.eq.s32.totalorder %s28, 0
      %s31 = sadd.s32 %s30, 1
      %s32 = scalar_select %p29, %s30, %s31
      %p35 = pneg %p29
      %p36 = scmp.eq.s32.totalorder %s20, 1
      %p37 = por %p35, %p36
      %p38 = scmp.ne.s32.totalorder %s30, %s33
      %p39 = scmp.eq.s32.totalorder %s20, 0
      %p40 = por %p38, %p39
      %p41 = scmp.ne.s32.totalorder %s30, %s33
      %p42 = scmp.eq.s32.totalorder %s25, 1
      %p43 = por %p41, %p42
      %p44 = scmp.ne.s32.totalorder %s33, %s34
      %p45 = scmp.eq.s32.totalorder %s25, 0
      %p46 = por %p44, %p45
      %p47 = scmp.ne.s32.totalorder %s33, %s34
      %p48 = scmp.eq.s32.totalorder %s26, 1
      %p49 = por %p47, %p48
      %p51 = scmp.ne.s32.totalorder %s34, %s50
      %p52 = scmp.eq.s32.totalorder %s26, 0
      %p53 = por %p51, %p52
      %s55 = sadd.s32 %s54, 1
      %p58 = scmp.eq.s32.totalorder %s20, 1
      %p59 = scmp.ne.s32.totalorder %s54, %s56
      %p60 = scmp.eq.s32.totalorder %s20, 0
      %p61 = por %p59, %p60
      %p62 = scmp.ne.s32.totalorder %s54, %s56
      %p63 = scmp.eq.s32.totalorder %s25, 1
      %p64 = por %p62, %p63
      %p65 = scmp.ne.s32.totalorder %s56, %s57
      %p66 = scmp.eq.s32.totalorder %s25, 0
      %p67 = por %p65, %p66
      %p68 = scmp.ne.s32.totalorder %s56, %s57
      %p69 = scmp.eq.s32.totalorder %s26, 1
      %p70 = por %p68, %p69
      %p72 = scmp.ne.s32.totalorder %s57, %s71
      %p73 = scmp.eq.s32.totalorder %s26, 0
      %p74 = por %p72, %p73
      %s76 = sadd.s32 %s75, 1
      %p79 = scmp.eq.s32.totalorder %s20, 1
      %p80 = scmp.ne.s32.totalorder %s75, %s77
      %p81 = scmp.eq.s32.totalorder %s20, 0
      %p82 = por %p80, %p81
      %p83 = scmp.ne.s32.totalorder %s75, %s77
      %p84 = scmp.eq.s32.totalorder %s25, 1
      %p85 = por %p83, %p84
      %p86 = scmp.ne.s32.totalorder %s77, %s78
      %p87 = scmp.eq.s32.totalorder %s25, 0
      %p88 = por %p86, %p87
      %p89 = scmp.ne.s32.totalorder %s77, %s78
      %p90 = scmp.eq.s32.totalorder %s26, 1
      %p91 = por %p89, %p90
      %p93 = scmp.ne.s32.totalorder %s78, %s92
      %p94 = scmp.eq.s32.totalorder %s26, 0
      %p95 = por %p93, %p94
      %s97 = sadd.s32 %s96, 1
      %p100 = scmp.eq.s32.totalorder %s20, 1
      %p101 = scmp.ne.s32.totalorder %s96, %s98
      %p102 = scmp.eq.s32.totalorder %s20, 0
      %p103 = por %p101, %p102
      %p104 = scmp.ne.s32.totalorder %s96, %s98
      %p105 = scmp.eq.s32.totalorder %s25, 1
      %p106 = por %p104, %p105
      %p107 = scmp.ne.s32.totalorder %s98, %s99
      %p108 = scmp.eq.s32.totalorder %s25, 0
      %p109 = por %p107, %p108
      %p110 = scmp.ne.s32.totalorder %s98, %s99
      %p111 = scmp.eq.s32.totalorder %s26, 1
      %p112 = por %p110, %p111
      %p114 = scmp.ne.s32.totalorder %s99, %s113
      %p115 = scmp.eq.s32.totalorder %s26, 0
      %p116 = por %p114, %p115
      %s117 = ssub.s32 %s20, %s27
      %p118 = scmp.eq.s32.totalorder %s117, 0
      %s120 = sadd.s32 %s119, 1
      %s121 = scalar_select %p118, %s119, %s120
      %p124 = pneg %p118
      %p125 = scmp.eq.s32.totalorder %s20, 1
      %p126 = por %p124, %p125
      %p127 = scmp.ne.s32.totalorder %s119, %s122
      %p128 = scmp.eq.s32.totalorder %s20, 0
      %p129 = por %p127, %p128
      %p130 = scmp.ne.s32.totalorder %s119, %s122
      %p131 = scmp.eq.s32.totalorder %s25, 1
      %p132 = por %p130, %p131
      %p133 = scmp.ne.s32.totalorder %s122, %s123
      %p134 = scmp.eq.s32.totalorder %s25, 0
      %p135 = por %p133, %p134
      %p136 = scmp.ne.s32.totalorder %s122, %s123
      %p137 = scmp.eq.s32.totalorder %s26, 1
      %p138 = por %p136, %p137
      %p140 = scmp.ne.s32.totalorder %s123, %s139
      %p141 = scmp.eq.s32.totalorder %s26, 0
      %p142 = por %p140, %p141
      %s143 = ssub.s32 %s20, %s27
      %p144 = scmp.eq.s32.totalorder %s143, 0
      %s146 = sadd.s32 %s145, 1
      %s147 = scalar_select %p144, %s145, %s146
      %p150 = pneg %p144
      %p151 = scmp.eq.s32.totalorder %s20, 1
      %p152 = por %p150, %p151
      %p153 = scmp.ne.s32.totalorder %s145, %s148
      %p154 = scmp.eq.s32.totalorder %s20, 0
      %p155 = por %p153, %p154
      %p156 = scmp.ne.s32.totalorder %s145, %s148
      %p157 = scmp.eq.s32.totalorder %s25, 1
      %p158 = por %p156, %p157
      %p159 = scmp.ne.s32.totalorder %s148, %s149
      %p160 = scmp.eq.s32.totalorder %s25, 0
      %p161 = por %p159, %p160
      %p162 = scmp.ne.s32.totalorder %s148, %s149
      %p163 = scmp.eq.s32.totalorder %s26, 1
      %p164 = por %p162, %p163
      %p166 = scmp.ne.s32.totalorder %s149, %s165
      %p167 = scmp.eq.s32.totalorder %s26, 0
      %p168 = por %p166, %p167
      %s169 = ssub.s32 %s20, %s27
      %p170 = scmp.eq.s32.totalorder %s169, 0
      %s172 = sadd.s32 %s171, 1
      %s173 = scalar_select %p170, %s171, %s172
      %p176 = pneg %p170
      %p177 = scmp.eq.s32.totalorder %s20, 1
      %p178 = por %p176, %p177
      %p179 = scmp.ne.s32.totalorder %s171, %s174
      %p180 = scmp.eq.s32.totalorder %s20, 0
      %p181 = por %p179, %p180
      %p182 = scmp.ne.s32.totalorder %s171, %s174
      %p183 = scmp.eq.s32.totalorder %s25, 1
      %p184 = por %p182, %p183
      %p185 = scmp.ne.s32.totalorder %s174, %s175
      %p186 = scmp.eq.s32.totalorder %s25, 0
      %p187 = por %p185, %p186
      %p188 = scmp.ne.s32.totalorder %s174, %s175
      %p189 = scmp.eq.s32.totalorder %s26, 1
      %p190 = por %p188, %p189
      %p192 = scmp.ne.s32.totalorder %s175, %s191
      %p193 = scmp.eq.s32.totalorder %s26, 0
      %p194 = por %p192, %p193
      %p195 = scmp.le.s32.totalorder 1, %s20
      %p196 = scmp.lt.s32.totalorder %s20, 3
      %p197 = pnand %p195, %p196
      %p198 = pneg %p197
      // Predicated region
      $region9: #{tpu_custom_call.1} parent=5 // pred_check
        _
      $region10: #{tpu_custom_call.1} parent=5 // pred_check_branch
        %200 = sbr.rel (%p197) target = $region12
      $region11: #{tpu_custom_call.1} parent=5 // pred_region
        %s201 = ssub.s32 %s20, 1
        // Predicated region
        $region13: #{tpu_custom_call.1} parent=11 // pred_check
          %p202 = pneg %p67
        $region14: #{tpu_custom_call.1} parent=11 // pred_check_branch
          %204 = sbr.rel (%p202) target = $region16
        $region15: #{tpu_custom_call.1} parent=11 // pred_region
          _
        $region16: #{tpu_custom_call.1} parent=11 // pred_fallthru
          _
        // Predicated region
        $region17: #{tpu_custom_call.1} parent=11 // pred_check
          %p205 = pneg %p88
        $region18: #{tpu_custom_call.1} parent=11 // pred_check_branch
          %207 = sbr.rel (%p205) target = $region20
        $region19: #{tpu_custom_call.1} parent=11 // pred_region
          _
        $region20: #{tpu_custom_call.1} parent=11 // pred_fallthru
          _
        // Predicated region
        $region21: #{tpu_custom_call.1} parent=11 // pred_check
          %p208 = pneg %p109
        $region22: #{tpu_custom_call.1} parent=11 // pred_check_branch
          %210 = sbr.rel (%p208) target = $region24
        $region23: #{tpu_custom_call.1} parent=11 // pred_region
          %s212 = ssub.s32 8192, 8192
          %213 = vsyncadd [#allocation8], %s212
          %s214 = sshll.u32 [#allocation7], 4
          %s215 = int_to_ptr.vmem [resolvable:$true] %s214
          %220 = dma.hbm_to_vmem [thread:$0]  %s3, 8192, %s215, [#allocation8], 2048, 2048, 128
        $region24: #{tpu_custom_call.1} parent=11 // pred_fallthru
          _
      $region12: #{tpu_custom_call.1} parent=5 // pred_fallthru
        _
      %p221 = scmp.lt.s32.totalorder %s20, 2
      // Predicated region
      $region25: #{tpu_custom_call.1} parent=5 // pred_check
        %p222 = pneg %p221
      $region26: #{tpu_custom_call.1} parent=5 // pred_check_branch
        %224 = sbr.rel (%p222) target = $region28
      $region27: #{tpu_custom_call.1} parent=5 // pred_region
        // Predicated region
        $region29: #{tpu_custom_call.1} parent=27 // pred_check
          %p225 = pneg %p40
        $region30: #{tpu_custom_call.1} parent=27 // pred_check_branch
          %227 = sbr.rel (%p225) target = $region32
        $region31: #{tpu_custom_call.1} parent=27 // pred_region
          %s228 = sand.u32 %s30, 1
          %s229 = scalar_lea.sflag [#allocation5], %s228
          %s230 = sand.u32 %s30, 1
          %s231 = smul.addr %s230, 128
          %s232 = scalar_lea.vmem [#allocation4], %s231
          %s234 = ssub.s32 2048, 2048
          %235 = vsyncadd %s229, %s234
          %s236 = smul.addr %s20, 16
          %s237 = smul.addr %s236, 128
          %s238 = scalar_lea.hbm %s0, %s237
          %s240 = sshll.u32 %s232, 4
          %s241 = int_to_ptr.vmem [resolvable:$true] %s240
          %243 = dma.hbm_to_vmem [thread:$0]  %s238, 2048, %s241, %s229
        $region32: #{tpu_custom_call.1} parent=27 // pred_fallthru
          _
      $region28: #{tpu_custom_call.1} parent=5 // pred_fallthru
        _
      %p244 = scmp.le.s32.totalorder 1, %s20
      %p245 = scmp.lt.s32.totalorder %s20, 3
      %p246 = pnand %p244, %p245
      %p247 = pneg %p246
      // Predicated region
      $region33: #{tpu_custom_call.1} parent=5 // pred_check
        _
      $region34: #{tpu_custom_call.1} parent=5 // pred_check_branch
        %249 = sbr.rel (%p246) target = $region36
      $region35: #{tpu_custom_call.1} parent=5 // pred_region
        %s250 = ssub.s32 %s20, 1
        %s251 = sand.u32 %s33, 1
        %s252 = scalar_lea.sflag [#allocation5], %s251
        %s253 = sand.u32 %s33, 1
        %s254 = smul.addr %s253, 128
        %s255 = scalar_lea.vmem [#allocation4], %s254
        // Predicated region
        $region37: #{tpu_custom_call.1} parent=35 // pred_check
          %p256 = pneg %p46
        $region38: #{tpu_custom_call.1} parent=35 // pred_check_branch
          %258 = sbr.rel (%p256) target = $region40
        $region39: #{tpu_custom_call.1} parent=35 // pred_region
          %259 = dma.done %s252, 2048
        $region40: #{tpu_custom_call.1} parent=35 // pred_fallthru
          _
        // Predicated region
        $region41: #{tpu_custom_call.1} parent=35 // pred_check
          %p260 = pneg %p109
        $region42: #{tpu_custom_call.1} parent=35 // pred_check_branch
          %262 = sbr.rel (%p260) target = $region44
        $region43: #{tpu_custom_call.1} parent=35 // pred_region
          %263 = dma.done [#allocation8], 8192
        $region44: #{tpu_custom_call.1} parent=35 // pred_fallthru
          _
        %s264 = sand.u32 %s33, 1
        %s265 = scalar_lea.sflag [#allocation5], %s264
        %s266 = sand.u32 %s33, 1
        %s267 = smul.addr %s266, 128
        %s268 = scalar_lea.vmem [#allocation4], %s267
        %p269 = pneg %p46
        %p270 = pneg %p43
        %p271 = pneg %p67
        %p272 = pneg %p64
        %p273 = pneg %p88
        %p274 = pneg %p85
        %p275 = pneg %p109
        %p276 = pneg %p106
        %p277 = pneg %p135
        %p278 = pneg %p132
        %s279 = sand.u32 %s122, 1
        %s280 = scalar_lea.sflag [#allocation6], %s279
        %s281 = sand.u32 %s122, 1
        %s282 = smul.addr %s281, 128
        %s283 = scalar_lea.vmem [#allocation9], %s282
        %p284 = pneg %p161
        %p285 = pneg %p158
        %p286 = scmp.lt.s32.totalorder %s25, 1
        %s287 = scalar_select %p286, %s25, 1
        %s288 = smul.addr %s287, 8
        %s289 = scalar_lea.vmem %s5, %s288
        %p290 = pneg %p187
        %p291 = pneg %p184
        %p292 = scmp.lt.s32.totalorder %s25, 1
        %s293 = scalar_select %p292, %s25, 1
        %s294 = smul.addr %s293, 8
        %s295 = scalar_lea.vmem %s6, %s294
        %p296 = scmp.lt.s32.totalorder %s25, 1
        %s297 = scalar_select %p296, %s25, 1
        %s298 = smul.addr %s297, 8
        %s299 = scalar_lea.vmem %s5, %s298
        %p300 = scmp.lt.s32.totalorder %s25, 1
        %s301 = scalar_select %p300, %s25, 1
        %s302 = smul.addr %s301, 8
        %s303 = scalar_lea.vmem %s6, %s302
        %v305 = vld [vmem:[%s255] sm:$0xff]
        %v306 = vld [vmem:[%s255 + $0x8] sm:$0xff]
        %v307 = vld [vmem:[%s255 + $0x10] sm:$0xff]
        %v308 = vld [vmem:[%s255 + $0x18] sm:$0xff]
        %v309 = vld [vmem:[%s255 + $0x20] sm:$0xff]
        %v310 = vld [vmem:[%s255 + $0x28] sm:$0xff]
        %v311 = vld [vmem:[%s255 + $0x30] sm:$0xff]
        %v312 = vld [vmem:[%s255 + $0x38] sm:$0xff]
        %v313 = vld [vmem:[%s255 + $0x40] sm:$0xff]
        %v314 = vld [vmem:[%s255 + $0x48] sm:$0xff]
        %v315 = vld [vmem:[%s255 + $0x50] sm:$0xff]
        %v316 = vld [vmem:[%s255 + $0x58] sm:$0xff]
        %v317 = vld [vmem:[%s255 + $0x60] sm:$0xff]
        %v318 = vld [vmem:[%s255 + $0x68] sm:$0xff]
        %v319 = vld [vmem:[%s255 + $0x70] sm:$0xff]
        %v320 = vld [vmem:[%s255 + $0x78] sm:$0xff]
        %321 = vrot.lane.b32.xlu0 %v305, 17
        %v322 = vpop.permute.xlu0 %321
        %323 = vrot.lane.b32.xlu0 %v306, 17
        %v324 = vpop.permute.xlu0 %323
        %325 = vrot.lane.b32.xlu0 %v307, 17
        %v326 = vpop.permute.xlu0 %325
        %327 = vrot.lane.b32.xlu0 %v308, 17
        %v328 = vpop.permute.xlu0 %327
        %329 = vrot.lane.b32.xlu0 %v309, 17
        %v330 = vpop.permute.xlu0 %329
        %331 = vrot.lane.b32.xlu0 %v310, 17
        %v332 = vpop.permute.xlu0 %331
        %333 = vrot.lane.b32.xlu0 %v311, 17
        %v334 = vpop.permute.xlu0 %333
        %335 = vrot.lane.b32.xlu0 %v312, 17
        %v336 = vpop.permute.xlu0 %335
        %337 = vrot.lane.b32.xlu0 %v313, 17
        %v338 = vpop.permute.xlu0 %337
        %339 = vrot.lane.b32.xlu0 %v314, 17
        %v340 = vpop.permute.xlu0 %339
        %341 = vrot.lane.b32.xlu0 %v315, 17
        %v342 = vpop.permute.xlu0 %341
        %343 = vrot.lane.b32.xlu0 %v316, 17
        %v344 = vpop.permute.xlu0 %343
        %345 = vrot.lane.b32.xlu0 %v317, 17
        %v346 = vpop.permute.xlu0 %345
        %347 = vrot.lane.b32.xlu0 %v318, 17
        %v348 = vpop.permute.xlu0 %347
        %349 = vrot.lane.b32.xlu0 %v319, 17
        %v350 = vpop.permute.xlu0 %349
        %351 = vrot.lane.b32.xlu0 %v320, 17
        %v352 = vpop.permute.xlu0 %351
        %v353 = vlaneseq
        %v354 = vand.u32 %v353, 127
        %vm355 = vcmp.lt.s32.totalorder %v354, 17
        %v356 = vsel %vm355, %v350, %v352
        %v357 = vsel %vm355, %v348, %v350
        %v358 = vsel %vm355, %v346, %v348
        %v359 = vsel %vm355, %v344, %v346
        %v360 = vsel %vm355, %v342, %v344
        %v361 = vsel %vm355, %v340, %v342
        %v362 = vsel %vm355, %v338, %v340
        %v363 = vsel %vm355, %v336, %v338
        %v364 = vsel %vm355, %v334, %v336
        %v365 = vsel %vm355, %v332, %v334
        %v366 = vsel %vm355, %v330, %v332
        %v367 = vsel %vm355, %v328, %v330
        %v368 = vsel %vm355, %v326, %v328
        %v369 = vsel %vm355, %v324, %v326
        %v370 = vsel %vm355, %v322, %v324
        %v371 = vsel %vm355, %v352, %v322
        %v372 = vld [vmem:[#allocation7] ss:$8 sm:$0xf]
        %v373 = vld [vmem:[#allocation7] ss:$8 sm:$0xf0]
        %v374 = vor.u32 %v372, %v373
        %s375 = scalar_lea.vmem [#allocation7], 64
        %v376 = vld [vmem:[%s375] ss:$8 sm:$0xf]
        %v377 = vld [vmem:[%s375] ss:$8 sm:$0xf0]
        %v378 = vor.u32 %v376, %v377
        %v381 = vlaneseq
        %v382 = vshrl.u32 %v381, 7
        %v383 = vsub.s32 0, %v382
        %v384 = vrot.slane %v374, %v383
        %v385 = vlaneseq
        %v386 = vshrl.u32 %v385, 7
        %v387 = vsub.s32 1, %v386
        %v388 = vrot.slane %v374, %v387
        %v389 = vlaneseq
        %v390 = vshrl.u32 %v389, 7
        %v391 = vsub.s32 2, %v390
        %v392 = vrot.slane %v374, %v391
        %v393 = vlaneseq
        %v394 = vshrl.u32 %v393, 7
        %v395 = vsub.s32 3, %v394
        %v396 = vrot.slane %v374, %v395
        %v397 = vlaneseq
        %v398 = vshrl.u32 %v397, 7
        %v399 = vsub.s32 4, %v398
        %v400 = vrot.slane %v374, %v399
        %v401 = vlaneseq
        %v402 = vshrl.u32 %v401, 7
        %v403 = vsub.s32 5, %v402
        %v404 = vrot.slane %v374, %v403
        %v405 = vlaneseq
        %v406 = vshrl.u32 %v405, 7
        %v407 = vsub.s32 6, %v406
        %v408 = vrot.slane %v374, %v407
        %v409 = vlaneseq
        %v410 = vshrl.u32 %v409, 7
        %v411 = vsub.s32 7, %v410
        %v412 = vrot.slane %v374, %v411
        %v413 = vlaneseq
        %v414 = vshrl.u32 %v413, 7
        %v415 = vsub.s32 0, %v414
        %v416 = vrot.slane %v378, %v415
        %v417 = vlaneseq
        %v418 = vshrl.u32 %v417, 7
        %v419 = vsub.s32 1, %v418
        %v420 = vrot.slane %v378, %v419
        %v421 = vlaneseq
        %v422 = vshrl.u32 %v421, 7
        %v423 = vsub.s32 2, %v422
        %v424 = vrot.slane %v378, %v423
        %v425 = vlaneseq
        %v426 = vshrl.u32 %v425, 7
        %v427 = vsub.s32 3, %v426
        %v428 = vrot.slane %v378, %v427
        %v429 = vlaneseq
        %v430 = vshrl.u32 %v429, 7
        %v431 = vsub.s32 4, %v430
        %v432 = vrot.slane %v378, %v431
        %v433 = vlaneseq
        %v434 = vshrl.u32 %v433, 7
        %v435 = vsub.s32 5, %v434
        %v436 = vrot.slane %v378, %v435
        %v437 = vlaneseq
        %v438 = vshrl.u32 %v437, 7
        %v439 = vsub.s32 6, %v438
        %v440 = vrot.slane %v378, %v439
        %v441 = vlaneseq
        %v442 = vshrl.u32 %v441, 7
        %v443 = vsub.s32 7, %v442
        %v444 = vrot.slane %v378, %v443
        %v461 = vmul.f32 %v357, %v384
        %v462 = vmul.f32 %v356, %v388
        %v463 = vmul.f32 %v371, %v392
        %v464 = vmul.f32 %v370, %v396
        %v465 = vmul.f32 %v369, %v400
        %v466 = vmul.f32 %v368, %v404
        %v467 = vmul.f32 %v367, %v408
        %v468 = vmul.f32 %v366, %v412
        %v469 = vmul.f32 %v365, %v416
        %v470 = vmul.f32 %v364, %v420
        %v471 = vmul.f32 %v363, %v424
        %v472 = vmul.f32 %v362, %v428
        %v473 = vmul.f32 %v361, %v432
        %v474 = vmul.f32 %v360, %v436
        %v475 = vmul.f32 %v359, %v440
        %v476 = vmul.f32 %v358, %v444
        %v477 = vpack.c.bf16 %v461, %v461
        %v478 = vpack.c.bf16 %v462, %v462
        %v479 = vpack.c.bf16 %v463, %v463
        %v480 = vpack.c.bf16 %v464, %v464
        %v481 = vpack.c.bf16 %v465, %v465
        %v482 = vpack.c.bf16 %v466, %v466
        %v483 = vpack.c.bf16 %v467, %v467
        %v484 = vpack.c.bf16 %v468, %v468
        %v485 = vpack.c.bf16 %v469, %v469
        %v486 = vpack.c.bf16 %v470, %v470
        %v487 = vpack.c.bf16 %v471, %v471
        %v488 = vpack.c.bf16 %v472, %v472
        %v489 = vpack.c.bf16 %v473, %v473
        %v490 = vpack.c.bf16 %v474, %v474
        %v491 = vpack.c.bf16 %v475, %v475
        %v492 = vpack.c.bf16 %v476, %v476
        %v509 = vunpack.c.l.b16 %v477
        %v510 = vunpack.c.l.b16 %v478
        %v511 = vunpack.c.l.b16 %v479
        %v512 = vunpack.c.l.b16 %v480
        %v513 = vunpack.c.l.b16 %v481
        %v514 = vunpack.c.l.b16 %v482
        %v515 = vunpack.c.l.b16 %v483
        %v516 = vunpack.c.l.b16 %v484
        %v517 = vunpack.c.l.b16 %v485
        %v518 = vunpack.c.l.b16 %v486
        %v519 = vunpack.c.l.b16 %v487
        %v520 = vunpack.c.l.b16 %v488
        %v521 = vunpack.c.l.b16 %v489
        %v522 = vunpack.c.l.b16 %v490
        %v523 = vunpack.c.l.b16 %v491
        %v524 = vunpack.c.l.b16 %v492
        %v525 = vpack.c.b16 %v510, %v509
        %v526 = vpack.c.b16 %v512, %v511
        %v527 = vpack.c.b16 %v514, %v513
        %v528 = vpack.c.b16 %v516, %v515
        %v529 = vpack.c.b16 %v518, %v517
        %v530 = vpack.c.b16 %v520, %v519
        %v531 = vpack.c.b16 %v522, %v521
        %v532 = vpack.c.b16 %v524, %v523
        %541 = vst [vmem:[#allocation2] sm:$0xff] %v525
        %542 = vst [vmem:[#allocation2 + $0x8] sm:$0xff] %v526
        %543 = vst [vmem:[#allocation2 + $0x10] sm:$0xff] %v527
        %544 = vst [vmem:[#allocation2 + $0x18] sm:$0xff] %v528
        %545 = vst [vmem:[#allocation2 + $0x20] sm:$0xff] %v529
        %546 = vst [vmem:[#allocation2 + $0x28] sm:$0xff] %v530
        %547 = vst [vmem:[#allocation2 + $0x30] sm:$0xff] %v531
        %548 = vst [vmem:[#allocation2 + $0x38] sm:$0xff] %v532
        %549 = vrot.lane.b32.xlu0 %v305, 16
        %v550 = vpop.permute.xlu0 %549
        %551 = vrot.lane.b32.xlu0 %v306, 16
        %v552 = vpop.permute.xlu0 %551
        %553 = vrot.lane.b32.xlu0 %v307, 16
        %v554 = vpop.permute.xlu0 %553
        %555 = vrot.lane.b32.xlu0 %v308, 16
        %v556 = vpop.permute.xlu0 %555
        %557 = vrot.lane.b32.xlu0 %v309, 16
        %v558 = vpop.permute.xlu0 %557
        %559 = vrot.lane.b32.xlu0 %v310, 16
        %v560 = vpop.permute.xlu0 %559
        %561 = vrot.lane.b32.xlu0 %v311, 16
        %v562 = vpop.permute.xlu0 %561
        %563 = vrot.lane.b32.xlu0 %v312, 16
        %v564 = vpop.permute.xlu0 %563
        %565 = vrot.lane.b32.xlu0 %v313, 16
        %v566 = vpop.permute.xlu0 %565
        %567 = vrot.lane.b32.xlu0 %v314, 16
        %v568 = vpop.permute.xlu0 %567
        %569 = vrot.lane.b32.xlu0 %v315, 16
        %v570 = vpop.permute.xlu0 %569
        %571 = vrot.lane.b32.xlu0 %v316, 16
        %v572 = vpop.permute.xlu0 %571
        %573 = vrot.lane.b32.xlu0 %v317, 16
        %v574 = vpop.permute.xlu0 %573
        %575 = vrot.lane.b32.xlu0 %v318, 16
        %v576 = vpop.permute.xlu0 %575
        %577 = vrot.lane.b32.xlu0 %v319, 16
        %v578 = vpop.permute.xlu0 %577
        %579 = vrot.lane.b32.xlu0 %v320, 16
        %v580 = vpop.permute.xlu0 %579
        %vm581 = vcmp.lt.s32.totalorder %v354, 16
        %v582 = vsel %vm581, %v578, %v580
        %v583 = vsel %vm581, %v576, %v578
        %v584 = vsel %vm581, %v574, %v576
        %v585 = vsel %vm581, %v572, %v574
        %v586 = vsel %vm581, %v570, %v572
        %v587 = vsel %vm581, %v568, %v570
        %v588 = vsel %vm581, %v566, %v568
        %v589 = vsel %vm581, %v564, %v566
        %v590 = vsel %vm581, %v562, %v564
        %v591 = vsel %vm581, %v560, %v562
        %v592 = vsel %vm581, %v558, %v560
        %v593 = vsel %vm581, %v556, %v558
        %v594 = vsel %vm581, %v554, %v556
        %v595 = vsel %vm581, %v552, %v554
        %v596 = vsel %vm581, %v550, %v552
        %v597 = vsel %vm581, %v580, %v550
        %s598 = scalar_lea.vmem [#allocation7], 1
        %v599 = vld [vmem:[%s598] ss:$8 sm:$0xf]
        %v600 = vld [vmem:[%s598] ss:$8 sm:$0xf0]
        %v601 = vor.u32 %v599, %v600
        %s602 = scalar_lea.vmem [#allocation7], 65
        %v603 = vld [vmem:[%s602] ss:$8 sm:$0xf]
        %v604 = vld [vmem:[%s602] ss:$8 sm:$0xf0]
        %v605 = vor.u32 %v603, %v604
        %v608 = vlaneseq
        %v609 = vshrl.u32 %v608, 7
        %v610 = vsub.s32 0, %v609
        %v611 = vrot.slane %v601, %v610
        %v612 = vlaneseq
        %v613 = vshrl.u32 %v612, 7
        %v614 = vsub.s32 1, %v613
        %v615 = vrot.slane %v601, %v614
        %v616 = vlaneseq
        %v617 = vshrl.u32 %v616, 7
        %v618 = vsub.s32 2, %v617
        %v619 = vrot.slane %v601, %v618
        %v620 = vlaneseq
        %v621 = vshrl.u32 %v620, 7
        %v622 = vsub.s32 3, %v621
        %v623 = vrot.slane %v601, %v622
        %v624 = vlaneseq
        %v625 = vshrl.u32 %v624, 7
        %v626 = vsub.s32 4, %v625
        %v627 = vrot.slane %v601, %v626
        %v628 = vlaneseq
        %v629 = vshrl.u32 %v628, 7
        %v630 = vsub.s32 5, %v629
        %v631 = vrot.slane %v601, %v630
        %v632 = vlaneseq
        %v633 = vshrl.u32 %v632, 7
        %v634 = vsub.s32 6, %v633
        %v635 = vrot.slane %v601, %v634
        %v636 = vlaneseq
        %v637 = vshrl.u32 %v636, 7
        %v638 = vsub.s32 7, %v637
        %v639 = vrot.slane %v601, %v638
        %v640 = vlaneseq
        %v641 = vshrl.u32 %v640, 7
        %v642 = vsub.s32 0, %v641
        %v643 = vrot.slane %v605, %v642
        %v644 = vlaneseq
        %v645 = vshrl.u32 %v644, 7
        %v646 = vsub.s32 1, %v645
        %v647 = vrot.slane %v605, %v646
        %v648 = vlaneseq
        %v649 = vshrl.u32 %v648, 7
        %v650 = vsub.s32 2, %v649
        %v651 = vrot.slane %v605, %v650
        %v652 = vlaneseq
        %v653 = vshrl.u32 %v652, 7
        %v654 = vsub.s32 3, %v653
        %v655 = vrot.slane %v605, %v654
        %v656 = vlaneseq
        %v657 = vshrl.u32 %v656, 7
        %v658 = vsub.s32 4, %v657
        %v659 = vrot.slane %v605, %v658
        %v660 = vlaneseq
        %v661 = vshrl.u32 %v660, 7
        %v662 = vsub.s32 5, %v661
        %v663 = vrot.slane %v605, %v662
        %v664 = vlaneseq
        %v665 = vshrl.u32 %v664, 7
        %v666 = vsub.s32 6, %v665
        %v667 = vrot.slane %v605, %v666
        %v668 = vlaneseq
        %v669 = vshrl.u32 %v668, 7
        %v670 = vsub.s32 7, %v669
        %v671 = vrot.slane %v605, %v670
        %v688 = vmul.f32 %v583, %v611
        %v689 = vmul.f32 %v582, %v615
        %v690 = vmul.f32 %v597, %v619
        %v691 = vmul.f32 %v596, %v623
        %v692 = vmul.f32 %v595, %v627
        %v693 = vmul.f32 %v594, %v631
        %v694 = vmul.f32 %v593, %v635
        %v695 = vmul.f32 %v592, %v639
        %v696 = vmul.f32 %v591, %v643
        %v697 = vmul.f32 %v590, %v647
        %v698 = vmul.f32 %v589, %v651
        %v699 = vmul.f32 %v588, %v655
        %v700 = vmul.f32 %v587, %v659
        %v701 = vmul.f32 %v586, %v663
        %v702 = vmul.f32 %v585, %v667
        %v703 = vmul.f32 %v584, %v671
        %v704 = vpack.c.bf16 %v688, %v688
        %v705 = vpack.c.bf16 %v689, %v689
        %v706 = vpack.c.bf16 %v690, %v690
        %v707 = vpack.c.bf16 %v691, %v691
        %v708 = vpack.c.bf16 %v692, %v692
        %v709 = vpack.c.bf16 %v693, %v693
        %v710 = vpack.c.bf16 %v694, %v694
        %v711 = vpack.c.bf16 %v695, %v695
        %v712 = vpack.c.bf16 %v696, %v696
        %v713 = vpack.c.bf16 %v697, %v697
        %v714 = vpack.c.bf16 %v698, %v698
        %v715 = vpack.c.bf16 %v699, %v699
        %v716 = vpack.c.bf16 %v700, %v700
        %v717 = vpack.c.bf16 %v701, %v701
        %v718 = vpack.c.bf16 %v702, %v702
        %v719 = vpack.c.bf16 %v703, %v703
        %v736 = vunpack.c.l.b16 %v704
        %v737 = vunpack.c.l.b16 %v705
        %v738 = vunpack.c.l.b16 %v706
        %v739 = vunpack.c.l.b16 %v707
        %v740 = vunpack.c.l.b16 %v708
        %v741 = vunpack.c.l.b16 %v709
        %v742 = vunpack.c.l.b16 %v710
        %v743 = vunpack.c.l.b16 %v711
        %v744 = vunpack.c.l.b16 %v712
        %v745 = vunpack.c.l.b16 %v713
        %v746 = vunpack.c.l.b16 %v714
        %v747 = vunpack.c.l.b16 %v715
        %v748 = vunpack.c.l.b16 %v716
        %v749 = vunpack.c.l.b16 %v717
        %v750 = vunpack.c.l.b16 %v718
        %v751 = vunpack.c.l.b16 %v719
        %v752 = vpack.c.b16 %v737, %v736
        %v753 = vpack.c.b16 %v739, %v738
        %v754 = vpack.c.b16 %v741, %v740
        %v755 = vpack.c.b16 %v743, %v742
        %v756 = vpack.c.b16 %v745, %v744
        %v757 = vpack.c.b16 %v747, %v746
        %v758 = vpack.c.b16 %v749, %v748
        %v759 = vpack.c.b16 %v751, %v750
        %768 = vst [vmem:[#allocation2 + $0x40] sm:$0xff] %v752
        %769 = vst [vmem:[#allocation2 + $0x48] sm:$0xff] %v753
        %770 = vst [vmem:[#allocation2 + $0x50] sm:$0xff] %v754
        %771 = vst [vmem:[#allocation2 + $0x58] sm:$0xff] %v755
        %772 = vst [vmem:[#allocation2 + $0x60] sm:$0xff] %v756
        %773 = vst [vmem:[#allocation2 + $0x68] sm:$0xff] %v757
        %774 = vst [vmem:[#allocation2 + $0x70] sm:$0xff] %v758
        %775 = vst [vmem:[#allocation2 + $0x78] sm:$0xff] %v759
        %776 = vrot.lane.b32.xlu0 %v305, 15
        %v777 = vpop.permute.xlu0 %776
        %778 = vrot.lane.b32.xlu0 %v306, 15
        %v779 = vpop.permute.xlu0 %778
        %780 = vrot.lane.b32.xlu0 %v307, 15
        %v781 = vpop.permute.xlu0 %780
        %782 = vrot.lane.b32.xlu0 %v308, 15
        %v783 = vpop.permute.xlu0 %782
        %784 = vrot.lane.b32.xlu0 %v309, 15
        %v785 = vpop.permute.xlu0 %784
        %786 = vrot.lane.b32.xlu0 %v310, 15
        %v787 = vpop.permute.xlu0 %786
        %788 = vrot.lane.b32.xlu0 %v311, 15
        %v789 = vpop.permute.xlu0 %788
        %790 = vrot.lane.b32.xlu0 %v312, 15
        %v791 = vpop.permute.xlu0 %790
        %792 = vrot.lane.b32.xlu0 %v313, 15
        %v793 = vpop.permute.xlu0 %792
        %794 = vrot.lane.b32.xlu0 %v314, 15
        %v795 = vpop.permute.xlu0 %794
        %796 = vrot.lane.b32.xlu0 %v315, 15
        %v797 = vpop.permute.xlu0 %796
        %798 = vrot.lane.b32.xlu0 %v316, 15
        %v799 = vpop.permute.xlu0 %798
        %800 = vrot.lane.b32.xlu0 %v317, 15
        %v801 = vpop.permute.xlu0 %800
        %802 = vrot.lane.b32.xlu0 %v318, 15
        %v803 = vpop.permute.xlu0 %802
        %804 = vrot.lane.b32.xlu0 %v319, 15
        %v805 = vpop.permute.xlu0 %804
        %806 = vrot.lane.b32.xlu0 %v320, 15
        %v807 = vpop.permute.xlu0 %806
        %vm808 = vcmp.lt.s32.totalorder %v354, 15
        %v809 = vsel %vm808, %v805, %v807
        %v810 = vsel %vm808, %v803, %v805
        %v811 = vsel %vm808, %v801, %v803
        %v812 = vsel %vm808, %v799, %v801
        %v813 = vsel %vm808, %v797, %v799
        %v814 = vsel %vm808, %v795, %v797
        %v815 = vsel %vm808, %v793, %v795
        %v816 = vsel %vm808, %v791, %v793
        %v817 = vsel %vm808, %v789, %v791
        %v818 = vsel %vm808, %v787, %v789
        %v819 = vsel %vm808, %v785, %v787
        %v820 = vsel %vm808, %v783, %v785
        %v821 = vsel %vm808, %v781, %v783
        %v822 = vsel %vm808, %v779, %v781
        %v823 = vsel %vm808, %v777, %v779
        %v824 = vsel %vm808, %v807, %v777
        %s825 = scalar_lea.vmem [#allocation7], 2
        %v826 = vld [vmem:[%s825] ss:$8 sm:$0xf]
        %v827 = vld [vmem:[%s825] ss:$8 sm:$0xf0]
        %v828 = vor.u32 %v826, %v827
        %s829 = scalar_lea.vmem [#allocation7], 66
        %v830 = vld [vmem:[%s829] ss:$8 sm:$0xf]
        %v831 = vld [vmem:[%s829] ss:$8 sm:$0xf0]
        %v832 = vor.u32 %v830, %v831
        %v835 = vlaneseq
        %v836 = vshrl.u32 %v835, 7
        %v837 = vsub.s32 0, %v836
        %v838 = vrot.slane %v828, %v837
        %v839 = vlaneseq
        %v840 = vshrl.u32 %v839, 7
        %v841 = vsub.s32 1, %v840
        %v842 = vrot.slane %v828, %v841
        %v843 = vlaneseq
        %v844 = vshrl.u32 %v843, 7
        %v845 = vsub.s32 2, %v844
        %v846 = vrot.slane %v828, %v845
        %v847 = vlaneseq
        %v848 = vshrl.u32 %v847, 7
        %v849 = vsub.s32 3, %v848
        %v850 = vrot.slane %v828, %v849
        %v851 = vlaneseq
        %v852 = vshrl.u32 %v851, 7
        %v853 = vsub.s32 4, %v852
        %v854 = vrot.slane %v828, %v853
        %v855 = vlaneseq
        %v856 = vshrl.u32 %v855, 7
        %v857 = vsub.s32 5, %v856
        %v858 = vrot.slane %v828, %v857
        %v859 = vlaneseq
        %v860 = vshrl.u32 %v859, 7
        %v861 = vsub.s32 6, %v860
        %v862 = vrot.slane %v828, %v861
        %v863 = vlaneseq
        %v864 = vshrl.u32 %v863, 7
        %v865 = vsub.s32 7, %v864
        %v866 = vrot.slane %v828, %v865
        %v867 = vlaneseq
        %v868 = vshrl.u32 %v867, 7
        %v869 = vsub.s32 0, %v868
        %v870 = vrot.slane %v832, %v869
        %v871 = vlaneseq
        %v872 = vshrl.u32 %v871, 7
        %v873 = vsub.s32 1, %v872
        %v874 = vrot.slane %v832, %v873
        %v875 = vlaneseq
        %v876 = vshrl.u32 %v875, 7
        %v877 = vsub.s32 2, %v876
        %v878 = vrot.slane %v832, %v877
        %v879 = vlaneseq
        %v880 = vshrl.u32 %v879, 7
        %v881 = vsub.s32 3, %v880
        %v882 = vrot.slane %v832, %v881
        %v883 = vlaneseq
        %v884 = vshrl.u32 %v883, 7
        %v885 = vsub.s32 4, %v884
        %v886 = vrot.slane %v832, %v885
        %v887 = vlaneseq
        %v888 = vshrl.u32 %v887, 7
        %v889 = vsub.s32 5, %v888
        %v890 = vrot.slane %v832, %v889
        %v891 = vlaneseq
        %v892 = vshrl.u32 %v891, 7
        %v893 = vsub.s32 6, %v892
        %v894 = vrot.slane %v832, %v893
        %v895 = vlaneseq
        %v896 = vshrl.u32 %v895, 7
        %v897 = vsub.s32 7, %v896
        %v898 = vrot.slane %v832, %v897
        %v915 = vmul.f32 %v810, %v838
        %v916 = vmul.f32 %v809, %v842
        %v917 = vmul.f32 %v824, %v846
        %v918 = vmul.f32 %v823, %v850
        %v919 = vmul.f32 %v822, %v854
        %v920 = vmul.f32 %v821, %v858
        %v921 = vmul.f32 %v820, %v862
        %v922 = vmul.f32 %v819, %v866
        %v923 = vmul.f32 %v818, %v870
        %v924 = vmul.f32 %v817, %v874
        %v925 = vmul.f32 %v816, %v878
        %v926 = vmul.f32 %v815, %v882
        %v927 = vmul.f32 %v814, %v886
        %v928 = vmul.f32 %v813, %v890
        %v929 = vmul.f32 %v812, %v894
        %v930 = vmul.f32 %v811, %v898
        %v931 = vpack.c.bf16 %v915, %v915
        %v932 = vpack.c.bf16 %v916, %v916
        %v933 = vpack.c.bf16 %v917, %v917
        %v934 = vpack.c.bf16 %v918, %v918
        %v935 = vpack.c.bf16 %v919, %v919
        %v936 = vpack.c.bf16 %v920, %v920
        %v937 = vpack.c.bf16 %v921, %v921
        %v938 = vpack.c.bf16 %v922, %v922
        %v939 = vpack.c.bf16 %v923, %v923
        %v940 = vpack.c.bf16 %v924, %v924
        %v941 = vpack.c.bf16 %v925, %v925
        %v942 = vpack.c.bf16 %v926, %v926
        %v943 = vpack.c.bf16 %v927, %v927
        %v944 = vpack.c.bf16 %v928, %v928
        %v945 = vpack.c.bf16 %v929, %v929
        %v946 = vpack.c.bf16 %v930, %v930
        %v963 = vunpack.c.l.b16 %v931
        %v964 = vunpack.c.l.b16 %v932
        %v965 = vunpack.c.l.b16 %v933
        %v966 = vunpack.c.l.b16 %v934
        %v967 = vunpack.c.l.b16 %v935
        %v968 = vunpack.c.l.b16 %v936
        %v969 = vunpack.c.l.b16 %v937
        %v970 = vunpack.c.l.b16 %v938
        %v971 = vunpack.c.l.b16 %v939
        %v972 = vunpack.c.l.b16 %v940
        %v973 = vunpack.c.l.b16 %v941
        %v974 = vunpack.c.l.b16 %v942
        %v975 = vunpack.c.l.b16 %v943
        %v976 = vunpack.c.l.b16 %v944
        %v977 = vunpack.c.l.b16 %v945
        %v978 = vunpack.c.l.b16 %v946
        %v979 = vpack.c.b16 %v964, %v963
        %v980 = vpack.c.b16 %v966, %v965
        %v981 = vpack.c.b16 %v968, %v967
        %v982 = vpack.c.b16 %v970, %v969
        %v983 = vpack.c.b16 %v972, %v971
        %v984 = vpack.c.b16 %v974, %v973
        %v985 = vpack.c.b16 %v976, %v975
        %v986 = vpack.c.b16 %v978, %v977
        %995 = vst [vmem:[#allocation2 + $0x80] sm:$0xff] %v979
        %996 = vst [vmem:[#allocation2 + $0x88] sm:$0xff] %v980
        %997 = vst [vmem:[#allocation2 + $0x90] sm:$0xff] %v981
        %998 = vst [vmem:[#allocation2 + $0x98] sm:$0xff] %v982
        %999 = vst [vmem:[#allocation2 + $0xa0] sm:$0xff] %v983
        %1000 = vst [vmem:[#allocation2 + $0xa8] sm:$0xff] %v984
        %1001 = vst [vmem:[#allocation2 + $0xb0] sm:$0xff] %v985
        %1002 = vst [vmem:[#allocation2 + $0xb8] sm:$0xff] %v986
        %1003 = vrot.lane.b32.xlu0 %v305, 1
        %v1004 = vpop.permute.xlu0 %1003
        %1005 = vrot.lane.b32.xlu0 %v306, 1
        %v1006 = vpop.permute.xlu0 %1005
        %1007 = vrot.lane.b32.xlu0 %v307, 1
        %v1008 = vpop.permute.xlu0 %1007
        %1009 = vrot.lane.b32.xlu0 %v308, 1
        %v1010 = vpop.permute.xlu0 %1009
        %1011 = vrot.lane.b32.xlu0 %v309, 1
        %v1012 = vpop.permute.xlu0 %1011
        %1013 = vrot.lane.b32.xlu0 %v310, 1
        %v1014 = vpop.permute.xlu0 %1013
        %1015 = vrot.lane.b32.xlu0 %v311, 1
        %v1016 = vpop.permute.xlu0 %1015
        %1017 = vrot.lane.b32.xlu0 %v312, 1
        %v1018 = vpop.permute.xlu0 %1017
        %1019 = vrot.lane.b32.xlu0 %v313, 1
        %v1020 = vpop.permute.xlu0 %1019
        %1021 = vrot.lane.b32.xlu0 %v314, 1
        %v1022 = vpop.permute.xlu0 %1021
        %1023 = vrot.lane.b32.xlu0 %v315, 1
        %v1024 = vpop.permute.xlu0 %1023
        %1025 = vrot.lane.b32.xlu0 %v316, 1
        %v1026 = vpop.permute.xlu0 %1025
        %1027 = vrot.lane.b32.xlu0 %v317, 1
        %v1028 = vpop.permute.xlu0 %1027
        %1029 = vrot.lane.b32.xlu0 %v318, 1
        %v1030 = vpop.permute.xlu0 %1029
        %1031 = vrot.lane.b32.xlu0 %v319, 1
        %v1032 = vpop.permute.xlu0 %1031
        %1033 = vrot.lane.b32.xlu0 %v320, 1
        %v1034 = vpop.permute.xlu0 %1033
        %vm1035 = vcmp.lt.s32.totalorder %v354, 1
        %v1036 = vsel %vm1035, %v1032, %v1034
        %v1037 = vsel %vm1035, %v1030, %v1032
        %v1038 = vsel %vm1035, %v1028, %v1030
        %v1039 = vsel %vm1035, %v1026, %v1028
        %v1040 = vsel %vm1035, %v1024, %v1026
        %v1041 = vsel %vm1035, %v1022, %v1024
        %v1042 = vsel %vm1035, %v1020, %v1022
        %v1043 = vsel %vm1035, %v1018, %v1020
        %v1044 = vsel %vm1035, %v1016, %v1018
        %v1045 = vsel %vm1035, %v1014, %v1016
        %v1046 = vsel %vm1035, %v1012, %v1014
        %v1047 = vsel %vm1035, %v1010, %v1012
        %v1048 = vsel %vm1035, %v1008, %v1010
        %v1049 = vsel %vm1035, %v1006, %v1008
        %v1050 = vsel %vm1035, %v1004, %v1006
        %v1051 = vsel %vm1035, %v1034, %v1004
        %s1052 = scalar_lea.vmem [#allocation7], 3
        %v1053 = vld [vmem:[%s1052] ss:$8 sm:$0xf]
        %v1054 = vld [vmem:[%s1052] ss:$8 sm:$0xf0]
        %v1055 = vor.u32 %v1053, %v1054
        %s1056 = scalar_lea.vmem [#allocation7], 67
        %v1057 = vld [vmem:[%s1056] ss:$8 sm:$0xf]
        %v1058 = vld [vmem:[%s1056] ss:$8 sm:$0xf0]
        %v1059 = vor.u32 %v1057, %v1058
        %v1062 = vlaneseq
        %v1063 = vshrl.u32 %v1062, 7
        %v1064 = vsub.s32 0, %v1063
        %v1065 = vrot.slane %v1055, %v1064
        %v1066 = vlaneseq
        %v1067 = vshrl.u32 %v1066, 7
        %v1068 = vsub.s32 1, %v1067
        %v1069 = vrot.slane %v1055, %v1068
        %v1070 = vlaneseq
        %v1071 = vshrl.u32 %v1070, 7
        %v1072 = vsub.s32 2, %v1071
        %v1073 = vrot.slane %v1055, %v1072
        %v1074 = vlaneseq
        %v1075 = vshrl.u32 %v1074, 7
        %v1076 = vsub.s32 3, %v1075
        %v1077 = vrot.slane %v1055, %v1076
        %v1078 = vlaneseq
        %v1079 = vshrl.u32 %v1078, 7
        %v1080 = vsub.s32 4, %v1079
        %v1081 = vrot.slane %v1055, %v1080
        %v1082 = vlaneseq
        %v1083 = vshrl.u32 %v1082, 7
        %v1084 = vsub.s32 5, %v1083
        %v1085 = vrot.slane %v1055, %v1084
        %v1086 = vlaneseq
        %v1087 = vshrl.u32 %v1086, 7
        %v1088 = vsub.s32 6, %v1087
        %v1089 = vrot.slane %v1055, %v1088
        %v1090 = vlaneseq
        %v1091 = vshrl.u32 %v1090, 7
        %v1092 = vsub.s32 7, %v1091
        %v1093 = vrot.slane %v1055, %v1092
        %v1094 = vlaneseq
        %v1095 = vshrl.u32 %v1094, 7
        %v1096 = vsub.s32 0, %v1095
        %v1097 = vrot.slane %v1059, %v1096
        %v1098 = vlaneseq
        %v1099 = vshrl.u32 %v1098, 7
        %v1100 = vsub.s32 1, %v1099
        %v1101 = vrot.slane %v1059, %v1100
        %v1102 = vlaneseq
        %v1103 = vshrl.u32 %v1102, 7
        %v1104 = vsub.s32 2, %v1103
        %v1105 = vrot.slane %v1059, %v1104
        %v1106 = vlaneseq
        %v1107 = vshrl.u32 %v1106, 7
        %v1108 = vsub.s32 3, %v1107
        %v1109 = vrot.slane %v1059, %v1108
        %v1110 = vlaneseq
        %v1111 = vshrl.u32 %v1110, 7
        %v1112 = vsub.s32 4, %v1111
        %v1113 = vrot.slane %v1059, %v1112
        %v1114 = vlaneseq
        %v1115 = vshrl.u32 %v1114, 7
        %v1116 = vsub.s32 5, %v1115
        %v1117 = vrot.slane %v1059, %v1116
        %v1118 = vlaneseq
        %v1119 = vshrl.u32 %v1118, 7
        %v1120 = vsub.s32 6, %v1119
        %v1121 = vrot.slane %v1059, %v1120
        %v1122 = vlaneseq
        %v1123 = vshrl.u32 %v1122, 7
        %v1124 = vsub.s32 7, %v1123
        %v1125 = vrot.slane %v1059, %v1124
        %v1142 = vmul.f32 %v1037, %v1065
        %v1143 = vmul.f32 %v1036, %v1069
        %v1144 = vmul.f32 %v1051, %v1073
        %v1145 = vmul.f32 %v1050, %v1077
        %v1146 = vmul.f32 %v1049, %v1081
        %v1147 = vmul.f32 %v1048, %v1085
        %v1148 = vmul.f32 %v1047, %v1089
        %v1149 = vmul.f32 %v1046, %v1093
        %v1150 = vmul.f32 %v1045, %v1097
        %v1151 = vmul.f32 %v1044, %v1101
        %v1152 = vmul.f32 %v1043, %v1105
        %v1153 = vmul.f32 %v1042, %v1109
        %v1154 = vmul.f32 %v1041, %v1113
        %v1155 = vmul.f32 %v1040, %v1117
        %v1156 = vmul.f32 %v1039, %v1121
        %v1157 = vmul.f32 %v1038, %v1125
        %v1158 = vpack.c.bf16 %v1142, %v1142
        %v1159 = vpack.c.bf16 %v1143, %v1143
        %v1160 = vpack.c.bf16 %v1144, %v1144
        %v1161 = vpack.c.bf16 %v1145, %v1145
        %v1162 = vpack.c.bf16 %v1146, %v1146
        %v1163 = vpack.c.bf16 %v1147, %v1147
        %v1164 = vpack.c.bf16 %v1148, %v1148
        %v1165 = vpack.c.bf16 %v1149, %v1149
        %v1166 = vpack.c.bf16 %v1150, %v1150
        %v1167 = vpack.c.bf16 %v1151, %v1151
        %v1168 = vpack.c.bf16 %v1152, %v1152
        %v1169 = vpack.c.bf16 %v1153, %v1153
        %v1170 = vpack.c.bf16 %v1154, %v1154
        %v1171 = vpack.c.bf16 %v1155, %v1155
        %v1172 = vpack.c.bf16 %v1156, %v1156
        %v1173 = vpack.c.bf16 %v1157, %v1157
        %v1190 = vunpack.c.l.b16 %v1158
        %v1191 = vunpack.c.l.b16 %v1159
        %v1192 = vunpack.c.l.b16 %v1160
        %v1193 = vunpack.c.l.b16 %v1161
        %v1194 = vunpack.c.l.b16 %v1162
        %v1195 = vunpack.c.l.b16 %v1163
        %v1196 = vunpack.c.l.b16 %v1164
        %v1197 = vunpack.c.l.b16 %v1165
        %v1198 = vunpack.c.l.b16 %v1166
        %v1199 = vunpack.c.l.b16 %v1167
        %v1200 = vunpack.c.l.b16 %v1168
        %v1201 = vunpack.c.l.b16 %v1169
        %v1202 = vunpack.c.l.b16 %v1170
        %v1203 = vunpack.c.l.b16 %v1171
        %v1204 = vunpack.c.l.b16 %v1172
        %v1205 = vunpack.c.l.b16 %v1173
        %v1206 = vpack.c.b16 %v1191, %v1190
        %v1207 = vpack.c.b16 %v1193, %v1192
        %v1208 = vpack.c.b16 %v1195, %v1194
        %v1209 = vpack.c.b16 %v1197, %v1196
        %v1210 = vpack.c.b16 %v1199, %v1198
        %v1211 = vpack.c.b16 %v1201, %v1200
        %v1212 = vpack.c.b16 %v1203, %v1202
        %v1213 = vpack.c.b16 %v1205, %v1204
        %1222 = vst [vmem:[#allocation2 + $0xc0] sm:$0xff] %v1206
        %1223 = vst [vmem:[#allocation2 + $0xc8] sm:$0xff] %v1207
        %1224 = vst [vmem:[#allocation2 + $0xd0] sm:$0xff] %v1208
        %1225 = vst [vmem:[#allocation2 + $0xd8] sm:$0xff] %v1209
        %1226 = vst [vmem:[#allocation2 + $0xe0] sm:$0xff] %v1210
        %1227 = vst [vmem:[#allocation2 + $0xe8] sm:$0xff] %v1211
        %1228 = vst [vmem:[#allocation2 + $0xf0] sm:$0xff] %v1212
        %1229 = vst [vmem:[#allocation2 + $0xf8] sm:$0xff] %v1213
        %s1230 = scalar_lea.vmem [#allocation7], 4
        %v1231 = vld [vmem:[%s1230] ss:$8 sm:$0xf]
        %v1232 = vld [vmem:[%s1230] ss:$8 sm:$0xf0]
        %v1233 = vor.u32 %v1231, %v1232
        %s1234 = scalar_lea.vmem [#allocation7], 68
        %v1235 = vld [vmem:[%s1234] ss:$8 sm:$0xf]
        %v1236 = vld [vmem:[%s1234] ss:$8 sm:$0xf0]
        %v1237 = vor.u32 %v1235, %v1236
        %v1240 = vlaneseq
        %v1241 = vshrl.u32 %v1240, 7
        %v1242 = vsub.s32 0, %v1241
        %v1243 = vrot.slane %v1233, %v1242
        %v1244 = vlaneseq
        %v1245 = vshrl.u32 %v1244, 7
        %v1246 = vsub.s32 1, %v1245
        %v1247 = vrot.slane %v1233, %v1246
        %v1248 = vlaneseq
        %v1249 = vshrl.u32 %v1248, 7
        %v1250 = vsub.s32 2, %v1249
        %v1251 = vrot.slane %v1233, %v1250
        %v1252 = vlaneseq
        %v1253 = vshrl.u32 %v1252, 7
        %v1254 = vsub.s32 3, %v1253
        %v1255 = vrot.slane %v1233, %v1254
        %v1256 = vlaneseq
        %v1257 = vshrl.u32 %v1256, 7
        %v1258 = vsub.s32 4, %v1257
        %v1259 = vrot.slane %v1233, %v1258
        %v1260 = vlaneseq
        %v1261 = vshrl.u32 %v1260, 7
        %v1262 = vsub.s32 5, %v1261
        %v1263 = vrot.slane %v1233, %v1262
        %v1264 = vlaneseq
        %v1265 = vshrl.u32 %v1264, 7
        %v1266 = vsub.s32 6, %v1265
        %v1267 = vrot.slane %v1233, %v1266
        %v1268 = vlaneseq
        %v1269 = vshrl.u32 %v1268, 7
        %v1270 = vsub.s32 7, %v1269
        %v1271 = vrot.slane %v1233, %v1270
        %v1272 = vlaneseq
        %v1273 = vshrl.u32 %v1272, 7
        %v1274 = vsub.s32 0, %v1273
        %v1275 = vrot.slane %v1237, %v1274
        %v1276 = vlaneseq
        %v1277 = vshrl.u32 %v1276, 7
        %v1278 = vsub.s32 1, %v1277
        %v1279 = vrot.slane %v1237, %v1278
        %v1280 = vlaneseq
        %v1281 = vshrl.u32 %v1280, 7
        %v1282 = vsub.s32 2, %v1281
        %v1283 = vrot.slane %v1237, %v1282
        %v1284 = vlaneseq
        %v1285 = vshrl.u32 %v1284, 7
        %v1286 = vsub.s32 3, %v1285
        %v1287 = vrot.slane %v1237, %v1286
        %v1288 = vlaneseq
        %v1289 = vshrl.u32 %v1288, 7
        %v1290 = vsub.s32 4, %v1289
        %v1291 = vrot.slane %v1237, %v1290
        %v1292 = vlaneseq
        %v1293 = vshrl.u32 %v1292, 7
        %v1294 = vsub.s32 5, %v1293
        %v1295 = vrot.slane %v1237, %v1294
        %v1296 = vlaneseq
        %v1297 = vshrl.u32 %v1296, 7
        %v1298 = vsub.s32 6, %v1297
        %v1299 = vrot.slane %v1237, %v1298
        %v1300 = vlaneseq
        %v1301 = vshrl.u32 %v1300, 7
        %v1302 = vsub.s32 7, %v1301
        %v1303 = vrot.slane %v1237, %v1302
        %v1320 = vmul.f32 %v319, %v1243
        %v1321 = vmul.f32 %v320, %v1247
        %v1322 = vmul.f32 %v305, %v1251
        %v1323 = vmul.f32 %v306, %v1255
        %v1324 = vmul.f32 %v307, %v1259
        %v1325 = vmul.f32 %v308, %v1263
        %v1326 = vmul.f32 %v309, %v1267
        %v1327 = vmul.f32 %v310, %v1271
        %v1328 = vmul.f32 %v311, %v1275
        %v1329 = vmul.f32 %v312, %v1279
        %v1330 = vmul.f32 %v313, %v1283
        %v1331 = vmul.f32 %v314, %v1287
        %v1332 = vmul.f32 %v315, %v1291
        %v1333 = vmul.f32 %v316, %v1295
        %v1334 = vmul.f32 %v317, %v1299
        %v1335 = vmul.f32 %v318, %v1303
        %v1336 = vpack.c.bf16 %v1320, %v1320
        %v1337 = vpack.c.bf16 %v1321, %v1321
        %v1338 = vpack.c.bf16 %v1322, %v1322
        %v1339 = vpack.c.bf16 %v1323, %v1323
        %v1340 = vpack.c.bf16 %v1324, %v1324
        %v1341 = vpack.c.bf16 %v1325, %v1325
        %v1342 = vpack.c.bf16 %v1326, %v1326
        %v1343 = vpack.c.bf16 %v1327, %v1327
        %v1344 = vpack.c.bf16 %v1328, %v1328
        %v1345 = vpack.c.bf16 %v1329, %v1329
        %v1346 = vpack.c.bf16 %v1330, %v1330
        %v1347 = vpack.c.bf16 %v1331, %v1331
        %v1348 = vpack.c.bf16 %v1332, %v1332
        %v1349 = vpack.c.bf16 %v1333, %v1333
        %v1350 = vpack.c.bf16 %v1334, %v1334
        %v1351 = vpack.c.bf16 %v1335, %v1335
        %v1368 = vunpack.c.l.b16 %v1336
        %v1369 = vunpack.c.l.b16 %v1337
        %v1370 = vunpack.c.l.b16 %v1338
        %v1371 = vunpack.c.l.b16 %v1339
        %v1372 = vunpack.c.l.b16 %v1340
        %v1373 = vunpack.c.l.b16 %v1341
        %v1374 = vunpack.c.l.b16 %v1342
        %v1375 = vunpack.c.l.b16 %v1343
        %v1376 = vunpack.c.l.b16 %v1344
        %v1377 = vunpack.c.l.b16 %v1345
        %v1378 = vunpack.c.l.b16 %v1346
        %v1379 = vunpack.c.l.b16 %v1347
        %v1380 = vunpack.c.l.b16 %v1348
        %v1381 = vunpack.c.l.b16 %v1349
        %v1382 = vunpack.c.l.b16 %v1350
        %v1383 = vunpack.c.l.b16 %v1351
        %v1384 = vpack.c.b16 %v1369, %v1368
        %v1385 = vpack.c.b16 %v1371, %v1370
        %v1386 = vpack.c.b16 %v1373, %v1372
        %v1387 = vpack.c.b16 %v1375, %v1374
        %v1388 = vpack.c.b16 %v1377, %v1376
        %v1389 = vpack.c.b16 %v1379, %v1378
        %v1390 = vpack.c.b16 %v1381, %v1380
        %v1391 = vpack.c.b16 %v1383, %v1382
        %1400 = vst [vmem:[#allocation2 + $0x100] sm:$0xff] %v1384
        %1401 = vst [vmem:[#allocation2 + $0x108] sm:$0xff] %v1385
        %1402 = vst [vmem:[#allocation2 + $0x110] sm:$0xff] %v1386
        %1403 = vst [vmem:[#allocation2 + $0x118] sm:$0xff] %v1387
        %1404 = vst [vmem:[#allocation2 + $0x120] sm:$0xff] %v1388
        %1405 = vst [vmem:[#allocation2 + $0x128] sm:$0xff] %v1389
        %1406 = vst [vmem:[#allocation2 + $0x130] sm:$0xff] %v1390
        %1407 = vst [vmem:[#allocation2 + $0x138] sm:$0xff] %v1391
        %1408 = vrot.lane.b32.xlu0 %v305, 127
        %v1409 = vpop.permute.xlu0 %1408
        %1410 = vrot.lane.b32.xlu0 %v306, 127
        %v1411 = vpop.permute.xlu0 %1410
        %1412 = vrot.lane.b32.xlu0 %v307, 127
        %v1413 = vpop.permute.xlu0 %1412
        %1414 = vrot.lane.b32.xlu0 %v308, 127
        %v1415 = vpop.permute.xlu0 %1414
        %1416 = vrot.lane.b32.xlu0 %v309, 127
        %v1417 = vpop.permute.xlu0 %1416
        %1418 = vrot.lane.b32.xlu0 %v310, 127
        %v1419 = vpop.permute.xlu0 %1418
        %1420 = vrot.lane.b32.xlu0 %v311, 127
        %v1421 = vpop.permute.xlu0 %1420
        %1422 = vrot.lane.b32.xlu0 %v312, 127
        %v1423 = vpop.permute.xlu0 %1422
        %1424 = vrot.lane.b32.xlu0 %v313, 127
        %v1425 = vpop.permute.xlu0 %1424
        %1426 = vrot.lane.b32.xlu0 %v314, 127
        %v1427 = vpop.permute.xlu0 %1426
        %1428 = vrot.lane.b32.xlu0 %v315, 127
        %v1429 = vpop.permute.xlu0 %1428
        %1430 = vrot.lane.b32.xlu0 %v316, 127
        %v1431 = vpop.permute.xlu0 %1430
        %1432 = vrot.lane.b32.xlu0 %v317, 127
        %v1433 = vpop.permute.xlu0 %1432
        %1434 = vrot.lane.b32.xlu0 %v318, 127
        %v1435 = vpop.permute.xlu0 %1434
        %1436 = vrot.lane.b32.xlu0 %v319, 127
        %v1437 = vpop.permute.xlu0 %1436
        %1438 = vrot.lane.b32.xlu0 %v320, 127
        %v1439 = vpop.permute.xlu0 %1438
        %vm1440 = vcmp.lt.s32.totalorder %v354, 127
        %v1441 = vsel %vm1440, %v1437, %v1439
        %v1442 = vsel %vm1440, %v1435, %v1437
        %v1443 = vsel %vm1440, %v1433, %v1435
        %v1444 = vsel %vm1440, %v1431, %v1433
        %v1445 = vsel %vm1440, %v1429, %v1431
        %v1446 = vsel %vm1440, %v1427, %v1429
        %v1447 = vsel %vm1440, %v1425, %v1427
        %v1448 = vsel %vm1440, %v1423, %v1425
        %v1449 = vsel %vm1440, %v1421, %v1423
        %v1450 = vsel %vm1440, %v1419, %v1421
        %v1451 = vsel %vm1440, %v1417, %v1419
        %v1452 = vsel %vm1440, %v1415, %v1417
        %v1453 = vsel %vm1440, %v1413, %v1415
        %v1454 = vsel %vm1440, %v1411, %v1413
        %v1455 = vsel %vm1440, %v1409, %v1411
        %v1456 = vsel %vm1440, %v1439, %v1409
        %s1457 = scalar_lea.vmem [#allocation7], 5
        %v1458 = vld [vmem:[%s1457] ss:$8 sm:$0xf]
        %v1459 = vld [vmem:[%s1457] ss:$8 sm:$0xf0]
        %v1460 = vor.u32 %v1458, %v1459
        %s1461 = scalar_lea.vmem [#allocation7], 69
        %v1462 = vld [vmem:[%s1461] ss:$8 sm:$0xf]
        %v1463 = vld [vmem:[%s1461] ss:$8 sm:$0xf0]
        %v1464 = vor.u32 %v1462, %v1463
        %v1467 = vlaneseq
        %v1468 = vshrl.u32 %v1467, 7
        %v1469 = vsub.s32 0, %v1468
        %v1470 = vrot.slane %v1460, %v1469
        %v1471 = vlaneseq
        %v1472 = vshrl.u32 %v1471, 7
        %v1473 = vsub.s32 1, %v1472
        %v1474 = vrot.slane %v1460, %v1473
        %v1475 = vlaneseq
        %v1476 = vshrl.u32 %v1475, 7
        %v1477 = vsub.s32 2, %v1476
        %v1478 = vrot.slane %v1460, %v1477
        %v1479 = vlaneseq
        %v1480 = vshrl.u32 %v1479, 7
        %v1481 = vsub.s32 3, %v1480
        %v1482 = vrot.slane %v1460, %v1481
        %v1483 = vlaneseq
        %v1484 = vshrl.u32 %v1483, 7
        %v1485 = vsub.s32 4, %v1484
        %v1486 = vrot.slane %v1460, %v1485
        %v1487 = vlaneseq
        %v1488 = vshrl.u32 %v1487, 7
        %v1489 = vsub.s32 5, %v1488
        %v1490 = vrot.slane %v1460, %v1489
        %v1491 = vlaneseq
        %v1492 = vshrl.u32 %v1491, 7
        %v1493 = vsub.s32 6, %v1492
        %v1494 = vrot.slane %v1460, %v1493
        %v1495 = vlaneseq
        %v1496 = vshrl.u32 %v1495, 7
        %v1497 = vsub.s32 7, %v1496
        %v1498 = vrot.slane %v1460, %v1497
        %v1499 = vlaneseq
        %v1500 = vshrl.u32 %v1499, 7
        %v1501 = vsub.s32 0, %v1500
        %v1502 = vrot.slane %v1464, %v1501
        %v1503 = vlaneseq
        %v1504 = vshrl.u32 %v1503, 7
        %v1505 = vsub.s32 1, %v1504
        %v1506 = vrot.slane %v1464, %v1505
        %v1507 = vlaneseq
        %v1508 = vshrl.u32 %v1507, 7
        %v1509 = vsub.s32 2, %v1508
        %v1510 = vrot.slane %v1464, %v1509
        %v1511 = vlaneseq
        %v1512 = vshrl.u32 %v1511, 7
        %v1513 = vsub.s32 3, %v1512
        %v1514 = vrot.slane %v1464, %v1513
        %v1515 = vlaneseq
        %v1516 = vshrl.u32 %v1515, 7
        %v1517 = vsub.s32 4, %v1516
        %v1518 = vrot.slane %v1464, %v1517
        %v1519 = vlaneseq
        %v1520 = vshrl.u32 %v1519, 7
        %v1521 = vsub.s32 5, %v1520
        %v1522 = vrot.slane %v1464, %v1521
        %v1523 = vlaneseq
        %v1524 = vshrl.u32 %v1523, 7
        %v1525 = vsub.s32 6, %v1524
        %v1526 = vrot.slane %v1464, %v1525
        %v1527 = vlaneseq
        %v1528 = vshrl.u32 %v1527, 7
        %v1529 = vsub.s32 7, %v1528
        %v1530 = vrot.slane %v1464, %v1529
        %v1547 = vmul.f32 %v1441, %v1470
        %v1548 = vmul.f32 %v1456, %v1474
        %v1549 = vmul.f32 %v1455, %v1478
        %v1550 = vmul.f32 %v1454, %v1482
        %v1551 = vmul.f32 %v1453, %v1486
        %v1552 = vmul.f32 %v1452, %v1490
        %v1553 = vmul.f32 %v1451, %v1494
        %v1554 = vmul.f32 %v1450, %v1498
        %v1555 = vmul.f32 %v1449, %v1502
        %v1556 = vmul.f32 %v1448, %v1506
        %v1557 = vmul.f32 %v1447, %v1510
        %v1558 = vmul.f32 %v1446, %v1514
        %v1559 = vmul.f32 %v1445, %v1518
        %v1560 = vmul.f32 %v1444, %v1522
        %v1561 = vmul.f32 %v1443, %v1526
        %v1562 = vmul.f32 %v1442, %v1530
        %v1563 = vpack.c.bf16 %v1547, %v1547
        %v1564 = vpack.c.bf16 %v1548, %v1548
        %v1565 = vpack.c.bf16 %v1549, %v1549
        %v1566 = vpack.c.bf16 %v1550, %v1550
        %v1567 = vpack.c.bf16 %v1551, %v1551
        %v1568 = vpack.c.bf16 %v1552, %v1552
        %v1569 = vpack.c.bf16 %v1553, %v1553
        %v1570 = vpack.c.bf16 %v1554, %v1554
        %v1571 = vpack.c.bf16 %v1555, %v1555
        %v1572 = vpack.c.bf16 %v1556, %v1556
        %v1573 = vpack.c.bf16 %v1557, %v1557
        %v1574 = vpack.c.bf16 %v1558, %v1558
        %v1575 = vpack.c.bf16 %v1559, %v1559
        %v1576 = vpack.c.bf16 %v1560, %v1560
        %v1577 = vpack.c.bf16 %v1561, %v1561
        %v1578 = vpack.c.bf16 %v1562, %v1562
        %v1595 = vunpack.c.l.b16 %v1563
        %v1596 = vunpack.c.l.b16 %v1564
        %v1597 = vunpack.c.l.b16 %v1565
        %v1598 = vunpack.c.l.b16 %v1566
        %v1599 = vunpack.c.l.b16 %v1567
        %v1600 = vunpack.c.l.b16 %v1568
        %v1601 = vunpack.c.l.b16 %v1569
        %v1602 = vunpack.c.l.b16 %v1570
        %v1603 = vunpack.c.l.b16 %v1571
        %v1604 = vunpack.c.l.b16 %v1572
        %v1605 = vunpack.c.l.b16 %v1573
        %v1606 = vunpack.c.l.b16 %v1574
        %v1607 = vunpack.c.l.b16 %v1575
        %v1608 = vunpack.c.l.b16 %v1576
        %v1609 = vunpack.c.l.b16 %v1577
        %v1610 = vunpack.c.l.b16 %v1578
        %v1611 = vpack.c.b16 %v1596, %v1595
        %v1612 = vpack.c.b16 %v1598, %v1597
        %v1613 = vpack.c.b16 %v1600, %v1599
        %v1614 = vpack.c.b16 %v1602, %v1601
        %v1615 = vpack.c.b16 %v1604, %v1603
        %v1616 = vpack.c.b16 %v1606, %v1605
        %v1617 = vpack.c.b16 %v1608, %v1607
        %v1618 = vpack.c.b16 %v1610, %v1609
        %1627 = vst [vmem:[#allocation2 + $0x140] sm:$0xff] %v1611
        %1628 = vst [vmem:[#allocation2 + $0x148] sm:$0xff] %v1612
        %1629 = vst [vmem:[#allocation2 + $0x150] sm:$0xff] %v1613
        %1630 = vst [vmem:[#allocation2 + $0x158] sm:$0xff] %v1614
        %1631 = vst [vmem:[#allocation2 + $0x160] sm:$0xff] %v1615
        %1632 = vst [vmem:[#allocation2 + $0x168] sm:$0xff] %v1616
        %1633 = vst [vmem:[#allocation2 + $0x170] sm:$0xff] %v1617
        %1634 = vst [vmem:[#allocation2 + $0x178] sm:$0xff] %v1618
        %1635 = vrot.lane.b32.xlu0 %v305, 113
        %v1636 = vpop.permute.xlu0 %1635
        %1637 = vrot.lane.b32.xlu0 %v306, 113
        %v1638 = vpop.permute.xlu0 %1637
        %1639 = vrot.lane.b32.xlu0 %v307, 113
        %v1640 = vpop.permute.xlu0 %1639
        %1641 = vrot.lane.b32.xlu0 %v308, 113
        %v1642 = vpop.permute.xlu0 %1641
        %1643 = vrot.lane.b32.xlu0 %v309, 113
        %v1644 = vpop.permute.xlu0 %1643
        %1645 = vrot.lane.b32.xlu0 %v310, 113
        %v1646 = vpop.permute.xlu0 %1645
        %1647 = vrot.lane.b32.xlu0 %v311, 113
        %v1648 = vpop.permute.xlu0 %1647
        %1649 = vrot.lane.b32.xlu0 %v312, 113
        %v1650 = vpop.permute.xlu0 %1649
        %1651 = vrot.lane.b32.xlu0 %v313, 113
        %v1652 = vpop.permute.xlu0 %1651
        %1653 = vrot.lane.b32.xlu0 %v314, 113
        %v1654 = vpop.permute.xlu0 %1653
        %1655 = vrot.lane.b32.xlu0 %v315, 113
        %v1656 = vpop.permute.xlu0 %1655
        %1657 = vrot.lane.b32.xlu0 %v316, 113
        %v1658 = vpop.permute.xlu0 %1657
        %1659 = vrot.lane.b32.xlu0 %v317, 113
        %v1660 = vpop.permute.xlu0 %1659
        %1661 = vrot.lane.b32.xlu0 %v318, 113
        %v1662 = vpop.permute.xlu0 %1661
        %1663 = vrot.lane.b32.xlu0 %v319, 113
        %v1664 = vpop.permute.xlu0 %1663
        %1665 = vrot.lane.b32.xlu0 %v320, 113
        %v1666 = vpop.permute.xlu0 %1665
        %vm1667 = vcmp.lt.s32.totalorder %v354, 113
        %v1668 = vsel %vm1667, %v1664, %v1666
        %v1669 = vsel %vm1667, %v1662, %v1664
        %v1670 = vsel %vm1667, %v1660, %v1662
        %v1671 = vsel %vm1667, %v1658, %v1660
        %v1672 = vsel %vm1667, %v1656, %v1658
        %v1673 = vsel %vm1667, %v1654, %v1656
        %v1674 = vsel %vm1667, %v1652, %v1654
        %v1675 = vsel %vm1667, %v1650, %v1652
        %v1676 = vsel %vm1667, %v1648, %v1650
        %v1677 = vsel %vm1667, %v1646, %v1648
        %v1678 = vsel %vm1667, %v1644, %v1646
        %v1679 = vsel %vm1667, %v1642, %v1644
        %v1680 = vsel %vm1667, %v1640, %v1642
        %v1681 = vsel %vm1667, %v1638, %v1640
        %v1682 = vsel %vm1667, %v1636, %v1638
        %v1683 = vsel %vm1667, %v1666, %v1636
        %s1684 = scalar_lea.vmem [#allocation7], 6
        %v1685 = vld [vmem:[%s1684] ss:$8 sm:$0xf]
        %v1686 = vld [vmem:[%s1684] ss:$8 sm:$0xf0]
        %v1687 = vor.u32 %v1685, %v1686
        %s1688 = scalar_lea.vmem [#allocation7], 70
        %v1689 = vld [vmem:[%s1688] ss:$8 sm:$0xf]
        %v1690 = vld [vmem:[%s1688] ss:$8 sm:$0xf0]
        %v1691 = vor.u32 %v1689, %v1690
        %v1694 = vlaneseq
        %v1695 = vshrl.u32 %v1694, 7
        %v1696 = vsub.s32 0, %v1695
        %v1697 = vrot.slane %v1687, %v1696
        %v1698 = vlaneseq
        %v1699 = vshrl.u32 %v1698, 7
        %v1700 = vsub.s32 1, %v1699
        %v1701 = vrot.slane %v1687, %v1700
        %v1702 = vlaneseq
        %v1703 = vshrl.u32 %v1702, 7
        %v1704 = vsub.s32 2, %v1703
        %v1705 = vrot.slane %v1687, %v1704
        %v1706 = vlaneseq
        %v1707 = vshrl.u32 %v1706, 7
        %v1708 = vsub.s32 3, %v1707
        %v1709 = vrot.slane %v1687, %v1708
        %v1710 = vlaneseq
        %v1711 = vshrl.u32 %v1710, 7
        %v1712 = vsub.s32 4, %v1711
        %v1713 = vrot.slane %v1687, %v1712
        %v1714 = vlaneseq
        %v1715 = vshrl.u32 %v1714, 7
        %v1716 = vsub.s32 5, %v1715
        %v1717 = vrot.slane %v1687, %v1716
        %v1718 = vlaneseq
        %v1719 = vshrl.u32 %v1718, 7
        %v1720 = vsub.s32 6, %v1719
        %v1721 = vrot.slane %v1687, %v1720
        %v1722 = vlaneseq
        %v1723 = vshrl.u32 %v1722, 7
        %v1724 = vsub.s32 7, %v1723
        %v1725 = vrot.slane %v1687, %v1724
        %v1726 = vlaneseq
        %v1727 = vshrl.u32 %v1726, 7
        %v1728 = vsub.s32 0, %v1727
        %v1729 = vrot.slane %v1691, %v1728
        %v1730 = vlaneseq
        %v1731 = vshrl.u32 %v1730, 7
        %v1732 = vsub.s32 1, %v1731
        %v1733 = vrot.slane %v1691, %v1732
        %v1734 = vlaneseq
        %v1735 = vshrl.u32 %v1734, 7
        %v1736 = vsub.s32 2, %v1735
        %v1737 = vrot.slane %v1691, %v1736
        %v1738 = vlaneseq
        %v1739 = vshrl.u32 %v1738, 7
        %v1740 = vsub.s32 3, %v1739
        %v1741 = vrot.slane %v1691, %v1740
        %v1742 = vlaneseq
        %v1743 = vshrl.u32 %v1742, 7
        %v1744 = vsub.s32 4, %v1743
        %v1745 = vrot.slane %v1691, %v1744
        %v1746 = vlaneseq
        %v1747 = vshrl.u32 %v1746, 7
        %v1748 = vsub.s32 5, %v1747
        %v1749 = vrot.slane %v1691, %v1748
        %v1750 = vlaneseq
        %v1751 = vshrl.u32 %v1750, 7
        %v1752 = vsub.s32 6, %v1751
        %v1753 = vrot.slane %v1691, %v1752
        %v1754 = vlaneseq
        %v1755 = vshrl.u32 %v1754, 7
        %v1756 = vsub.s32 7, %v1755
        %v1757 = vrot.slane %v1691, %v1756
        %v1774 = vmul.f32 %v1668, %v1697
        %v1775 = vmul.f32 %v1683, %v1701
        %v1776 = vmul.f32 %v1682, %v1705
        %v1777 = vmul.f32 %v1681, %v1709
        %v1778 = vmul.f32 %v1680, %v1713
        %v1779 = vmul.f32 %v1679, %v1717
        %v1780 = vmul.f32 %v1678, %v1721
        %v1781 = vmul.f32 %v1677, %v1725
        %v1782 = vmul.f32 %v1676, %v1729
        %v1783 = vmul.f32 %v1675, %v1733
        %v1784 = vmul.f32 %v1674, %v1737
        %v1785 = vmul.f32 %v1673, %v1741
        %v1786 = vmul.f32 %v1672, %v1745
        %v1787 = vmul.f32 %v1671, %v1749
        %v1788 = vmul.f32 %v1670, %v1753
        %v1789 = vmul.f32 %v1669, %v1757
        %v1790 = vpack.c.bf16 %v1774, %v1774
        %v1791 = vpack.c.bf16 %v1775, %v1775
        %v1792 = vpack.c.bf16 %v1776, %v1776
        %v1793 = vpack.c.bf16 %v1777, %v1777
        %v1794 = vpack.c.bf16 %v1778, %v1778
        %v1795 = vpack.c.bf16 %v1779, %v1779
        %v1796 = vpack.c.bf16 %v1780, %v1780
        %v1797 = vpack.c.bf16 %v1781, %v1781
        %v1798 = vpack.c.bf16 %v1782, %v1782
        %v1799 = vpack.c.bf16 %v1783, %v1783
        %v1800 = vpack.c.bf16 %v1784, %v1784
        %v1801 = vpack.c.bf16 %v1785, %v1785
        %v1802 = vpack.c.bf16 %v1786, %v1786
        %v1803 = vpack.c.bf16 %v1787, %v1787
        %v1804 = vpack.c.bf16 %v1788, %v1788
        %v1805 = vpack.c.bf16 %v1789, %v1789
        %v1822 = vunpack.c.l.b16 %v1790
        %v1823 = vunpack.c.l.b16 %v1791
        %v1824 = vunpack.c.l.b16 %v1792
        %v1825 = vunpack.c.l.b16 %v1793
        %v1826 = vunpack.c.l.b16 %v1794
        %v1827 = vunpack.c.l.b16 %v1795
        %v1828 = vunpack.c.l.b16 %v1796
        %v1829 = vunpack.c.l.b16 %v1797
        %v1830 = vunpack.c.l.b16 %v1798
        %v1831 = vunpack.c.l.b16 %v1799
        %v1832 = vunpack.c.l.b16 %v1800
        %v1833 = vunpack.c.l.b16 %v1801
        %v1834 = vunpack.c.l.b16 %v1802
        %v1835 = vunpack.c.l.b16 %v1803
        %v1836 = vunpack.c.l.b16 %v1804
        %v1837 = vunpack.c.l.b16 %v1805
        %v1838 = vpack.c.b16 %v1823, %v1822
        %v1839 = vpack.c.b16 %v1825, %v1824
        %v1840 = vpack.c.b16 %v1827, %v1826
        %v1841 = vpack.c.b16 %v1829, %v1828
        %v1842 = vpack.c.b16 %v1831, %v1830
        %v1843 = vpack.c.b16 %v1833, %v1832
        %v1844 = vpack.c.b16 %v1835, %v1834
        %v1845 = vpack.c.b16 %v1837, %v1836
        %1854 = vst [vmem:[#allocation2 + $0x180] sm:$0xff] %v1838
        %1855 = vst [vmem:[#allocation2 + $0x188] sm:$0xff] %v1839
        %1856 = vst [vmem:[#allocation2 + $0x190] sm:$0xff] %v1840
        %1857 = vst [vmem:[#allocation2 + $0x198] sm:$0xff] %v1841
        %1858 = vst [vmem:[#allocation2 + $0x1a0] sm:$0xff] %v1842
        %1859 = vst [vmem:[#allocation2 + $0x1a8] sm:$0xff] %v1843
        %1860 = vst [vmem:[#allocation2 + $0x1b0] sm:$0xff] %v1844
        %1861 = vst [vmem:[#allocation2 + $0x1b8] sm:$0xff] %v1845
        %1862 = vrot.lane.b32.xlu0 %v305, 112
        %v1863 = vpop.permute.xlu0 %1862
        %1864 = vrot.lane.b32.xlu0 %v306, 112
        %v1865 = vpop.permute.xlu0 %1864
        %1866 = vrot.lane.b32.xlu0 %v307, 112
        %v1867 = vpop.permute.xlu0 %1866
        %1868 = vrot.lane.b32.xlu0 %v308, 112
        %v1869 = vpop.permute.xlu0 %1868
        %1870 = vrot.lane.b32.xlu0 %v309, 112
        %v1871 = vpop.permute.xlu0 %1870
        %1872 = vrot.lane.b32.xlu0 %v310, 112
        %v1873 = vpop.permute.xlu0 %1872
        %1874 = vrot.lane.b32.xlu0 %v311, 112
        %v1875 = vpop.permute.xlu0 %1874
        %1876 = vrot.lane.b32.xlu0 %v312, 112
        %v1877 = vpop.permute.xlu0 %1876
        %1878 = vrot.lane.b32.xlu0 %v313, 112
        %v1879 = vpop.permute.xlu0 %1878
        %1880 = vrot.lane.b32.xlu0 %v314, 112
        %v1881 = vpop.permute.xlu0 %1880
        %1882 = vrot.lane.b32.xlu0 %v315, 112
        %v1883 = vpop.permute.xlu0 %1882
        %1884 = vrot.lane.b32.xlu0 %v316, 112
        %v1885 = vpop.permute.xlu0 %1884
        %1886 = vrot.lane.b32.xlu0 %v317, 112
        %v1887 = vpop.permute.xlu0 %1886
        %1888 = vrot.lane.b32.xlu0 %v318, 112
        %v1889 = vpop.permute.xlu0 %1888
        %1890 = vrot.lane.b32.xlu0 %v319, 112
        %v1891 = vpop.permute.xlu0 %1890
        %1892 = vrot.lane.b32.xlu0 %v320, 112
        %v1893 = vpop.permute.xlu0 %1892
        %vm1894 = vcmp.lt.s32.totalorder %v354, 112
        %v1895 = vsel %vm1894, %v1891, %v1893
        %v1896 = vsel %vm1894, %v1889, %v1891
        %v1897 = vsel %vm1894, %v1887, %v1889
        %v1898 = vsel %vm1894, %v1885, %v1887
        %v1899 = vsel %vm1894, %v1883, %v1885
        %v1900 = vsel %vm1894, %v1881, %v1883
        %v1901 = vsel %vm1894, %v1879, %v1881
        %v1902 = vsel %vm1894, %v1877, %v1879
        %v1903 = vsel %vm1894, %v1875, %v1877
        %v1904 = vsel %vm1894, %v1873, %v1875
        %v1905 = vsel %vm1894, %v1871, %v1873
        %v1906 = vsel %vm1894, %v1869, %v1871
        %v1907 = vsel %vm1894, %v1867, %v1869
        %v1908 = vsel %vm1894, %v1865, %v1867
        %v1909 = vsel %vm1894, %v1863, %v1865
        %v1910 = vsel %vm1894, %v1893, %v1863
        %s1911 = scalar_lea.vmem [#allocation7], 7
        %v1912 = vld [vmem:[%s1911] ss:$8 sm:$0xf]
        %v1913 = vld [vmem:[%s1911] ss:$8 sm:$0xf0]
        %v1914 = vor.u32 %v1912, %v1913
        %s1915 = scalar_lea.vmem [#allocation7], 71
        %v1916 = vld [vmem:[%s1915] ss:$8 sm:$0xf]
        %v1917 = vld [vmem:[%s1915] ss:$8 sm:$0xf0]
        %v1918 = vor.u32 %v1916, %v1917
        %v1921 = vlaneseq
        %v1922 = vshrl.u32 %v1921, 7
        %v1923 = vsub.s32 0, %v1922
        %v1924 = vrot.slane %v1914, %v1923
        %v1925 = vlaneseq
        %v1926 = vshrl.u32 %v1925, 7
        %v1927 = vsub.s32 1, %v1926
        %v1928 = vrot.slane %v1914, %v1927
        %v1929 = vlaneseq
        %v1930 = vshrl.u32 %v1929, 7
        %v1931 = vsub.s32 2, %v1930
        %v1932 = vrot.slane %v1914, %v1931
        %v1933 = vlaneseq
        %v1934 = vshrl.u32 %v1933, 7
        %v1935 = vsub.s32 3, %v1934
        %v1936 = vrot.slane %v1914, %v1935
        %v1937 = vlaneseq
        %v1938 = vshrl.u32 %v1937, 7
        %v1939 = vsub.s32 4, %v1938
        %v1940 = vrot.slane %v1914, %v1939
        %v1941 = vlaneseq
        %v1942 = vshrl.u32 %v1941, 7
        %v1943 = vsub.s32 5, %v1942
        %v1944 = vrot.slane %v1914, %v1943
        %v1945 = vlaneseq
        %v1946 = vshrl.u32 %v1945, 7
        %v1947 = vsub.s32 6, %v1946
        %v1948 = vrot.slane %v1914, %v1947
        %v1949 = vlaneseq
        %v1950 = vshrl.u32 %v1949, 7
        %v1951 = vsub.s32 7, %v1950
        %v1952 = vrot.slane %v1914, %v1951
        %v1953 = vlaneseq
        %v1954 = vshrl.u32 %v1953, 7
        %v1955 = vsub.s32 0, %v1954
        %v1956 = vrot.slane %v1918, %v1955
        %v1957 = vlaneseq
        %v1958 = vshrl.u32 %v1957, 7
        %v1959 = vsub.s32 1, %v1958
        %v1960 = vrot.slane %v1918, %v1959
        %v1961 = vlaneseq
        %v1962 = vshrl.u32 %v1961, 7
        %v1963 = vsub.s32 2, %v1962
        %v1964 = vrot.slane %v1918, %v1963
        %v1965 = vlaneseq
        %v1966 = vshrl.u32 %v1965, 7
        %v1967 = vsub.s32 3, %v1966
        %v1968 = vrot.slane %v1918, %v1967
        %v1969 = vlaneseq
        %v1970 = vshrl.u32 %v1969, 7
        %v1971 = vsub.s32 4, %v1970
        %v1972 = vrot.slane %v1918, %v1971
        %v1973 = vlaneseq
        %v1974 = vshrl.u32 %v1973, 7
        %v1975 = vsub.s32 5, %v1974
        %v1976 = vrot.slane %v1918, %v1975
        %v1977 = vlaneseq
        %v1978 = vshrl.u32 %v1977, 7
        %v1979 = vsub.s32 6, %v1978
        %v1980 = vrot.slane %v1918, %v1979
        %v1981 = vlaneseq
        %v1982 = vshrl.u32 %v1981, 7
        %v1983 = vsub.s32 7, %v1982
        %v1984 = vrot.slane %v1918, %v1983
        %v2001 = vmul.f32 %v1895, %v1924
        %v2002 = vmul.f32 %v1910, %v1928
        %v2003 = vmul.f32 %v1909, %v1932
        %v2004 = vmul.f32 %v1908, %v1936
        %v2005 = vmul.f32 %v1907, %v1940
        %v2006 = vmul.f32 %v1906, %v1944
        %v2007 = vmul.f32 %v1905, %v1948
        %v2008 = vmul.f32 %v1904, %v1952
        %v2009 = vmul.f32 %v1903, %v1956
        %v2010 = vmul.f32 %v1902, %v1960
        %v2011 = vmul.f32 %v1901, %v1964
        %v2012 = vmul.f32 %v1900, %v1968
        %v2013 = vmul.f32 %v1899, %v1972
        %v2014 = vmul.f32 %v1898, %v1976
        %v2015 = vmul.f32 %v1897, %v1980
        %v2016 = vmul.f32 %v1896, %v1984
        %v2017 = vpack.c.bf16 %v2001, %v2001
        %v2018 = vpack.c.bf16 %v2002, %v2002
        %v2019 = vpack.c.bf16 %v2003, %v2003
        %v2020 = vpack.c.bf16 %v2004, %v2004
        %v2021 = vpack.c.bf16 %v2005, %v2005
        %v2022 = vpack.c.bf16 %v2006, %v2006
        %v2023 = vpack.c.bf16 %v2007, %v2007
        %v2024 = vpack.c.bf16 %v2008, %v2008
        %v2025 = vpack.c.bf16 %v2009, %v2009
        %v2026 = vpack.c.bf16 %v2010, %v2010
        %v2027 = vpack.c.bf16 %v2011, %v2011
        %v2028 = vpack.c.bf16 %v2012, %v2012
        %v2029 = vpack.c.bf16 %v2013, %v2013
        %v2030 = vpack.c.bf16 %v2014, %v2014
        %v2031 = vpack.c.bf16 %v2015, %v2015
        %v2032 = vpack.c.bf16 %v2016, %v2016
        %v2049 = vunpack.c.l.b16 %v2017
        %v2050 = vunpack.c.l.b16 %v2018
        %v2051 = vunpack.c.l.b16 %v2019
        %v2052 = vunpack.c.l.b16 %v2020
        %v2053 = vunpack.c.l.b16 %v2021
        %v2054 = vunpack.c.l.b16 %v2022
        %v2055 = vunpack.c.l.b16 %v2023
        %v2056 = vunpack.c.l.b16 %v2024
        %v2057 = vunpack.c.l.b16 %v2025
        %v2058 = vunpack.c.l.b16 %v2026
        %v2059 = vunpack.c.l.b16 %v2027
        %v2060 = vunpack.c.l.b16 %v2028
        %v2061 = vunpack.c.l.b16 %v2029
        %v2062 = vunpack.c.l.b16 %v2030
        %v2063 = vunpack.c.l.b16 %v2031
        %v2064 = vunpack.c.l.b16 %v2032
        %v2065 = vpack.c.b16 %v2050, %v2049
        %v2066 = vpack.c.b16 %v2052, %v2051
        %v2067 = vpack.c.b16 %v2054, %v2053
        %v2068 = vpack.c.b16 %v2056, %v2055
        %v2069 = vpack.c.b16 %v2058, %v2057
        %v2070 = vpack.c.b16 %v2060, %v2059
        %v2071 = vpack.c.b16 %v2062, %v2061
        %v2072 = vpack.c.b16 %v2064, %v2063
        %2081 = vst [vmem:[#allocation2 + $0x1c0] sm:$0xff] %v2065
        %2082 = vst [vmem:[#allocation2 + $0x1c8] sm:$0xff] %v2066
        %2083 = vst [vmem:[#allocation2 + $0x1d0] sm:$0xff] %v2067
        %2084 = vst [vmem:[#allocation2 + $0x1d8] sm:$0xff] %v2068
        %2085 = vst [vmem:[#allocation2 + $0x1e0] sm:$0xff] %v2069
        %2086 = vst [vmem:[#allocation2 + $0x1e8] sm:$0xff] %v2070
        %2087 = vst [vmem:[#allocation2 + $0x1f0] sm:$0xff] %v2071
        %2088 = vst [vmem:[#allocation2 + $0x1f8] sm:$0xff] %v2072
        %2089 = vrot.lane.b32.xlu0 %v305, 111
        %v2090 = vpop.permute.xlu0 %2089
        %2091 = vrot.lane.b32.xlu0 %v306, 111
        %v2092 = vpop.permute.xlu0 %2091
        %2093 = vrot.lane.b32.xlu0 %v307, 111
        %v2094 = vpop.permute.xlu0 %2093
        %2095 = vrot.lane.b32.xlu0 %v308, 111
        %v2096 = vpop.permute.xlu0 %2095
        %2097 = vrot.lane.b32.xlu0 %v309, 111
        %v2098 = vpop.permute.xlu0 %2097
        %2099 = vrot.lane.b32.xlu0 %v310, 111
        %v2100 = vpop.permute.xlu0 %2099
        %2101 = vrot.lane.b32.xlu0 %v311, 111
        %v2102 = vpop.permute.xlu0 %2101
        %2103 = vrot.lane.b32.xlu0 %v312, 111
        %v2104 = vpop.permute.xlu0 %2103
        %2105 = vrot.lane.b32.xlu0 %v313, 111
        %v2106 = vpop.permute.xlu0 %2105
        %2107 = vrot.lane.b32.xlu0 %v314, 111
        %v2108 = vpop.permute.xlu0 %2107
        %2109 = vrot.lane.b32.xlu0 %v315, 111
        %v2110 = vpop.permute.xlu0 %2109
        %2111 = vrot.lane.b32.xlu0 %v316, 111
        %v2112 = vpop.permute.xlu0 %2111
        %2113 = vrot.lane.b32.xlu0 %v317, 111
        %v2114 = vpop.permute.xlu0 %2113
        %2115 = vrot.lane.b32.xlu0 %v318, 111
        %v2116 = vpop.permute.xlu0 %2115
        %2117 = vrot.lane.b32.xlu0 %v319, 111
        %v2118 = vpop.permute.xlu0 %2117
        %2119 = vrot.lane.b32.xlu0 %v320, 111
        %v2120 = vpop.permute.xlu0 %2119
        %vm2121 = vcmp.lt.s32.totalorder %v354, 111
        %v2122 = vsel %vm2121, %v2118, %v2120
        %v2123 = vsel %vm2121, %v2116, %v2118
        %v2124 = vsel %vm2121, %v2114, %v2116
        %v2125 = vsel %vm2121, %v2112, %v2114
        %v2126 = vsel %vm2121, %v2110, %v2112
        %v2127 = vsel %vm2121, %v2108, %v2110
        %v2128 = vsel %vm2121, %v2106, %v2108
        %v2129 = vsel %vm2121, %v2104, %v2106
        %v2130 = vsel %vm2121, %v2102, %v2104
        %v2131 = vsel %vm2121, %v2100, %v2102
        %v2132 = vsel %vm2121, %v2098, %v2100
        %v2133 = vsel %vm2121, %v2096, %v2098
        %v2134 = vsel %vm2121, %v2094, %v2096
        %v2135 = vsel %vm2121, %v2092, %v2094
        %v2136 = vsel %vm2121, %v2090, %v2092
        %v2137 = vsel %vm2121, %v2120, %v2090
        %s2138 = scalar_lea.vmem [#allocation7], 128
        %v2139 = vld [vmem:[%s2138] ss:$8 sm:$0xf]
        %v2140 = vld [vmem:[%s2138] ss:$8 sm:$0xf0]
        %v2141 = vor.u32 %v2139, %v2140
        %s2142 = scalar_lea.vmem [#allocation7], 192
        %v2143 = vld [vmem:[%s2142] ss:$8 sm:$0xf]
        %v2144 = vld [vmem:[%s2142] ss:$8 sm:$0xf0]
        %v2145 = vor.u32 %v2143, %v2144
        %v2148 = vlaneseq
        %v2149 = vshrl.u32 %v2148, 7
        %v2150 = vsub.s32 0, %v2149
        %v2151 = vrot.slane %v2141, %v2150
        %v2152 = vlaneseq
        %v2153 = vshrl.u32 %v2152, 7
        %v2154 = vsub.s32 1, %v2153
        %v2155 = vrot.slane %v2141, %v2154
        %v2156 = vlaneseq
        %v2157 = vshrl.u32 %v2156, 7
        %v2158 = vsub.s32 2, %v2157
        %v2159 = vrot.slane %v2141, %v2158
        %v2160 = vlaneseq
        %v2161 = vshrl.u32 %v2160, 7
        %v2162 = vsub.s32 3, %v2161
        %v2163 = vrot.slane %v2141, %v2162
        %v2164 = vlaneseq
        %v2165 = vshrl.u32 %v2164, 7
        %v2166 = vsub.s32 4, %v2165
        %v2167 = vrot.slane %v2141, %v2166
        %v2168 = vlaneseq
        %v2169 = vshrl.u32 %v2168, 7
        %v2170 = vsub.s32 5, %v2169
        %v2171 = vrot.slane %v2141, %v2170
        %v2172 = vlaneseq
        %v2173 = vshrl.u32 %v2172, 7
        %v2174 = vsub.s32 6, %v2173
        %v2175 = vrot.slane %v2141, %v2174
        %v2176 = vlaneseq
        %v2177 = vshrl.u32 %v2176, 7
        %v2178 = vsub.s32 7, %v2177
        %v2179 = vrot.slane %v2141, %v2178
        %v2180 = vlaneseq
        %v2181 = vshrl.u32 %v2180, 7
        %v2182 = vsub.s32 0, %v2181
        %v2183 = vrot.slane %v2145, %v2182
        %v2184 = vlaneseq
        %v2185 = vshrl.u32 %v2184, 7
        %v2186 = vsub.s32 1, %v2185
        %v2187 = vrot.slane %v2145, %v2186
        %v2188 = vlaneseq
        %v2189 = vshrl.u32 %v2188, 7
        %v2190 = vsub.s32 2, %v2189
        %v2191 = vrot.slane %v2145, %v2190
        %v2192 = vlaneseq
        %v2193 = vshrl.u32 %v2192, 7
        %v2194 = vsub.s32 3, %v2193
        %v2195 = vrot.slane %v2145, %v2194
        %v2196 = vlaneseq
        %v2197 = vshrl.u32 %v2196, 7
        %v2198 = vsub.s32 4, %v2197
        %v2199 = vrot.slane %v2145, %v2198
        %v2200 = vlaneseq
        %v2201 = vshrl.u32 %v2200, 7
        %v2202 = vsub.s32 5, %v2201
        %v2203 = vrot.slane %v2145, %v2202
        %v2204 = vlaneseq
        %v2205 = vshrl.u32 %v2204, 7
        %v2206 = vsub.s32 6, %v2205
        %v2207 = vrot.slane %v2145, %v2206
        %v2208 = vlaneseq
        %v2209 = vshrl.u32 %v2208, 7
        %v2210 = vsub.s32 7, %v2209
        %v2211 = vrot.slane %v2145, %v2210
        %v2228 = vmul.f32 %v2122, %v2151
        %v2229 = vmul.f32 %v2137, %v2155
        %v2230 = vmul.f32 %v2136, %v2159
        %v2231 = vmul.f32 %v2135, %v2163
        %v2232 = vmul.f32 %v2134, %v2167
        %v2233 = vmul.f32 %v2133, %v2171
        %v2234 = vmul.f32 %v2132, %v2175
        %v2235 = vmul.f32 %v2131, %v2179
        %v2236 = vmul.f32 %v2130, %v2183
        %v2237 = vmul.f32 %v2129, %v2187
        %v2238 = vmul.f32 %v2128, %v2191
        %v2239 = vmul.f32 %v2127, %v2195
        %v2240 = vmul.f32 %v2126, %v2199
        %v2241 = vmul.f32 %v2125, %v2203
        %v2242 = vmul.f32 %v2124, %v2207
        %v2243 = vmul.f32 %v2123, %v2211
        %v2244 = vpack.c.bf16 %v2228, %v2228
        %v2245 = vpack.c.bf16 %v2229, %v2229
        %v2246 = vpack.c.bf16 %v2230, %v2230
        %v2247 = vpack.c.bf16 %v2231, %v2231
        %v2248 = vpack.c.bf16 %v2232, %v2232
        %v2249 = vpack.c.bf16 %v2233, %v2233
        %v2250 = vpack.c.bf16 %v2234, %v2234
        %v2251 = vpack.c.bf16 %v2235, %v2235
        %v2252 = vpack.c.bf16 %v2236, %v2236
        %v2253 = vpack.c.bf16 %v2237, %v2237
        %v2254 = vpack.c.bf16 %v2238, %v2238
        %v2255 = vpack.c.bf16 %v2239, %v2239
        %v2256 = vpack.c.bf16 %v2240, %v2240
        %v2257 = vpack.c.bf16 %v2241, %v2241
        %v2258 = vpack.c.bf16 %v2242, %v2242
        %v2259 = vpack.c.bf16 %v2243, %v2243
        %v2276 = vunpack.c.l.b16 %v2244
        %v2277 = vunpack.c.l.b16 %v2245
        %v2278 = vunpack.c.l.b16 %v2246
        %v2279 = vunpack.c.l.b16 %v2247
        %v2280 = vunpack.c.l.b16 %v2248
        %v2281 = vunpack.c.l.b16 %v2249
        %v2282 = vunpack.c.l.b16 %v2250
        %v2283 = vunpack.c.l.b16 %v2251
        %v2284 = vunpack.c.l.b16 %v2252
        %v2285 = vunpack.c.l.b16 %v2253
        %v2286 = vunpack.c.l.b16 %v2254
        %v2287 = vunpack.c.l.b16 %v2255
        %v2288 = vunpack.c.l.b16 %v2256
        %v2289 = vunpack.c.l.b16 %v2257
        %v2290 = vunpack.c.l.b16 %v2258
        %v2291 = vunpack.c.l.b16 %v2259
        %v2292 = vpack.c.b16 %v2277, %v2276
        %v2293 = vpack.c.b16 %v2279, %v2278
        %v2294 = vpack.c.b16 %v2281, %v2280
        %v2295 = vpack.c.b16 %v2283, %v2282
        %v2296 = vpack.c.b16 %v2285, %v2284
        %v2297 = vpack.c.b16 %v2287, %v2286
        %v2298 = vpack.c.b16 %v2289, %v2288
        %v2299 = vpack.c.b16 %v2291, %v2290
        %2308 = vst [vmem:[#allocation2 + $0x200] sm:$0xff] %v2292
        %2309 = vst [vmem:[#allocation2 + $0x208] sm:$0xff] %v2293
        %2310 = vst [vmem:[#allocation2 + $0x210] sm:$0xff] %v2294
        %2311 = vst [vmem:[#allocation2 + $0x218] sm:$0xff] %v2295
        %2312 = vst [vmem:[#allocation2 + $0x220] sm:$0xff] %v2296
        %2313 = vst [vmem:[#allocation2 + $0x228] sm:$0xff] %v2297
        %2314 = vst [vmem:[#allocation2 + $0x230] sm:$0xff] %v2298
        %2315 = vst [vmem:[#allocation2 + $0x238] sm:$0xff] %v2299
        %v2316 = vld [vmem:[%s1] sm:$0xf]
        %v2317 = vld [vmem:[#allocation2] sm:$0xff]
        %v2318 = vld [vmem:[#allocation2 + $0x8] sm:$0xff]
        %v2319 = vld [vmem:[#allocation2 + $0x10] sm:$0xff]
        %v2320 = vld [vmem:[#allocation2 + $0x18] sm:$0xff]
        %v2321 = vld [vmem:[#allocation2 + $0x20] sm:$0xff]
        %v2322 = vld [vmem:[#allocation2 + $0x28] sm:$0xff]
        %v2323 = vld [vmem:[#allocation2 + $0x30] sm:$0xff]
        %v2324 = vld [vmem:[#allocation2 + $0x38] sm:$0xff]
        %v2325 = vld [vmem:[#allocation2 + $0x40] sm:$0xff]
        %v2326 = vld [vmem:[#allocation2 + $0x48] sm:$0xff]
        %v2327 = vld [vmem:[#allocation2 + $0x50] sm:$0xff]
        %v2328 = vld [vmem:[#allocation2 + $0x58] sm:$0xff]
        %v2329 = vld [vmem:[#allocation2 + $0x60] sm:$0xff]
        %v2330 = vld [vmem:[#allocation2 + $0x68] sm:$0xff]
        %v2331 = vld [vmem:[#allocation2 + $0x70] sm:$0xff]
        %v2332 = vld [vmem:[#allocation2 + $0x78] sm:$0xff]
        %v2333 = vld [vmem:[#allocation2 + $0x80] sm:$0xff]
        %v2334 = vld [vmem:[#allocation2 + $0x88] sm:$0xff]
        %v2335 = vld [vmem:[#allocation2 + $0x90] sm:$0xff]
        %v2336 = vld [vmem:[#allocation2 + $0x98] sm:$0xff]
        %v2337 = vld [vmem:[#allocation2 + $0xa0] sm:$0xff]
        %v2338 = vld [vmem:[#allocation2 + $0xa8] sm:$0xff]
        %v2339 = vld [vmem:[#allocation2 + $0xb0] sm:$0xff]
        %v2340 = vld [vmem:[#allocation2 + $0xb8] sm:$0xff]
        %v2341 = vld [vmem:[#allocation2 + $0xc0] sm:$0xff]
        %v2342 = vld [vmem:[#allocation2 + $0xc8] sm:$0xff]
        %v2343 = vld [vmem:[#allocation2 + $0xd0] sm:$0xff]
        %v2344 = vld [vmem:[#allocation2 + $0xd8] sm:$0xff]
        %v2345 = vld [vmem:[#allocation2 + $0xe0] sm:$0xff]
        %v2346 = vld [vmem:[#allocation2 + $0xe8] sm:$0xff]
        %v2347 = vld [vmem:[#allocation2 + $0xf0] sm:$0xff]
        %v2348 = vld [vmem:[#allocation2 + $0xf8] sm:$0xff]
        %v2349 = vld [vmem:[#allocation2 + $0x100] sm:$0xff]
        %v2350 = vld [vmem:[#allocation2 + $0x108] sm:$0xff]
        %v2351 = vld [vmem:[#allocation2 + $0x110] sm:$0xff]
        %v2352 = vld [vmem:[#allocation2 + $0x118] sm:$0xff]
        %v2353 = vld [vmem:[#allocation2 + $0x120] sm:$0xff]
        %v2354 = vld [vmem:[#allocation2 + $0x128] sm:$0xff]
        %v2355 = vld [vmem:[#allocation2 + $0x130] sm:$0xff]
        %v2356 = vld [vmem:[#allocation2 + $0x138] sm:$0xff]
        %v2357 = vld [vmem:[#allocation2 + $0x140] sm:$0xff]
        %v2358 = vld [vmem:[#allocation2 + $0x148] sm:$0xff]
        %v2359 = vld [vmem:[#allocation2 + $0x150] sm:$0xff]
        %v2360 = vld [vmem:[#allocation2 + $0x158] sm:$0xff]
        %v2361 = vld [vmem:[#allocation2 + $0x160] sm:$0xff]
        %v2362 = vld [vmem:[#allocation2 + $0x168] sm:$0xff]
        %v2363 = vld [vmem:[#allocation2 + $0x170] sm:$0xff]
        %v2364 = vld [vmem:[#allocation2 + $0x178] sm:$0xff]
        %v2365 = vld [vmem:[#allocation2 + $0x180] sm:$0xff]
        %v2366 = vld [vmem:[#allocation2 + $0x188] sm:$0xff]
        %v2367 = vld [vmem:[#allocation2 + $0x190] sm:$0xff]
        %v2368 = vld [vmem:[#allocation2 + $0x198] sm:$0xff]
        %v2369 = vld [vmem:[#allocation2 + $0x1a0] sm:$0xff]
        %v2370 = vld [vmem:[#allocation2 + $0x1a8] sm:$0xff]
        %v2371 = vld [vmem:[#allocation2 + $0x1b0] sm:$0xff]
        %v2372 = vld [vmem:[#allocation2 + $0x1b8] sm:$0xff]
        %v2373 = vld [vmem:[#allocation2 + $0x1c0] sm:$0xff]
        %v2374 = vld [vmem:[#allocation2 + $0x1c8] sm:$0xff]
        %v2375 = vld [vmem:[#allocation2 + $0x1d0] sm:$0xff]
        %v2376 = vld [vmem:[#allocation2 + $0x1d8] sm:$0xff]
        %v2377 = vld [vmem:[#allocation2 + $0x1e0] sm:$0xff]
        %v2378 = vld [vmem:[#allocation2 + $0x1e8] sm:$0xff]
        %v2379 = vld [vmem:[#allocation2 + $0x1f0] sm:$0xff]
        %v2380 = vld [vmem:[#allocation2 + $0x1f8] sm:$0xff]
        %v2381 = vld [vmem:[#allocation2 + $0x200] sm:$0xff]
        %v2382 = vld [vmem:[#allocation2 + $0x208] sm:$0xff]
        %v2383 = vld [vmem:[#allocation2 + $0x210] sm:$0xff]
        %v2384 = vld [vmem:[#allocation2 + $0x218] sm:$0xff]
        %v2385 = vld [vmem:[#allocation2 + $0x220] sm:$0xff]
        %v2386 = vld [vmem:[#allocation2 + $0x228] sm:$0xff]
        %v2387 = vld [vmem:[#allocation2 + $0x230] sm:$0xff]
        %v2388 = vld [vmem:[#allocation2 + $0x238] sm:$0xff]
        %s2389 = scalar_lea.vmem [#allocation7], 129
        %v2390 = vld [vmem:[%s2389] ss:$8 sm:$0xf]
        %v2391 = vld [vmem:[%s2389] ss:$8 sm:$0xf0]
        %v2392 = vor.u32 %v2390, %v2391
        %s2393 = scalar_lea.vmem [#allocation7], 193
        %v2394 = vld [vmem:[%s2393] ss:$8 sm:$0xf]
        %v2395 = vld [vmem:[%s2393] ss:$8 sm:$0xf0]
        %v2396 = vor.u32 %v2394, %v2395
        %v2399 = vlaneseq
        %v2400 = vshrl.u32 %v2399, 7
        %v2401 = vsub.s32 0, %v2400
        %v2402 = vrot.slane %v2392, %v2401
        %v2403 = vlaneseq
        %v2404 = vshrl.u32 %v2403, 7
        %v2405 = vsub.s32 1, %v2404
        %v2406 = vrot.slane %v2392, %v2405
        %v2407 = vlaneseq
        %v2408 = vshrl.u32 %v2407, 7
        %v2409 = vsub.s32 2, %v2408
        %v2410 = vrot.slane %v2392, %v2409
        %v2411 = vlaneseq
        %v2412 = vshrl.u32 %v2411, 7
        %v2413 = vsub.s32 3, %v2412
        %v2414 = vrot.slane %v2392, %v2413
        %v2415 = vlaneseq
        %v2416 = vshrl.u32 %v2415, 7
        %v2417 = vsub.s32 4, %v2416
        %v2418 = vrot.slane %v2392, %v2417
        %v2419 = vlaneseq
        %v2420 = vshrl.u32 %v2419, 7
        %v2421 = vsub.s32 5, %v2420
        %v2422 = vrot.slane %v2392, %v2421
        %v2423 = vlaneseq
        %v2424 = vshrl.u32 %v2423, 7
        %v2425 = vsub.s32 6, %v2424
        %v2426 = vrot.slane %v2392, %v2425
        %v2427 = vlaneseq
        %v2428 = vshrl.u32 %v2427, 7
        %v2429 = vsub.s32 7, %v2428
        %v2430 = vrot.slane %v2392, %v2429
        %v2431 = vlaneseq
        %v2432 = vshrl.u32 %v2431, 7
        %v2433 = vsub.s32 0, %v2432
        %v2434 = vrot.slane %v2396, %v2433
        %v2435 = vlaneseq
        %v2436 = vshrl.u32 %v2435, 7
        %v2437 = vsub.s32 1, %v2436
        %v2438 = vrot.slane %v2396, %v2437
        %v2439 = vlaneseq
        %v2440 = vshrl.u32 %v2439, 7
        %v2441 = vsub.s32 2, %v2440
        %v2442 = vrot.slane %v2396, %v2441
        %v2443 = vlaneseq
        %v2444 = vshrl.u32 %v2443, 7
        %v2445 = vsub.s32 3, %v2444
        %v2446 = vrot.slane %v2396, %v2445
        %v2447 = vlaneseq
        %v2448 = vshrl.u32 %v2447, 7
        %v2449 = vsub.s32 4, %v2448
        %v2450 = vrot.slane %v2396, %v2449
        %v2451 = vlaneseq
        %v2452 = vshrl.u32 %v2451, 7
        %v2453 = vsub.s32 5, %v2452
        %v2454 = vrot.slane %v2396, %v2453
        %v2455 = vlaneseq
        %v2456 = vshrl.u32 %v2455, 7
        %v2457 = vsub.s32 6, %v2456
        %v2458 = vrot.slane %v2396, %v2457
        %v2459 = vlaneseq
        %v2460 = vshrl.u32 %v2459, 7
        %v2461 = vsub.s32 7, %v2460
        %v2462 = vrot.slane %v2396, %v2461
        %v2479 = vmul.f32 %v371, %v2402
        %v2480 = vmul.f32 %v370, %v2406
        %v2481 = vmul.f32 %v369, %v2410
        %v2482 = vmul.f32 %v368, %v2414
        %v2483 = vmul.f32 %v367, %v2418
        %v2484 = vmul.f32 %v366, %v2422
        %v2485 = vmul.f32 %v365, %v2426
        %v2486 = vmul.f32 %v364, %v2430
        %v2487 = vmul.f32 %v363, %v2434
        %v2488 = vmul.f32 %v362, %v2438
        %v2489 = vmul.f32 %v361, %v2442
        %v2490 = vmul.f32 %v360, %v2446
        %v2491 = vmul.f32 %v359, %v2450
        %v2492 = vmul.f32 %v358, %v2454
        %v2493 = vmul.f32 %v357, %v2458
        %v2494 = vmul.f32 %v356, %v2462
        %v2495 = vpack.c.bf16 %v2479, %v2479
        %v2496 = vpack.c.bf16 %v2480, %v2480
        %v2497 = vpack.c.bf16 %v2481, %v2481
        %v2498 = vpack.c.bf16 %v2482, %v2482
        %v2499 = vpack.c.bf16 %v2483, %v2483
        %v2500 = vpack.c.bf16 %v2484, %v2484
        %v2501 = vpack.c.bf16 %v2485, %v2485
        %v2502 = vpack.c.bf16 %v2486, %v2486
        %v2503 = vpack.c.bf16 %v2487, %v2487
        %v2504 = vpack.c.bf16 %v2488, %v2488
        %v2505 = vpack.c.bf16 %v2489, %v2489
        %v2506 = vpack.c.bf16 %v2490, %v2490
        %v2507 = vpack.c.bf16 %v2491, %v2491
        %v2508 = vpack.c.bf16 %v2492, %v2492
        %v2509 = vpack.c.bf16 %v2493, %v2493
        %v2510 = vpack.c.bf16 %v2494, %v2494
        %v2527 = vunpack.c.l.b16 %v2495
        %v2528 = vunpack.c.l.b16 %v2496
        %v2529 = vunpack.c.l.b16 %v2497
        %v2530 = vunpack.c.l.b16 %v2498
        %v2531 = vunpack.c.l.b16 %v2499
        %v2532 = vunpack.c.l.b16 %v2500
        %v2533 = vunpack.c.l.b16 %v2501
        %v2534 = vunpack.c.l.b16 %v2502
        %v2535 = vunpack.c.l.b16 %v2503
        %v2536 = vunpack.c.l.b16 %v2504
        %v2537 = vunpack.c.l.b16 %v2505
        %v2538 = vunpack.c.l.b16 %v2506
        %v2539 = vunpack.c.l.b16 %v2507
        %v2540 = vunpack.c.l.b16 %v2508
        %v2541 = vunpack.c.l.b16 %v2509
        %v2542 = vunpack.c.l.b16 %v2510
        %v2543 = vpack.c.b16 %v2528, %v2527
        %v2544 = vpack.c.b16 %v2530, %v2529
        %v2545 = vpack.c.b16 %v2532, %v2531
        %v2546 = vpack.c.b16 %v2534, %v2533
        %v2547 = vpack.c.b16 %v2536, %v2535
        %v2548 = vpack.c.b16 %v2538, %v2537
        %v2549 = vpack.c.b16 %v2540, %v2539
        %v2550 = vpack.c.b16 %v2542, %v2541
        %2559 = vst [vmem:[#allocation3] sm:$0xff] %v2543
        %2560 = vst [vmem:[#allocation3 + $0x8] sm:$0xff] %v2544
        %2561 = vst [vmem:[#allocation3 + $0x10] sm:$0xff] %v2545
        %2562 = vst [vmem:[#allocation3 + $0x18] sm:$0xff] %v2546
        %2563 = vst [vmem:[#allocation3 + $0x20] sm:$0xff] %v2547
        %2564 = vst [vmem:[#allocation3 + $0x28] sm:$0xff] %v2548
        %2565 = vst [vmem:[#allocation3 + $0x30] sm:$0xff] %v2549
        %2566 = vst [vmem:[#allocation3 + $0x38] sm:$0xff] %v2550
        %s2567 = scalar_lea.vmem [#allocation7], 130
        %v2568 = vld [vmem:[%s2567] ss:$8 sm:$0xf]
        %v2569 = vld [vmem:[%s2567] ss:$8 sm:$0xf0]
        %v2570 = vor.u32 %v2568, %v2569
        %s2571 = scalar_lea.vmem [#allocation7], 194
        %v2572 = vld [vmem:[%s2571] ss:$8 sm:$0xf]
        %v2573 = vld [vmem:[%s2571] ss:$8 sm:$0xf0]
        %v2574 = vor.u32 %v2572, %v2573
        %v2577 = vlaneseq
        %v2578 = vshrl.u32 %v2577, 7
        %v2579 = vsub.s32 0, %v2578
        %v2580 = vrot.slane %v2570, %v2579
        %v2581 = vlaneseq
        %v2582 = vshrl.u32 %v2581, 7
        %v2583 = vsub.s32 1, %v2582
        %v2584 = vrot.slane %v2570, %v2583
        %v2585 = vlaneseq
        %v2586 = vshrl.u32 %v2585, 7
        %v2587 = vsub.s32 2, %v2586
        %v2588 = vrot.slane %v2570, %v2587
        %v2589 = vlaneseq
        %v2590 = vshrl.u32 %v2589, 7
        %v2591 = vsub.s32 3, %v2590
        %v2592 = vrot.slane %v2570, %v2591
        %v2593 = vlaneseq
        %v2594 = vshrl.u32 %v2593, 7
        %v2595 = vsub.s32 4, %v2594
        %v2596 = vrot.slane %v2570, %v2595
        %v2597 = vlaneseq
        %v2598 = vshrl.u32 %v2597, 7
        %v2599 = vsub.s32 5, %v2598
        %v2600 = vrot.slane %v2570, %v2599
        %v2601 = vlaneseq
        %v2602 = vshrl.u32 %v2601, 7
        %v2603 = vsub.s32 6, %v2602
        %v2604 = vrot.slane %v2570, %v2603
        %v2605 = vlaneseq
        %v2606 = vshrl.u32 %v2605, 7
        %v2607 = vsub.s32 7, %v2606
        %v2608 = vrot.slane %v2570, %v2607
        %v2609 = vlaneseq
        %v2610 = vshrl.u32 %v2609, 7
        %v2611 = vsub.s32 0, %v2610
        %v2612 = vrot.slane %v2574, %v2611
        %v2613 = vlaneseq
        %v2614 = vshrl.u32 %v2613, 7
        %v2615 = vsub.s32 1, %v2614
        %v2616 = vrot.slane %v2574, %v2615
        %v2617 = vlaneseq
        %v2618 = vshrl.u32 %v2617, 7
        %v2619 = vsub.s32 2, %v2618
        %v2620 = vrot.slane %v2574, %v2619
        %v2621 = vlaneseq
        %v2622 = vshrl.u32 %v2621, 7
        %v2623 = vsub.s32 3, %v2622
        %v2624 = vrot.slane %v2574, %v2623
        %v2625 = vlaneseq
        %v2626 = vshrl.u32 %v2625, 7
        %v2627 = vsub.s32 4, %v2626
        %v2628 = vrot.slane %v2574, %v2627
        %v2629 = vlaneseq
        %v2630 = vshrl.u32 %v2629, 7
        %v2631 = vsub.s32 5, %v2630
        %v2632 = vrot.slane %v2574, %v2631
        %v2633 = vlaneseq
        %v2634 = vshrl.u32 %v2633, 7
        %v2635 = vsub.s32 6, %v2634
        %v2636 = vrot.slane %v2574, %v2635
        %v2637 = vlaneseq
        %v2638 = vshrl.u32 %v2637, 7
        %v2639 = vsub.s32 7, %v2638
        %v2640 = vrot.slane %v2574, %v2639
        %v2657 = vmul.f32 %v597, %v2580
        %v2658 = vmul.f32 %v596, %v2584
        %v2659 = vmul.f32 %v595, %v2588
        %v2660 = vmul.f32 %v594, %v2592
        %v2661 = vmul.f32 %v593, %v2596
        %v2662 = vmul.f32 %v592, %v2600
        %v2663 = vmul.f32 %v591, %v2604
        %v2664 = vmul.f32 %v590, %v2608
        %v2665 = vmul.f32 %v589, %v2612
        %v2666 = vmul.f32 %v588, %v2616
        %v2667 = vmul.f32 %v587, %v2620
        %v2668 = vmul.f32 %v586, %v2624
        %v2669 = vmul.f32 %v585, %v2628
        %v2670 = vmul.f32 %v584, %v2632
        %v2671 = vmul.f32 %v583, %v2636
        %v2672 = vmul.f32 %v582, %v2640
        %v2673 = vpack.c.bf16 %v2657, %v2657
        %v2674 = vpack.c.bf16 %v2658, %v2658
        %v2675 = vpack.c.bf16 %v2659, %v2659
        %v2676 = vpack.c.bf16 %v2660, %v2660
        %v2677 = vpack.c.bf16 %v2661, %v2661
        %v2678 = vpack.c.bf16 %v2662, %v2662
        %v2679 = vpack.c.bf16 %v2663, %v2663
        %v2680 = vpack.c.bf16 %v2664, %v2664
        %v2681 = vpack.c.bf16 %v2665, %v2665
        %v2682 = vpack.c.bf16 %v2666, %v2666
        %v2683 = vpack.c.bf16 %v2667, %v2667
        %v2684 = vpack.c.bf16 %v2668, %v2668
        %v2685 = vpack.c.bf16 %v2669, %v2669
        %v2686 = vpack.c.bf16 %v2670, %v2670
        %v2687 = vpack.c.bf16 %v2671, %v2671
        %v2688 = vpack.c.bf16 %v2672, %v2672
        %v2705 = vunpack.c.l.b16 %v2673
        %v2706 = vunpack.c.l.b16 %v2674
        %v2707 = vunpack.c.l.b16 %v2675
        %v2708 = vunpack.c.l.b16 %v2676
        %v2709 = vunpack.c.l.b16 %v2677
        %v2710 = vunpack.c.l.b16 %v2678
        %v2711 = vunpack.c.l.b16 %v2679
        %v2712 = vunpack.c.l.b16 %v2680
        %v2713 = vunpack.c.l.b16 %v2681
        %v2714 = vunpack.c.l.b16 %v2682
        %v2715 = vunpack.c.l.b16 %v2683
        %v2716 = vunpack.c.l.b16 %v2684
        %v2717 = vunpack.c.l.b16 %v2685
        %v2718 = vunpack.c.l.b16 %v2686
        %v2719 = vunpack.c.l.b16 %v2687
        %v2720 = vunpack.c.l.b16 %v2688
        %v2721 = vpack.c.b16 %v2706, %v2705
        %v2722 = vpack.c.b16 %v2708, %v2707
        %v2723 = vpack.c.b16 %v2710, %v2709
        %v2724 = vpack.c.b16 %v2712, %v2711
        %v2725 = vpack.c.b16 %v2714, %v2713
        %v2726 = vpack.c.b16 %v2716, %v2715
        %v2727 = vpack.c.b16 %v2718, %v2717
        %v2728 = vpack.c.b16 %v2720, %v2719
        %2737 = vst [vmem:[#allocation3 + $0x40] sm:$0xff] %v2721
        %2738 = vst [vmem:[#allocation3 + $0x48] sm:$0xff] %v2722
        %2739 = vst [vmem:[#allocation3 + $0x50] sm:$0xff] %v2723
        %2740 = vst [vmem:[#allocation3 + $0x58] sm:$0xff] %v2724
        %2741 = vst [vmem:[#allocation3 + $0x60] sm:$0xff] %v2725
        %2742 = vst [vmem:[#allocation3 + $0x68] sm:$0xff] %v2726
        %2743 = vst [vmem:[#allocation3 + $0x70] sm:$0xff] %v2727
        %2744 = vst [vmem:[#allocation3 + $0x78] sm:$0xff] %v2728
        %s2745 = scalar_lea.vmem [#allocation7], 131
        %v2746 = vld [vmem:[%s2745] ss:$8 sm:$0xf]
        %v2747 = vld [vmem:[%s2745] ss:$8 sm:$0xf0]
        %v2748 = vor.u32 %v2746, %v2747
        %s2749 = scalar_lea.vmem [#allocation7], 195
        %v2750 = vld [vmem:[%s2749] ss:$8 sm:$0xf]
        %v2751 = vld [vmem:[%s2749] ss:$8 sm:$0xf0]
        %v2752 = vor.u32 %v2750, %v2751
        %v2755 = vlaneseq
        %v2756 = vshrl.u32 %v2755, 7
        %v2757 = vsub.s32 0, %v2756
        %v2758 = vrot.slane %v2748, %v2757
        %v2759 = vlaneseq
        %v2760 = vshrl.u32 %v2759, 7
        %v2761 = vsub.s32 1, %v2760
        %v2762 = vrot.slane %v2748, %v2761
        %v2763 = vlaneseq
        %v2764 = vshrl.u32 %v2763, 7
        %v2765 = vsub.s32 2, %v2764
        %v2766 = vrot.slane %v2748, %v2765
        %v2767 = vlaneseq
        %v2768 = vshrl.u32 %v2767, 7
        %v2769 = vsub.s32 3, %v2768
        %v2770 = vrot.slane %v2748, %v2769
        %v2771 = vlaneseq
        %v2772 = vshrl.u32 %v2771, 7
        %v2773 = vsub.s32 4, %v2772
        %v2774 = vrot.slane %v2748, %v2773
        %v2775 = vlaneseq
        %v2776 = vshrl.u32 %v2775, 7
        %v2777 = vsub.s32 5, %v2776
        %v2778 = vrot.slane %v2748, %v2777
        %v2779 = vlaneseq
        %v2780 = vshrl.u32 %v2779, 7
        %v2781 = vsub.s32 6, %v2780
        %v2782 = vrot.slane %v2748, %v2781
        %v2783 = vlaneseq
        %v2784 = vshrl.u32 %v2783, 7
        %v2785 = vsub.s32 7, %v2784
        %v2786 = vrot.slane %v2748, %v2785
        %v2787 = vlaneseq
        %v2788 = vshrl.u32 %v2787, 7
        %v2789 = vsub.s32 0, %v2788
        %v2790 = vrot.slane %v2752, %v2789
        %v2791 = vlaneseq
        %v2792 = vshrl.u32 %v2791, 7
        %v2793 = vsub.s32 1, %v2792
        %v2794 = vrot.slane %v2752, %v2793
        %v2795 = vlaneseq
        %v2796 = vshrl.u32 %v2795, 7
        %v2797 = vsub.s32 2, %v2796
        %v2798 = vrot.slane %v2752, %v2797
        %v2799 = vlaneseq
        %v2800 = vshrl.u32 %v2799, 7
        %v2801 = vsub.s32 3, %v2800
        %v2802 = vrot.slane %v2752, %v2801
        %v2803 = vlaneseq
        %v2804 = vshrl.u32 %v2803, 7
        %v2805 = vsub.s32 4, %v2804
        %v2806 = vrot.slane %v2752, %v2805
        %v2807 = vlaneseq
        %v2808 = vshrl.u32 %v2807, 7
        %v2809 = vsub.s32 5, %v2808
        %v2810 = vrot.slane %v2752, %v2809
        %v2811 = vlaneseq
        %v2812 = vshrl.u32 %v2811, 7
        %v2813 = vsub.s32 6, %v2812
        %v2814 = vrot.slane %v2752, %v2813
        %v2815 = vlaneseq
        %v2816 = vshrl.u32 %v2815, 7
        %v2817 = vsub.s32 7, %v2816
        %v2818 = vrot.slane %v2752, %v2817
        %v2835 = vmul.f32 %v824, %v2758
        %v2836 = vmul.f32 %v823, %v2762
        %v2837 = vmul.f32 %v822, %v2766
        %v2838 = vmul.f32 %v821, %v2770
        %v2839 = vmul.f32 %v820, %v2774
        %v2840 = vmul.f32 %v819, %v2778
        %v2841 = vmul.f32 %v818, %v2782
        %v2842 = vmul.f32 %v817, %v2786
        %v2843 = vmul.f32 %v816, %v2790
        %v2844 = vmul.f32 %v815, %v2794
        %v2845 = vmul.f32 %v814, %v2798
        %v2846 = vmul.f32 %v813, %v2802
        %v2847 = vmul.f32 %v812, %v2806
        %v2848 = vmul.f32 %v811, %v2810
        %v2849 = vmul.f32 %v810, %v2814
        %v2850 = vmul.f32 %v809, %v2818
        %v2851 = vpack.c.bf16 %v2835, %v2835
        %v2852 = vpack.c.bf16 %v2836, %v2836
        %v2853 = vpack.c.bf16 %v2837, %v2837
        %v2854 = vpack.c.bf16 %v2838, %v2838
        %v2855 = vpack.c.bf16 %v2839, %v2839
        %v2856 = vpack.c.bf16 %v2840, %v2840
        %v2857 = vpack.c.bf16 %v2841, %v2841
        %v2858 = vpack.c.bf16 %v2842, %v2842
        %v2859 = vpack.c.bf16 %v2843, %v2843
        %v2860 = vpack.c.bf16 %v2844, %v2844
        %v2861 = vpack.c.bf16 %v2845, %v2845
        %v2862 = vpack.c.bf16 %v2846, %v2846
        %v2863 = vpack.c.bf16 %v2847, %v2847
        %v2864 = vpack.c.bf16 %v2848, %v2848
        %v2865 = vpack.c.bf16 %v2849, %v2849
        %v2866 = vpack.c.bf16 %v2850, %v2850
        %v2883 = vunpack.c.l.b16 %v2851
        %v2884 = vunpack.c.l.b16 %v2852
        %v2885 = vunpack.c.l.b16 %v2853
        %v2886 = vunpack.c.l.b16 %v2854
        %v2887 = vunpack.c.l.b16 %v2855
        %v2888 = vunpack.c.l.b16 %v2856
        %v2889 = vunpack.c.l.b16 %v2857
        %v2890 = vunpack.c.l.b16 %v2858
        %v2891 = vunpack.c.l.b16 %v2859
        %v2892 = vunpack.c.l.b16 %v2860
        %v2893 = vunpack.c.l.b16 %v2861
        %v2894 = vunpack.c.l.b16 %v2862
        %v2895 = vunpack.c.l.b16 %v2863
        %v2896 = vunpack.c.l.b16 %v2864
        %v2897 = vunpack.c.l.b16 %v2865
        %v2898 = vunpack.c.l.b16 %v2866
        %v2899 = vpack.c.b16 %v2884, %v2883
        %v2900 = vpack.c.b16 %v2886, %v2885
        %v2901 = vpack.c.b16 %v2888, %v2887
        %v2902 = vpack.c.b16 %v2890, %v2889
        %v2903 = vpack.c.b16 %v2892, %v2891
        %v2904 = vpack.c.b16 %v2894, %v2893
        %v2905 = vpack.c.b16 %v2896, %v2895
        %v2906 = vpack.c.b16 %v2898, %v2897
        %2915 = vst [vmem:[#allocation3 + $0x80] sm:$0xff] %v2899
        %2916 = vst [vmem:[#allocation3 + $0x88] sm:$0xff] %v2900
        %2917 = vst [vmem:[#allocation3 + $0x90] sm:$0xff] %v2901
        %2918 = vst [vmem:[#allocation3 + $0x98] sm:$0xff] %v2902
        %2919 = vst [vmem:[#allocation3 + $0xa0] sm:$0xff] %v2903
        %2920 = vst [vmem:[#allocation3 + $0xa8] sm:$0xff] %v2904
        %2921 = vst [vmem:[#allocation3 + $0xb0] sm:$0xff] %v2905
        %2922 = vst [vmem:[#allocation3 + $0xb8] sm:$0xff] %v2906
        %s2923 = scalar_lea.vmem [#allocation7], 132
        %v2924 = vld [vmem:[%s2923] ss:$8 sm:$0xf]
        %v2925 = vld [vmem:[%s2923] ss:$8 sm:$0xf0]
        %v2926 = vor.u32 %v2924, %v2925
        %s2927 = scalar_lea.vmem [#allocation7], 196
        %v2928 = vld [vmem:[%s2927] ss:$8 sm:$0xf]
        %v2929 = vld [vmem:[%s2927] ss:$8 sm:$0xf0]
        %v2930 = vor.u32 %v2928, %v2929
        %v2933 = vlaneseq
        %v2934 = vshrl.u32 %v2933, 7
        %v2935 = vsub.s32 0, %v2934
        %v2936 = vrot.slane %v2926, %v2935
        %v2937 = vlaneseq
        %v2938 = vshrl.u32 %v2937, 7
        %v2939 = vsub.s32 1, %v2938
        %v2940 = vrot.slane %v2926, %v2939
        %v2941 = vlaneseq
        %v2942 = vshrl.u32 %v2941, 7
        %v2943 = vsub.s32 2, %v2942
        %v2944 = vrot.slane %v2926, %v2943
        %v2945 = vlaneseq
        %v2946 = vshrl.u32 %v2945, 7
        %v2947 = vsub.s32 3, %v2946
        %v2948 = vrot.slane %v2926, %v2947
        %v2949 = vlaneseq
        %v2950 = vshrl.u32 %v2949, 7
        %v2951 = vsub.s32 4, %v2950
        %v2952 = vrot.slane %v2926, %v2951
        %v2953 = vlaneseq
        %v2954 = vshrl.u32 %v2953, 7
        %v2955 = vsub.s32 5, %v2954
        %v2956 = vrot.slane %v2926, %v2955
        %v2957 = vlaneseq
        %v2958 = vshrl.u32 %v2957, 7
        %v2959 = vsub.s32 6, %v2958
        %v2960 = vrot.slane %v2926, %v2959
        %v2961 = vlaneseq
        %v2962 = vshrl.u32 %v2961, 7
        %v2963 = vsub.s32 7, %v2962
        %v2964 = vrot.slane %v2926, %v2963
        %v2965 = vlaneseq
        %v2966 = vshrl.u32 %v2965, 7
        %v2967 = vsub.s32 0, %v2966
        %v2968 = vrot.slane %v2930, %v2967
        %v2969 = vlaneseq
        %v2970 = vshrl.u32 %v2969, 7
        %v2971 = vsub.s32 1, %v2970
        %v2972 = vrot.slane %v2930, %v2971
        %v2973 = vlaneseq
        %v2974 = vshrl.u32 %v2973, 7
        %v2975 = vsub.s32 2, %v2974
        %v2976 = vrot.slane %v2930, %v2975
        %v2977 = vlaneseq
        %v2978 = vshrl.u32 %v2977, 7
        %v2979 = vsub.s32 3, %v2978
        %v2980 = vrot.slane %v2930, %v2979
        %v2981 = vlaneseq
        %v2982 = vshrl.u32 %v2981, 7
        %v2983 = vsub.s32 4, %v2982
        %v2984 = vrot.slane %v2930, %v2983
        %v2985 = vlaneseq
        %v2986 = vshrl.u32 %v2985, 7
        %v2987 = vsub.s32 5, %v2986
        %v2988 = vrot.slane %v2930, %v2987
        %v2989 = vlaneseq
        %v2990 = vshrl.u32 %v2989, 7
        %v2991 = vsub.s32 6, %v2990
        %v2992 = vrot.slane %v2930, %v2991
        %v2993 = vlaneseq
        %v2994 = vshrl.u32 %v2993, 7
        %v2995 = vsub.s32 7, %v2994
        %v2996 = vrot.slane %v2930, %v2995
        %v3013 = vmul.f32 %v1051, %v2936
        %v3014 = vmul.f32 %v1050, %v2940
        %v3015 = vmul.f32 %v1049, %v2944
        %v3016 = vmul.f32 %v1048, %v2948
        %v3017 = vmul.f32 %v1047, %v2952
        %v3018 = vmul.f32 %v1046, %v2956
        %v3019 = vmul.f32 %v1045, %v2960
        %v3020 = vmul.f32 %v1044, %v2964
        %v3021 = vmul.f32 %v1043, %v2968
        %v3022 = vmul.f32 %v1042, %v2972
        %v3023 = vmul.f32 %v1041, %v2976
        %v3024 = vmul.f32 %v1040, %v2980
        %v3025 = vmul.f32 %v1039, %v2984
        %v3026 = vmul.f32 %v1038, %v2988
        %v3027 = vmul.f32 %v1037, %v2992
        %v3028 = vmul.f32 %v1036, %v2996
        %v3029 = vpack.c.bf16 %v3013, %v3013
        %v3030 = vpack.c.bf16 %v3014, %v3014
        %v3031 = vpack.c.bf16 %v3015, %v3015
        %v3032 = vpack.c.bf16 %v3016, %v3016
        %v3033 = vpack.c.bf16 %v3017, %v3017
        %v3034 = vpack.c.bf16 %v3018, %v3018
        %v3035 = vpack.c.bf16 %v3019, %v3019
        %v3036 = vpack.c.bf16 %v3020, %v3020
        %v3037 = vpack.c.bf16 %v3021, %v3021
        %v3038 = vpack.c.bf16 %v3022, %v3022
        %v3039 = vpack.c.bf16 %v3023, %v3023
        %v3040 = vpack.c.bf16 %v3024, %v3024
        %v3041 = vpack.c.bf16 %v3025, %v3025
        %v3042 = vpack.c.bf16 %v3026, %v3026
        %v3043 = vpack.c.bf16 %v3027, %v3027
        %v3044 = vpack.c.bf16 %v3028, %v3028
        %v3061 = vunpack.c.l.b16 %v3029
        %v3062 = vunpack.c.l.b16 %v3030
        %v3063 = vunpack.c.l.b16 %v3031
        %v3064 = vunpack.c.l.b16 %v3032
        %v3065 = vunpack.c.l.b16 %v3033
        %v3066 = vunpack.c.l.b16 %v3034
        %v3067 = vunpack.c.l.b16 %v3035
        %v3068 = vunpack.c.l.b16 %v3036
        %v3069 = vunpack.c.l.b16 %v3037
        %v3070 = vunpack.c.l.b16 %v3038
        %v3071 = vunpack.c.l.b16 %v3039
        %v3072 = vunpack.c.l.b16 %v3040
        %v3073 = vunpack.c.l.b16 %v3041
        %v3074 = vunpack.c.l.b16 %v3042
        %v3075 = vunpack.c.l.b16 %v3043
        %v3076 = vunpack.c.l.b16 %v3044
        %v3077 = vpack.c.b16 %v3062, %v3061
        %v3078 = vpack.c.b16 %v3064, %v3063
        %v3079 = vpack.c.b16 %v3066, %v3065
        %v3080 = vpack.c.b16 %v3068, %v3067
        %v3081 = vpack.c.b16 %v3070, %v3069
        %v3082 = vpack.c.b16 %v3072, %v3071
        %v3083 = vpack.c.b16 %v3074, %v3073
        %v3084 = vpack.c.b16 %v3076, %v3075
        %3093 = vst [vmem:[#allocation3 + $0xc0] sm:$0xff] %v3077
        %3094 = vst [vmem:[#allocation3 + $0xc8] sm:$0xff] %v3078
        %3095 = vst [vmem:[#allocation3 + $0xd0] sm:$0xff] %v3079
        %3096 = vst [vmem:[#allocation3 + $0xd8] sm:$0xff] %v3080
        %3097 = vst [vmem:[#allocation3 + $0xe0] sm:$0xff] %v3081
        %3098 = vst [vmem:[#allocation3 + $0xe8] sm:$0xff] %v3082
        %3099 = vst [vmem:[#allocation3 + $0xf0] sm:$0xff] %v3083
        %3100 = vst [vmem:[#allocation3 + $0xf8] sm:$0xff] %v3084
        %s3101 = scalar_lea.vmem [#allocation7], 133
        %v3102 = vld [vmem:[%s3101] ss:$8 sm:$0xf]
        %v3103 = vld [vmem:[%s3101] ss:$8 sm:$0xf0]
        %v3104 = vor.u32 %v3102, %v3103
        %s3105 = scalar_lea.vmem [#allocation7], 197
        %v3106 = vld [vmem:[%s3105] ss:$8 sm:$0xf]
        %v3107 = vld [vmem:[%s3105] ss:$8 sm:$0xf0]
        %v3108 = vor.u32 %v3106, %v3107
        %v3111 = vlaneseq
        %v3112 = vshrl.u32 %v3111, 7
        %v3113 = vsub.s32 0, %v3112
        %v3114 = vrot.slane %v3104, %v3113
        %v3115 = vlaneseq
        %v3116 = vshrl.u32 %v3115, 7
        %v3117 = vsub.s32 1, %v3116
        %v3118 = vrot.slane %v3104, %v3117
        %v3119 = vlaneseq
        %v3120 = vshrl.u32 %v3119, 7
        %v3121 = vsub.s32 2, %v3120
        %v3122 = vrot.slane %v3104, %v3121
        %v3123 = vlaneseq
        %v3124 = vshrl.u32 %v3123, 7
        %v3125 = vsub.s32 3, %v3124
        %v3126 = vrot.slane %v3104, %v3125
        %v3127 = vlaneseq
        %v3128 = vshrl.u32 %v3127, 7
        %v3129 = vsub.s32 4, %v3128
        %v3130 = vrot.slane %v3104, %v3129
        %v3131 = vlaneseq
        %v3132 = vshrl.u32 %v3131, 7
        %v3133 = vsub.s32 5, %v3132
        %v3134 = vrot.slane %v3104, %v3133
        %v3135 = vlaneseq
        %v3136 = vshrl.u32 %v3135, 7
        %v3137 = vsub.s32 6, %v3136
        %v3138 = vrot.slane %v3104, %v3137
        %v3139 = vlaneseq
        %v3140 = vshrl.u32 %v3139, 7
        %v3141 = vsub.s32 7, %v3140
        %v3142 = vrot.slane %v3104, %v3141
        %v3143 = vlaneseq
        %v3144 = vshrl.u32 %v3143, 7
        %v3145 = vsub.s32 0, %v3144
        %v3146 = vrot.slane %v3108, %v3145
        %v3147 = vlaneseq
        %v3148 = vshrl.u32 %v3147, 7
        %v3149 = vsub.s32 1, %v3148
        %v3150 = vrot.slane %v3108, %v3149
        %v3151 = vlaneseq
        %v3152 = vshrl.u32 %v3151, 7
        %v3153 = vsub.s32 2, %v3152
        %v3154 = vrot.slane %v3108, %v3153
        %v3155 = vlaneseq
        %v3156 = vshrl.u32 %v3155, 7
        %v3157 = vsub.s32 3, %v3156
        %v3158 = vrot.slane %v3108, %v3157
        %v3159 = vlaneseq
        %v3160 = vshrl.u32 %v3159, 7
        %v3161 = vsub.s32 4, %v3160
        %v3162 = vrot.slane %v3108, %v3161
        %v3163 = vlaneseq
        %v3164 = vshrl.u32 %v3163, 7
        %v3165 = vsub.s32 5, %v3164
        %v3166 = vrot.slane %v3108, %v3165
        %v3167 = vlaneseq
        %v3168 = vshrl.u32 %v3167, 7
        %v3169 = vsub.s32 6, %v3168
        %v3170 = vrot.slane %v3108, %v3169
        %v3171 = vlaneseq
        %v3172 = vshrl.u32 %v3171, 7
        %v3173 = vsub.s32 7, %v3172
        %v3174 = vrot.slane %v3108, %v3173
        %v3191 = vmul.f32 %v305, %v3114
        %v3192 = vmul.f32 %v306, %v3118
        %v3193 = vmul.f32 %v307, %v3122
        %v3194 = vmul.f32 %v308, %v3126
        %v3195 = vmul.f32 %v309, %v3130
        %v3196 = vmul.f32 %v310, %v3134
        %v3197 = vmul.f32 %v311, %v3138
        %v3198 = vmul.f32 %v312, %v3142
        %v3199 = vmul.f32 %v313, %v3146
        %v3200 = vmul.f32 %v314, %v3150
        %v3201 = vmul.f32 %v315, %v3154
        %v3202 = vmul.f32 %v316, %v3158
        %v3203 = vmul.f32 %v317, %v3162
        %v3204 = vmul.f32 %v318, %v3166
        %v3205 = vmul.f32 %v319, %v3170
        %v3206 = vmul.f32 %v320, %v3174
        %v3207 = vpack.c.bf16 %v3191, %v3191
        %v3208 = vpack.c.bf16 %v3192, %v3192
        %v3209 = vpack.c.bf16 %v3193, %v3193
        %v3210 = vpack.c.bf16 %v3194, %v3194
        %v3211 = vpack.c.bf16 %v3195, %v3195
        %v3212 = vpack.c.bf16 %v3196, %v3196
        %v3213 = vpack.c.bf16 %v3197, %v3197
        %v3214 = vpack.c.bf16 %v3198, %v3198
        %v3215 = vpack.c.bf16 %v3199, %v3199
        %v3216 = vpack.c.bf16 %v3200, %v3200
        %v3217 = vpack.c.bf16 %v3201, %v3201
        %v3218 = vpack.c.bf16 %v3202, %v3202
        %v3219 = vpack.c.bf16 %v3203, %v3203
        %v3220 = vpack.c.bf16 %v3204, %v3204
        %v3221 = vpack.c.bf16 %v3205, %v3205
        %v3222 = vpack.c.bf16 %v3206, %v3206
        %v3239 = vunpack.c.l.b16 %v3207
        %v3240 = vunpack.c.l.b16 %v3208
        %v3241 = vunpack.c.l.b16 %v3209
        %v3242 = vunpack.c.l.b16 %v3210
        %v3243 = vunpack.c.l.b16 %v3211
        %v3244 = vunpack.c.l.b16 %v3212
        %v3245 = vunpack.c.l.b16 %v3213
        %v3246 = vunpack.c.l.b16 %v3214
        %v3247 = vunpack.c.l.b16 %v3215
        %v3248 = vunpack.c.l.b16 %v3216
        %v3249 = vunpack.c.l.b16 %v3217
        %v3250 = vunpack.c.l.b16 %v3218
        %v3251 = vunpack.c.l.b16 %v3219
        %v3252 = vunpack.c.l.b16 %v3220
        %v3253 = vunpack.c.l.b16 %v3221
        %v3254 = vunpack.c.l.b16 %v3222
        %v3255 = vpack.c.b16 %v3240, %v3239
        %v3256 = vpack.c.b16 %v3242, %v3241
        %v3257 = vpack.c.b16 %v3244, %v3243
        %v3258 = vpack.c.b16 %v3246, %v3245
        %v3259 = vpack.c.b16 %v3248, %v3247
        %v3260 = vpack.c.b16 %v3250, %v3249
        %v3261 = vpack.c.b16 %v3252, %v3251
        %v3262 = vpack.c.b16 %v3254, %v3253
        %3271 = vst [vmem:[#allocation3 + $0x100] sm:$0xff] %v3255
        %3272 = vst [vmem:[#allocation3 + $0x108] sm:$0xff] %v3256
        %3273 = vst [vmem:[#allocation3 + $0x110] sm:$0xff] %v3257
        %3274 = vst [vmem:[#allocation3 + $0x118] sm:$0xff] %v3258
        %3275 = vst [vmem:[#allocation3 + $0x120] sm:$0xff] %v3259
        %3276 = vst [vmem:[#allocation3 + $0x128] sm:$0xff] %v3260
        %3277 = vst [vmem:[#allocation3 + $0x130] sm:$0xff] %v3261
        %3278 = vst [vmem:[#allocation3 + $0x138] sm:$0xff] %v3262
        %s3279 = scalar_lea.vmem [#allocation7], 134
        %v3280 = vld [vmem:[%s3279] ss:$8 sm:$0xf]
        %v3281 = vld [vmem:[%s3279] ss:$8 sm:$0xf0]
        %v3282 = vor.u32 %v3280, %v3281
        %s3283 = scalar_lea.vmem [#allocation7], 198
        %v3284 = vld [vmem:[%s3283] ss:$8 sm:$0xf]
        %v3285 = vld [vmem:[%s3283] ss:$8 sm:$0xf0]
        %v3286 = vor.u32 %v3284, %v3285
        %v3289 = vlaneseq
        %v3290 = vshrl.u32 %v3289, 7
        %v3291 = vsub.s32 0, %v3290
        %v3292 = vrot.slane %v3282, %v3291
        %v3293 = vlaneseq
        %v3294 = vshrl.u32 %v3293, 7
        %v3295 = vsub.s32 1, %v3294
        %v3296 = vrot.slane %v3282, %v3295
        %v3297 = vlaneseq
        %v3298 = vshrl.u32 %v3297, 7
        %v3299 = vsub.s32 2, %v3298
        %v3300 = vrot.slane %v3282, %v3299
        %v3301 = vlaneseq
        %v3302 = vshrl.u32 %v3301, 7
        %v3303 = vsub.s32 3, %v3302
        %v3304 = vrot.slane %v3282, %v3303
        %v3305 = vlaneseq
        %v3306 = vshrl.u32 %v3305, 7
        %v3307 = vsub.s32 4, %v3306
        %v3308 = vrot.slane %v3282, %v3307
        %v3309 = vlaneseq
        %v3310 = vshrl.u32 %v3309, 7
        %v3311 = vsub.s32 5, %v3310
        %v3312 = vrot.slane %v3282, %v3311
        %v3313 = vlaneseq
        %v3314 = vshrl.u32 %v3313, 7
        %v3315 = vsub.s32 6, %v3314
        %v3316 = vrot.slane %v3282, %v3315
        %v3317 = vlaneseq
        %v3318 = vshrl.u32 %v3317, 7
        %v3319 = vsub.s32 7, %v3318
        %v3320 = vrot.slane %v3282, %v3319
        %v3321 = vlaneseq
        %v3322 = vshrl.u32 %v3321, 7
        %v3323 = vsub.s32 0, %v3322
        %v3324 = vrot.slane %v3286, %v3323
        %v3325 = vlaneseq
        %v3326 = vshrl.u32 %v3325, 7
        %v3327 = vsub.s32 1, %v3326
        %v3328 = vrot.slane %v3286, %v3327
        %v3329 = vlaneseq
        %v3330 = vshrl.u32 %v3329, 7
        %v3331 = vsub.s32 2, %v3330
        %v3332 = vrot.slane %v3286, %v3331
        %v3333 = vlaneseq
        %v3334 = vshrl.u32 %v3333, 7
        %v3335 = vsub.s32 3, %v3334
        %v3336 = vrot.slane %v3286, %v3335
        %v3337 = vlaneseq
        %v3338 = vshrl.u32 %v3337, 7
        %v3339 = vsub.s32 4, %v3338
        %v3340 = vrot.slane %v3286, %v3339
        %v3341 = vlaneseq
        %v3342 = vshrl.u32 %v3341, 7
        %v3343 = vsub.s32 5, %v3342
        %v3344 = vrot.slane %v3286, %v3343
        %v3345 = vlaneseq
        %v3346 = vshrl.u32 %v3345, 7
        %v3347 = vsub.s32 6, %v3346
        %v3348 = vrot.slane %v3286, %v3347
        %v3349 = vlaneseq
        %v3350 = vshrl.u32 %v3349, 7
        %v3351 = vsub.s32 7, %v3350
        %v3352 = vrot.slane %v3286, %v3351
        %v3369 = vmul.f32 %v1455, %v3292
        %v3370 = vmul.f32 %v1454, %v3296
        %v3371 = vmul.f32 %v1453, %v3300
        %v3372 = vmul.f32 %v1452, %v3304
        %v3373 = vmul.f32 %v1451, %v3308
        %v3374 = vmul.f32 %v1450, %v3312
        %v3375 = vmul.f32 %v1449, %v3316
        %v3376 = vmul.f32 %v1448, %v3320
        %v3377 = vmul.f32 %v1447, %v3324
        %v3378 = vmul.f32 %v1446, %v3328
        %v3379 = vmul.f32 %v1445, %v3332
        %v3380 = vmul.f32 %v1444, %v3336
        %v3381 = vmul.f32 %v1443, %v3340
        %v3382 = vmul.f32 %v1442, %v3344
        %v3383 = vmul.f32 %v1441, %v3348
        %v3384 = vmul.f32 %v1456, %v3352
        %v3385 = vpack.c.bf16 %v3369, %v3369
        %v3386 = vpack.c.bf16 %v3370, %v3370
        %v3387 = vpack.c.bf16 %v3371, %v3371
        %v3388 = vpack.c.bf16 %v3372, %v3372
        %v3389 = vpack.c.bf16 %v3373, %v3373
        %v3390 = vpack.c.bf16 %v3374, %v3374
        %v3391 = vpack.c.bf16 %v3375, %v3375
        %v3392 = vpack.c.bf16 %v3376, %v3376
        %v3393 = vpack.c.bf16 %v3377, %v3377
        %v3394 = vpack.c.bf16 %v3378, %v3378
        %v3395 = vpack.c.bf16 %v3379, %v3379
        %v3396 = vpack.c.bf16 %v3380, %v3380
        %v3397 = vpack.c.bf16 %v3381, %v3381
        %v3398 = vpack.c.bf16 %v3382, %v3382
        %v3399 = vpack.c.bf16 %v3383, %v3383
        %v3400 = vpack.c.bf16 %v3384, %v3384
        %v3417 = vunpack.c.l.b16 %v3385
        %v3418 = vunpack.c.l.b16 %v3386
        %v3419 = vunpack.c.l.b16 %v3387
        %v3420 = vunpack.c.l.b16 %v3388
        %v3421 = vunpack.c.l.b16 %v3389
        %v3422 = vunpack.c.l.b16 %v3390
        %v3423 = vunpack.c.l.b16 %v3391
        %v3424 = vunpack.c.l.b16 %v3392
        %v3425 = vunpack.c.l.b16 %v3393
        %v3426 = vunpack.c.l.b16 %v3394
        %v3427 = vunpack.c.l.b16 %v3395
        %v3428 = vunpack.c.l.b16 %v3396
        %v3429 = vunpack.c.l.b16 %v3397
        %v3430 = vunpack.c.l.b16 %v3398
        %v3431 = vunpack.c.l.b16 %v3399
        %v3432 = vunpack.c.l.b16 %v3400
        %v3433 = vpack.c.b16 %v3418, %v3417
        %v3434 = vpack.c.b16 %v3420, %v3419
        %v3435 = vpack.c.b16 %v3422, %v3421
        %v3436 = vpack.c.b16 %v3424, %v3423
        %v3437 = vpack.c.b16 %v3426, %v3425
        %v3438 = vpack.c.b16 %v3428, %v3427
        %v3439 = vpack.c.b16 %v3430, %v3429
        %v3440 = vpack.c.b16 %v3432, %v3431
        %3449 = vst [vmem:[#allocation3 + $0x140] sm:$0xff] %v3433
        %3450 = vst [vmem:[#allocation3 + $0x148] sm:$0xff] %v3434
        %3451 = vst [vmem:[#allocation3 + $0x150] sm:$0xff] %v3435
        %3452 = vst [vmem:[#allocation3 + $0x158] sm:$0xff] %v3436
        %3453 = vst [vmem:[#allocation3 + $0x160] sm:$0xff] %v3437
        %3454 = vst [vmem:[#allocation3 + $0x168] sm:$0xff] %v3438
        %3455 = vst [vmem:[#allocation3 + $0x170] sm:$0xff] %v3439
        %3456 = vst [vmem:[#allocation3 + $0x178] sm:$0xff] %v3440
        %s3457 = scalar_lea.vmem [#allocation7], 135
        %v3458 = vld [vmem:[%s3457] ss:$8 sm:$0xf]
        %v3459 = vld [vmem:[%s3457] ss:$8 sm:$0xf0]
        %v3460 = vor.u32 %v3458, %v3459
        %s3461 = scalar_lea.vmem [#allocation7], 199
        %v3462 = vld [vmem:[%s3461] ss:$8 sm:$0xf]
        %v3463 = vld [vmem:[%s3461] ss:$8 sm:$0xf0]
        %v3464 = vor.u32 %v3462, %v3463
        %v3467 = vlaneseq
        %v3468 = vshrl.u32 %v3467, 7
        %v3469 = vsub.s32 0, %v3468
        %v3470 = vrot.slane %v3460, %v3469
        %v3471 = vlaneseq
        %v3472 = vshrl.u32 %v3471, 7
        %v3473 = vsub.s32 1, %v3472
        %v3474 = vrot.slane %v3460, %v3473
        %v3475 = vlaneseq
        %v3476 = vshrl.u32 %v3475, 7
        %v3477 = vsub.s32 2, %v3476
        %v3478 = vrot.slane %v3460, %v3477
        %v3479 = vlaneseq
        %v3480 = vshrl.u32 %v3479, 7
        %v3481 = vsub.s32 3, %v3480
        %v3482 = vrot.slane %v3460, %v3481
        %v3483 = vlaneseq
        %v3484 = vshrl.u32 %v3483, 7
        %v3485 = vsub.s32 4, %v3484
        %v3486 = vrot.slane %v3460, %v3485
        %v3487 = vlaneseq
        %v3488 = vshrl.u32 %v3487, 7
        %v3489 = vsub.s32 5, %v3488
        %v3490 = vrot.slane %v3460, %v3489
        %v3491 = vlaneseq
        %v3492 = vshrl.u32 %v3491, 7
        %v3493 = vsub.s32 6, %v3492
        %v3494 = vrot.slane %v3460, %v3493
        %v3495 = vlaneseq
        %v3496 = vshrl.u32 %v3495, 7
        %v3497 = vsub.s32 7, %v3496
        %v3498 = vrot.slane %v3460, %v3497
        %v3499 = vlaneseq
        %v3500 = vshrl.u32 %v3499, 7
        %v3501 = vsub.s32 0, %v3500
        %v3502 = vrot.slane %v3464, %v3501
        %v3503 = vlaneseq
        %v3504 = vshrl.u32 %v3503, 7
        %v3505 = vsub.s32 1, %v3504
        %v3506 = vrot.slane %v3464, %v3505
        %v3507 = vlaneseq
        %v3508 = vshrl.u32 %v3507, 7
        %v3509 = vsub.s32 2, %v3508
        %v3510 = vrot.slane %v3464, %v3509
        %v3511 = vlaneseq
        %v3512 = vshrl.u32 %v3511, 7
        %v3513 = vsub.s32 3, %v3512
        %v3514 = vrot.slane %v3464, %v3513
        %v3515 = vlaneseq
        %v3516 = vshrl.u32 %v3515, 7
        %v3517 = vsub.s32 4, %v3516
        %v3518 = vrot.slane %v3464, %v3517
        %v3519 = vlaneseq
        %v3520 = vshrl.u32 %v3519, 7
        %v3521 = vsub.s32 5, %v3520
        %v3522 = vrot.slane %v3464, %v3521
        %v3523 = vlaneseq
        %v3524 = vshrl.u32 %v3523, 7
        %v3525 = vsub.s32 6, %v3524
        %v3526 = vrot.slane %v3464, %v3525
        %v3527 = vlaneseq
        %v3528 = vshrl.u32 %v3527, 7
        %v3529 = vsub.s32 7, %v3528
        %v3530 = vrot.slane %v3464, %v3529
        %v3547 = vmul.f32 %v1682, %v3470
        %v3548 = vmul.f32 %v1681, %v3474
        %v3549 = vmul.f32 %v1680, %v3478
        %v3550 = vmul.f32 %v1679, %v3482
        %v3551 = vmul.f32 %v1678, %v3486
        %v3552 = vmul.f32 %v1677, %v3490
        %v3553 = vmul.f32 %v1676, %v3494
        %v3554 = vmul.f32 %v1675, %v3498
        %v3555 = vmul.f32 %v1674, %v3502
        %v3556 = vmul.f32 %v1673, %v3506
        %v3557 = vmul.f32 %v1672, %v3510
        %v3558 = vmul.f32 %v1671, %v3514
        %v3559 = vmul.f32 %v1670, %v3518
        %v3560 = vmul.f32 %v1669, %v3522
        %v3561 = vmul.f32 %v1668, %v3526
        %v3562 = vmul.f32 %v1683, %v3530
        %v3563 = vpack.c.bf16 %v3547, %v3547
        %v3564 = vpack.c.bf16 %v3548, %v3548
        %v3565 = vpack.c.bf16 %v3549, %v3549
        %v3566 = vpack.c.bf16 %v3550, %v3550
        %v3567 = vpack.c.bf16 %v3551, %v3551
        %v3568 = vpack.c.bf16 %v3552, %v3552
        %v3569 = vpack.c.bf16 %v3553, %v3553
        %v3570 = vpack.c.bf16 %v3554, %v3554
        %v3571 = vpack.c.bf16 %v3555, %v3555
        %v3572 = vpack.c.bf16 %v3556, %v3556
        %v3573 = vpack.c.bf16 %v3557, %v3557
        %v3574 = vpack.c.bf16 %v3558, %v3558
        %v3575 = vpack.c.bf16 %v3559, %v3559
        %v3576 = vpack.c.bf16 %v3560, %v3560
        %v3577 = vpack.c.bf16 %v3561, %v3561
        %v3578 = vpack.c.bf16 %v3562, %v3562
        %v3595 = vunpack.c.l.b16 %v3563
        %v3596 = vunpack.c.l.b16 %v3564
        %v3597 = vunpack.c.l.b16 %v3565
        %v3598 = vunpack.c.l.b16 %v3566
        %v3599 = vunpack.c.l.b16 %v3567
        %v3600 = vunpack.c.l.b16 %v3568
        %v3601 = vunpack.c.l.b16 %v3569
        %v3602 = vunpack.c.l.b16 %v3570
        %v3603 = vunpack.c.l.b16 %v3571
        %v3604 = vunpack.c.l.b16 %v3572
        %v3605 = vunpack.c.l.b16 %v3573
        %v3606 = vunpack.c.l.b16 %v3574
        %v3607 = vunpack.c.l.b16 %v3575
        %v3608 = vunpack.c.l.b16 %v3576
        %v3609 = vunpack.c.l.b16 %v3577
        %v3610 = vunpack.c.l.b16 %v3578
        %v3611 = vpack.c.b16 %v3596, %v3595
        %v3612 = vpack.c.b16 %v3598, %v3597
        %v3613 = vpack.c.b16 %v3600, %v3599
        %v3614 = vpack.c.b16 %v3602, %v3601
        %v3615 = vpack.c.b16 %v3604, %v3603
        %v3616 = vpack.c.b16 %v3606, %v3605
        %v3617 = vpack.c.b16 %v3608, %v3607
        %v3618 = vpack.c.b16 %v3610, %v3609
        %3627 = vst [vmem:[#allocation3 + $0x180] sm:$0xff] %v3611
        %3628 = vst [vmem:[#allocation3 + $0x188] sm:$0xff] %v3612
        %3629 = vst [vmem:[#allocation3 + $0x190] sm:$0xff] %v3613
        %3630 = vst [vmem:[#allocation3 + $0x198] sm:$0xff] %v3614
        %3631 = vst [vmem:[#allocation3 + $0x1a0] sm:$0xff] %v3615
        %3632 = vst [vmem:[#allocation3 + $0x1a8] sm:$0xff] %v3616
        %3633 = vst [vmem:[#allocation3 + $0x1b0] sm:$0xff] %v3617
        %3634 = vst [vmem:[#allocation3 + $0x1b8] sm:$0xff] %v3618
        %s3635 = scalar_lea.vmem [#allocation7], 256
        %v3636 = vld [vmem:[%s3635] ss:$8 sm:$0xf]
        %v3637 = vld [vmem:[%s3635] ss:$8 sm:$0xf0]
        %v3638 = vor.u32 %v3636, %v3637
        %s3639 = scalar_lea.vmem [#allocation7], 320
        %v3640 = vld [vmem:[%s3639] ss:$8 sm:$0xf]
        %v3641 = vld [vmem:[%s3639] ss:$8 sm:$0xf0]
        %v3642 = vor.u32 %v3640, %v3641
        %v3645 = vlaneseq
        %v3646 = vshrl.u32 %v3645, 7
        %v3647 = vsub.s32 0, %v3646
        %v3648 = vrot.slane %v3638, %v3647
        %v3649 = vlaneseq
        %v3650 = vshrl.u32 %v3649, 7
        %v3651 = vsub.s32 1, %v3650
        %v3652 = vrot.slane %v3638, %v3651
        %v3653 = vlaneseq
        %v3654 = vshrl.u32 %v3653, 7
        %v3655 = vsub.s32 2, %v3654
        %v3656 = vrot.slane %v3638, %v3655
        %v3657 = vlaneseq
        %v3658 = vshrl.u32 %v3657, 7
        %v3659 = vsub.s32 3, %v3658
        %v3660 = vrot.slane %v3638, %v3659
        %v3661 = vlaneseq
        %v3662 = vshrl.u32 %v3661, 7
        %v3663 = vsub.s32 4, %v3662
        %v3664 = vrot.slane %v3638, %v3663
        %v3665 = vlaneseq
        %v3666 = vshrl.u32 %v3665, 7
        %v3667 = vsub.s32 5, %v3666
        %v3668 = vrot.slane %v3638, %v3667
        %v3669 = vlaneseq
        %v3670 = vshrl.u32 %v3669, 7
        %v3671 = vsub.s32 6, %v3670
        %v3672 = vrot.slane %v3638, %v3671
        %v3673 = vlaneseq
        %v3674 = vshrl.u32 %v3673, 7
        %v3675 = vsub.s32 7, %v3674
        %v3676 = vrot.slane %v3638, %v3675
        %v3677 = vlaneseq
        %v3678 = vshrl.u32 %v3677, 7
        %v3679 = vsub.s32 0, %v3678
        %v3680 = vrot.slane %v3642, %v3679
        %v3681 = vlaneseq
        %v3682 = vshrl.u32 %v3681, 7
        %v3683 = vsub.s32 1, %v3682
        %v3684 = vrot.slane %v3642, %v3683
        %v3685 = vlaneseq
        %v3686 = vshrl.u32 %v3685, 7
        %v3687 = vsub.s32 2, %v3686
        %v3688 = vrot.slane %v3642, %v3687
        %v3689 = vlaneseq
        %v3690 = vshrl.u32 %v3689, 7
        %v3691 = vsub.s32 3, %v3690
        %v3692 = vrot.slane %v3642, %v3691
        %v3693 = vlaneseq
        %v3694 = vshrl.u32 %v3693, 7
        %v3695 = vsub.s32 4, %v3694
        %v3696 = vrot.slane %v3642, %v3695
        %v3697 = vlaneseq
        %v3698 = vshrl.u32 %v3697, 7
        %v3699 = vsub.s32 5, %v3698
        %v3700 = vrot.slane %v3642, %v3699
        %v3701 = vlaneseq
        %v3702 = vshrl.u32 %v3701, 7
        %v3703 = vsub.s32 6, %v3702
        %v3704 = vrot.slane %v3642, %v3703
        %v3705 = vlaneseq
        %v3706 = vshrl.u32 %v3705, 7
        %v3707 = vsub.s32 7, %v3706
        %v3708 = vrot.slane %v3642, %v3707
        %v3725 = vmul.f32 %v1909, %v3648
        %v3726 = vmul.f32 %v1908, %v3652
        %v3727 = vmul.f32 %v1907, %v3656
        %v3728 = vmul.f32 %v1906, %v3660
        %v3729 = vmul.f32 %v1905, %v3664
        %v3730 = vmul.f32 %v1904, %v3668
        %v3731 = vmul.f32 %v1903, %v3672
        %v3732 = vmul.f32 %v1902, %v3676
        %v3733 = vmul.f32 %v1901, %v3680
        %v3734 = vmul.f32 %v1900, %v3684
        %v3735 = vmul.f32 %v1899, %v3688
        %v3736 = vmul.f32 %v1898, %v3692
        %v3737 = vmul.f32 %v1897, %v3696
        %v3738 = vmul.f32 %v1896, %v3700
        %v3739 = vmul.f32 %v1895, %v3704
        %v3740 = vmul.f32 %v1910, %v3708
        %v3741 = vpack.c.bf16 %v3725, %v3725
        %v3742 = vpack.c.bf16 %v3726, %v3726
        %v3743 = vpack.c.bf16 %v3727, %v3727
        %v3744 = vpack.c.bf16 %v3728, %v3728
        %v3745 = vpack.c.bf16 %v3729, %v3729
        %v3746 = vpack.c.bf16 %v3730, %v3730
        %v3747 = vpack.c.bf16 %v3731, %v3731
        %v3748 = vpack.c.bf16 %v3732, %v3732
        %v3749 = vpack.c.bf16 %v3733, %v3733
        %v3750 = vpack.c.bf16 %v3734, %v3734
        %v3751 = vpack.c.bf16 %v3735, %v3735
        %v3752 = vpack.c.bf16 %v3736, %v3736
        %v3753 = vpack.c.bf16 %v3737, %v3737
        %v3754 = vpack.c.bf16 %v3738, %v3738
        %v3755 = vpack.c.bf16 %v3739, %v3739
        %v3756 = vpack.c.bf16 %v3740, %v3740
        %v3773 = vunpack.c.l.b16 %v3741
        %v3774 = vunpack.c.l.b16 %v3742
        %v3775 = vunpack.c.l.b16 %v3743
        %v3776 = vunpack.c.l.b16 %v3744
        %v3777 = vunpack.c.l.b16 %v3745
        %v3778 = vunpack.c.l.b16 %v3746
        %v3779 = vunpack.c.l.b16 %v3747
        %v3780 = vunpack.c.l.b16 %v3748
        %v3781 = vunpack.c.l.b16 %v3749
        %v3782 = vunpack.c.l.b16 %v3750
        %v3783 = vunpack.c.l.b16 %v3751
        %v3784 = vunpack.c.l.b16 %v3752
        %v3785 = vunpack.c.l.b16 %v3753
        %v3786 = vunpack.c.l.b16 %v3754
        %v3787 = vunpack.c.l.b16 %v3755
        %v3788 = vunpack.c.l.b16 %v3756
        %v3789 = vpack.c.b16 %v3774, %v3773
        %v3790 = vpack.c.b16 %v3776, %v3775
        %v3791 = vpack.c.b16 %v3778, %v3777
        %v3792 = vpack.c.b16 %v3780, %v3779
        %v3793 = vpack.c.b16 %v3782, %v3781
        %v3794 = vpack.c.b16 %v3784, %v3783
        %v3795 = vpack.c.b16 %v3786, %v3785
        %v3796 = vpack.c.b16 %v3788, %v3787
        %3805 = vst [vmem:[#allocation3 + $0x1c0] sm:$0xff] %v3789
        %3806 = vst [vmem:[#allocation3 + $0x1c8] sm:$0xff] %v3790
        %3807 = vst [vmem:[#allocation3 + $0x1d0] sm:$0xff] %v3791
        %3808 = vst [vmem:[#allocation3 + $0x1d8] sm:$0xff] %v3792
        %3809 = vst [vmem:[#allocation3 + $0x1e0] sm:$0xff] %v3793
        %3810 = vst [vmem:[#allocation3 + $0x1e8] sm:$0xff] %v3794
        %3811 = vst [vmem:[#allocation3 + $0x1f0] sm:$0xff] %v3795
        %3812 = vst [vmem:[#allocation3 + $0x1f8] sm:$0xff] %v3796
        %s3813 = scalar_lea.vmem [#allocation7], 257
        %v3814 = vld [vmem:[%s3813] ss:$8 sm:$0xf]
        %v3815 = vld [vmem:[%s3813] ss:$8 sm:$0xf0]
        %v3816 = vor.u32 %v3814, %v3815
        %s3817 = scalar_lea.vmem [#allocation7], 321
        %v3818 = vld [vmem:[%s3817] ss:$8 sm:$0xf]
        %v3819 = vld [vmem:[%s3817] ss:$8 sm:$0xf0]
        %v3820 = vor.u32 %v3818, %v3819
        %v3823 = vlaneseq
        %v3824 = vshrl.u32 %v3823, 7
        %v3825 = vsub.s32 0, %v3824
        %v3826 = vrot.slane %v3816, %v3825
        %v3827 = vlaneseq
        %v3828 = vshrl.u32 %v3827, 7
        %v3829 = vsub.s32 1, %v3828
        %v3830 = vrot.slane %v3816, %v3829
        %v3831 = vlaneseq
        %v3832 = vshrl.u32 %v3831, 7
        %v3833 = vsub.s32 2, %v3832
        %v3834 = vrot.slane %v3816, %v3833
        %v3835 = vlaneseq
        %v3836 = vshrl.u32 %v3835, 7
        %v3837 = vsub.s32 3, %v3836
        %v3838 = vrot.slane %v3816, %v3837
        %v3839 = vlaneseq
        %v3840 = vshrl.u32 %v3839, 7
        %v3841 = vsub.s32 4, %v3840
        %v3842 = vrot.slane %v3816, %v3841
        %v3843 = vlaneseq
        %v3844 = vshrl.u32 %v3843, 7
        %v3845 = vsub.s32 5, %v3844
        %v3846 = vrot.slane %v3816, %v3845
        %v3847 = vlaneseq
        %v3848 = vshrl.u32 %v3847, 7
        %v3849 = vsub.s32 6, %v3848
        %v3850 = vrot.slane %v3816, %v3849
        %v3851 = vlaneseq
        %v3852 = vshrl.u32 %v3851, 7
        %v3853 = vsub.s32 7, %v3852
        %v3854 = vrot.slane %v3816, %v3853
        %v3855 = vlaneseq
        %v3856 = vshrl.u32 %v3855, 7
        %v3857 = vsub.s32 0, %v3856
        %v3858 = vrot.slane %v3820, %v3857
        %v3859 = vlaneseq
        %v3860 = vshrl.u32 %v3859, 7
        %v3861 = vsub.s32 1, %v3860
        %v3862 = vrot.slane %v3820, %v3861
        %v3863 = vlaneseq
        %v3864 = vshrl.u32 %v3863, 7
        %v3865 = vsub.s32 2, %v3864
        %v3866 = vrot.slane %v3820, %v3865
        %v3867 = vlaneseq
        %v3868 = vshrl.u32 %v3867, 7
        %v3869 = vsub.s32 3, %v3868
        %v3870 = vrot.slane %v3820, %v3869
        %v3871 = vlaneseq
        %v3872 = vshrl.u32 %v3871, 7
        %v3873 = vsub.s32 4, %v3872
        %v3874 = vrot.slane %v3820, %v3873
        %v3875 = vlaneseq
        %v3876 = vshrl.u32 %v3875, 7
        %v3877 = vsub.s32 5, %v3876
        %v3878 = vrot.slane %v3820, %v3877
        %v3879 = vlaneseq
        %v3880 = vshrl.u32 %v3879, 7
        %v3881 = vsub.s32 6, %v3880
        %v3882 = vrot.slane %v3820, %v3881
        %v3883 = vlaneseq
        %v3884 = vshrl.u32 %v3883, 7
        %v3885 = vsub.s32 7, %v3884
        %v3886 = vrot.slane %v3820, %v3885
        %v3903 = vmul.f32 %v2136, %v3826
        %v3904 = vmul.f32 %v2135, %v3830
        %v3905 = vmul.f32 %v2134, %v3834
        %v3906 = vmul.f32 %v2133, %v3838
        %v3907 = vmul.f32 %v2132, %v3842
        %v3908 = vmul.f32 %v2131, %v3846
        %v3909 = vmul.f32 %v2130, %v3850
        %v3910 = vmul.f32 %v2129, %v3854
        %v3911 = vmul.f32 %v2128, %v3858
        %v3912 = vmul.f32 %v2127, %v3862
        %v3913 = vmul.f32 %v2126, %v3866
        %v3914 = vmul.f32 %v2125, %v3870
        %v3915 = vmul.f32 %v2124, %v3874
        %v3916 = vmul.f32 %v2123, %v3878
        %v3917 = vmul.f32 %v2122, %v3882
        %v3918 = vmul.f32 %v2137, %v3886
        %v3919 = vpack.c.bf16 %v3903, %v3903
        %v3920 = vpack.c.bf16 %v3904, %v3904
        %v3921 = vpack.c.bf16 %v3905, %v3905
        %v3922 = vpack.c.bf16 %v3906, %v3906
        %v3923 = vpack.c.bf16 %v3907, %v3907
        %v3924 = vpack.c.bf16 %v3908, %v3908
        %v3925 = vpack.c.bf16 %v3909, %v3909
        %v3926 = vpack.c.bf16 %v3910, %v3910
        %v3927 = vpack.c.bf16 %v3911, %v3911
        %v3928 = vpack.c.bf16 %v3912, %v3912
        %v3929 = vpack.c.bf16 %v3913, %v3913
        %v3930 = vpack.c.bf16 %v3914, %v3914
        %v3931 = vpack.c.bf16 %v3915, %v3915
        %v3932 = vpack.c.bf16 %v3916, %v3916
        %v3933 = vpack.c.bf16 %v3917, %v3917
        %v3934 = vpack.c.bf16 %v3918, %v3918
        %v3951 = vunpack.c.l.b16 %v3919
        %v3952 = vunpack.c.l.b16 %v3920
        %v3953 = vunpack.c.l.b16 %v3921
        %v3954 = vunpack.c.l.b16 %v3922
        %v3955 = vunpack.c.l.b16 %v3923
        %v3956 = vunpack.c.l.b16 %v3924
        %v3957 = vunpack.c.l.b16 %v3925
        %v3958 = vunpack.c.l.b16 %v3926
        %v3959 = vunpack.c.l.b16 %v3927
        %v3960 = vunpack.c.l.b16 %v3928
        %v3961 = vunpack.c.l.b16 %v3929
        %v3962 = vunpack.c.l.b16 %v3930
        %v3963 = vunpack.c.l.b16 %v3931
        %v3964 = vunpack.c.l.b16 %v3932
        %v3965 = vunpack.c.l.b16 %v3933
        %v3966 = vunpack.c.l.b16 %v3934
        %v3967 = vpack.c.b16 %v3952, %v3951
        %v3968 = vpack.c.b16 %v3954, %v3953
        %v3969 = vpack.c.b16 %v3956, %v3955
        %v3970 = vpack.c.b16 %v3958, %v3957
        %v3971 = vpack.c.b16 %v3960, %v3959
        %v3972 = vpack.c.b16 %v3962, %v3961
        %v3973 = vpack.c.b16 %v3964, %v3963
        %v3974 = vpack.c.b16 %v3966, %v3965
        %3983 = vst [vmem:[#allocation3 + $0x200] sm:$0xff] %v3967
        %3984 = vst [vmem:[#allocation3 + $0x208] sm:$0xff] %v3968
        %3985 = vst [vmem:[#allocation3 + $0x210] sm:$0xff] %v3969
        %3986 = vst [vmem:[#allocation3 + $0x218] sm:$0xff] %v3970
        %3987 = vst [vmem:[#allocation3 + $0x220] sm:$0xff] %v3971
        %3988 = vst [vmem:[#allocation3 + $0x228] sm:$0xff] %v3972
        %3989 = vst [vmem:[#allocation3 + $0x230] sm:$0xff] %v3973
        %3990 = vst [vmem:[#allocation3 + $0x238] sm:$0xff] %v3974
        %s3991 = scalar_lea.vmem %s1, 4
        %v3992 = vld [vmem:[%s3991] sm:$0xf]
        %v3993 = vld [vmem:[#allocation3] sm:$0xff]
        %v3994 = vld [vmem:[#allocation3 + $0x8] sm:$0xff]
        %v3995 = vld [vmem:[#allocation3 + $0x10] sm:$0xff]
        %v3996 = vld [vmem:[#allocation3 + $0x18] sm:$0xff]
        %v3997 = vld [vmem:[#allocation3 + $0x20] sm:$0xff]
        %v3998 = vld [vmem:[#allocation3 + $0x28] sm:$0xff]
        %v3999 = vld [vmem:[#allocation3 + $0x30] sm:$0xff]
        %v4000 = vld [vmem:[#allocation3 + $0x38] sm:$0xff]
        %v4001 = vld [vmem:[#allocation3 + $0x40] sm:$0xff]
        %v4002 = vld [vmem:[#allocation3 + $0x48] sm:$0xff]
        %v4003 = vld [vmem:[#allocation3 + $0x50] sm:$0xff]
        %v4004 = vld [vmem:[#allocation3 + $0x58] sm:$0xff]
        %v4005 = vld [vmem:[#allocation3 + $0x60] sm:$0xff]
        %v4006 = vld [vmem:[#allocation3 + $0x68] sm:$0xff]
        %v4007 = vld [vmem:[#allocation3 + $0x70] sm:$0xff]
        %v4008 = vld [vmem:[#allocation3 + $0x78] sm:$0xff]
        %v4009 = vld [vmem:[#allocation3 + $0x80] sm:$0xff]
        %v4010 = vld [vmem:[#allocation3 + $0x88] sm:$0xff]
        %v4011 = vld [vmem:[#allocation3 + $0x90] sm:$0xff]
        %v4012 = vld [vmem:[#allocation3 + $0x98] sm:$0xff]
        %v4013 = vld [vmem:[#allocation3 + $0xa0] sm:$0xff]
        %v4014 = vld [vmem:[#allocation3 + $0xa8] sm:$0xff]
        %v4015 = vld [vmem:[#allocation3 + $0xb0] sm:$0xff]
        %v4016 = vld [vmem:[#allocation3 + $0xb8] sm:$0xff]
        %v4017 = vld [vmem:[#allocation3 + $0xc0] sm:$0xff]
        %v4018 = vld [vmem:[#allocation3 + $0xc8] sm:$0xff]
        %v4019 = vld [vmem:[#allocation3 + $0xd0] sm:$0xff]
        %v4020 = vld [vmem:[#allocation3 + $0xd8] sm:$0xff]
        %v4021 = vld [vmem:[#allocation3 + $0xe0] sm:$0xff]
        %v4022 = vld [vmem:[#allocation3 + $0xe8] sm:$0xff]
        %v4023 = vld [vmem:[#allocation3 + $0xf0] sm:$0xff]
        %v4024 = vld [vmem:[#allocation3 + $0xf8] sm:$0xff]
        %v4025 = vld [vmem:[#allocation3 + $0x100] sm:$0xff]
        %v4026 = vld [vmem:[#allocation3 + $0x108] sm:$0xff]
        %v4027 = vld [vmem:[#allocation3 + $0x110] sm:$0xff]
        %v4028 = vld [vmem:[#allocation3 + $0x118] sm:$0xff]
        %v4029 = vld [vmem:[#allocation3 + $0x120] sm:$0xff]
        %v4030 = vld [vmem:[#allocation3 + $0x128] sm:$0xff]
        %v4031 = vld [vmem:[#allocation3 + $0x130] sm:$0xff]
        %v4032 = vld [vmem:[#allocation3 + $0x138] sm:$0xff]
        %v4033 = vld [vmem:[#allocation3 + $0x140] sm:$0xff]
        %v4034 = vld [vmem:[#allocation3 + $0x148] sm:$0xff]
        %v4035 = vld [vmem:[#allocation3 + $0x150] sm:$0xff]
        %v4036 = vld [vmem:[#allocation3 + $0x158] sm:$0xff]
        %v4037 = vld [vmem:[#allocation3 + $0x160] sm:$0xff]
        %v4038 = vld [vmem:[#allocation3 + $0x168] sm:$0xff]
        %v4039 = vld [vmem:[#allocation3 + $0x170] sm:$0xff]
        %v4040 = vld [vmem:[#allocation3 + $0x178] sm:$0xff]
        %v4041 = vld [vmem:[#allocation3 + $0x180] sm:$0xff]
        %v4042 = vld [vmem:[#allocation3 + $0x188] sm:$0xff]
        %v4043 = vld [vmem:[#allocation3 + $0x190] sm:$0xff]
        %v4044 = vld [vmem:[#allocation3 + $0x198] sm:$0xff]
        %v4045 = vld [vmem:[#allocation3 + $0x1a0] sm:$0xff]
        %v4046 = vld [vmem:[#allocation3 + $0x1a8] sm:$0xff]
        %v4047 = vld [vmem:[#allocation3 + $0x1b0] sm:$0xff]
        %v4048 = vld [vmem:[#allocation3 + $0x1b8] sm:$0xff]
        %v4049 = vld [vmem:[#allocation3 + $0x1c0] sm:$0xff]
        %v4050 = vld [vmem:[#allocation3 + $0x1c8] sm:$0xff]
        %v4051 = vld [vmem:[#allocation3 + $0x1d0] sm:$0xff]
        %v4052 = vld [vmem:[#allocation3 + $0x1d8] sm:$0xff]
        %v4053 = vld [vmem:[#allocation3 + $0x1e0] sm:$0xff]
        %v4054 = vld [vmem:[#allocation3 + $0x1e8] sm:$0xff]
        %v4055 = vld [vmem:[#allocation3 + $0x1f0] sm:$0xff]
        %v4056 = vld [vmem:[#allocation3 + $0x1f8] sm:$0xff]
        %v4057 = vld [vmem:[#allocation3 + $0x200] sm:$0xff]
        %v4058 = vld [vmem:[#allocation3 + $0x208] sm:$0xff]
        %v4059 = vld [vmem:[#allocation3 + $0x210] sm:$0xff]
        %v4060 = vld [vmem:[#allocation3 + $0x218] sm:$0xff]
        %v4061 = vld [vmem:[#allocation3 + $0x220] sm:$0xff]
        %v4062 = vld [vmem:[#allocation3 + $0x228] sm:$0xff]
        %v4063 = vld [vmem:[#allocation3 + $0x230] sm:$0xff]
        %v4064 = vld [vmem:[#allocation3 + $0x238] sm:$0xff]
        %v4137 = vunpack.c.l.b16 %v3993
        %v4138 = vunpack.c.h.b16 %v3993
        %v4139 = vunpack.c.l.b16 %v3994
        %v4140 = vunpack.c.h.b16 %v3994
        %v4141 = vunpack.c.l.b16 %v3995
        %v4142 = vunpack.c.h.b16 %v3995
        %v4143 = vunpack.c.l.b16 %v3996
        %v4144 = vunpack.c.h.b16 %v3996
        %v4145 = vunpack.c.l.b16 %v3997
        %v4146 = vunpack.c.h.b16 %v3997
        %v4147 = vunpack.c.l.b16 %v3998
        %v4148 = vunpack.c.h.b16 %v3998
        %v4149 = vunpack.c.l.b16 %v3999
        %v4150 = vunpack.c.h.b16 %v3999
        %v4151 = vunpack.c.l.b16 %v4000
        %v4152 = vunpack.c.h.b16 %v4000
        %v4153 = vunpack.c.l.b16 %v4001
        %v4154 = vunpack.c.h.b16 %v4001
        %v4155 = vunpack.c.l.b16 %v4002
        %v4156 = vunpack.c.h.b16 %v4002
        %v4157 = vunpack.c.l.b16 %v4003
        %v4158 = vunpack.c.h.b16 %v4003
        %v4159 = vunpack.c.l.b16 %v4004
        %v4160 = vunpack.c.h.b16 %v4004
        %v4161 = vunpack.c.l.b16 %v4005
        %v4162 = vunpack.c.h.b16 %v4005
        %v4163 = vunpack.c.l.b16 %v4006
        %v4164 = vunpack.c.h.b16 %v4006
        %v4165 = vunpack.c.l.b16 %v4007
        %v4166 = vunpack.c.h.b16 %v4007
        %v4167 = vunpack.c.l.b16 %v4008
        %v4168 = vunpack.c.h.b16 %v4008
        %v4169 = vunpack.c.l.b16 %v4009
        %v4170 = vunpack.c.h.b16 %v4009
        %v4171 = vunpack.c.l.b16 %v4010
        %v4172 = vunpack.c.h.b16 %v4010
        %v4173 = vunpack.c.l.b16 %v4011
        %v4174 = vunpack.c.h.b16 %v4011
        %v4175 = vunpack.c.l.b16 %v4012
        %v4176 = vunpack.c.h.b16 %v4012
        %v4177 = vunpack.c.l.b16 %v4013
        %v4178 = vunpack.c.h.b16 %v4013
        %v4179 = vunpack.c.l.b16 %v4014
        %v4180 = vunpack.c.h.b16 %v4014
        %v4181 = vunpack.c.l.b16 %v4015
        %v4182 = vunpack.c.h.b16 %v4015
        %v4183 = vunpack.c.l.b16 %v4016
        %v4184 = vunpack.c.h.b16 %v4016
        %v4185 = vunpack.c.l.b16 %v4017
        %v4186 = vunpack.c.h.b16 %v4017
        %v4187 = vunpack.c.l.b16 %v4018
        %v4188 = vunpack.c.h.b16 %v4018
        %v4189 = vunpack.c.l.b16 %v4019
        %v4190 = vunpack.c.h.b16 %v4019
        %v4191 = vunpack.c.l.b16 %v4020
        %v4192 = vunpack.c.h.b16 %v4020
        %v4193 = vunpack.c.l.b16 %v4021
        %v4194 = vunpack.c.h.b16 %v4021
        %v4195 = vunpack.c.l.b16 %v4022
        %v4196 = vunpack.c.h.b16 %v4022
        %v4197 = vunpack.c.l.b16 %v4023
        %v4198 = vunpack.c.h.b16 %v4023
        %v4199 = vunpack.c.l.b16 %v4024
        %v4200 = vunpack.c.h.b16 %v4024
        %v4201 = vunpack.c.l.b16 %v4025
        %v4202 = vunpack.c.h.b16 %v4025
        %v4203 = vunpack.c.l.b16 %v4026
        %v4204 = vunpack.c.h.b16 %v4026
        %v4205 = vunpack.c.l.b16 %v4027
        %v4206 = vunpack.c.h.b16 %v4027
        %v4207 = vunpack.c.l.b16 %v4028
        %v4208 = vunpack.c.h.b16 %v4028
        %v4209 = vunpack.c.l.b16 %v4029
        %v4210 = vunpack.c.h.b16 %v4029
        %v4211 = vunpack.c.l.b16 %v4030
        %v4212 = vunpack.c.h.b16 %v4030
        %v4213 = vunpack.c.l.b16 %v4031
        %v4214 = vunpack.c.h.b16 %v4031
        %v4215 = vunpack.c.l.b16 %v4032
        %v4216 = vunpack.c.h.b16 %v4032
        %v4217 = vunpack.c.l.b16 %v4033
        %v4218 = vunpack.c.h.b16 %v4033
        %v4219 = vunpack.c.l.b16 %v4034
        %v4220 = vunpack.c.h.b16 %v4034
        %v4221 = vunpack.c.l.b16 %v4035
        %v4222 = vunpack.c.h.b16 %v4035
        %v4223 = vunpack.c.l.b16 %v4036
        %v4224 = vunpack.c.h.b16 %v4036
        %v4225 = vunpack.c.l.b16 %v4037
        %v4226 = vunpack.c.h.b16 %v4037
        %v4227 = vunpack.c.l.b16 %v4038
        %v4228 = vunpack.c.h.b16 %v4038
        %v4229 = vunpack.c.l.b16 %v4039
        %v4230 = vunpack.c.h.b16 %v4039
        %v4231 = vunpack.c.l.b16 %v4040
        %v4232 = vunpack.c.h.b16 %v4040
        %v4233 = vunpack.c.l.b16 %v4041
        %v4234 = vunpack.c.h.b16 %v4041
        %v4235 = vunpack.c.l.b16 %v4042
        %v4236 = vunpack.c.h.b16 %v4042
        %v4237 = vunpack.c.l.b16 %v4043
        %v4238 = vunpack.c.h.b16 %v4043
        %v4239 = vunpack.c.l.b16 %v4044
        %v4240 = vunpack.c.h.b16 %v4044
        %v4241 = vunpack.c.l.b16 %v4045
        %v4242 = vunpack.c.h.b16 %v4045
        %v4243 = vunpack.c.l.b16 %v4046
        %v4244 = vunpack.c.h.b16 %v4046
        %v4245 = vunpack.c.l.b16 %v4047
        %v4246 = vunpack.c.h.b16 %v4047
        %v4247 = vunpack.c.l.b16 %v4048
        %v4248 = vunpack.c.h.b16 %v4048
        %v4249 = vunpack.c.l.b16 %v4049
        %v4250 = vunpack.c.h.b16 %v4049
        %v4251 = vunpack.c.l.b16 %v4050
        %v4252 = vunpack.c.h.b16 %v4050
        %v4253 = vunpack.c.l.b16 %v4051
        %v4254 = vunpack.c.h.b16 %v4051
        %v4255 = vunpack.c.l.b16 %v4052
        %v4256 = vunpack.c.h.b16 %v4052
        %v4257 = vunpack.c.l.b16 %v4053
        %v4258 = vunpack.c.h.b16 %v4053
        %v4259 = vunpack.c.l.b16 %v4054
        %v4260 = vunpack.c.h.b16 %v4054
        %v4261 = vunpack.c.l.b16 %v4055
        %v4262 = vunpack.c.h.b16 %v4055
        %v4263 = vunpack.c.l.b16 %v4056
        %v4264 = vunpack.c.h.b16 %v4056
        %v4265 = vunpack.c.l.b16 %v4057
        %v4266 = vunpack.c.h.b16 %v4057
        %v4267 = vunpack.c.l.b16 %v4058
        %v4268 = vunpack.c.h.b16 %v4058
        %v4269 = vunpack.c.l.b16 %v4059
        %v4270 = vunpack.c.h.b16 %v4059
        %v4271 = vunpack.c.l.b16 %v4060
        %v4272 = vunpack.c.h.b16 %v4060
        %v4273 = vunpack.c.l.b16 %v4061
        %v4274 = vunpack.c.h.b16 %v4061
        %v4275 = vunpack.c.l.b16 %v4062
        %v4276 = vunpack.c.h.b16 %v4062
        %v4277 = vunpack.c.l.b16 %v4063
        %v4278 = vunpack.c.h.b16 %v4063
        %v4279 = vunpack.c.l.b16 %v4064
        %v4280 = vunpack.c.h.b16 %v4064
        %v4281 = vpack.c.b16 %v4153, %v4137
        %v4282 = vpack.c.b16 %v4154, %v4138
        %v4283 = vpack.c.b16 %v4155, %v4139
        %v4284 = vpack.c.b16 %v4156, %v4140
        %v4285 = vpack.c.b16 %v4157, %v4141
        %v4286 = vpack.c.b16 %v4158, %v4142
        %v4287 = vpack.c.b16 %v4159, %v4143
        %v4288 = vpack.c.b16 %v4160, %v4144
        %v4289 = vpack.c.b16 %v4161, %v4145
        %v4290 = vpack.c.b16 %v4162, %v4146
        %v4291 = vpack.c.b16 %v4163, %v4147
        %v4292 = vpack.c.b16 %v4164, %v4148
        %v4293 = vpack.c.b16 %v4165, %v4149
        %v4294 = vpack.c.b16 %v4166, %v4150
        %v4295 = vpack.c.b16 %v4167, %v4151
        %v4296 = vpack.c.b16 %v4168, %v4152
        %v4297 = vpack.c.b16 %v4185, %v4169
        %v4298 = vpack.c.b16 %v4186, %v4170
        %v4299 = vpack.c.b16 %v4187, %v4171
        %v4300 = vpack.c.b16 %v4188, %v4172
        %v4301 = vpack.c.b16 %v4189, %v4173
        %v4302 = vpack.c.b16 %v4190, %v4174
        %v4303 = vpack.c.b16 %v4191, %v4175
        %v4304 = vpack.c.b16 %v4192, %v4176
        %v4305 = vpack.c.b16 %v4193, %v4177
        %v4306 = vpack.c.b16 %v4194, %v4178
        %v4307 = vpack.c.b16 %v4195, %v4179
        %v4308 = vpack.c.b16 %v4196, %v4180
        %v4309 = vpack.c.b16 %v4197, %v4181
        %v4310 = vpack.c.b16 %v4198, %v4182
        %v4311 = vpack.c.b16 %v4199, %v4183
        %v4312 = vpack.c.b16 %v4200, %v4184
        %v4313 = vpack.c.b16 %v4217, %v4201
        %v4314 = vpack.c.b16 %v4218, %v4202
        %v4315 = vpack.c.b16 %v4219, %v4203
        %v4316 = vpack.c.b16 %v4220, %v4204
        %v4317 = vpack.c.b16 %v4221, %v4205
        %v4318 = vpack.c.b16 %v4222, %v4206
        %v4319 = vpack.c.b16 %v4223, %v4207
        %v4320 = vpack.c.b16 %v4224, %v4208
        %v4321 = vpack.c.b16 %v4225, %v4209
        %v4322 = vpack.c.b16 %v4226, %v4210
        %v4323 = vpack.c.b16 %v4227, %v4211
        %v4324 = vpack.c.b16 %v4228, %v4212
        %v4325 = vpack.c.b16 %v4229, %v4213
        %v4326 = vpack.c.b16 %v4230, %v4214
        %v4327 = vpack.c.b16 %v4231, %v4215
        %v4328 = vpack.c.b16 %v4232, %v4216
        %v4329 = vpack.c.b16 %v4249, %v4233
        %v4330 = vpack.c.b16 %v4250, %v4234
        %v4331 = vpack.c.b16 %v4251, %v4235
        %v4332 = vpack.c.b16 %v4252, %v4236
        %v4333 = vpack.c.b16 %v4253, %v4237
        %v4334 = vpack.c.b16 %v4254, %v4238
        %v4335 = vpack.c.b16 %v4255, %v4239
        %v4336 = vpack.c.b16 %v4256, %v4240
        %v4337 = vpack.c.b16 %v4257, %v4241
        %v4338 = vpack.c.b16 %v4258, %v4242
        %v4339 = vpack.c.b16 %v4259, %v4243
        %v4340 = vpack.c.b16 %v4260, %v4244
        %v4341 = vpack.c.b16 %v4261, %v4245
        %v4342 = vpack.c.b16 %v4262, %v4246
        %v4343 = vpack.c.b16 %v4263, %v4247
        %v4344 = vpack.c.b16 %v4264, %v4248
        %v4345 = vpack.c.b16 %v4265, %v4265
        %v4346 = vpack.c.b16 %v4266, %v4266
        %v4347 = vpack.c.b16 %v4267, %v4267
        %v4348 = vpack.c.b16 %v4268, %v4268
        %v4349 = vpack.c.b16 %v4269, %v4269
        %v4350 = vpack.c.b16 %v4270, %v4270
        %v4351 = vpack.c.b16 %v4271, %v4271
        %v4352 = vpack.c.b16 %v4272, %v4272
        %v4353 = vpack.c.b16 %v4273, %v4273
        %v4354 = vpack.c.b16 %v4274, %v4274
        %v4355 = vpack.c.b16 %v4275, %v4275
        %v4356 = vpack.c.b16 %v4276, %v4276
        %v4357 = vpack.c.b16 %v4277, %v4277
        %v4358 = vpack.c.b16 %v4278, %v4278
        %v4359 = vpack.c.b16 %v4279, %v4279
        %v4360 = vpack.c.b16 %v4280, %v4280
        %vm4425 = vcmask 588800
        %v4427 = vsel %vm4425, %v3992, 0
        %vm4429 = vcmask 1043456
        %v4431 = vsel %vm4429, %v4345, 0
        %v4434 = vsel %vm4429, %v4346, 0
        %v4437 = vsel %vm4429, %v4347, 0
        %v4440 = vsel %vm4429, %v4348, 0
        %v4443 = vsel %vm4429, %v4349, 0
        %v4446 = vsel %vm4429, %v4350, 0
        %v4449 = vsel %vm4429, %v4351, 0
        %v4452 = vsel %vm4429, %v4352, 0
        %v4455 = vsel %vm4429, %v4353, 0
        %v4458 = vsel %vm4429, %v4354, 0
        %v4461 = vsel %vm4429, %v4355, 0
        %v4464 = vsel %vm4429, %v4356, 0
        %v4467 = vsel %vm4429, %v4357, 0
        %v4470 = vsel %vm4429, %v4358, 0
        %v4473 = vsel %vm4429, %v4359, 0
        %v4476 = vsel %vm4429, %v4360, 0
        %4478 = vmatprep.subr.bf16.mxu0 %v4282
        %4479 = vmatpush1.bf16.msra.mxu0 %v4281
        %4480 = vmatprep.subr.bf16.mxu0 %v4298
        %4481 = vmatpush1.bf16.msra.mxu0 %v4297
        %4482 = vmatprep.subr.bf16.mxu0 %v4314
        %4483 = vmatpush1.bf16.msra.mxu0 %v4313
        %4484 = vmatprep.subr.bf16.mxu0 %v4330
        %4485 = vmatpush1.bf16.msra.mxu0 %v4329
        %4486 = vmatprep.subr.bf16.mxu0 %v4434
        %4487 = vmatpush1.bf16.msra.mxu0 %v4431
        %4488 = vmatprep.subr.bf16.mxu0 0
        %4489 = vmatpush1.bf16.msra.mxu0 0
        %4490 = vmatprep.subr.bf16.mxu0 0
        %4491 = vmatpush1.bf16.msra.mxu0 0
        %4492 = vmatprep.subr.bf16.mxu0 0
        %4493 = vmatpush1.bf16.msra.mxu0 0
        %4494 = vmatprep.subr.bf16.mxu0 0
        %4495 = vmatpush1.bf16.msra.mxu0 0
        %4496 = vmatprep.subr.bf16.mxu0 0
        %4497 = vmatpush1.bf16.msra.mxu0 0
        %4498 = vmatprep.subr.bf16.mxu0 0
        %4499 = vmatpush1.bf16.msra.mxu0 0
        %4500 = vmatprep.subr.bf16.mxu0 0
        %4501 = vmatpush1.bf16.msra.mxu0 0
        %4502 = vmatprep.subr.bf16.mxu0 0
        %4503 = vmatpush1.bf16.msra.mxu0 0
        %4504 = vmatprep.subr.bf16.mxu0 0
        %4505 = vmatpush1.bf16.msra.mxu0 0
        %4506 = vmatprep.subr.bf16.mxu0 0
        %4507 = vmatpush1.bf16.msra.mxu0 0
        %4508 = vmatprep.subr.bf16.mxu0 0
        %4509 = vmatpush1.bf16.msra.mxu0 0
        %4510 = vmatprep.mubr.bf16.mxu0 0
        %4511 = vmatmul.mubr.bf16.gmra.mrb[0].mxu0 %v4427
        %v4512 = vpop.f32.mrb[0].mxu0
        %v4513 = vadd.f32 0.0, %v4512
        %v4514 = vpop.f32.mrb[0].mxu0
        %v4515 = vadd.f32 0.0, %v4514
        %v4516 = vpop.f32.mrb[0].mxu0
        %v4517 = vpop.f32.mrb[0].mxu0
        %4518 = vdwg.mxu0
        %4519 = vmatprep.subr.bf16.mxu0 %v4284
        %4520 = vmatpush1.bf16.msra.mxu0 %v4283
        %4521 = vmatprep.subr.bf16.mxu0 %v4300
        %4522 = vmatpush1.bf16.msra.mxu0 %v4299
        %4523 = vmatprep.subr.bf16.mxu0 %v4316
        %4524 = vmatpush1.bf16.msra.mxu0 %v4315
        %4525 = vmatprep.subr.bf16.mxu0 %v4332
        %4526 = vmatpush1.bf16.msra.mxu0 %v4331
        %4527 = vmatprep.subr.bf16.mxu0 %v4440
        %4528 = vmatpush1.bf16.msra.mxu0 %v4437
        %4529 = vmatprep.subr.bf16.mxu0 0
        %4530 = vmatpush1.bf16.msra.mxu0 0
        %4531 = vmatprep.subr.bf16.mxu0 0
        %4532 = vmatpush1.bf16.msra.mxu0 0
        %4533 = vmatprep.subr.bf16.mxu0 0
        %4534 = vmatpush1.bf16.msra.mxu0 0
        %4535 = vmatprep.subr.bf16.mxu0 0
        %4536 = vmatpush1.bf16.msra.mxu0 0
        %4537 = vmatprep.subr.bf16.mxu0 0
        %4538 = vmatpush1.bf16.msra.mxu0 0
        %4539 = vmatprep.subr.bf16.mxu0 0
        %4540 = vmatpush1.bf16.msra.mxu0 0
        %4541 = vmatprep.subr.bf16.mxu0 0
        %4542 = vmatpush1.bf16.msra.mxu0 0
        %4543 = vmatprep.subr.bf16.mxu0 0
        %4544 = vmatpush1.bf16.msra.mxu0 0
        %4545 = vmatprep.subr.bf16.mxu0 0
        %4546 = vmatpush1.bf16.msra.mxu0 0
        %4547 = vmatprep.subr.bf16.mxu0 0
        %4548 = vmatpush1.bf16.msra.mxu0 0
        %4549 = vmatprep.subr.bf16.mxu0 0
        %4550 = vmatpush1.bf16.msra.mxu0 0
        %4551 = vmatprep.mubr.bf16.mxu0 0
        %4552 = vmatmul.mubr.bf16.gmra.mrb[0].mxu0 %v4427
        %v4553 = vpop.f32.mrb[0].mxu0
        %v4554 = vadd.f32 0.0, %v4553
        %v4555 = vpop.f32.mrb[0].mxu0
        %v4556 = vadd.f32 0.0, %v4555
        %v4557 = vpop.f32.mrb[0].mxu0
        %v4558 = vpop.f32.mrb[0].mxu0
        %4559 = vdwg.mxu0
        %4560 = vmatprep.subr.bf16.mxu0 %v4286
        %4561 = vmatpush1.bf16.msra.mxu0 %v4285
        %4562 = vmatprep.subr.bf16.mxu0 %v4302
        %4563 = vmatpush1.bf16.msra.mxu0 %v4301
        %4564 = vmatprep.subr.bf16.mxu0 %v4318
        %4565 = vmatpush1.bf16.msra.mxu0 %v4317
        %4566 = vmatprep.subr.bf16.mxu0 %v4334
        %4567 = vmatpush1.bf16.msra.mxu0 %v4333
        %4568 = vmatprep.subr.bf16.mxu0 %v4446
        %4569 = vmatpush1.bf16.msra.mxu0 %v4443
        %4570 = vmatprep.subr.bf16.mxu0 0
        %4571 = vmatpush1.bf16.msra.mxu0 0
        %4572 = vmatprep.subr.bf16.mxu0 0
        %4573 = vmatpush1.bf16.msra.mxu0 0
        %4574 = vmatprep.subr.bf16.mxu0 0
        %4575 = vmatpush1.bf16.msra.mxu0 0
        %4576 = vmatprep.subr.bf16.mxu0 0
        %4577 = vmatpush1.bf16.msra.mxu0 0
        %4578 = vmatprep.subr.bf16.mxu0 0
        %4579 = vmatpush1.bf16.msra.mxu0 0
        %4580 = vmatprep.subr.bf16.mxu0 0
        %4581 = vmatpush1.bf16.msra.mxu0 0
        %4582 = vmatprep.subr.bf16.mxu0 0
        %4583 = vmatpush1.bf16.msra.mxu0 0
        %4584 = vmatprep.subr.bf16.mxu0 0
        %4585 = vmatpush1.bf16.msra.mxu0 0
        %4586 = vmatprep.subr.bf16.mxu0 0
        %4587 = vmatpush1.bf16.msra.mxu0 0
        %4588 = vmatprep.subr.bf16.mxu0 0
        %4589 = vmatpush1.bf16.msra.mxu0 0
        %4590 = vmatprep.subr.bf16.mxu0 0
        %4591 = vmatpush1.bf16.msra.mxu0 0
        %4592 = vmatprep.mubr.bf16.mxu0 0
        %4593 = vmatmul.mubr.bf16.gmra.mrb[0].mxu0 %v4427
        %v4594 = vpop.f32.mrb[0].mxu0
        %v4595 = vadd.f32 0.0, %v4594
        %v4596 = vpop.f32.mrb[0].mxu0
        %v4597 = vadd.f32 0.0, %v4596
        %v4598 = vpop.f32.mrb[0].mxu0
        %v4599 = vpop.f32.mrb[0].mxu0
        %4600 = vdwg.mxu0
        %4601 = vmatprep.subr.bf16.mxu0 %v4288
        %4602 = vmatpush1.bf16.msra.mxu0 %v4287
        %4603 = vmatprep.subr.bf16.mxu0 %v4304
        %4604 = vmatpush1.bf16.msra.mxu0 %v4303
        %4605 = vmatprep.subr.bf16.mxu0 %v4320
        %4606 = vmatpush1.bf16.msra.mxu0 %v4319
        %4607 = vmatprep.subr.bf16.mxu0 %v4336
        %4608 = vmatpush1.bf16.msra.mxu0 %v4335
        %4609 = vmatprep.subr.bf16.mxu0 %v4452
        %4610 = vmatpush1.bf16.msra.mxu0 %v4449
        %4611 = vmatprep.subr.bf16.mxu0 0
        %4612 = vmatpush1.bf16.msra.mxu0 0
        %4613 = vmatprep.subr.bf16.mxu0 0
        %4614 = vmatpush1.bf16.msra.mxu0 0
        %4615 = vmatprep.subr.bf16.mxu0 0
        %4616 = vmatpush1.bf16.msra.mxu0 0
        %4617 = vmatprep.subr.bf16.mxu0 0
        %4618 = vmatpush1.bf16.msra.mxu0 0
        %4619 = vmatprep.subr.bf16.mxu0 0
        %4620 = vmatpush1.bf16.msra.mxu0 0
        %4621 = vmatprep.subr.bf16.mxu0 0
        %4622 = vmatpush1.bf16.msra.mxu0 0
        %4623 = vmatprep.subr.bf16.mxu0 0
        %4624 = vmatpush1.bf16.msra.mxu0 0
        %4625 = vmatprep.subr.bf16.mxu0 0
        %4626 = vmatpush1.bf16.msra.mxu0 0
        %4627 = vmatprep.subr.bf16.mxu0 0
        %4628 = vmatpush1.bf16.msra.mxu0 0
        %4629 = vmatprep.subr.bf16.mxu0 0
        %4630 = vmatpush1.bf16.msra.mxu0 0
        %4631 = vmatprep.subr.bf16.mxu0 0
        %4632 = vmatpush1.bf16.msra.mxu0 0
        %4633 = vmatprep.mubr.bf16.mxu0 0
        %4634 = vmatmul.mubr.bf16.gmra.mrb[0].mxu0 %v4427
        %v4635 = vpop.f32.mrb[0].mxu0
        %v4636 = vadd.f32 0.0, %v4635
        %v4637 = vpop.f32.mrb[0].mxu0
        %v4638 = vadd.f32 0.0, %v4637
        %v4639 = vpop.f32.mrb[0].mxu0
        %v4640 = vpop.f32.mrb[0].mxu0
        %4641 = vdwg.mxu0
        %4642 = vmatprep.subr.bf16.mxu0 %v4290
        %4643 = vmatpush1.bf16.msra.mxu0 %v4289
        %4644 = vmatprep.subr.bf16.mxu0 %v4306
        %4645 = vmatpush1.bf16.msra.mxu0 %v4305
        %4646 = vmatprep.subr.bf16.mxu0 %v4322
        %4647 = vmatpush1.bf16.msra.mxu0 %v4321
        %4648 = vmatprep.subr.bf16.mxu0 %v4338
        %4649 = vmatpush1.bf16.msra.mxu0 %v4337
        %4650 = vmatprep.subr.bf16.mxu0 %v4458
        %4651 = vmatpush1.bf16.msra.mxu0 %v4455
        %4652 = vmatprep.subr.bf16.mxu0 0
        %4653 = vmatpush1.bf16.msra.mxu0 0
        %4654 = vmatprep.subr.bf16.mxu0 0
        %4655 = vmatpush1.bf16.msra.mxu0 0
        %4656 = vmatprep.subr.bf16.mxu0 0
        %4657 = vmatpush1.bf16.msra.mxu0 0
        %4658 = vmatprep.subr.bf16.mxu0 0
        %4659 = vmatpush1.bf16.msra.mxu0 0
        %4660 = vmatprep.subr.bf16.mxu0 0
        %4661 = vmatpush1.bf16.msra.mxu0 0
        %4662 = vmatprep.subr.bf16.mxu0 0
        %4663 = vmatpush1.bf16.msra.mxu0 0
        %4664 = vmatprep.subr.bf16.mxu0 0
        %4665 = vmatpush1.bf16.msra.mxu0 0
        %4666 = vmatprep.subr.bf16.mxu0 0
        %4667 = vmatpush1.bf16.msra.mxu0 0
        %4668 = vmatprep.subr.bf16.mxu0 0
        %4669 = vmatpush1.bf16.msra.mxu0 0
        %4670 = vmatprep.subr.bf16.mxu0 0
        %4671 = vmatpush1.bf16.msra.mxu0 0
        %4672 = vmatprep.subr.bf16.mxu0 0
        %4673 = vmatpush1.bf16.msra.mxu0 0
        %4674 = vmatprep.mubr.bf16.mxu0 0
        %4675 = vmatmul.mubr.bf16.gmra.mrb[0].mxu0 %v4427
        %v4676 = vpop.f32.mrb[0].mxu0
        %v4677 = vadd.f32 0.0, %v4676
        %v4678 = vpop.f32.mrb[0].mxu0
        %v4679 = vadd.f32 0.0, %v4678
        %v4680 = vpop.f32.mrb[0].mxu0
        %v4681 = vpop.f32.mrb[0].mxu0
        %4682 = vdwg.mxu0
        %4683 = vmatprep.subr.bf16.mxu0 %v4292
        %4684 = vmatpush1.bf16.msra.mxu0 %v4291
        %4685 = vmatprep.subr.bf16.mxu0 %v4308
        %4686 = vmatpush1.bf16.msra.mxu0 %v4307
        %4687 = vmatprep.subr.bf16.mxu0 %v4324
        %4688 = vmatpush1.bf16.msra.mxu0 %v4323
        %4689 = vmatprep.subr.bf16.mxu0 %v4340
        %4690 = vmatpush1.bf16.msra.mxu0 %v4339
        %4691 = vmatprep.subr.bf16.mxu0 %v4464
        %4692 = vmatpush1.bf16.msra.mxu0 %v4461
        %4693 = vmatprep.subr.bf16.mxu0 0
        %4694 = vmatpush1.bf16.msra.mxu0 0
        %4695 = vmatprep.subr.bf16.mxu0 0
        %4696 = vmatpush1.bf16.msra.mxu0 0
        %4697 = vmatprep.subr.bf16.mxu0 0
        %4698 = vmatpush1.bf16.msra.mxu0 0
        %4699 = vmatprep.subr.bf16.mxu0 0
        %4700 = vmatpush1.bf16.msra.mxu0 0
        %4701 = vmatprep.subr.bf16.mxu0 0
        %4702 = vmatpush1.bf16.msra.mxu0 0
        %4703 = vmatprep.subr.bf16.mxu0 0
        %4704 = vmatpush1.bf16.msra.mxu0 0
        %4705 = vmatprep.subr.bf16.mxu0 0
        %4706 = vmatpush1.bf16.msra.mxu0 0
        %4707 = vmatprep.subr.bf16.mxu0 0
        %4708 = vmatpush1.bf16.msra.mxu0 0
        %4709 = vmatprep.subr.bf16.mxu0 0
        %4710 = vmatpush1.bf16.msra.mxu0 0
        %4711 = vmatprep.subr.bf16.mxu0 0
        %4712 = vmatpush1.bf16.msra.mxu0 0
        %4713 = vmatprep.subr.bf16.mxu0 0
        %4714 = vmatpush1.bf16.msra.mxu0 0
        %4715 = vmatprep.mubr.bf16.mxu0 0
        %4716 = vmatmul.mubr.bf16.gmra.mrb[0].mxu0 %v4427
        %v4717 = vpop.f32.mrb[0].mxu0
        %v4718 = vadd.f32 0.0, %v4717
        %v4719 = vpop.f32.mrb[0].mxu0
        %v4720 = vadd.f32 0.0, %v4719
        %v4721 = vpop.f32.mrb[0].mxu0
        %v4722 = vpop.f32.mrb[0].mxu0
        %4723 = vdwg.mxu0
        %4724 = vmatprep.subr.bf16.mxu0 %v4294
        %4725 = vmatpush1.bf16.msra.mxu0 %v4293
        %4726 = vmatprep.subr.bf16.mxu0 %v4310
        %4727 = vmatpush1.bf16.msra.mxu0 %v4309
        %4728 = vmatprep.subr.bf16.mxu0 %v4326
        %4729 = vmatpush1.bf16.msra.mxu0 %v4325
        %4730 = vmatprep.subr.bf16.mxu0 %v4342
        %4731 = vmatpush1.bf16.msra.mxu0 %v4341
        %4732 = vmatprep.subr.bf16.mxu0 %v4470
        %4733 = vmatpush1.bf16.msra.mxu0 %v4467
        %4734 = vmatprep.subr.bf16.mxu0 0
        %4735 = vmatpush1.bf16.msra.mxu0 0
        %4736 = vmatprep.subr.bf16.mxu0 0
        %4737 = vmatpush1.bf16.msra.mxu0 0
        %4738 = vmatprep.subr.bf16.mxu0 0
        %4739 = vmatpush1.bf16.msra.mxu0 0
        %4740 = vmatprep.subr.bf16.mxu0 0
        %4741 = vmatpush1.bf16.msra.mxu0 0
        %4742 = vmatprep.subr.bf16.mxu0 0
        %4743 = vmatpush1.bf16.msra.mxu0 0
        %4744 = vmatprep.subr.bf16.mxu0 0
        %4745 = vmatpush1.bf16.msra.mxu0 0
        %4746 = vmatprep.subr.bf16.mxu0 0
        %4747 = vmatpush1.bf16.msra.mxu0 0
        %4748 = vmatprep.subr.bf16.mxu0 0
        %4749 = vmatpush1.bf16.msra.mxu0 0
        %4750 = vmatprep.subr.bf16.mxu0 0
        %4751 = vmatpush1.bf16.msra.mxu0 0
        %4752 = vmatprep.subr.bf16.mxu0 0
        %4753 = vmatpush1.bf16.msra.mxu0 0
        %4754 = vmatprep.subr.bf16.mxu0 0
        %4755 = vmatpush1.bf16.msra.mxu0 0
        %4756 = vmatprep.mubr.bf16.mxu0 0
        %4757 = vmatmul.mubr.bf16.gmra.mrb[0].mxu0 %v4427
        %v4758 = vpop.f32.mrb[0].mxu0
        %v4759 = vadd.f32 0.0, %v4758
        %v4760 = vpop.f32.mrb[0].mxu0
        %v4761 = vadd.f32 0.0, %v4760
        %v4762 = vpop.f32.mrb[0].mxu0
        %v4763 = vpop.f32.mrb[0].mxu0
        %4764 = vdwg.mxu0
        %4765 = vmatprep.subr.bf16.mxu0 %v4296
        %4766 = vmatpush1.bf16.msra.mxu0 %v4295
        %4767 = vmatprep.subr.bf16.mxu0 %v4312
        %4768 = vmatpush1.bf16.msra.mxu0 %v4311
        %4769 = vmatprep.subr.bf16.mxu0 %v4328
        %4770 = vmatpush1.bf16.msra.mxu0 %v4327
        %4771 = vmatprep.subr.bf16.mxu0 %v4344
        %4772 = vmatpush1.bf16.msra.mxu0 %v4343
        %4773 = vmatprep.subr.bf16.mxu0 %v4476
        %4774 = vmatpush1.bf16.msra.mxu0 %v4473
        %4775 = vmatprep.subr.bf16.mxu0 0
        %4776 = vmatpush1.bf16.msra.mxu0 0
        %4777 = vmatprep.subr.bf16.mxu0 0
        %4778 = vmatpush1.bf16.msra.mxu0 0
        %4779 = vmatprep.subr.bf16.mxu0 0
        %4780 = vmatpush1.bf16.msra.mxu0 0
        %4781 = vmatprep.subr.bf16.mxu0 0
        %4782 = vmatpush1.bf16.msra.mxu0 0
        %4783 = vmatprep.subr.bf16.mxu0 0
        %4784 = vmatpush1.bf16.msra.mxu0 0
        %4785 = vmatprep.subr.bf16.mxu0 0
        %4786 = vmatpush1.bf16.msra.mxu0 0
        %4787 = vmatprep.subr.bf16.mxu0 0
        %4788 = vmatpush1.bf16.msra.mxu0 0
        %4789 = vmatprep.subr.bf16.mxu0 0
        %4790 = vmatpush1.bf16.msra.mxu0 0
        %4791 = vmatprep.subr.bf16.mxu0 0
        %4792 = vmatpush1.bf16.msra.mxu0 0
        %4793 = vmatprep.subr.bf16.mxu0 0
        %4794 = vmatpush1.bf16.msra.mxu0 0
        %4795 = vmatprep.subr.bf16.mxu0 0
        %4796 = vmatpush1.bf16.msra.mxu0 0
        %4797 = vmatprep.mubr.bf16.mxu0 0
        %4798 = vmatmul.mubr.bf16.gmra.mrb[0].mxu0 %v4427
        %v4799 = vpop.f32.mrb[0].mxu0
        %v4800 = vadd.f32 0.0, %v4799
        %v4801 = vpop.f32.mrb[0].mxu0
        %v4802 = vadd.f32 0.0, %v4801
        %v4803 = vpop.f32.mrb[0].mxu0
        %v4804 = vpop.f32.mrb[0].mxu0
        %4805 = vdwg.mxu0
        %v4878 = vunpack.c.l.b16 %v2317
        %v4879 = vunpack.c.h.b16 %v2317
        %v4880 = vunpack.c.l.b16 %v2318
        %v4881 = vunpack.c.h.b16 %v2318
        %v4882 = vunpack.c.l.b16 %v2319
        %v4883 = vunpack.c.h.b16 %v2319
        %v4884 = vunpack.c.l.b16 %v2320
        %v4885 = vunpack.c.h.b16 %v2320
        %v4886 = vunpack.c.l.b16 %v2321
        %v4887 = vunpack.c.h.b16 %v2321
        %v4888 = vunpack.c.l.b16 %v2322
        %v4889 = vunpack.c.h.b16 %v2322
        %v4890 = vunpack.c.l.b16 %v2323
        %v4891 = vunpack.c.h.b16 %v2323
        %v4892 = vunpack.c.l.b16 %v2324
        %v4893 = vunpack.c.h.b16 %v2324
        %v4894 = vunpack.c.l.b16 %v2325
        %v4895 = vunpack.c.h.b16 %v2325
        %v4896 = vunpack.c.l.b16 %v2326
        %v4897 = vunpack.c.h.b16 %v2326
        %v4898 = vunpack.c.l.b16 %v2327
        %v4899 = vunpack.c.h.b16 %v2327
        %v4900 = vunpack.c.l.b16 %v2328
        %v4901 = vunpack.c.h.b16 %v2328
        %v4902 = vunpack.c.l.b16 %v2329
        %v4903 = vunpack.c.h.b16 %v2329
        %v4904 = vunpack.c.l.b16 %v2330
        %v4905 = vunpack.c.h.b16 %v2330
        %v4906 = vunpack.c.l.b16 %v2331
        %v4907 = vunpack.c.h.b16 %v2331
        %v4908 = vunpack.c.l.b16 %v2332
        %v4909 = vunpack.c.h.b16 %v2332
        %v4910 = vunpack.c.l.b16 %v2333
        %v4911 = vunpack.c.h.b16 %v2333
        %v4912 = vunpack.c.l.b16 %v2334
        %v4913 = vunpack.c.h.b16 %v2334
        %v4914 = vunpack.c.l.b16 %v2335
        %v4915 = vunpack.c.h.b16 %v2335
        %v4916 = vunpack.c.l.b16 %v2336
        %v4917 = vunpack.c.h.b16 %v2336
        %v4918 = vunpack.c.l.b16 %v2337
        %v4919 = vunpack.c.h.b16 %v2337
        %v4920 = vunpack.c.l.b16 %v2338
        %v4921 = vunpack.c.h.b16 %v2338
        %v4922 = vunpack.c.l.b16 %v2339
        %v4923 = vunpack.c.h.b16 %v2339
        %v4924 = vunpack.c.l.b16 %v2340
        %v4925 = vunpack.c.h.b16 %v2340
        %v4926 = vunpack.c.l.b16 %v2341
        %v4927 = vunpack.c.h.b16 %v2341
        %v4928 = vunpack.c.l.b16 %v2342
        %v4929 = vunpack.c.h.b16 %v2342
        %v4930 = vunpack.c.l.b16 %v2343
        %v4931 = vunpack.c.h.b16 %v2343
        %v4932 = vunpack.c.l.b16 %v2344
        %v4933 = vunpack.c.h.b16 %v2344
        %v4934 = vunpack.c.l.b16 %v2345
        %v4935 = vunpack.c.h.b16 %v2345
        %v4936 = vunpack.c.l.b16 %v2346
        %v4937 = vunpack.c.h.b16 %v2346
        %v4938 = vunpack.c.l.b16 %v2347
        %v4939 = vunpack.c.h.b16 %v2347
        %v4940 = vunpack.c.l.b16 %v2348
        %v4941 = vunpack.c.h.b16 %v2348
        %v4942 = vunpack.c.l.b16 %v2349
        %v4943 = vunpack.c.h.b16 %v2349
        %v4944 = vunpack.c.l.b16 %v2350
        %v4945 = vunpack.c.h.b16 %v2350
        %v4946 = vunpack.c.l.b16 %v2351
        %v4947 = vunpack.c.h.b16 %v2351
        %v4948 = vunpack.c.l.b16 %v2352
        %v4949 = vunpack.c.h.b16 %v2352
        %v4950 = vunpack.c.l.b16 %v2353
        %v4951 = vunpack.c.h.b16 %v2353
        %v4952 = vunpack.c.l.b16 %v2354
        %v4953 = vunpack.c.h.b16 %v2354
        %v4954 = vunpack.c.l.b16 %v2355
        %v4955 = vunpack.c.h.b16 %v2355
        %v4956 = vunpack.c.l.b16 %v2356
        %v4957 = vunpack.c.h.b16 %v2356
        %v4958 = vunpack.c.l.b16 %v2357
        %v4959 = vunpack.c.h.b16 %v2357
        %v4960 = vunpack.c.l.b16 %v2358
        %v4961 = vunpack.c.h.b16 %v2358
        %v4962 = vunpack.c.l.b16 %v2359
        %v4963 = vunpack.c.h.b16 %v2359
        %v4964 = vunpack.c.l.b16 %v2360
        %v4965 = vunpack.c.h.b16 %v2360
        %v4966 = vunpack.c.l.b16 %v2361
        %v4967 = vunpack.c.h.b16 %v2361
        %v4968 = vunpack.c.l.b16 %v2362
        %v4969 = vunpack.c.h.b16 %v2362
        %v4970 = vunpack.c.l.b16 %v2363
        %v4971 = vunpack.c.h.b16 %v2363
        %v4972 = vunpack.c.l.b16 %v2364
        %v4973 = vunpack.c.h.b16 %v2364
        %v4974 = vunpack.c.l.b16 %v2365
        %v4975 = vunpack.c.h.b16 %v2365
        %v4976 = vunpack.c.l.b16 %v2366
        %v4977 = vunpack.c.h.b16 %v2366
        %v4978 = vunpack.c.l.b16 %v2367
        %v4979 = vunpack.c.h.b16 %v2367
        %v4980 = vunpack.c.l.b16 %v2368
        %v4981 = vunpack.c.h.b16 %v2368
        %v4982 = vunpack.c.l.b16 %v2369
        %v4983 = vunpack.c.h.b16 %v2369
        %v4984 = vunpack.c.l.b16 %v2370
        %v4985 = vunpack.c.h.b16 %v2370
        %v4986 = vunpack.c.l.b16 %v2371
        %v4987 = vunpack.c.h.b16 %v2371
        %v4988 = vunpack.c.l.b16 %v2372
        %v4989 = vunpack.c.h.b16 %v2372
        %v4990 = vunpack.c.l.b16 %v2373
        %v4991 = vunpack.c.h.b16 %v2373
        %v4992 = vunpack.c.l.b16 %v2374
        %v4993 = vunpack.c.h.b16 %v2374
        %v4994 = vunpack.c.l.b16 %v2375
        %v4995 = vunpack.c.h.b16 %v2375
        %v4996 = vunpack.c.l.b16 %v2376
        %v4997 = vunpack.c.h.b16 %v2376
        %v4998 = vunpack.c.l.b16 %v2377
        %v4999 = vunpack.c.h.b16 %v2377
        %v5000 = vunpack.c.l.b16 %v2378
        %v5001 = vunpack.c.h.b16 %v2378
        %v5002 = vunpack.c.l.b16 %v2379
        %v5003 = vunpack.c.h.b16 %v2379
        %v5004 = vunpack.c.l.b16 %v2380
        %v5005 = vunpack.c.h.b16 %v2380
        %v5006 = vunpack.c.l.b16 %v2381
        %v5007 = vunpack.c.h.b16 %v2381
        %v5008 = vunpack.c.l.b16 %v2382
        %v5009 = vunpack.c.h.b16 %v2382
        %v5010 = vunpack.c.l.b16 %v2383
        %v5011 = vunpack.c.h.b16 %v2383
        %v5012 = vunpack.c.l.b16 %v2384
        %v5013 = vunpack.c.h.b16 %v2384
        %v5014 = vunpack.c.l.b16 %v2385
        %v5015 = vunpack.c.h.b16 %v2385
        %v5016 = vunpack.c.l.b16 %v2386
        %v5017 = vunpack.c.h.b16 %v2386
        %v5018 = vunpack.c.l.b16 %v2387
        %v5019 = vunpack.c.h.b16 %v2387
        %v5020 = vunpack.c.l.b16 %v2388
        %v5021 = vunpack.c.h.b16 %v2388
        %v5022 = vpack.c.b16 %v4894, %v4878
        %v5023 = vpack.c.b16 %v4895, %v4879
        %v5024 = vpack.c.b16 %v4896, %v4880
        %v5025 = vpack.c.b16 %v4897, %v4881
        %v5026 = vpack.c.b16 %v4898, %v4882
        %v5027 = vpack.c.b16 %v4899, %v4883
        %v5028 = vpack.c.b16 %v4900, %v4884
        %v5029 = vpack.c.b16 %v4901, %v4885
        %v5030 = vpack.c.b16 %v4902, %v4886
        %v5031 = vpack.c.b16 %v4903, %v4887
        %v5032 = vpack.c.b16 %v4904, %v4888
        %v5033 = vpack.c.b16 %v4905, %v4889
        %v5034 = vpack.c.b16 %v4906, %v4890
        %v5035 = vpack.c.b16 %v4907, %v4891
        %v5036 = vpack.c.b16 %v4908, %v4892
        %v5037 = vpack.c.b16 %v4909, %v4893
        %v5038 = vpack.c.b16 %v4926, %v4910
        %v5039 = vpack.c.b16 %v4927, %v4911
        %v5040 = vpack.c.b16 %v4928, %v4912
        %v5041 = vpack.c.b16 %v4929, %v4913
        %v5042 = vpack.c.b16 %v4930, %v4914
        %v5043 = vpack.c.b16 %v4931, %v4915
        %v5044 = vpack.c.b16 %v4932, %v4916
        %v5045 = vpack.c.b16 %v4933, %v4917
        %v5046 = vpack.c.b16 %v4934, %v4918
        %v5047 = vpack.c.b16 %v4935, %v4919
        %v5048 = vpack.c.b16 %v4936, %v4920
        %v5049 = vpack.c.b16 %v4937, %v4921
        %v5050 = vpack.c.b16 %v4938, %v4922
        %v5051 = vpack.c.b16 %v4939, %v4923
        %v5052 = vpack.c.b16 %v4940, %v4924
        %v5053 = vpack.c.b16 %v4941, %v4925
        %v5054 = vpack.c.b16 %v4958, %v4942
        %v5055 = vpack.c.b16 %v4959, %v4943
        %v5056 = vpack.c.b16 %v4960, %v4944
        %v5057 = vpack.c.b16 %v4961, %v4945
        %v5058 = vpack.c.b16 %v4962, %v4946
        %v5059 = vpack.c.b16 %v4963, %v4947
        %v5060 = vpack.c.b16 %v4964, %v4948
        %v5061 = vpack.c.b16 %v4965, %v4949
        %v5062 = vpack.c.b16 %v4966, %v4950
        %v5063 = vpack.c.b16 %v4967, %v4951
        %v5064 = vpack.c.b16 %v4968, %v4952
        %v5065 = vpack.c.b16 %v4969, %v4953
        %v5066 = vpack.c.b16 %v4970, %v4954
        %v5067 = vpack.c.b16 %v4971, %v4955
        %v5068 = vpack.c.b16 %v4972, %v4956
        %v5069 = vpack.c.b16 %v4973, %v4957
        %v5070 = vpack.c.b16 %v4990, %v4974
        %v5071 = vpack.c.b16 %v4991, %v4975
        %v5072 = vpack.c.b16 %v4992, %v4976
        %v5073 = vpack.c.b16 %v4993, %v4977
        %v5074 = vpack.c.b16 %v4994, %v4978
        %v5075 = vpack.c.b16 %v4995, %v4979
        %v5076 = vpack.c.b16 %v4996, %v4980
        %v5077 = vpack.c.b16 %v4997, %v4981
        %v5078 = vpack.c.b16 %v4998, %v4982
        %v5079 = vpack.c.b16 %v4999, %v4983
        %v5080 = vpack.c.b16 %v5000, %v4984
        %v5081 = vpack.c.b16 %v5001, %v4985
        %v5082 = vpack.c.b16 %v5002, %v4986
        %v5083 = vpack.c.b16 %v5003, %v4987
        %v5084 = vpack.c.b16 %v5004, %v4988
        %v5085 = vpack.c.b16 %v5005, %v4989
        %v5086 = vpack.c.b16 %v5006, %v5006
        %v5087 = vpack.c.b16 %v5007, %v5007
        %v5088 = vpack.c.b16 %v5008, %v5008
        %v5089 = vpack.c.b16 %v5009, %v5009
        %v5090 = vpack.c.b16 %v5010, %v5010
        %v5091 = vpack.c.b16 %v5011, %v5011
        %v5092 = vpack.c.b16 %v5012, %v5012
        %v5093 = vpack.c.b16 %v5013, %v5013
        %v5094 = vpack.c.b16 %v5014, %v5014
        %v5095 = vpack.c.b16 %v5015, %v5015
        %v5096 = vpack.c.b16 %v5016, %v5016
        %v5097 = vpack.c.b16 %v5017, %v5017
        %v5098 = vpack.c.b16 %v5018, %v5018
        %v5099 = vpack.c.b16 %v5019, %v5019
        %v5100 = vpack.c.b16 %v5020, %v5020
        %v5101 = vpack.c.b16 %v5021, %v5021
        %v5167 = vsel %vm4425, %v2316, 0
        %v5170 = vsel %vm4429, %v5086, 0
        %v5173 = vsel %vm4429, %v5087, 0
        %v5176 = vsel %vm4429, %v5088, 0
        %v5179 = vsel %vm4429, %v5089, 0
        %v5182 = vsel %vm4429, %v5090, 0
        %v5185 = vsel %vm4429, %v5091, 0
        %v5188 = vsel %vm4429, %v5092, 0
        %v5191 = vsel %vm4429, %v5093, 0
        %v5194 = vsel %vm4429, %v5094, 0
        %v5197 = vsel %vm4429, %v5095, 0
        %v5200 = vsel %vm4429, %v5096, 0
        %v5203 = vsel %vm4429, %v5097, 0
        %v5206 = vsel %vm4429, %v5098, 0
        %v5209 = vsel %vm4429, %v5099, 0
        %v5212 = vsel %vm4429, %v5100, 0
        %v5215 = vsel %vm4429, %v5101, 0
        %5217 = vmatprep.subr.bf16.mxu0 %v5023
        %5218 = vmatpush1.bf16.msra.mxu0 %v5022
        %5219 = vmatprep.subr.bf16.mxu0 %v5039
        %5220 = vmatpush1.bf16.msra.mxu0 %v5038
        %5221 = vmatprep.subr.bf16.mxu0 %v5055
        %5222 = vmatpush1.bf16.msra.mxu0 %v5054
        %5223 = vmatprep.subr.bf16.mxu0 %v5071
        %5224 = vmatpush1.bf16.msra.mxu0 %v5070
        %5225 = vmatprep.subr.bf16.mxu0 %v5173
        %5226 = vmatpush1.bf16.msra.mxu0 %v5170
        %5227 = vmatprep.subr.bf16.mxu0 0
        %5228 = vmatpush1.bf16.msra.mxu0 0
        %5229 = vmatprep.subr.bf16.mxu0 0
        %5230 = vmatpush1.bf16.msra.mxu0 0
        %5231 = vmatprep.subr.bf16.mxu0 0
        %5232 = vmatpush1.bf16.msra.mxu0 0
        %5233 = vmatprep.subr.bf16.mxu0 0
        %5234 = vmatpush1.bf16.msra.mxu0 0
        %5235 = vmatprep.subr.bf16.mxu0 0
        %5236 = vmatpush1.bf16.msra.mxu0 0
        %5237 = vmatprep.subr.bf16.mxu0 0
        %5238 = vmatpush1.bf16.msra.mxu0 0
        %5239 = vmatprep.subr.bf16.mxu0 0
        %5240 = vmatpush1.bf16.msra.mxu0 0
        %5241 = vmatprep.subr.bf16.mxu0 0
        %5242 = vmatpush1.bf16.msra.mxu0 0
        %5243 = vmatprep.subr.bf16.mxu0 0
        %5244 = vmatpush1.bf16.msra.mxu0 0
        %5245 = vmatprep.subr.bf16.mxu0 0
        %5246 = vmatpush1.bf16.msra.mxu0 0
        %5247 = vmatprep.subr.bf16.mxu0 0
        %5248 = vmatpush1.bf16.msra.mxu0 0
        %5249 = vmatprep.mubr.bf16.mxu0 0
        %5250 = vmatmul.mubr.bf16.gmra.mrb[0].mxu0 %v5167
        %v5251 = vpop.f32.mrb[0].mxu0
        %v5252 = vadd.f32 %v4513, %v5251
        %v5253 = vpop.f32.mrb[0].mxu0
        %v5254 = vadd.f32 %v4515, %v5253
        %v5255 = vpop.f32.mrb[0].mxu0
        %v5256 = vpop.f32.mrb[0].mxu0
        %5257 = vdwg.mxu0
        %5258 = vmatprep.subr.bf16.mxu0 %v5025
        %5259 = vmatpush1.bf16.msra.mxu0 %v5024
        %5260 = vmatprep.subr.bf16.mxu0 %v5041
        %5261 = vmatpush1.bf16.msra.mxu0 %v5040
        %5262 = vmatprep.subr.bf16.mxu0 %v5057
        %5263 = vmatpush1.bf16.msra.mxu0 %v5056
        %5264 = vmatprep.subr.bf16.mxu0 %v5073
        %5265 = vmatpush1.bf16.msra.mxu0 %v5072
        %5266 = vmatprep.subr.bf16.mxu0 %v5179
        %5267 = vmatpush1.bf16.msra.mxu0 %v5176
        %5268 = vmatprep.subr.bf16.mxu0 0
        %5269 = vmatpush1.bf16.msra.mxu0 0
        %5270 = vmatprep.subr.bf16.mxu0 0
        %5271 = vmatpush1.bf16.msra.mxu0 0
        %5272 = vmatprep.subr.bf16.mxu0 0
        %5273 = vmatpush1.bf16.msra.mxu0 0
        %5274 = vmatprep.subr.bf16.mxu0 0
        %5275 = vmatpush1.bf16.msra.mxu0 0
        %5276 = vmatprep.subr.bf16.mxu0 0
        %5277 = vmatpush1.bf16.msra.mxu0 0
        %5278 = vmatprep.subr.bf16.mxu0 0
        %5279 = vmatpush1.bf16.msra.mxu0 0
        %5280 = vmatprep.subr.bf16.mxu0 0
        %5281 = vmatpush1.bf16.msra.mxu0 0
        %5282 = vmatprep.subr.bf16.mxu0 0
        %5283 = vmatpush1.bf16.msra.mxu0 0
        %5284 = vmatprep.subr.bf16.mxu0 0
        %5285 = vmatpush1.bf16.msra.mxu0 0
        %5286 = vmatprep.subr.bf16.mxu0 0
        %5287 = vmatpush1.bf16.msra.mxu0 0
        %5288 = vmatprep.subr.bf16.mxu0 0
        %5289 = vmatpush1.bf16.msra.mxu0 0
        %5290 = vmatprep.mubr.bf16.mxu0 0
        %5291 = vmatmul.mubr.bf16.gmra.mrb[0].mxu0 %v5167
        %v5292 = vpop.f32.mrb[0].mxu0
        %v5293 = vadd.f32 %v4554, %v5292
        %v5294 = vpop.f32.mrb[0].mxu0
        %v5295 = vadd.f32 %v4556, %v5294
        %v5296 = vpop.f32.mrb[0].mxu0
        %v5297 = vpop.f32.mrb[0].mxu0
        %5298 = vdwg.mxu0
        %5299 = vmatprep.subr.bf16.mxu0 %v5027
        %5300 = vmatpush1.bf16.msra.mxu0 %v5026
        %5301 = vmatprep.subr.bf16.mxu0 %v5043
        %5302 = vmatpush1.bf16.msra.mxu0 %v5042
        %5303 = vmatprep.subr.bf16.mxu0 %v5059
        %5304 = vmatpush1.bf16.msra.mxu0 %v5058
        %5305 = vmatprep.subr.bf16.mxu0 %v5075
        %5306 = vmatpush1.bf16.msra.mxu0 %v5074
        %5307 = vmatprep.subr.bf16.mxu0 %v5185
        %5308 = vmatpush1.bf16.msra.mxu0 %v5182
        %5309 = vmatprep.subr.bf16.mxu0 0
        %5310 = vmatpush1.bf16.msra.mxu0 0
        %5311 = vmatprep.subr.bf16.mxu0 0
        %5312 = vmatpush1.bf16.msra.mxu0 0
        %5313 = vmatprep.subr.bf16.mxu0 0
        %5314 = vmatpush1.bf16.msra.mxu0 0
        %5315 = vmatprep.subr.bf16.mxu0 0
        %5316 = vmatpush1.bf16.msra.mxu0 0
        %5317 = vmatprep.subr.bf16.mxu0 0
        %5318 = vmatpush1.bf16.msra.mxu0 0
        %5319 = vmatprep.subr.bf16.mxu0 0
        %5320 = vmatpush1.bf16.msra.mxu0 0
        %5321 = vmatprep.subr.bf16.mxu0 0
        %5322 = vmatpush1.bf16.msra.mxu0 0
        %5323 = vmatprep.subr.bf16.mxu0 0
        %5324 = vmatpush1.bf16.msra.mxu0 0
        %5325 = vmatprep.subr.bf16.mxu0 0
        %5326 = vmatpush1.bf16.msra.mxu0 0
        %5327 = vmatprep.subr.bf16.mxu0 0
        %5328 = vmatpush1.bf16.msra.mxu0 0
        %5329 = vmatprep.subr.bf16.mxu0 0
        %5330 = vmatpush1.bf16.msra.mxu0 0
        %5331 = vmatprep.mubr.bf16.mxu0 0
        %5332 = vmatmul.mubr.bf16.gmra.mrb[0].mxu0 %v5167
        %v5333 = vpop.f32.mrb[0].mxu0
        %v5334 = vadd.f32 %v4595, %v5333
        %v5335 = vpop.f32.mrb[0].mxu0
        %v5336 = vadd.f32 %v4597, %v5335
        %v5337 = vpop.f32.mrb[0].mxu0
        %v5338 = vpop.f32.mrb[0].mxu0
        %5339 = vdwg.mxu0
        %5340 = vmatprep.subr.bf16.mxu0 %v5029
        %5341 = vmatpush1.bf16.msra.mxu0 %v5028
        %5342 = vmatprep.subr.bf16.mxu0 %v5045
        %5343 = vmatpush1.bf16.msra.mxu0 %v5044
        %5344 = vmatprep.subr.bf16.mxu0 %v5061
        %5345 = vmatpush1.bf16.msra.mxu0 %v5060
        %5346 = vmatprep.subr.bf16.mxu0 %v5077
        %5347 = vmatpush1.bf16.msra.mxu0 %v5076
        %5348 = vmatprep.subr.bf16.mxu0 %v5191
        %5349 = vmatpush1.bf16.msra.mxu0 %v5188
        %5350 = vmatprep.subr.bf16.mxu0 0
        %5351 = vmatpush1.bf16.msra.mxu0 0
        %5352 = vmatprep.subr.bf16.mxu0 0
        %5353 = vmatpush1.bf16.msra.mxu0 0
        %5354 = vmatprep.subr.bf16.mxu0 0
        %5355 = vmatpush1.bf16.msra.mxu0 0
        %5356 = vmatprep.subr.bf16.mxu0 0
        %5357 = vmatpush1.bf16.msra.mxu0 0
        %5358 = vmatprep.subr.bf16.mxu0 0
        %5359 = vmatpush1.bf16.msra.mxu0 0
        %5360 = vmatprep.subr.bf16.mxu0 0
        %5361 = vmatpush1.bf16.msra.mxu0 0
        %5362 = vmatprep.subr.bf16.mxu0 0
        %5363 = vmatpush1.bf16.msra.mxu0 0
        %5364 = vmatprep.subr.bf16.mxu0 0
        %5365 = vmatpush1.bf16.msra.mxu0 0
        %5366 = vmatprep.subr.bf16.mxu0 0
        %5367 = vmatpush1.bf16.msra.mxu0 0
        %5368 = vmatprep.subr.bf16.mxu0 0
        %5369 = vmatpush1.bf16.msra.mxu0 0
        %5370 = vmatprep.subr.bf16.mxu0 0
        %5371 = vmatpush1.bf16.msra.mxu0 0
        %5372 = vmatprep.mubr.bf16.mxu0 0
        %5373 = vmatmul.mubr.bf16.gmra.mrb[0].mxu0 %v5167
        %v5374 = vpop.f32.mrb[0].mxu0
        %v5375 = vadd.f32 %v4636, %v5374
        %v5376 = vpop.f32.mrb[0].mxu0
        %v5377 = vadd.f32 %v4638, %v5376
        %v5378 = vpop.f32.mrb[0].mxu0
        %v5379 = vpop.f32.mrb[0].mxu0
        %5380 = vdwg.mxu0
        %5381 = vmatprep.subr.bf16.mxu0 %v5031
        %5382 = vmatpush1.bf16.msra.mxu0 %v5030
        %5383 = vmatprep.subr.bf16.mxu0 %v5047
        %5384 = vmatpush1.bf16.msra.mxu0 %v5046
        %5385 = vmatprep.subr.bf16.mxu0 %v5063
        %5386 = vmatpush1.bf16.msra.mxu0 %v5062
        %5387 = vmatprep.subr.bf16.mxu0 %v5079
        %5388 = vmatpush1.bf16.msra.mxu0 %v5078
        %5389 = vmatprep.subr.bf16.mxu0 %v5197
        %5390 = vmatpush1.bf16.msra.mxu0 %v5194
        %5391 = vmatprep.subr.bf16.mxu0 0
        %5392 = vmatpush1.bf16.msra.mxu0 0
        %5393 = vmatprep.subr.bf16.mxu0 0
        %5394 = vmatpush1.bf16.msra.mxu0 0
        %5395 = vmatprep.subr.bf16.mxu0 0
        %5396 = vmatpush1.bf16.msra.mxu0 0
        %5397 = vmatprep.subr.bf16.mxu0 0
        %5398 = vmatpush1.bf16.msra.mxu0 0
        %5399 = vmatprep.subr.bf16.mxu0 0
        %5400 = vmatpush1.bf16.msra.mxu0 0
        %5401 = vmatprep.subr.bf16.mxu0 0
        %5402 = vmatpush1.bf16.msra.mxu0 0
        %5403 = vmatprep.subr.bf16.mxu0 0
        %5404 = vmatpush1.bf16.msra.mxu0 0
        %5405 = vmatprep.subr.bf16.mxu0 0
        %5406 = vmatpush1.bf16.msra.mxu0 0
        %5407 = vmatprep.subr.bf16.mxu0 0
        %5408 = vmatpush1.bf16.msra.mxu0 0
        %5409 = vmatprep.subr.bf16.mxu0 0
        %5410 = vmatpush1.bf16.msra.mxu0 0
        %5411 = vmatprep.subr.bf16.mxu0 0
        %5412 = vmatpush1.bf16.msra.mxu0 0
        %5413 = vmatprep.mubr.bf16.mxu0 0
        %5414 = vmatmul.mubr.bf16.gmra.mrb[0].mxu0 %v5167
        %v5415 = vpop.f32.mrb[0].mxu0
        %v5416 = vadd.f32 %v4677, %v5415
        %v5417 = vpop.f32.mrb[0].mxu0
        %v5418 = vadd.f32 %v4679, %v5417
        %v5419 = vpop.f32.mrb[0].mxu0
        %v5420 = vpop.f32.mrb[0].mxu0
        %5421 = vdwg.mxu0
        %5422 = vmatprep.subr.bf16.mxu0 %v5033
        %5423 = vmatpush1.bf16.msra.mxu0 %v5032
        %5424 = vmatprep.subr.bf16.mxu0 %v5049
        %5425 = vmatpush1.bf16.msra.mxu0 %v5048
        %5426 = vmatprep.subr.bf16.mxu0 %v5065
        %5427 = vmatpush1.bf16.msra.mxu0 %v5064
        %5428 = vmatprep.subr.bf16.mxu0 %v5081
        %5429 = vmatpush1.bf16.msra.mxu0 %v5080
        %5430 = vmatprep.subr.bf16.mxu0 %v5203
        %5431 = vmatpush1.bf16.msra.mxu0 %v5200
        %5432 = vmatprep.subr.bf16.mxu0 0
        %5433 = vmatpush1.bf16.msra.mxu0 0
        %5434 = vmatprep.subr.bf16.mxu0 0
        %5435 = vmatpush1.bf16.msra.mxu0 0
        %5436 = vmatprep.subr.bf16.mxu0 0
        %5437 = vmatpush1.bf16.msra.mxu0 0
        %5438 = vmatprep.subr.bf16.mxu0 0
        %5439 = vmatpush1.bf16.msra.mxu0 0
        %5440 = vmatprep.subr.bf16.mxu0 0
        %5441 = vmatpush1.bf16.msra.mxu0 0
        %5442 = vmatprep.subr.bf16.mxu0 0
        %5443 = vmatpush1.bf16.msra.mxu0 0
        %5444 = vmatprep.subr.bf16.mxu0 0
        %5445 = vmatpush1.bf16.msra.mxu0 0
        %5446 = vmatprep.subr.bf16.mxu0 0
        %5447 = vmatpush1.bf16.msra.mxu0 0
        %5448 = vmatprep.subr.bf16.mxu0 0
        %5449 = vmatpush1.bf16.msra.mxu0 0
        %5450 = vmatprep.subr.bf16.mxu0 0
        %5451 = vmatpush1.bf16.msra.mxu0 0
        %5452 = vmatprep.subr.bf16.mxu0 0
        %5453 = vmatpush1.bf16.msra.mxu0 0
        %5454 = vmatprep.mubr.bf16.mxu0 0
        %5455 = vmatmul.mubr.bf16.gmra.mrb[0].mxu0 %v5167
        %v5456 = vpop.f32.mrb[0].mxu0
        %v5457 = vadd.f32 %v4718, %v5456
        %v5458 = vpop.f32.mrb[0].mxu0
        %v5459 = vadd.f32 %v4720, %v5458
        %v5460 = vpop.f32.mrb[0].mxu0
        %v5461 = vpop.f32.mrb[0].mxu0
        %5462 = vdwg.mxu0
        %5463 = vmatprep.subr.bf16.mxu0 %v5035
        %5464 = vmatpush1.bf16.msra.mxu0 %v5034
        %5465 = vmatprep.subr.bf16.mxu0 %v5051
        %5466 = vmatpush1.bf16.msra.mxu0 %v5050
        %5467 = vmatprep.subr.bf16.mxu0 %v5067
        %5468 = vmatpush1.bf16.msra.mxu0 %v5066
        %5469 = vmatprep.subr.bf16.mxu0 %v5083
        %5470 = vmatpush1.bf16.msra.mxu0 %v5082
        %5471 = vmatprep.subr.bf16.mxu0 %v5209
        %5472 = vmatpush1.bf16.msra.mxu0 %v5206
        %5473 = vmatprep.subr.bf16.mxu0 0
        %5474 = vmatpush1.bf16.msra.mxu0 0
        %5475 = vmatprep.subr.bf16.mxu0 0
        %5476 = vmatpush1.bf16.msra.mxu0 0
        %5477 = vmatprep.subr.bf16.mxu0 0
        %5478 = vmatpush1.bf16.msra.mxu0 0
        %5479 = vmatprep.subr.bf16.mxu0 0
        %5480 = vmatpush1.bf16.msra.mxu0 0
        %5481 = vmatprep.subr.bf16.mxu0 0
        %5482 = vmatpush1.bf16.msra.mxu0 0
        %5483 = vmatprep.subr.bf16.mxu0 0
        %5484 = vmatpush1.bf16.msra.mxu0 0
        %5485 = vmatprep.subr.bf16.mxu0 0
        %5486 = vmatpush1.bf16.msra.mxu0 0
        %5487 = vmatprep.subr.bf16.mxu0 0
        %5488 = vmatpush1.bf16.msra.mxu0 0
        %5489 = vmatprep.subr.bf16.mxu0 0
        %5490 = vmatpush1.bf16.msra.mxu0 0
        %5491 = vmatprep.subr.bf16.mxu0 0
        %5492 = vmatpush1.bf16.msra.mxu0 0
        %5493 = vmatprep.subr.bf16.mxu0 0
        %5494 = vmatpush1.bf16.msra.mxu0 0
        %5495 = vmatprep.mubr.bf16.mxu0 0
        %5496 = vmatmul.mubr.bf16.gmra.mrb[0].mxu0 %v5167
        %v5497 = vpop.f32.mrb[0].mxu0
        %v5498 = vadd.f32 %v4759, %v5497
        %v5499 = vpop.f32.mrb[0].mxu0
        %v5500 = vadd.f32 %v4761, %v5499
        %v5501 = vpop.f32.mrb[0].mxu0
        %v5502 = vpop.f32.mrb[0].mxu0
        %5503 = vdwg.mxu0
        %5504 = vmatprep.subr.bf16.mxu0 %v5037
        %5505 = vmatpush1.bf16.msra.mxu0 %v5036
        %5506 = vmatprep.subr.bf16.mxu0 %v5053
        %5507 = vmatpush1.bf16.msra.mxu0 %v5052
        %5508 = vmatprep.subr.bf16.mxu0 %v5069
        %5509 = vmatpush1.bf16.msra.mxu0 %v5068
        %5510 = vmatprep.subr.bf16.mxu0 %v5085
        %5511 = vmatpush1.bf16.msra.mxu0 %v5084
        %5512 = vmatprep.subr.bf16.mxu0 %v5215
        %5513 = vmatpush1.bf16.msra.mxu0 %v5212
        %5514 = vmatprep.subr.bf16.mxu0 0
        %5515 = vmatpush1.bf16.msra.mxu0 0
        %5516 = vmatprep.subr.bf16.mxu0 0
        %5517 = vmatpush1.bf16.msra.mxu0 0
        %5518 = vmatprep.subr.bf16.mxu0 0
        %5519 = vmatpush1.bf16.msra.mxu0 0
        %5520 = vmatprep.subr.bf16.mxu0 0
        %5521 = vmatpush1.bf16.msra.mxu0 0
        %5522 = vmatprep.subr.bf16.mxu0 0
        %5523 = vmatpush1.bf16.msra.mxu0 0
        %5524 = vmatprep.subr.bf16.mxu0 0
        %5525 = vmatpush1.bf16.msra.mxu0 0
        %5526 = vmatprep.subr.bf16.mxu0 0
        %5527 = vmatpush1.bf16.msra.mxu0 0
        %5528 = vmatprep.subr.bf16.mxu0 0
        %5529 = vmatpush1.bf16.msra.mxu0 0
        %5530 = vmatprep.subr.bf16.mxu0 0
        %5531 = vmatpush1.bf16.msra.mxu0 0
        %5532 = vmatprep.subr.bf16.mxu0 0
        %5533 = vmatpush1.bf16.msra.mxu0 0
        %5534 = vmatprep.subr.bf16.mxu0 0
        %5535 = vmatpush1.bf16.msra.mxu0 0
        %5536 = vmatprep.mubr.bf16.mxu0 0
        %5537 = vmatmul.mubr.bf16.gmra.mrb[0].mxu0 %v5167
        %v5538 = vpop.f32.mrb[0].mxu0
        %v5539 = vadd.f32 %v4800, %v5538
        %v5540 = vpop.f32.mrb[0].mxu0
        %v5541 = vadd.f32 %v4802, %v5540
        %v5542 = vpop.f32.mrb[0].mxu0
        %v5543 = vpop.f32.mrb[0].mxu0
        %5544 = vdwg.mxu0
        %s5545 = scalar_lea.vmem [#allocation7], 258
        %v5546 = vld [vmem:[%s5545] ss:$8 sm:$0xf]
        %v5547 = vld [vmem:[%s5545] ss:$8 sm:$0xf0]
        %v5548 = vor.u32 %v5546, %v5547
        %s5549 = scalar_lea.vmem [#allocation7], 322
        %v5550 = vld [vmem:[%s5549] ss:$8 sm:$0xf]
        %v5551 = vld [vmem:[%s5549] ss:$8 sm:$0xf0]
        %v5552 = vor.u32 %v5550, %v5551
        %v5555 = vlaneseq
        %v5556 = vshrl.u32 %v5555, 7
        %v5557 = vsub.s32 0, %v5556
        %v5558 = vrot.slane %v5548, %v5557
        %v5559 = vlaneseq
        %v5560 = vshrl.u32 %v5559, 7
        %v5561 = vsub.s32 1, %v5560
        %v5562 = vrot.slane %v5548, %v5561
        %v5563 = vlaneseq
        %v5564 = vshrl.u32 %v5563, 7
        %v5565 = vsub.s32 2, %v5564
        %v5566 = vrot.slane %v5548, %v5565
        %v5567 = vlaneseq
        %v5568 = vshrl.u32 %v5567, 7
        %v5569 = vsub.s32 3, %v5568
        %v5570 = vrot.slane %v5548, %v5569
        %v5571 = vlaneseq
        %v5572 = vshrl.u32 %v5571, 7
        %v5573 = vsub.s32 4, %v5572
        %v5574 = vrot.slane %v5548, %v5573
        %v5575 = vlaneseq
        %v5576 = vshrl.u32 %v5575, 7
        %v5577 = vsub.s32 5, %v5576
        %v5578 = vrot.slane %v5548, %v5577
        %v5579 = vlaneseq
        %v5580 = vshrl.u32 %v5579, 7
        %v5581 = vsub.s32 6, %v5580
        %v5582 = vrot.slane %v5548, %v5581
        %v5583 = vlaneseq
        %v5584 = vshrl.u32 %v5583, 7
        %v5585 = vsub.s32 7, %v5584
        %v5586 = vrot.slane %v5548, %v5585
        %v5587 = vlaneseq
        %v5588 = vshrl.u32 %v5587, 7
        %v5589 = vsub.s32 0, %v5588
        %v5590 = vrot.slane %v5552, %v5589
        %v5591 = vlaneseq
        %v5592 = vshrl.u32 %v5591, 7
        %v5593 = vsub.s32 1, %v5592
        %v5594 = vrot.slane %v5552, %v5593
        %v5595 = vlaneseq
        %v5596 = vshrl.u32 %v5595, 7
        %v5597 = vsub.s32 2, %v5596
        %v5598 = vrot.slane %v5552, %v5597
        %v5599 = vlaneseq
        %v5600 = vshrl.u32 %v5599, 7
        %v5601 = vsub.s32 3, %v5600
        %v5602 = vrot.slane %v5552, %v5601
        %v5603 = vlaneseq
        %v5604 = vshrl.u32 %v5603, 7
        %v5605 = vsub.s32 4, %v5604
        %v5606 = vrot.slane %v5552, %v5605
        %v5607 = vlaneseq
        %v5608 = vshrl.u32 %v5607, 7
        %v5609 = vsub.s32 5, %v5608
        %v5610 = vrot.slane %v5552, %v5609
        %v5611 = vlaneseq
        %v5612 = vshrl.u32 %v5611, 7
        %v5613 = vsub.s32 6, %v5612
        %v5614 = vrot.slane %v5552, %v5613
        %v5615 = vlaneseq
        %v5616 = vshrl.u32 %v5615, 7
        %v5617 = vsub.s32 7, %v5616
        %v5618 = vrot.slane %v5552, %v5617
        %v5635 = vmul.f32 %v369, %v5558
        %v5636 = vmul.f32 %v368, %v5562
        %v5637 = vmul.f32 %v367, %v5566
        %v5638 = vmul.f32 %v366, %v5570
        %v5639 = vmul.f32 %v365, %v5574
        %v5640 = vmul.f32 %v364, %v5578
        %v5641 = vmul.f32 %v363, %v5582
        %v5642 = vmul.f32 %v362, %v5586
        %v5643 = vmul.f32 %v361, %v5590
        %v5644 = vmul.f32 %v360, %v5594
        %v5645 = vmul.f32 %v359, %v5598
        %v5646 = vmul.f32 %v358, %v5602
        %v5647 = vmul.f32 %v357, %v5606
        %v5648 = vmul.f32 %v356, %v5610
        %v5649 = vmul.f32 %v371, %v5614
        %v5650 = vmul.f32 %v370, %v5618
        %v5651 = vpack.c.bf16 %v5635, %v5635
        %v5652 = vpack.c.bf16 %v5636, %v5636
        %v5653 = vpack.c.bf16 %v5637, %v5637
        %v5654 = vpack.c.bf16 %v5638, %v5638
        %v5655 = vpack.c.bf16 %v5639, %v5639
        %v5656 = vpack.c.bf16 %v5640, %v5640
        %v5657 = vpack.c.bf16 %v5641, %v5641
        %v5658 = vpack.c.bf16 %v5642, %v5642
        %v5659 = vpack.c.bf16 %v5643, %v5643
        %v5660 = vpack.c.bf16 %v5644, %v5644
        %v5661 = vpack.c.bf16 %v5645, %v5645
        %v5662 = vpack.c.bf16 %v5646, %v5646
        %v5663 = vpack.c.bf16 %v5647, %v5647
        %v5664 = vpack.c.bf16 %v5648, %v5648
        %v5665 = vpack.c.bf16 %v5649, %v5649
        %v5666 = vpack.c.bf16 %v5650, %v5650
        %v5683 = vunpack.c.l.b16 %v5651
        %v5684 = vunpack.c.l.b16 %v5652
        %v5685 = vunpack.c.l.b16 %v5653
        %v5686 = vunpack.c.l.b16 %v5654
        %v5687 = vunpack.c.l.b16 %v5655
        %v5688 = vunpack.c.l.b16 %v5656
        %v5689 = vunpack.c.l.b16 %v5657
        %v5690 = vunpack.c.l.b16 %v5658
        %v5691 = vunpack.c.l.b16 %v5659
        %v5692 = vunpack.c.l.b16 %v5660
        %v5693 = vunpack.c.l.b16 %v5661
        %v5694 = vunpack.c.l.b16 %v5662
        %v5695 = vunpack.c.l.b16 %v5663
        %v5696 = vunpack.c.l.b16 %v5664
        %v5697 = vunpack.c.l.b16 %v5665
        %v5698 = vunpack.c.l.b16 %v5666
        %v5699 = vpack.c.b16 %v5684, %v5683
        %v5700 = vpack.c.b16 %v5686, %v5685
        %v5701 = vpack.c.b16 %v5688, %v5687
        %v5702 = vpack.c.b16 %v5690, %v5689
        %v5703 = vpack.c.b16 %v5692, %v5691
        %v5704 = vpack.c.b16 %v5694, %v5693
        %v5705 = vpack.c.b16 %v5696, %v5695
        %v5706 = vpack.c.b16 %v5698, %v5697
        %5715 = vst [vmem:[#allocation2] sm:$0xff] %v5699
        %5716 = vst [vmem:[#allocation2 + $0x8] sm:$0xff] %v5700
        %5717 = vst [vmem:[#allocation2 + $0x10] sm:$0xff] %v5701
        %5718 = vst [vmem:[#allocation2 + $0x18] sm:$0xff] %v5702
        %5719 = vst [vmem:[#allocation2 + $0x20] sm:$0xff] %v5703
        %5720 = vst [vmem:[#allocation2 + $0x28] sm:$0xff] %v5704
        %5721 = vst [vmem:[#allocation2 + $0x30] sm:$0xff] %v5705
        %5722 = vst [vmem:[#allocation2 + $0x38] sm:$0xff] %v5706
        %s5723 = scalar_lea.vmem [#allocation7], 259
        %v5724 = vld [vmem:[%s5723] ss:$8 sm:$0xf]
        %v5725 = vld [vmem:[%s5723] ss:$8 sm:$0xf0]
        %v5726 = vor.u32 %v5724, %v5725
        %s5727 = scalar_lea.vmem [#allocation7], 323
        %v5728 = vld [vmem:[%s5727] ss:$8 sm:$0xf]
        %v5729 = vld [vmem:[%s5727] ss:$8 sm:$0xf0]
        %v5730 = vor.u32 %v5728, %v5729
        %v5733 = vlaneseq
        %v5734 = vshrl.u32 %v5733, 7
        %v5735 = vsub.s32 0, %v5734
        %v5736 = vrot.slane %v5726, %v5735
        %v5737 = vlaneseq
        %v5738 = vshrl.u32 %v5737, 7
        %v5739 = vsub.s32 1, %v5738
        %v5740 = vrot.slane %v5726, %v5739
        %v5741 = vlaneseq
        %v5742 = vshrl.u32 %v5741, 7
        %v5743 = vsub.s32 2, %v5742
        %v5744 = vrot.slane %v5726, %v5743
        %v5745 = vlaneseq
        %v5746 = vshrl.u32 %v5745, 7
        %v5747 = vsub.s32 3, %v5746
        %v5748 = vrot.slane %v5726, %v5747
        %v5749 = vlaneseq
        %v5750 = vshrl.u32 %v5749, 7
        %v5751 = vsub.s32 4, %v5750
        %v5752 = vrot.slane %v5726, %v5751
        %v5753 = vlaneseq
        %v5754 = vshrl.u32 %v5753, 7
        %v5755 = vsub.s32 5, %v5754
        %v5756 = vrot.slane %v5726, %v5755
        %v5757 = vlaneseq
        %v5758 = vshrl.u32 %v5757, 7
        %v5759 = vsub.s32 6, %v5758
        %v5760 = vrot.slane %v5726, %v5759
        %v5761 = vlaneseq
        %v5762 = vshrl.u32 %v5761, 7
        %v5763 = vsub.s32 7, %v5762
        %v5764 = vrot.slane %v5726, %v5763
        %v5765 = vlaneseq
        %v5766 = vshrl.u32 %v5765, 7
        %v5767 = vsub.s32 0, %v5766
        %v5768 = vrot.slane %v5730, %v5767
        %v5769 = vlaneseq
        %v5770 = vshrl.u32 %v5769, 7
        %v5771 = vsub.s32 1, %v5770
        %v5772 = vrot.slane %v5730, %v5771
        %v5773 = vlaneseq
        %v5774 = vshrl.u32 %v5773, 7
        %v5775 = vsub.s32 2, %v5774
        %v5776 = vrot.slane %v5730, %v5775
        %v5777 = vlaneseq
        %v5778 = vshrl.u32 %v5777, 7
        %v5779 = vsub.s32 3, %v5778
        %v5780 = vrot.slane %v5730, %v5779
        %v5781 = vlaneseq
        %v5782 = vshrl.u32 %v5781, 7
        %v5783 = vsub.s32 4, %v5782
        %v5784 = vrot.slane %v5730, %v5783
        %v5785 = vlaneseq
        %v5786 = vshrl.u32 %v5785, 7
        %v5787 = vsub.s32 5, %v5786
        %v5788 = vrot.slane %v5730, %v5787
        %v5789 = vlaneseq
        %v5790 = vshrl.u32 %v5789, 7
        %v5791 = vsub.s32 6, %v5790
        %v5792 = vrot.slane %v5730, %v5791
        %v5793 = vlaneseq
        %v5794 = vshrl.u32 %v5793, 7
        %v5795 = vsub.s32 7, %v5794
        %v5796 = vrot.slane %v5730, %v5795
        %v5813 = vmul.f32 %v595, %v5736
        %v5814 = vmul.f32 %v594, %v5740
        %v5815 = vmul.f32 %v593, %v5744
        %v5816 = vmul.f32 %v592, %v5748
        %v5817 = vmul.f32 %v591, %v5752
        %v5818 = vmul.f32 %v590, %v5756
        %v5819 = vmul.f32 %v589, %v5760
        %v5820 = vmul.f32 %v588, %v5764
        %v5821 = vmul.f32 %v587, %v5768
        %v5822 = vmul.f32 %v586, %v5772
        %v5823 = vmul.f32 %v585, %v5776
        %v5824 = vmul.f32 %v584, %v5780
        %v5825 = vmul.f32 %v583, %v5784
        %v5826 = vmul.f32 %v582, %v5788
        %v5827 = vmul.f32 %v597, %v5792
        %v5828 = vmul.f32 %v596, %v5796
        %v5829 = vpack.c.bf16 %v5813, %v5813
        %v5830 = vpack.c.bf16 %v5814, %v5814
        %v5831 = vpack.c.bf16 %v5815, %v5815
        %v5832 = vpack.c.bf16 %v5816, %v5816
        %v5833 = vpack.c.bf16 %v5817, %v5817
        %v5834 = vpack.c.bf16 %v5818, %v5818
        %v5835 = vpack.c.bf16 %v5819, %v5819
        %v5836 = vpack.c.bf16 %v5820, %v5820
        %v5837 = vpack.c.bf16 %v5821, %v5821
        %v5838 = vpack.c.bf16 %v5822, %v5822
        %v5839 = vpack.c.bf16 %v5823, %v5823
        %v5840 = vpack.c.bf16 %v5824, %v5824
        %v5841 = vpack.c.bf16 %v5825, %v5825
        %v5842 = vpack.c.bf16 %v5826, %v5826
        %v5843 = vpack.c.bf16 %v5827, %v5827
        %v5844 = vpack.c.bf16 %v5828, %v5828
        %v5861 = vunpack.c.l.b16 %v5829
        %v5862 = vunpack.c.l.b16 %v5830
        %v5863 = vunpack.c.l.b16 %v5831
        %v5864 = vunpack.c.l.b16 %v5832
        %v5865 = vunpack.c.l.b16 %v5833
        %v5866 = vunpack.c.l.b16 %v5834
        %v5867 = vunpack.c.l.b16 %v5835
        %v5868 = vunpack.c.l.b16 %v5836
        %v5869 = vunpack.c.l.b16 %v5837
        %v5870 = vunpack.c.l.b16 %v5838
        %v5871 = vunpack.c.l.b16 %v5839
        %v5872 = vunpack.c.l.b16 %v5840
        %v5873 = vunpack.c.l.b16 %v5841
        %v5874 = vunpack.c.l.b16 %v5842
        %v5875 = vunpack.c.l.b16 %v5843
        %v5876 = vunpack.c.l.b16 %v5844
        %v5877 = vpack.c.b16 %v5862, %v5861
        %v5878 = vpack.c.b16 %v5864, %v5863
        %v5879 = vpack.c.b16 %v5866, %v5865
        %v5880 = vpack.c.b16 %v5868, %v5867
        %v5881 = vpack.c.b16 %v5870, %v5869
        %v5882 = vpack.c.b16 %v5872, %v5871
        %v5883 = vpack.c.b16 %v5874, %v5873
        %v5884 = vpack.c.b16 %v5876, %v5875
        %5893 = vst [vmem:[#allocation2 + $0x40] sm:$0xff] %v5877
        %5894 = vst [vmem:[#allocation2 + $0x48] sm:$0xff] %v5878
        %5895 = vst [vmem:[#allocation2 + $0x50] sm:$0xff] %v5879
        %5896 = vst [vmem:[#allocation2 + $0x58] sm:$0xff] %v5880
        %5897 = vst [vmem:[#allocation2 + $0x60] sm:$0xff] %v5881
        %5898 = vst [vmem:[#allocation2 + $0x68] sm:$0xff] %v5882
        %5899 = vst [vmem:[#allocation2 + $0x70] sm:$0xff] %v5883
        %5900 = vst [vmem:[#allocation2 + $0x78] sm:$0xff] %v5884
        %s5901 = scalar_lea.vmem [#allocation7], 260
        %v5902 = vld [vmem:[%s5901] ss:$8 sm:$0xf]
        %v5903 = vld [vmem:[%s5901] ss:$8 sm:$0xf0]
        %v5904 = vor.u32 %v5902, %v5903
        %s5905 = scalar_lea.vmem [#allocation7], 324
        %v5906 = vld [vmem:[%s5905] ss:$8 sm:$0xf]
        %v5907 = vld [vmem:[%s5905] ss:$8 sm:$0xf0]
        %v5908 = vor.u32 %v5906, %v5907
        %v5911 = vlaneseq
        %v5912 = vshrl.u32 %v5911, 7
        %v5913 = vsub.s32 0, %v5912
        %v5914 = vrot.slane %v5904, %v5913
        %v5915 = vlaneseq
        %v5916 = vshrl.u32 %v5915, 7
        %v5917 = vsub.s32 1, %v5916
        %v5918 = vrot.slane %v5904, %v5917
        %v5919 = vlaneseq
        %v5920 = vshrl.u32 %v5919, 7
        %v5921 = vsub.s32 2, %v5920
        %v5922 = vrot.slane %v5904, %v5921
        %v5923 = vlaneseq
        %v5924 = vshrl.u32 %v5923, 7
        %v5925 = vsub.s32 3, %v5924
        %v5926 = vrot.slane %v5904, %v5925
        %v5927 = vlaneseq
        %v5928 = vshrl.u32 %v5927, 7
        %v5929 = vsub.s32 4, %v5928
        %v5930 = vrot.slane %v5904, %v5929
        %v5931 = vlaneseq
        %v5932 = vshrl.u32 %v5931, 7
        %v5933 = vsub.s32 5, %v5932
        %v5934 = vrot.slane %v5904, %v5933
        %v5935 = vlaneseq
        %v5936 = vshrl.u32 %v5935, 7
        %v5937 = vsub.s32 6, %v5936
        %v5938 = vrot.slane %v5904, %v5937
        %v5939 = vlaneseq
        %v5940 = vshrl.u32 %v5939, 7
        %v5941 = vsub.s32 7, %v5940
        %v5942 = vrot.slane %v5904, %v5941
        %v5943 = vlaneseq
        %v5944 = vshrl.u32 %v5943, 7
        %v5945 = vsub.s32 0, %v5944
        %v5946 = vrot.slane %v5908, %v5945
        %v5947 = vlaneseq
        %v5948 = vshrl.u32 %v5947, 7
        %v5949 = vsub.s32 1, %v5948
        %v5950 = vrot.slane %v5908, %v5949
        %v5951 = vlaneseq
        %v5952 = vshrl.u32 %v5951, 7
        %v5953 = vsub.s32 2, %v5952
        %v5954 = vrot.slane %v5908, %v5953
        %v5955 = vlaneseq
        %v5956 = vshrl.u32 %v5955, 7
        %v5957 = vsub.s32 3, %v5956
        %v5958 = vrot.slane %v5908, %v5957
        %v5959 = vlaneseq
        %v5960 = vshrl.u32 %v5959, 7
        %v5961 = vsub.s32 4, %v5960
        %v5962 = vrot.slane %v5908, %v5961
        %v5963 = vlaneseq
        %v5964 = vshrl.u32 %v5963, 7
        %v5965 = vsub.s32 5, %v5964
        %v5966 = vrot.slane %v5908, %v5965
        %v5967 = vlaneseq
        %v5968 = vshrl.u32 %v5967, 7
        %v5969 = vsub.s32 6, %v5968
        %v5970 = vrot.slane %v5908, %v5969
        %v5971 = vlaneseq
        %v5972 = vshrl.u32 %v5971, 7
        %v5973 = vsub.s32 7, %v5972
        %v5974 = vrot.slane %v5908, %v5973
        %v5991 = vmul.f32 %v822, %v5914
        %v5992 = vmul.f32 %v821, %v5918
        %v5993 = vmul.f32 %v820, %v5922
        %v5994 = vmul.f32 %v819, %v5926
        %v5995 = vmul.f32 %v818, %v5930
        %v5996 = vmul.f32 %v817, %v5934
        %v5997 = vmul.f32 %v816, %v5938
        %v5998 = vmul.f32 %v815, %v5942
        %v5999 = vmul.f32 %v814, %v5946
        %v6000 = vmul.f32 %v813, %v5950
        %v6001 = vmul.f32 %v812, %v5954
        %v6002 = vmul.f32 %v811, %v5958
        %v6003 = vmul.f32 %v810, %v5962
        %v6004 = vmul.f32 %v809, %v5966
        %v6005 = vmul.f32 %v824, %v5970
        %v6006 = vmul.f32 %v823, %v5974
        %v6007 = vpack.c.bf16 %v5991, %v5991
        %v6008 = vpack.c.bf16 %v5992, %v5992
        %v6009 = vpack.c.bf16 %v5993, %v5993
        %v6010 = vpack.c.bf16 %v5994, %v5994
        %v6011 = vpack.c.bf16 %v5995, %v5995
        %v6012 = vpack.c.bf16 %v5996, %v5996
        %v6013 = vpack.c.bf16 %v5997, %v5997
        %v6014 = vpack.c.bf16 %v5998, %v5998
        %v6015 = vpack.c.bf16 %v5999, %v5999
        %v6016 = vpack.c.bf16 %v6000, %v6000
        %v6017 = vpack.c.bf16 %v6001, %v6001
        %v6018 = vpack.c.bf16 %v6002, %v6002
        %v6019 = vpack.c.bf16 %v6003, %v6003
        %v6020 = vpack.c.bf16 %v6004, %v6004
        %v6021 = vpack.c.bf16 %v6005, %v6005
        %v6022 = vpack.c.bf16 %v6006, %v6006
        %v6039 = vunpack.c.l.b16 %v6007
        %v6040 = vunpack.c.l.b16 %v6008
        %v6041 = vunpack.c.l.b16 %v6009
        %v6042 = vunpack.c.l.b16 %v6010
        %v6043 = vunpack.c.l.b16 %v6011
        %v6044 = vunpack.c.l.b16 %v6012
        %v6045 = vunpack.c.l.b16 %v6013
        %v6046 = vunpack.c.l.b16 %v6014
        %v6047 = vunpack.c.l.b16 %v6015
        %v6048 = vunpack.c.l.b16 %v6016
        %v6049 = vunpack.c.l.b16 %v6017
        %v6050 = vunpack.c.l.b16 %v6018
        %v6051 = vunpack.c.l.b16 %v6019
        %v6052 = vunpack.c.l.b16 %v6020
        %v6053 = vunpack.c.l.b16 %v6021
        %v6054 = vunpack.c.l.b16 %v6022
        %v6055 = vpack.c.b16 %v6040, %v6039
        %v6056 = vpack.c.b16 %v6042, %v6041
        %v6057 = vpack.c.b16 %v6044, %v6043
        %v6058 = vpack.c.b16 %v6046, %v6045
        %v6059 = vpack.c.b16 %v6048, %v6047
        %v6060 = vpack.c.b16 %v6050, %v6049
        %v6061 = vpack.c.b16 %v6052, %v6051
        %v6062 = vpack.c.b16 %v6054, %v6053
        %6071 = vst [vmem:[#allocation2 + $0x80] sm:$0xff] %v6055
        %6072 = vst [vmem:[#allocation2 + $0x88] sm:$0xff] %v6056
        %6073 = vst [vmem:[#allocation2 + $0x90] sm:$0xff] %v6057
        %6074 = vst [vmem:[#allocation2 + $0x98] sm:$0xff] %v6058
        %6075 = vst [vmem:[#allocation2 + $0xa0] sm:$0xff] %v6059
        %6076 = vst [vmem:[#allocation2 + $0xa8] sm:$0xff] %v6060
        %6077 = vst [vmem:[#allocation2 + $0xb0] sm:$0xff] %v6061
        %6078 = vst [vmem:[#allocation2 + $0xb8] sm:$0xff] %v6062
        %s6079 = scalar_lea.vmem [#allocation7], 261
        %v6080 = vld [vmem:[%s6079] ss:$8 sm:$0xf]
        %v6081 = vld [vmem:[%s6079] ss:$8 sm:$0xf0]
        %v6082 = vor.u32 %v6080, %v6081
        %s6083 = scalar_lea.vmem [#allocation7], 325
        %v6084 = vld [vmem:[%s6083] ss:$8 sm:$0xf]
        %v6085 = vld [vmem:[%s6083] ss:$8 sm:$0xf0]
        %v6086 = vor.u32 %v6084, %v6085
        %v6089 = vlaneseq
        %v6090 = vshrl.u32 %v6089, 7
        %v6091 = vsub.s32 0, %v6090
        %v6092 = vrot.slane %v6082, %v6091
        %v6093 = vlaneseq
        %v6094 = vshrl.u32 %v6093, 7
        %v6095 = vsub.s32 1, %v6094
        %v6096 = vrot.slane %v6082, %v6095
        %v6097 = vlaneseq
        %v6098 = vshrl.u32 %v6097, 7
        %v6099 = vsub.s32 2, %v6098
        %v6100 = vrot.slane %v6082, %v6099
        %v6101 = vlaneseq
        %v6102 = vshrl.u32 %v6101, 7
        %v6103 = vsub.s32 3, %v6102
        %v6104 = vrot.slane %v6082, %v6103
        %v6105 = vlaneseq
        %v6106 = vshrl.u32 %v6105, 7
        %v6107 = vsub.s32 4, %v6106
        %v6108 = vrot.slane %v6082, %v6107
        %v6109 = vlaneseq
        %v6110 = vshrl.u32 %v6109, 7
        %v6111 = vsub.s32 5, %v6110
        %v6112 = vrot.slane %v6082, %v6111
        %v6113 = vlaneseq
        %v6114 = vshrl.u32 %v6113, 7
        %v6115 = vsub.s32 6, %v6114
        %v6116 = vrot.slane %v6082, %v6115
        %v6117 = vlaneseq
        %v6118 = vshrl.u32 %v6117, 7
        %v6119 = vsub.s32 7, %v6118
        %v6120 = vrot.slane %v6082, %v6119
        %v6121 = vlaneseq
        %v6122 = vshrl.u32 %v6121, 7
        %v6123 = vsub.s32 0, %v6122
        %v6124 = vrot.slane %v6086, %v6123
        %v6125 = vlaneseq
        %v6126 = vshrl.u32 %v6125, 7
        %v6127 = vsub.s32 1, %v6126
        %v6128 = vrot.slane %v6086, %v6127
        %v6129 = vlaneseq
        %v6130 = vshrl.u32 %v6129, 7
        %v6131 = vsub.s32 2, %v6130
        %v6132 = vrot.slane %v6086, %v6131
        %v6133 = vlaneseq
        %v6134 = vshrl.u32 %v6133, 7
        %v6135 = vsub.s32 3, %v6134
        %v6136 = vrot.slane %v6086, %v6135
        %v6137 = vlaneseq
        %v6138 = vshrl.u32 %v6137, 7
        %v6139 = vsub.s32 4, %v6138
        %v6140 = vrot.slane %v6086, %v6139
        %v6141 = vlaneseq
        %v6142 = vshrl.u32 %v6141, 7
        %v6143 = vsub.s32 5, %v6142
        %v6144 = vrot.slane %v6086, %v6143
        %v6145 = vlaneseq
        %v6146 = vshrl.u32 %v6145, 7
        %v6147 = vsub.s32 6, %v6146
        %v6148 = vrot.slane %v6086, %v6147
        %v6149 = vlaneseq
        %v6150 = vshrl.u32 %v6149, 7
        %v6151 = vsub.s32 7, %v6150
        %v6152 = vrot.slane %v6086, %v6151
        %v6169 = vmul.f32 %v1049, %v6092
        %v6170 = vmul.f32 %v1048, %v6096
        %v6171 = vmul.f32 %v1047, %v6100
        %v6172 = vmul.f32 %v1046, %v6104
        %v6173 = vmul.f32 %v1045, %v6108
        %v6174 = vmul.f32 %v1044, %v6112
        %v6175 = vmul.f32 %v1043, %v6116
        %v6176 = vmul.f32 %v1042, %v6120
        %v6177 = vmul.f32 %v1041, %v6124
        %v6178 = vmul.f32 %v1040, %v6128
        %v6179 = vmul.f32 %v1039, %v6132
        %v6180 = vmul.f32 %v1038, %v6136
        %v6181 = vmul.f32 %v1037, %v6140
        %v6182 = vmul.f32 %v1036, %v6144
        %v6183 = vmul.f32 %v1051, %v6148
        %v6184 = vmul.f32 %v1050, %v6152
        %v6185 = vpack.c.bf16 %v6169, %v6169
        %v6186 = vpack.c.bf16 %v6170, %v6170
        %v6187 = vpack.c.bf16 %v6171, %v6171
        %v6188 = vpack.c.bf16 %v6172, %v6172
        %v6189 = vpack.c.bf16 %v6173, %v6173
        %v6190 = vpack.c.bf16 %v6174, %v6174
        %v6191 = vpack.c.bf16 %v6175, %v6175
        %v6192 = vpack.c.bf16 %v6176, %v6176
        %v6193 = vpack.c.bf16 %v6177, %v6177
        %v6194 = vpack.c.bf16 %v6178, %v6178
        %v6195 = vpack.c.bf16 %v6179, %v6179
        %v6196 = vpack.c.bf16 %v6180, %v6180
        %v6197 = vpack.c.bf16 %v6181, %v6181
        %v6198 = vpack.c.bf16 %v6182, %v6182
        %v6199 = vpack.c.bf16 %v6183, %v6183
        %v6200 = vpack.c.bf16 %v6184, %v6184
        %v6217 = vunpack.c.l.b16 %v6185
        %v6218 = vunpack.c.l.b16 %v6186
        %v6219 = vunpack.c.l.b16 %v6187
        %v6220 = vunpack.c.l.b16 %v6188
        %v6221 = vunpack.c.l.b16 %v6189
        %v6222 = vunpack.c.l.b16 %v6190
        %v6223 = vunpack.c.l.b16 %v6191
        %v6224 = vunpack.c.l.b16 %v6192
        %v6225 = vunpack.c.l.b16 %v6193
        %v6226 = vunpack.c.l.b16 %v6194
        %v6227 = vunpack.c.l.b16 %v6195
        %v6228 = vunpack.c.l.b16 %v6196
        %v6229 = vunpack.c.l.b16 %v6197
        %v6230 = vunpack.c.l.b16 %v6198
        %v6231 = vunpack.c.l.b16 %v6199
        %v6232 = vunpack.c.l.b16 %v6200
        %v6233 = vpack.c.b16 %v6218, %v6217
        %v6234 = vpack.c.b16 %v6220, %v6219
        %v6235 = vpack.c.b16 %v6222, %v6221
        %v6236 = vpack.c.b16 %v6224, %v6223
        %v6237 = vpack.c.b16 %v6226, %v6225
        %v6238 = vpack.c.b16 %v6228, %v6227
        %v6239 = vpack.c.b16 %v6230, %v6229
        %v6240 = vpack.c.b16 %v6232, %v6231
        %6249 = vst [vmem:[#allocation2 + $0xc0] sm:$0xff] %v6233
        %6250 = vst [vmem:[#allocation2 + $0xc8] sm:$0xff] %v6234
        %6251 = vst [vmem:[#allocation2 + $0xd0] sm:$0xff] %v6235
        %6252 = vst [vmem:[#allocation2 + $0xd8] sm:$0xff] %v6236
        %6253 = vst [vmem:[#allocation2 + $0xe0] sm:$0xff] %v6237
        %6254 = vst [vmem:[#allocation2 + $0xe8] sm:$0xff] %v6238
        %6255 = vst [vmem:[#allocation2 + $0xf0] sm:$0xff] %v6239
        %6256 = vst [vmem:[#allocation2 + $0xf8] sm:$0xff] %v6240
        %s6257 = scalar_lea.vmem [#allocation7], 262
        %v6258 = vld [vmem:[%s6257] ss:$8 sm:$0xf]
        %v6259 = vld [vmem:[%s6257] ss:$8 sm:$0xf0]
        %v6260 = vor.u32 %v6258, %v6259
        %s6261 = scalar_lea.vmem [#allocation7], 326
        %v6262 = vld [vmem:[%s6261] ss:$8 sm:$0xf]
        %v6263 = vld [vmem:[%s6261] ss:$8 sm:$0xf0]
        %v6264 = vor.u32 %v6262, %v6263
        %v6267 = vlaneseq
        %v6268 = vshrl.u32 %v6267, 7
        %v6269 = vsub.s32 0, %v6268
        %v6270 = vrot.slane %v6260, %v6269
        %v6271 = vlaneseq
        %v6272 = vshrl.u32 %v6271, 7
        %v6273 = vsub.s32 1, %v6272
        %v6274 = vrot.slane %v6260, %v6273
        %v6275 = vlaneseq
        %v6276 = vshrl.u32 %v6275, 7
        %v6277 = vsub.s32 2, %v6276
        %v6278 = vrot.slane %v6260, %v6277
        %v6279 = vlaneseq
        %v6280 = vshrl.u32 %v6279, 7
        %v6281 = vsub.s32 3, %v6280
        %v6282 = vrot.slane %v6260, %v6281
        %v6283 = vlaneseq
        %v6284 = vshrl.u32 %v6283, 7
        %v6285 = vsub.s32 4, %v6284
        %v6286 = vrot.slane %v6260, %v6285
        %v6287 = vlaneseq
        %v6288 = vshrl.u32 %v6287, 7
        %v6289 = vsub.s32 5, %v6288
        %v6290 = vrot.slane %v6260, %v6289
        %v6291 = vlaneseq
        %v6292 = vshrl.u32 %v6291, 7
        %v6293 = vsub.s32 6, %v6292
        %v6294 = vrot.slane %v6260, %v6293
        %v6295 = vlaneseq
        %v6296 = vshrl.u32 %v6295, 7
        %v6297 = vsub.s32 7, %v6296
        %v6298 = vrot.slane %v6260, %v6297
        %v6299 = vlaneseq
        %v6300 = vshrl.u32 %v6299, 7
        %v6301 = vsub.s32 0, %v6300
        %v6302 = vrot.slane %v6264, %v6301
        %v6303 = vlaneseq
        %v6304 = vshrl.u32 %v6303, 7
        %v6305 = vsub.s32 1, %v6304
        %v6306 = vrot.slane %v6264, %v6305
        %v6307 = vlaneseq
        %v6308 = vshrl.u32 %v6307, 7
        %v6309 = vsub.s32 2, %v6308
        %v6310 = vrot.slane %v6264, %v6309
        %v6311 = vlaneseq
        %v6312 = vshrl.u32 %v6311, 7
        %v6313 = vsub.s32 3, %v6312
        %v6314 = vrot.slane %v6264, %v6313
        %v6315 = vlaneseq
        %v6316 = vshrl.u32 %v6315, 7
        %v6317 = vsub.s32 4, %v6316
        %v6318 = vrot.slane %v6264, %v6317
        %v6319 = vlaneseq
        %v6320 = vshrl.u32 %v6319, 7
        %v6321 = vsub.s32 5, %v6320
        %v6322 = vrot.slane %v6264, %v6321
        %v6323 = vlaneseq
        %v6324 = vshrl.u32 %v6323, 7
        %v6325 = vsub.s32 6, %v6324
        %v6326 = vrot.slane %v6264, %v6325
        %v6327 = vlaneseq
        %v6328 = vshrl.u32 %v6327, 7
        %v6329 = vsub.s32 7, %v6328
        %v6330 = vrot.slane %v6264, %v6329
        %v6347 = vmul.f32 %v307, %v6270
        %v6348 = vmul.f32 %v308, %v6274
        %v6349 = vmul.f32 %v309, %v6278
        %v6350 = vmul.f32 %v310, %v6282
        %v6351 = vmul.f32 %v311, %v6286
        %v6352 = vmul.f32 %v312, %v6290
        %v6353 = vmul.f32 %v313, %v6294
        %v6354 = vmul.f32 %v314, %v6298
        %v6355 = vmul.f32 %v315, %v6302
        %v6356 = vmul.f32 %v316, %v6306
        %v6357 = vmul.f32 %v317, %v6310
        %v6358 = vmul.f32 %v318, %v6314
        %v6359 = vmul.f32 %v319, %v6318
        %v6360 = vmul.f32 %v320, %v6322
        %v6361 = vmul.f32 %v305, %v6326
        %v6362 = vmul.f32 %v306, %v6330
        %v6363 = vpack.c.bf16 %v6347, %v6347
        %v6364 = vpack.c.bf16 %v6348, %v6348
        %v6365 = vpack.c.bf16 %v6349, %v6349
        %v6366 = vpack.c.bf16 %v6350, %v6350
        %v6367 = vpack.c.bf16 %v6351, %v6351
        %v6368 = vpack.c.bf16 %v6352, %v6352
        %v6369 = vpack.c.bf16 %v6353, %v6353
        %v6370 = vpack.c.bf16 %v6354, %v6354
        %v6371 = vpack.c.bf16 %v6355, %v6355
        %v6372 = vpack.c.bf16 %v6356, %v6356
        %v6373 = vpack.c.bf16 %v6357, %v6357
        %v6374 = vpack.c.bf16 %v6358, %v6358
        %v6375 = vpack.c.bf16 %v6359, %v6359
        %v6376 = vpack.c.bf16 %v6360, %v6360
        %v6377 = vpack.c.bf16 %v6361, %v6361
        %v6378 = vpack.c.bf16 %v6362, %v6362
        %v6395 = vunpack.c.l.b16 %v6363
        %v6396 = vunpack.c.l.b16 %v6364
        %v6397 = vunpack.c.l.b16 %v6365
        %v6398 = vunpack.c.l.b16 %v6366
        %v6399 = vunpack.c.l.b16 %v6367
        %v6400 = vunpack.c.l.b16 %v6368
        %v6401 = vunpack.c.l.b16 %v6369
        %v6402 = vunpack.c.l.b16 %v6370
        %v6403 = vunpack.c.l.b16 %v6371
        %v6404 = vunpack.c.l.b16 %v6372
        %v6405 = vunpack.c.l.b16 %v6373
        %v6406 = vunpack.c.l.b16 %v6374
        %v6407 = vunpack.c.l.b16 %v6375
        %v6408 = vunpack.c.l.b16 %v6376
        %v6409 = vunpack.c.l.b16 %v6377
        %v6410 = vunpack.c.l.b16 %v6378
        %v6411 = vpack.c.b16 %v6396, %v6395
        %v6412 = vpack.c.b16 %v6398, %v6397
        %v6413 = vpack.c.b16 %v6400, %v6399
        %v6414 = vpack.c.b16 %v6402, %v6401
        %v6415 = vpack.c.b16 %v6404, %v6403
        %v6416 = vpack.c.b16 %v6406, %v6405
        %v6417 = vpack.c.b16 %v6408, %v6407
        %v6418 = vpack.c.b16 %v6410, %v6409
        %6427 = vst [vmem:[#allocation2 + $0x100] sm:$0xff] %v6411
        %6428 = vst [vmem:[#allocation2 + $0x108] sm:$0xff] %v6412
        %6429 = vst [vmem:[#allocation2 + $0x110] sm:$0xff] %v6413
        %6430 = vst [vmem:[#allocation2 + $0x118] sm:$0xff] %v6414
        %6431 = vst [vmem:[#allocation2 + $0x120] sm:$0xff] %v6415
        %6432 = vst [vmem:[#allocation2 + $0x128] sm:$0xff] %v6416
        %6433 = vst [vmem:[#allocation2 + $0x130] sm:$0xff] %v6417
        %6434 = vst [vmem:[#allocation2 + $0x138] sm:$0xff] %v6418
        %s6435 = scalar_lea.vmem [#allocation7], 263
        %v6436 = vld [vmem:[%s6435] ss:$8 sm:$0xf]
        %v6437 = vld [vmem:[%s6435] ss:$8 sm:$0xf0]
        %v6438 = vor.u32 %v6436, %v6437
        %s6439 = scalar_lea.vmem [#allocation7], 327
        %v6440 = vld [vmem:[%s6439] ss:$8 sm:$0xf]
        %v6441 = vld [vmem:[%s6439] ss:$8 sm:$0xf0]
        %v6442 = vor.u32 %v6440, %v6441
        %v6445 = vlaneseq
        %v6446 = vshrl.u32 %v6445, 7
        %v6447 = vsub.s32 0, %v6446
        %v6448 = vrot.slane %v6438, %v6447
        %v6449 = vlaneseq
        %v6450 = vshrl.u32 %v6449, 7
        %v6451 = vsub.s32 1, %v6450
        %v6452 = vrot.slane %v6438, %v6451
        %v6453 = vlaneseq
        %v6454 = vshrl.u32 %v6453, 7
        %v6455 = vsub.s32 2, %v6454
        %v6456 = vrot.slane %v6438, %v6455
        %v6457 = vlaneseq
        %v6458 = vshrl.u32 %v6457, 7
        %v6459 = vsub.s32 3, %v6458
        %v6460 = vrot.slane %v6438, %v6459
        %v6461 = vlaneseq
        %v6462 = vshrl.u32 %v6461, 7
        %v6463 = vsub.s32 4, %v6462
        %v6464 = vrot.slane %v6438, %v6463
        %v6465 = vlaneseq
        %v6466 = vshrl.u32 %v6465, 7
        %v6467 = vsub.s32 5, %v6466
        %v6468 = vrot.slane %v6438, %v6467
        %v6469 = vlaneseq
        %v6470 = vshrl.u32 %v6469, 7
        %v6471 = vsub.s32 6, %v6470
        %v6472 = vrot.slane %v6438, %v6471
        %v6473 = vlaneseq
        %v6474 = vshrl.u32 %v6473, 7
        %v6475 = vsub.s32 7, %v6474
        %v6476 = vrot.slane %v6438, %v6475
        %v6477 = vlaneseq
        %v6478 = vshrl.u32 %v6477, 7
        %v6479 = vsub.s32 0, %v6478
        %v6480 = vrot.slane %v6442, %v6479
        %v6481 = vlaneseq
        %v6482 = vshrl.u32 %v6481, 7
        %v6483 = vsub.s32 1, %v6482
        %v6484 = vrot.slane %v6442, %v6483
        %v6485 = vlaneseq
        %v6486 = vshrl.u32 %v6485, 7
        %v6487 = vsub.s32 2, %v6486
        %v6488 = vrot.slane %v6442, %v6487
        %v6489 = vlaneseq
        %v6490 = vshrl.u32 %v6489, 7
        %v6491 = vsub.s32 3, %v6490
        %v6492 = vrot.slane %v6442, %v6491
        %v6493 = vlaneseq
        %v6494 = vshrl.u32 %v6493, 7
        %v6495 = vsub.s32 4, %v6494
        %v6496 = vrot.slane %v6442, %v6495
        %v6497 = vlaneseq
        %v6498 = vshrl.u32 %v6497, 7
        %v6499 = vsub.s32 5, %v6498
        %v6500 = vrot.slane %v6442, %v6499
        %v6501 = vlaneseq
        %v6502 = vshrl.u32 %v6501, 7
        %v6503 = vsub.s32 6, %v6502
        %v6504 = vrot.slane %v6442, %v6503
        %v6505 = vlaneseq
        %v6506 = vshrl.u32 %v6505, 7
        %v6507 = vsub.s32 7, %v6506
        %v6508 = vrot.slane %v6442, %v6507
        %v6525 = vmul.f32 %v1453, %v6448
        %v6526 = vmul.f32 %v1452, %v6452
        %v6527 = vmul.f32 %v1451, %v6456
        %v6528 = vmul.f32 %v1450, %v6460
        %v6529 = vmul.f32 %v1449, %v6464
        %v6530 = vmul.f32 %v1448, %v6468
        %v6531 = vmul.f32 %v1447, %v6472
        %v6532 = vmul.f32 %v1446, %v6476
        %v6533 = vmul.f32 %v1445, %v6480
        %v6534 = vmul.f32 %v1444, %v6484
        %v6535 = vmul.f32 %v1443, %v6488
        %v6536 = vmul.f32 %v1442, %v6492
        %v6537 = vmul.f32 %v1441, %v6496
        %v6538 = vmul.f32 %v1456, %v6500
        %v6539 = vmul.f32 %v1455, %v6504
        %v6540 = vmul.f32 %v1454, %v6508
        %v6541 = vpack.c.bf16 %v6525, %v6525
        %v6542 = vpack.c.bf16 %v6526, %v6526
        %v6543 = vpack.c.bf16 %v6527, %v6527
        %v6544 = vpack.c.bf16 %v6528, %v6528
        %v6545 = vpack.c.bf16 %v6529, %v6529
        %v6546 = vpack.c.bf16 %v6530, %v6530
        %v6547 = vpack.c.bf16 %v6531, %v6531
        %v6548 = vpack.c.bf16 %v6532, %v6532
        %v6549 = vpack.c.bf16 %v6533, %v6533
        %v6550 = vpack.c.bf16 %v6534, %v6534
        %v6551 = vpack.c.bf16 %v6535, %v6535
        %v6552 = vpack.c.bf16 %v6536, %v6536
        %v6553 = vpack.c.bf16 %v6537, %v6537
        %v6554 = vpack.c.bf16 %v6538, %v6538
        %v6555 = vpack.c.bf16 %v6539, %v6539
        %v6556 = vpack.c.bf16 %v6540, %v6540
        %v6573 = vunpack.c.l.b16 %v6541
        %v6574 = vunpack.c.l.b16 %v6542
        %v6575 = vunpack.c.l.b16 %v6543
        %v6576 = vunpack.c.l.b16 %v6544
        %v6577 = vunpack.c.l.b16 %v6545
        %v6578 = vunpack.c.l.b16 %v6546
        %v6579 = vunpack.c.l.b16 %v6547
        %v6580 = vunpack.c.l.b16 %v6548
        %v6581 = vunpack.c.l.b16 %v6549
        %v6582 = vunpack.c.l.b16 %v6550
        %v6583 = vunpack.c.l.b16 %v6551
        %v6584 = vunpack.c.l.b16 %v6552
        %v6585 = vunpack.c.l.b16 %v6553
        %v6586 = vunpack.c.l.b16 %v6554
        %v6587 = vunpack.c.l.b16 %v6555
        %v6588 = vunpack.c.l.b16 %v6556
        %v6589 = vpack.c.b16 %v6574, %v6573
        %v6590 = vpack.c.b16 %v6576, %v6575
        %v6591 = vpack.c.b16 %v6578, %v6577
        %v6592 = vpack.c.b16 %v6580, %v6579
        %v6593 = vpack.c.b16 %v6582, %v6581
        %v6594 = vpack.c.b16 %v6584, %v6583
        %v6595 = vpack.c.b16 %v6586, %v6585
        %v6596 = vpack.c.b16 %v6588, %v6587
        %6605 = vst [vmem:[#allocation2 + $0x140] sm:$0xff] %v6589
        %6606 = vst [vmem:[#allocation2 + $0x148] sm:$0xff] %v6590
        %6607 = vst [vmem:[#allocation2 + $0x150] sm:$0xff] %v6591
        %6608 = vst [vmem:[#allocation2 + $0x158] sm:$0xff] %v6592
        %6609 = vst [vmem:[#allocation2 + $0x160] sm:$0xff] %v6593
        %6610 = vst [vmem:[#allocation2 + $0x168] sm:$0xff] %v6594
        %6611 = vst [vmem:[#allocation2 + $0x170] sm:$0xff] %v6595
        %6612 = vst [vmem:[#allocation2 + $0x178] sm:$0xff] %v6596
        %s6613 = scalar_lea.vmem [#allocation7], 384
        %v6614 = vld [vmem:[%s6613] ss:$8 sm:$0xf]
        %v6615 = vld [vmem:[%s6613] ss:$8 sm:$0xf0]
        %v6616 = vor.u32 %v6614, %v6615
        %s6617 = scalar_lea.vmem [#allocation7], 448
        %v6618 = vld [vmem:[%s6617] ss:$8 sm:$0xf]
        %v6619 = vld [vmem:[%s6617] ss:$8 sm:$0xf0]
        %v6620 = vor.u32 %v6618, %v6619
        %v6623 = vlaneseq
        %v6624 = vshrl.u32 %v6623, 7
        %v6625 = vsub.s32 0, %v6624
        %v6626 = vrot.slane %v6616, %v6625
        %v6627 = vlaneseq
        %v6628 = vshrl.u32 %v6627, 7
        %v6629 = vsub.s32 1, %v6628
        %v6630 = vrot.slane %v6616, %v6629
        %v6631 = vlaneseq
        %v6632 = vshrl.u32 %v6631, 7
        %v6633 = vsub.s32 2, %v6632
        %v6634 = vrot.slane %v6616, %v6633
        %v6635 = vlaneseq
        %v6636 = vshrl.u32 %v6635, 7
        %v6637 = vsub.s32 3, %v6636
        %v6638 = vrot.slane %v6616, %v6637
        %v6639 = vlaneseq
        %v6640 = vshrl.u32 %v6639, 7
        %v6641 = vsub.s32 4, %v6640
        %v6642 = vrot.slane %v6616, %v6641
        %v6643 = vlaneseq
        %v6644 = vshrl.u32 %v6643, 7
        %v6645 = vsub.s32 5, %v6644
        %v6646 = vrot.slane %v6616, %v6645
        %v6647 = vlaneseq
        %v6648 = vshrl.u32 %v6647, 7
        %v6649 = vsub.s32 6, %v6648
        %v6650 = vrot.slane %v6616, %v6649
        %v6651 = vlaneseq
        %v6652 = vshrl.u32 %v6651, 7
        %v6653 = vsub.s32 7, %v6652
        %v6654 = vrot.slane %v6616, %v6653
        %v6655 = vlaneseq
        %v6656 = vshrl.u32 %v6655, 7
        %v6657 = vsub.s32 0, %v6656
        %v6658 = vrot.slane %v6620, %v6657
        %v6659 = vlaneseq
        %v6660 = vshrl.u32 %v6659, 7
        %v6661 = vsub.s32 1, %v6660
        %v6662 = vrot.slane %v6620, %v6661
        %v6663 = vlaneseq
        %v6664 = vshrl.u32 %v6663, 7
        %v6665 = vsub.s32 2, %v6664
        %v6666 = vrot.slane %v6620, %v6665
        %v6667 = vlaneseq
        %v6668 = vshrl.u32 %v6667, 7
        %v6669 = vsub.s32 3, %v6668
        %v6670 = vrot.slane %v6620, %v6669
        %v6671 = vlaneseq
        %v6672 = vshrl.u32 %v6671, 7
        %v6673 = vsub.s32 4, %v6672
        %v6674 = vrot.slane %v6620, %v6673
        %v6675 = vlaneseq
        %v6676 = vshrl.u32 %v6675, 7
        %v6677 = vsub.s32 5, %v6676
        %v6678 = vrot.slane %v6620, %v6677
        %v6679 = vlaneseq
        %v6680 = vshrl.u32 %v6679, 7
        %v6681 = vsub.s32 6, %v6680
        %v6682 = vrot.slane %v6620, %v6681
        %v6683 = vlaneseq
        %v6684 = vshrl.u32 %v6683, 7
        %v6685 = vsub.s32 7, %v6684
        %v6686 = vrot.slane %v6620, %v6685
        %v6703 = vmul.f32 %v1680, %v6626
        %v6704 = vmul.f32 %v1679, %v6630
        %v6705 = vmul.f32 %v1678, %v6634
        %v6706 = vmul.f32 %v1677, %v6638
        %v6707 = vmul.f32 %v1676, %v6642
        %v6708 = vmul.f32 %v1675, %v6646
        %v6709 = vmul.f32 %v1674, %v6650
        %v6710 = vmul.f32 %v1673, %v6654
        %v6711 = vmul.f32 %v1672, %v6658
        %v6712 = vmul.f32 %v1671, %v6662
        %v6713 = vmul.f32 %v1670, %v6666
        %v6714 = vmul.f32 %v1669, %v6670
        %v6715 = vmul.f32 %v1668, %v6674
        %v6716 = vmul.f32 %v1683, %v6678
        %v6717 = vmul.f32 %v1682, %v6682
        %v6718 = vmul.f32 %v1681, %v6686
        %v6719 = vpack.c.bf16 %v6703, %v6703
        %v6720 = vpack.c.bf16 %v6704, %v6704
        %v6721 = vpack.c.bf16 %v6705, %v6705
        %v6722 = vpack.c.bf16 %v6706, %v6706
        %v6723 = vpack.c.bf16 %v6707, %v6707
        %v6724 = vpack.c.bf16 %v6708, %v6708
        %v6725 = vpack.c.bf16 %v6709, %v6709
        %v6726 = vpack.c.bf16 %v6710, %v6710
        %v6727 = vpack.c.bf16 %v6711, %v6711
        %v6728 = vpack.c.bf16 %v6712, %v6712
        %v6729 = vpack.c.bf16 %v6713, %v6713
        %v6730 = vpack.c.bf16 %v6714, %v6714
        %v6731 = vpack.c.bf16 %v6715, %v6715
        %v6732 = vpack.c.bf16 %v6716, %v6716
        %v6733 = vpack.c.bf16 %v6717, %v6717
        %v6734 = vpack.c.bf16 %v6718, %v6718
        %v6751 = vunpack.c.l.b16 %v6719
        %v6752 = vunpack.c.l.b16 %v6720
        %v6753 = vunpack.c.l.b16 %v6721
        %v6754 = vunpack.c.l.b16 %v6722
        %v6755 = vunpack.c.l.b16 %v6723
        %v6756 = vunpack.c.l.b16 %v6724
        %v6757 = vunpack.c.l.b16 %v6725
        %v6758 = vunpack.c.l.b16 %v6726
        %v6759 = vunpack.c.l.b16 %v6727
        %v6760 = vunpack.c.l.b16 %v6728
        %v6761 = vunpack.c.l.b16 %v6729
        %v6762 = vunpack.c.l.b16 %v6730
        %v6763 = vunpack.c.l.b16 %v6731
        %v6764 = vunpack.c.l.b16 %v6732
        %v6765 = vunpack.c.l.b16 %v6733
        %v6766 = vunpack.c.l.b16 %v6734
        %v6767 = vpack.c.b16 %v6752, %v6751
        %v6768 = vpack.c.b16 %v6754, %v6753
        %v6769 = vpack.c.b16 %v6756, %v6755
        %v6770 = vpack.c.b16 %v6758, %v6757
        %v6771 = vpack.c.b16 %v6760, %v6759
        %v6772 = vpack.c.b16 %v6762, %v6761
        %v6773 = vpack.c.b16 %v6764, %v6763
        %v6774 = vpack.c.b16 %v6766, %v6765
        %6783 = vst [vmem:[#allocation2 + $0x180] sm:$0xff] %v6767
        %6784 = vst [vmem:[#allocation2 + $0x188] sm:$0xff] %v6768
        %6785 = vst [vmem:[#allocation2 + $0x190] sm:$0xff] %v6769
        %6786 = vst [vmem:[#allocation2 + $0x198] sm:$0xff] %v6770
        %6787 = vst [vmem:[#allocation2 + $0x1a0] sm:$0xff] %v6771
        %6788 = vst [vmem:[#allocation2 + $0x1a8] sm:$0xff] %v6772
        %6789 = vst [vmem:[#allocation2 + $0x1b0] sm:$0xff] %v6773
        %6790 = vst [vmem:[#allocation2 + $0x1b8] sm:$0xff] %v6774
        %s6791 = scalar_lea.vmem [#allocation7], 385
        %v6792 = vld [vmem:[%s6791] ss:$8 sm:$0xf]
        %v6793 = vld [vmem:[%s6791] ss:$8 sm:$0xf0]
        %v6794 = vor.u32 %v6792, %v6793
        %s6795 = scalar_lea.vmem [#allocation7], 449
        %v6796 = vld [vmem:[%s6795] ss:$8 sm:$0xf]
        %v6797 = vld [vmem:[%s6795] ss:$8 sm:$0xf0]
        %v6798 = vor.u32 %v6796, %v6797
        %v6801 = vlaneseq
        %v6802 = vshrl.u32 %v6801, 7
        %v6803 = vsub.s32 0, %v6802
        %v6804 = vrot.slane %v6794, %v6803
        %v6805 = vlaneseq
        %v6806 = vshrl.u32 %v6805, 7
        %v6807 = vsub.s32 1, %v6806
        %v6808 = vrot.slane %v6794, %v6807
        %v6809 = vlaneseq
        %v6810 = vshrl.u32 %v6809, 7
        %v6811 = vsub.s32 2, %v6810
        %v6812 = vrot.slane %v6794, %v6811
        %v6813 = vlaneseq
        %v6814 = vshrl.u32 %v6813, 7
        %v6815 = vsub.s32 3, %v6814
        %v6816 = vrot.slane %v6794, %v6815
        %v6817 = vlaneseq
        %v6818 = vshrl.u32 %v6817, 7
        %v6819 = vsub.s32 4, %v6818
        %v6820 = vrot.slane %v6794, %v6819
        %v6821 = vlaneseq
        %v6822 = vshrl.u32 %v6821, 7
        %v6823 = vsub.s32 5, %v6822
        %v6824 = vrot.slane %v6794, %v6823
        %v6825 = vlaneseq
        %v6826 = vshrl.u32 %v6825, 7
        %v6827 = vsub.s32 6, %v6826
        %v6828 = vrot.slane %v6794, %v6827
        %v6829 = vlaneseq
        %v6830 = vshrl.u32 %v6829, 7
        %v6831 = vsub.s32 7, %v6830
        %v6832 = vrot.slane %v6794, %v6831
        %v6833 = vlaneseq
        %v6834 = vshrl.u32 %v6833, 7
        %v6835 = vsub.s32 0, %v6834
        %v6836 = vrot.slane %v6798, %v6835
        %v6837 = vlaneseq
        %v6838 = vshrl.u32 %v6837, 7
        %v6839 = vsub.s32 1, %v6838
        %v6840 = vrot.slane %v6798, %v6839
        %v6841 = vlaneseq
        %v6842 = vshrl.u32 %v6841, 7
        %v6843 = vsub.s32 2, %v6842
        %v6844 = vrot.slane %v6798, %v6843
        %v6845 = vlaneseq
        %v6846 = vshrl.u32 %v6845, 7
        %v6847 = vsub.s32 3, %v6846
        %v6848 = vrot.slane %v6798, %v6847
        %v6849 = vlaneseq
        %v6850 = vshrl.u32 %v6849, 7
        %v6851 = vsub.s32 4, %v6850
        %v6852 = vrot.slane %v6798, %v6851
        %v6853 = vlaneseq
        %v6854 = vshrl.u32 %v6853, 7
        %v6855 = vsub.s32 5, %v6854
        %v6856 = vrot.slane %v6798, %v6855
        %v6857 = vlaneseq
        %v6858 = vshrl.u32 %v6857, 7
        %v6859 = vsub.s32 6, %v6858
        %v6860 = vrot.slane %v6798, %v6859
        %v6861 = vlaneseq
        %v6862 = vshrl.u32 %v6861, 7
        %v6863 = vsub.s32 7, %v6862
        %v6864 = vrot.slane %v6798, %v6863
        %v6881 = vmul.f32 %v1907, %v6804
        %v6882 = vmul.f32 %v1906, %v6808
        %v6883 = vmul.f32 %v1905, %v6812
        %v6884 = vmul.f32 %v1904, %v6816
        %v6885 = vmul.f32 %v1903, %v6820
        %v6886 = vmul.f32 %v1902, %v6824
        %v6887 = vmul.f32 %v1901, %v6828
        %v6888 = vmul.f32 %v1900, %v6832
        %v6889 = vmul.f32 %v1899, %v6836
        %v6890 = vmul.f32 %v1898, %v6840
        %v6891 = vmul.f32 %v1897, %v6844
        %v6892 = vmul.f32 %v1896, %v6848
        %v6893 = vmul.f32 %v1895, %v6852
        %v6894 = vmul.f32 %v1910, %v6856
        %v6895 = vmul.f32 %v1909, %v6860
        %v6896 = vmul.f32 %v1908, %v6864
        %v6897 = vpack.c.bf16 %v6881, %v6881
        %v6898 = vpack.c.bf16 %v6882, %v6882
        %v6899 = vpack.c.bf16 %v6883, %v6883
        %v6900 = vpack.c.bf16 %v6884, %v6884
        %v6901 = vpack.c.bf16 %v6885, %v6885
        %v6902 = vpack.c.bf16 %v6886, %v6886
        %v6903 = vpack.c.bf16 %v6887, %v6887
        %v6904 = vpack.c.bf16 %v6888, %v6888
        %v6905 = vpack.c.bf16 %v6889, %v6889
        %v6906 = vpack.c.bf16 %v6890, %v6890
        %v6907 = vpack.c.bf16 %v6891, %v6891
        %v6908 = vpack.c.bf16 %v6892, %v6892
        %v6909 = vpack.c.bf16 %v6893, %v6893
        %v6910 = vpack.c.bf16 %v6894, %v6894
        %v6911 = vpack.c.bf16 %v6895, %v6895
        %v6912 = vpack.c.bf16 %v6896, %v6896
        %v6929 = vunpack.c.l.b16 %v6897
        %v6930 = vunpack.c.l.b16 %v6898
        %v6931 = vunpack.c.l.b16 %v6899
        %v6932 = vunpack.c.l.b16 %v6900
        %v6933 = vunpack.c.l.b16 %v6901
        %v6934 = vunpack.c.l.b16 %v6902
        %v6935 = vunpack.c.l.b16 %v6903
        %v6936 = vunpack.c.l.b16 %v6904
        %v6937 = vunpack.c.l.b16 %v6905
        %v6938 = vunpack.c.l.b16 %v6906
        %v6939 = vunpack.c.l.b16 %v6907
        %v6940 = vunpack.c.l.b16 %v6908
        %v6941 = vunpack.c.l.b16 %v6909
        %v6942 = vunpack.c.l.b16 %v6910
        %v6943 = vunpack.c.l.b16 %v6911
        %v6944 = vunpack.c.l.b16 %v6912
        %v6945 = vpack.c.b16 %v6930, %v6929
        %v6946 = vpack.c.b16 %v6932, %v6931
        %v6947 = vpack.c.b16 %v6934, %v6933
        %v6948 = vpack.c.b16 %v6936, %v6935
        %v6949 = vpack.c.b16 %v6938, %v6937
        %v6950 = vpack.c.b16 %v6940, %v6939
        %v6951 = vpack.c.b16 %v6942, %v6941
        %v6952 = vpack.c.b16 %v6944, %v6943
        %6961 = vst [vmem:[#allocation2 + $0x1c0] sm:$0xff] %v6945
        %6962 = vst [vmem:[#allocation2 + $0x1c8] sm:$0xff] %v6946
        %6963 = vst [vmem:[#allocation2 + $0x1d0] sm:$0xff] %v6947
        %6964 = vst [vmem:[#allocation2 + $0x1d8] sm:$0xff] %v6948
        %6965 = vst [vmem:[#allocation2 + $0x1e0] sm:$0xff] %v6949
        %6966 = vst [vmem:[#allocation2 + $0x1e8] sm:$0xff] %v6950
        %6967 = vst [vmem:[#allocation2 + $0x1f0] sm:$0xff] %v6951
        %6968 = vst [vmem:[#allocation2 + $0x1f8] sm:$0xff] %v6952
        %s6969 = scalar_lea.vmem [#allocation7], 386
        %v6970 = vld [vmem:[%s6969] ss:$8 sm:$0xf]
        %v6971 = vld [vmem:[%s6969] ss:$8 sm:$0xf0]
        %v6972 = vor.u32 %v6970, %v6971
        %s6973 = scalar_lea.vmem [#allocation7], 450
        %v6974 = vld [vmem:[%s6973] ss:$8 sm:$0xf]
        %v6975 = vld [vmem:[%s6973] ss:$8 sm:$0xf0]
        %v6976 = vor.u32 %v6974, %v6975
        %v6979 = vlaneseq
        %v6980 = vshrl.u32 %v6979, 7
        %v6981 = vsub.s32 0, %v6980
        %v6982 = vrot.slane %v6972, %v6981
        %v6983 = vlaneseq
        %v6984 = vshrl.u32 %v6983, 7
        %v6985 = vsub.s32 1, %v6984
        %v6986 = vrot.slane %v6972, %v6985
        %v6987 = vlaneseq
        %v6988 = vshrl.u32 %v6987, 7
        %v6989 = vsub.s32 2, %v6988
        %v6990 = vrot.slane %v6972, %v6989
        %v6991 = vlaneseq
        %v6992 = vshrl.u32 %v6991, 7
        %v6993 = vsub.s32 3, %v6992
        %v6994 = vrot.slane %v6972, %v6993
        %v6995 = vlaneseq
        %v6996 = vshrl.u32 %v6995, 7
        %v6997 = vsub.s32 4, %v6996
        %v6998 = vrot.slane %v6972, %v6997
        %v6999 = vlaneseq
        %v7000 = vshrl.u32 %v6999, 7
        %v7001 = vsub.s32 5, %v7000
        %v7002 = vrot.slane %v6972, %v7001
        %v7003 = vlaneseq
        %v7004 = vshrl.u32 %v7003, 7
        %v7005 = vsub.s32 6, %v7004
        %v7006 = vrot.slane %v6972, %v7005
        %v7007 = vlaneseq
        %v7008 = vshrl.u32 %v7007, 7
        %v7009 = vsub.s32 7, %v7008
        %v7010 = vrot.slane %v6972, %v7009
        %v7011 = vlaneseq
        %v7012 = vshrl.u32 %v7011, 7
        %v7013 = vsub.s32 0, %v7012
        %v7014 = vrot.slane %v6976, %v7013
        %v7015 = vlaneseq
        %v7016 = vshrl.u32 %v7015, 7
        %v7017 = vsub.s32 1, %v7016
        %v7018 = vrot.slane %v6976, %v7017
        %v7019 = vlaneseq
        %v7020 = vshrl.u32 %v7019, 7
        %v7021 = vsub.s32 2, %v7020
        %v7022 = vrot.slane %v6976, %v7021
        %v7023 = vlaneseq
        %v7024 = vshrl.u32 %v7023, 7
        %v7025 = vsub.s32 3, %v7024
        %v7026 = vrot.slane %v6976, %v7025
        %v7027 = vlaneseq
        %v7028 = vshrl.u32 %v7027, 7
        %v7029 = vsub.s32 4, %v7028
        %v7030 = vrot.slane %v6976, %v7029
        %v7031 = vlaneseq
        %v7032 = vshrl.u32 %v7031, 7
        %v7033 = vsub.s32 5, %v7032
        %v7034 = vrot.slane %v6976, %v7033
        %v7035 = vlaneseq
        %v7036 = vshrl.u32 %v7035, 7
        %v7037 = vsub.s32 6, %v7036
        %v7038 = vrot.slane %v6976, %v7037
        %v7039 = vlaneseq
        %v7040 = vshrl.u32 %v7039, 7
        %v7041 = vsub.s32 7, %v7040
        %v7042 = vrot.slane %v6976, %v7041
        %v7059 = vmul.f32 %v2134, %v6982
        %v7060 = vmul.f32 %v2133, %v6986
        %v7061 = vmul.f32 %v2132, %v6990
        %v7062 = vmul.f32 %v2131, %v6994
        %v7063 = vmul.f32 %v2130, %v6998
        %v7064 = vmul.f32 %v2129, %v7002
        %v7065 = vmul.f32 %v2128, %v7006
        %v7066 = vmul.f32 %v2127, %v7010
        %v7067 = vmul.f32 %v2126, %v7014
        %v7068 = vmul.f32 %v2125, %v7018
        %v7069 = vmul.f32 %v2124, %v7022
        %v7070 = vmul.f32 %v2123, %v7026
        %v7071 = vmul.f32 %v2122, %v7030
        %v7072 = vmul.f32 %v2137, %v7034
        %v7073 = vmul.f32 %v2136, %v7038
        %v7074 = vmul.f32 %v2135, %v7042
        %v7075 = vpack.c.bf16 %v7059, %v7059
        %v7076 = vpack.c.bf16 %v7060, %v7060
        %v7077 = vpack.c.bf16 %v7061, %v7061
        %v7078 = vpack.c.bf16 %v7062, %v7062
        %v7079 = vpack.c.bf16 %v7063, %v7063
        %v7080 = vpack.c.bf16 %v7064, %v7064
        %v7081 = vpack.c.bf16 %v7065, %v7065
        %v7082 = vpack.c.bf16 %v7066, %v7066
        %v7083 = vpack.c.bf16 %v7067, %v7067
        %v7084 = vpack.c.bf16 %v7068, %v7068
        %v7085 = vpack.c.bf16 %v7069, %v7069
        %v7086 = vpack.c.bf16 %v7070, %v7070
        %v7087 = vpack.c.bf16 %v7071, %v7071
        %v7088 = vpack.c.bf16 %v7072, %v7072
        %v7089 = vpack.c.bf16 %v7073, %v7073
        %v7090 = vpack.c.bf16 %v7074, %v7074
        %v7107 = vunpack.c.l.b16 %v7075
        %v7108 = vunpack.c.l.b16 %v7076
        %v7109 = vunpack.c.l.b16 %v7077
        %v7110 = vunpack.c.l.b16 %v7078
        %v7111 = vunpack.c.l.b16 %v7079
        %v7112 = vunpack.c.l.b16 %v7080
        %v7113 = vunpack.c.l.b16 %v7081
        %v7114 = vunpack.c.l.b16 %v7082
        %v7115 = vunpack.c.l.b16 %v7083
        %v7116 = vunpack.c.l.b16 %v7084
        %v7117 = vunpack.c.l.b16 %v7085
        %v7118 = vunpack.c.l.b16 %v7086
        %v7119 = vunpack.c.l.b16 %v7087
        %v7120 = vunpack.c.l.b16 %v7088
        %v7121 = vunpack.c.l.b16 %v7089
        %v7122 = vunpack.c.l.b16 %v7090
        %v7123 = vpack.c.b16 %v7108, %v7107
        %v7124 = vpack.c.b16 %v7110, %v7109
        %v7125 = vpack.c.b16 %v7112, %v7111
        %v7126 = vpack.c.b16 %v7114, %v7113
        %v7127 = vpack.c.b16 %v7116, %v7115
        %v7128 = vpack.c.b16 %v7118, %v7117
        %v7129 = vpack.c.b16 %v7120, %v7119
        %v7130 = vpack.c.b16 %v7122, %v7121
        %7139 = vst [vmem:[#allocation2 + $0x200] sm:$0xff] %v7123
        %7140 = vst [vmem:[#allocation2 + $0x208] sm:$0xff] %v7124
        %7141 = vst [vmem:[#allocation2 + $0x210] sm:$0xff] %v7125
        %7142 = vst [vmem:[#allocation2 + $0x218] sm:$0xff] %v7126
        %7143 = vst [vmem:[#allocation2 + $0x220] sm:$0xff] %v7127
        %7144 = vst [vmem:[#allocation2 + $0x228] sm:$0xff] %v7128
        %7145 = vst [vmem:[#allocation2 + $0x230] sm:$0xff] %v7129
        %7146 = vst [vmem:[#allocation2 + $0x238] sm:$0xff] %v7130
        %s7147 = scalar_lea.vmem %s1, 8
        %v7148 = vld [vmem:[%s7147] sm:$0xf]
        %v7149 = vld [vmem:[#allocation2] sm:$0xff]
        %v7150 = vld [vmem:[#allocation2 + $0x8] sm:$0xff]
        %v7151 = vld [vmem:[#allocation2 + $0x10] sm:$0xff]
        %v7152 = vld [vmem:[#allocation2 + $0x18] sm:$0xff]
        %v7153 = vld [vmem:[#allocation2 + $0x20] sm:$0xff]
        %v7154 = vld [vmem:[#allocation2 + $0x28] sm:$0xff]
        %v7155 = vld [vmem:[#allocation2 + $0x30] sm:$0xff]
        %v7156 = vld [vmem:[#allocation2 + $0x38] sm:$0xff]
        %v7157 = vld [vmem:[#allocation2 + $0x40] sm:$0xff]
        %v7158 = vld [vmem:[#allocation2 + $0x48] sm:$0xff]
        %v7159 = vld [vmem:[#allocation2 + $0x50] sm:$0xff]
        %v7160 = vld [vmem:[#allocation2 + $0x58] sm:$0xff]
        %v7161 = vld [vmem:[#allocation2 + $0x60] sm:$0xff]
        %v7162 = vld [vmem:[#allocation2 + $0x68] sm:$0xff]
        %v7163 = vld [vmem:[#allocation2 + $0x70] sm:$0xff]
        %v7164 = vld [vmem:[#allocation2 + $0x78] sm:$0xff]
        %v7165 = vld [vmem:[#allocation2 + $0x80] sm:$0xff]
        %v7166 = vld [vmem:[#allocation2 + $0x88] sm:$0xff]
        %v7167 = vld [vmem:[#allocation2 + $0x90] sm:$0xff]
        %v7168 = vld [vmem:[#allocation2 + $0x98] sm:$0xff]
        %v7169 = vld [vmem:[#allocation2 + $0xa0] sm:$0xff]
        %v7170 = vld [vmem:[#allocation2 + $0xa8] sm:$0xff]
        %v7171 = vld [vmem:[#allocation2 + $0xb0] sm:$0xff]
        %v7172 = vld [vmem:[#allocation2 + $0xb8] sm:$0xff]
        %v7173 = vld [vmem:[#allocation2 + $0xc0] sm:$0xff]
        %v7174 = vld [vmem:[#allocation2 + $0xc8] sm:$0xff]
        %v7175 = vld [vmem:[#allocation2 + $0xd0] sm:$0xff]
        %v7176 = vld [vmem:[#allocation2 + $0xd8] sm:$0xff]
        %v7177 = vld [vmem:[#allocation2 + $0xe0] sm:$0xff]
        %v7178 = vld [vmem:[#allocation2 + $0xe8] sm:$0xff]
        %v7179 = vld [vmem:[#allocation2 + $0xf0] sm:$0xff]
        %v7180 = vld [vmem:[#allocation2 + $0xf8] sm:$0xff]
        %v7181 = vld [vmem:[#allocation2 + $0x100] sm:$0xff]
        %v7182 = vld [vmem:[#allocation2 + $0x108] sm:$0xff]
        %v7183 = vld [vmem:[#allocation2 + $0x110] sm:$0xff]
        %v7184 = vld [vmem:[#allocation2 + $0x118] sm:$0xff]
        %v7185 = vld [vmem:[#allocation2 + $0x120] sm:$0xff]
        %v7186 = vld [vmem:[#allocation2 + $0x128] sm:$0xff]
        %v7187 = vld [vmem:[#allocation2 + $0x130] sm:$0xff]
        %v7188 = vld [vmem:[#allocation2 + $0x138] sm:$0xff]
        %v7189 = vld [vmem:[#allocation2 + $0x140] sm:$0xff]
        %v7190 = vld [vmem:[#allocation2 + $0x148] sm:$0xff]
        %v7191 = vld [vmem:[#allocation2 + $0x150] sm:$0xff]
        %v7192 = vld [vmem:[#allocation2 + $0x158] sm:$0xff]
        %v7193 = vld [vmem:[#allocation2 + $0x160] sm:$0xff]
        %v7194 = vld [vmem:[#allocation2 + $0x168] sm:$0xff]
        %v7195 = vld [vmem:[#allocation2 + $0x170] sm:$0xff]
        %v7196 = vld [vmem:[#allocation2 + $0x178] sm:$0xff]
        %v7197 = vld [vmem:[#allocation2 + $0x180] sm:$0xff]
        %v7198 = vld [vmem:[#allocation2 + $0x188] sm:$0xff]
        %v7199 = vld [vmem:[#allocation2 + $0x190] sm:$0xff]
        %v7200 = vld [vmem:[#allocation2 + $0x198] sm:$0xff]
        %v7201 = vld [vmem:[#allocation2 + $0x1a0] sm:$0xff]
        %v7202 = vld [vmem:[#allocation2 + $0x1a8] sm:$0xff]
        %v7203 = vld [vmem:[#allocation2 + $0x1b0] sm:$0xff]
        %v7204 = vld [vmem:[#allocation2 + $0x1b8] sm:$0xff]
        %v7205 = vld [vmem:[#allocation2 + $0x1c0] sm:$0xff]
        %v7206 = vld [vmem:[#allocation2 + $0x1c8] sm:$0xff]
        %v7207 = vld [vmem:[#allocation2 + $0x1d0] sm:$0xff]
        %v7208 = vld [vmem:[#allocation2 + $0x1d8] sm:$0xff]
        %v7209 = vld [vmem:[#allocation2 + $0x1e0] sm:$0xff]
        %v7210 = vld [vmem:[#allocation2 + $0x1e8] sm:$0xff]
        %v7211 = vld [vmem:[#allocation2 + $0x1f0] sm:$0xff]
        %v7212 = vld [vmem:[#allocation2 + $0x1f8] sm:$0xff]
        %v7213 = vld [vmem:[#allocation2 + $0x200] sm:$0xff]
        %v7214 = vld [vmem:[#allocation2 + $0x208] sm:$0xff]
        %v7215 = vld [vmem:[#allocation2 + $0x210] sm:$0xff]
        %v7216 = vld [vmem:[#allocation2 + $0x218] sm:$0xff]
        %v7217 = vld [vmem:[#allocation2 + $0x220] sm:$0xff]
        %v7218 = vld [vmem:[#allocation2 + $0x228] sm:$0xff]
        %v7219 = vld [vmem:[#allocation2 + $0x230] sm:$0xff]
        %v7220 = vld [vmem:[#allocation2 + $0x238] sm:$0xff]
        %v7293 = vunpack.c.l.b16 %v7149
        %v7294 = vunpack.c.h.b16 %v7149
        %v7295 = vunpack.c.l.b16 %v7150
        %v7296 = vunpack.c.h.b16 %v7150
        %v7297 = vunpack.c.l.b16 %v7151
        %v7298 = vunpack.c.h.b16 %v7151
        %v7299 = vunpack.c.l.b16 %v7152
        %v7300 = vunpack.c.h.b16 %v7152
        %v7301 = vunpack.c.l.b16 %v7153
        %v7302 = vunpack.c.h.b16 %v7153
        %v7303 = vunpack.c.l.b16 %v7154
        %v7304 = vunpack.c.h.b16 %v7154
        %v7305 = vunpack.c.l.b16 %v7155
        %v7306 = vunpack.c.h.b16 %v7155
        %v7307 = vunpack.c.l.b16 %v7156
        %v7308 = vunpack.c.h.b16 %v7156
        %v7309 = vunpack.c.l.b16 %v7157
        %v7310 = vunpack.c.h.b16 %v7157
        %v7311 = vunpack.c.l.b16 %v7158
        %v7312 = vunpack.c.h.b16 %v7158
        %v7313 = vunpack.c.l.b16 %v7159
        %v7314 = vunpack.c.h.b16 %v7159
        %v7315 = vunpack.c.l.b16 %v7160
        %v7316 = vunpack.c.h.b16 %v7160
        %v7317 = vunpack.c.l.b16 %v7161
        %v7318 = vunpack.c.h.b16 %v7161
        %v7319 = vunpack.c.l.b16 %v7162
        %v7320 = vunpack.c.h.b16 %v7162
        %v7321 = vunpack.c.l.b16 %v7163
        %v7322 = vunpack.c.h.b16 %v7163
        %v7323 = vunpack.c.l.b16 %v7164
        %v7324 = vunpack.c.h.b16 %v7164
        %v7325 = vunpack.c.l.b16 %v7165
        %v7326 = vunpack.c.h.b16 %v7165
        %v7327 = vunpack.c.l.b16 %v7166
        %v7328 = vunpack.c.h.b16 %v7166
        %v7329 = vunpack.c.l.b16 %v7167
        %v7330 = vunpack.c.h.b16 %v7167
        %v7331 = vunpack.c.l.b16 %v7168
        %v7332 = vunpack.c.h.b16 %v7168
        %v7333 = vunpack.c.l.b16 %v7169
        %v7334 = vunpack.c.h.b16 %v7169
        %v7335 = vunpack.c.l.b16 %v7170
        %v7336 = vunpack.c.h.b16 %v7170
        %v7337 = vunpack.c.l.b16 %v7171
        %v7338 = vunpack.c.h.b16 %v7171
        %v7339 = vunpack.c.l.b16 %v7172
        %v7340 = vunpack.c.h.b16 %v7172
        %v7341 = vunpack.c.l.b16 %v7173
        %v7342 = vunpack.c.h.b16 %v7173
        %v7343 = vunpack.c.l.b16 %v7174
        %v7344 = vunpack.c.h.b16 %v7174
        %v7345 = vunpack.c.l.b16 %v7175
        %v7346 = vunpack.c.h.b16 %v7175
        %v7347 = vunpack.c.l.b16 %v7176
        %v7348 = vunpack.c.h.b16 %v7176
        %v7349 = vunpack.c.l.b16 %v7177
        %v7350 = vunpack.c.h.b16 %v7177
        %v7351 = vunpack.c.l.b16 %v7178
        %v7352 = vunpack.c.h.b16 %v7178
        %v7353 = vunpack.c.l.b16 %v7179
        %v7354 = vunpack.c.h.b16 %v7179
        %v7355 = vunpack.c.l.b16 %v7180
        %v7356 = vunpack.c.h.b16 %v7180
        %v7357 = vunpack.c.l.b16 %v7181
        %v7358 = vunpack.c.h.b16 %v7181
        %v7359 = vunpack.c.l.b16 %v7182
        %v7360 = vunpack.c.h.b16 %v7182
        %v7361 = vunpack.c.l.b16 %v7183
        %v7362 = vunpack.c.h.b16 %v7183
        %v7363 = vunpack.c.l.b16 %v7184
        %v7364 = vunpack.c.h.b16 %v7184
        %v7365 = vunpack.c.l.b16 %v7185
        %v7366 = vunpack.c.h.b16 %v7185
        %v7367 = vunpack.c.l.b16 %v7186
        %v7368 = vunpack.c.h.b16 %v7186
        %v7369 = vunpack.c.l.b16 %v7187
        %v7370 = vunpack.c.h.b16 %v7187
        %v7371 = vunpack.c.l.b16 %v7188
        %v7372 = vunpack.c.h.b16 %v7188
        %v7373 = vunpack.c.l.b16 %v7189
        %v7374 = vunpack.c.h.b16 %v7189
        %v7375 = vunpack.c.l.b16 %v7190
        %v7376 = vunpack.c.h.b16 %v7190
        %v7377 = vunpack.c.l.b16 %v7191
        %v7378 = vunpack.c.h.b16 %v7191
        %v7379 = vunpack.c.l.b16 %v7192
        %v7380 = vunpack.c.h.b16 %v7192
        %v7381 = vunpack.c.l.b16 %v7193
        %v7382 = vunpack.c.h.b16 %v7193
        %v7383 = vunpack.c.l.b16 %v7194
        %v7384 = vunpack.c.h.b16 %v7194
        %v7385 = vunpack.c.l.b16 %v7195
        %v7386 = vunpack.c.h.b16 %v7195
        %v7387 = vunpack.c.l.b16 %v7196
        %v7388 = vunpack.c.h.b16 %v7196
        %v7389 = vunpack.c.l.b16 %v7197
        %v7390 = vunpack.c.h.b16 %v7197
        %v7391 = vunpack.c.l.b16 %v7198
        %v7392 = vunpack.c.h.b16 %v7198
        %v7393 = vunpack.c.l.b16 %v7199
        %v7394 = vunpack.c.h.b16 %v7199
        %v7395 = vunpack.c.l.b16 %v7200
        %v7396 = vunpack.c.h.b16 %v7200
        %v7397 = vunpack.c.l.b16 %v7201
        %v7398 = vunpack.c.h.b16 %v7201
        %v7399 = vunpack.c.l.b16 %v7202
        %v7400 = vunpack.c.h.b16 %v7202
        %v7401 = vunpack.c.l.b16 %v7203
        %v7402 = vunpack.c.h.b16 %v7203
        %v7403 = vunpack.c.l.b16 %v7204
        %v7404 = vunpack.c.h.b16 %v7204
        %v7405 = vunpack.c.l.b16 %v7205
        %v7406 = vunpack.c.h.b16 %v7205
        %v7407 = vunpack.c.l.b16 %v7206
        %v7408 = vunpack.c.h.b16 %v7206
        %v7409 = vunpack.c.l.b16 %v7207
        %v7410 = vunpack.c.h.b16 %v7207
        %v7411 = vunpack.c.l.b16 %v7208
        %v7412 = vunpack.c.h.b16 %v7208
        %v7413 = vunpack.c.l.b16 %v7209
        %v7414 = vunpack.c.h.b16 %v7209
        %v7415 = vunpack.c.l.b16 %v7210
        %v7416 = vunpack.c.h.b16 %v7210
        %v7417 = vunpack.c.l.b16 %v7211
        %v7418 = vunpack.c.h.b16 %v7211
        %v7419 = vunpack.c.l.b16 %v7212
        %v7420 = vunpack.c.h.b16 %v7212
        %v7421 = vunpack.c.l.b16 %v7213
        %v7422 = vunpack.c.h.b16 %v7213
        %v7423 = vunpack.c.l.b16 %v7214
        %v7424 = vunpack.c.h.b16 %v7214
        %v7425 = vunpack.c.l.b16 %v7215
        %v7426 = vunpack.c.h.b16 %v7215
        %v7427 = vunpack.c.l.b16 %v7216
        %v7428 = vunpack.c.h.b16 %v7216
        %v7429 = vunpack.c.l.b16 %v7217
        %v7430 = vunpack.c.h.b16 %v7217
        %v7431 = vunpack.c.l.b16 %v7218
        %v7432 = vunpack.c.h.b16 %v7218
        %v7433 = vunpack.c.l.b16 %v7219
        %v7434 = vunpack.c.h.b16 %v7219
        %v7435 = vunpack.c.l.b16 %v7220
        %v7436 = vunpack.c.h.b16 %v7220
        %v7437 = vpack.c.b16 %v7309, %v7293
        %v7438 = vpack.c.b16 %v7310, %v7294
        %v7439 = vpack.c.b16 %v7311, %v7295
        %v7440 = vpack.c.b16 %v7312, %v7296
        %v7441 = vpack.c.b16 %v7313, %v7297
        %v7442 = vpack.c.b16 %v7314, %v7298
        %v7443 = vpack.c.b16 %v7315, %v7299
        %v7444 = vpack.c.b16 %v7316, %v7300
        %v7445 = vpack.c.b16 %v7317, %v7301
        %v7446 = vpack.c.b16 %v7318, %v7302
        %v7447 = vpack.c.b16 %v7319, %v7303
        %v7448 = vpack.c.b16 %v7320, %v7304
        %v7449 = vpack.c.b16 %v7321, %v7305
        %v7450 = vpack.c.b16 %v7322, %v7306
        %v7451 = vpack.c.b16 %v7323, %v7307
        %v7452 = vpack.c.b16 %v7324, %v7308
        %v7453 = vpack.c.b16 %v7341, %v7325
        %v7454 = vpack.c.b16 %v7342, %v7326
        %v7455 = vpack.c.b16 %v7343, %v7327
        %v7456 = vpack.c.b16 %v7344, %v7328
        %v7457 = vpack.c.b16 %v7345, %v7329
        %v7458 = vpack.c.b16 %v7346, %v7330
        %v7459 = vpack.c.b16 %v7347, %v7331
        %v7460 = vpack.c.b16 %v7348, %v7332
        %v7461 = vpack.c.b16 %v7349, %v7333
        %v7462 = vpack.c.b16 %v7350, %v7334
        %v7463 = vpack.c.b16 %v7351, %v7335
        %v7464 = vpack.c.b16 %v7352, %v7336
        %v7465 = vpack.c.b16 %v7353, %v7337
        %v7466 = vpack.c.b16 %v7354, %v7338
        %v7467 = vpack.c.b16 %v7355, %v7339
        %v7468 = vpack.c.b16 %v7356, %v7340
        %v7469 = vpack.c.b16 %v7373, %v7357
        %v7470 = vpack.c.b16 %v7374, %v7358
        %v7471 = vpack.c.b16 %v7375, %v7359
        %v7472 = vpack.c.b16 %v7376, %v7360
        %v7473 = vpack.c.b16 %v7377, %v7361
        %v7474 = vpack.c.b16 %v7378, %v7362
        %v7475 = vpack.c.b16 %v7379, %v7363
        %v7476 = vpack.c.b16 %v7380, %v7364
        %v7477 = vpack.c.b16 %v7381, %v7365
        %v7478 = vpack.c.b16 %v7382, %v7366
        %v7479 = vpack.c.b16 %v7383, %v7367
        %v7480 = vpack.c.b16 %v7384, %v7368
        %v7481 = vpack.c.b16 %v7385, %v7369
        %v7482 = vpack.c.b16 %v7386, %v7370
        %v7483 = vpack.c.b16 %v7387, %v7371
        %v7484 = vpack.c.b16 %v7388, %v7372
        %v7485 = vpack.c.b16 %v7405, %v7389
        %v7486 = vpack.c.b16 %v7406, %v7390
        %v7487 = vpack.c.b16 %v7407, %v7391
        %v7488 = vpack.c.b16 %v7408, %v7392
        %v7489 = vpack.c.b16 %v7409, %v7393
        %v7490 = vpack.c.b16 %v7410, %v7394
        %v7491 = vpack.c.b16 %v7411, %v7395
        %v7492 = vpack.c.b16 %v7412, %v7396
        %v7493 = vpack.c.b16 %v7413, %v7397
        %v7494 = vpack.c.b16 %v7414, %v7398
        %v7495 = vpack.c.b16 %v7415, %v7399
        %v7496 = vpack.c.b16 %v7416, %v7400
        %v7497 = vpack.c.b16 %v7417, %v7401
        %v7498 = vpack.c.b16 %v7418, %v7402
        %v7499 = vpack.c.b16 %v7419, %v7403
        %v7500 = vpack.c.b16 %v7420, %v7404
        %v7501 = vpack.c.b16 %v7421, %v7421
        %v7502 = vpack.c.b16 %v7422, %v7422
        %v7503 = vpack.c.b16 %v7423, %v7423
        %v7504 = vpack.c.b16 %v7424, %v7424
        %v7505 = vpack.c.b16 %v7425, %v7425
        %v7506 = vpack.c.b16 %v7426, %v7426
        %v7507 = vpack.c.b16 %v7427, %v7427
        %v7508 = vpack.c.b16 %v7428, %v7428
        %v7509 = vpack.c.b16 %v7429, %v7429
        %v7510 = vpack.c.b16 %v7430, %v7430
        %v7511 = vpack.c.b16 %v7431, %v7431
        %v7512 = vpack.c.b16 %v7432, %v7432
        %v7513 = vpack.c.b16 %v7433, %v7433
        %v7514 = vpack.c.b16 %v7434, %v7434
        %v7515 = vpack.c.b16 %v7435, %v7435
        %v7516 = vpack.c.b16 %v7436, %v7436
        %v7582 = vsel %vm4425, %v7148, 0
        %v7585 = vsel %vm4429, %v7501, 0
        %v7588 = vsel %vm4429, %v7502, 0
        %v7591 = vsel %vm4429, %v7503, 0
        %v7594 = vsel %vm4429, %v7504, 0
        %v7597 = vsel %vm4429, %v7505, 0
        %v7600 = vsel %vm4429, %v7506, 0
        %v7603 = vsel %vm4429, %v7507, 0
        %v7606 = vsel %vm4429, %v7508, 0
        %v7609 = vsel %vm4429, %v7509, 0
        %v7612 = vsel %vm4429, %v7510, 0
        %v7615 = vsel %vm4429, %v7511, 0
        %v7618 = vsel %vm4429, %v7512, 0
        %v7621 = vsel %vm4429, %v7513, 0
        %v7624 = vsel %vm4429, %v7514, 0
        %v7627 = vsel %vm4429, %v7515, 0
        %v7630 = vsel %vm4429, %v7516, 0
        %7632 = vmatprep.subr.bf16.mxu0 %v7438
        %7633 = vmatpush1.bf16.msra.mxu0 %v7437
        %7634 = vmatprep.subr.bf16.mxu0 %v7454
        %7635 = vmatpush1.bf16.msra.mxu0 %v7453
        %7636 = vmatprep.subr.bf16.mxu0 %v7470
        %7637 = vmatpush1.bf16.msra.mxu0 %v7469
        %7638 = vmatprep.subr.bf16.mxu0 %v7486
        %7639 = vmatpush1.bf16.msra.mxu0 %v7485
        %7640 = vmatprep.subr.bf16.mxu0 %v7588
        %7641 = vmatpush1.bf16.msra.mxu0 %v7585
        %7642 = vmatprep.subr.bf16.mxu0 0
        %7643 = vmatpush1.bf16.msra.mxu0 0
        %7644 = vmatprep.subr.bf16.mxu0 0
        %7645 = vmatpush1.bf16.msra.mxu0 0
        %7646 = vmatprep.subr.bf16.mxu0 0
        %7647 = vmatpush1.bf16.msra.mxu0 0
        %7648 = vmatprep.subr.bf16.mxu0 0
        %7649 = vmatpush1.bf16.msra.mxu0 0
        %7650 = vmatprep.subr.bf16.mxu0 0
        %7651 = vmatpush1.bf16.msra.mxu0 0
        %7652 = vmatprep.subr.bf16.mxu0 0
        %7653 = vmatpush1.bf16.msra.mxu0 0
        %7654 = vmatprep.subr.bf16.mxu0 0
        %7655 = vmatpush1.bf16.msra.mxu0 0
        %7656 = vmatprep.subr.bf16.mxu0 0
        %7657 = vmatpush1.bf16.msra.mxu0 0
        %7658 = vmatprep.subr.bf16.mxu0 0
        %7659 = vmatpush1.bf16.msra.mxu0 0
        %7660 = vmatprep.subr.bf16.mxu0 0
        %7661 = vmatpush1.bf16.msra.mxu0 0
        %7662 = vmatprep.subr.bf16.mxu0 0
        %7663 = vmatpush1.bf16.msra.mxu0 0
        %7664 = vmatprep.mubr.bf16.mxu0 0
        %7665 = vmatmul.mubr.bf16.gmra.mrb[0].mxu0 %v7582
        %v7666 = vpop.f32.mrb[0].mxu0
        %v7667 = vadd.f32 0.0, %v7666
        %v7668 = vpop.f32.mrb[0].mxu0
        %v7669 = vadd.f32 0.0, %v7668
        %v7670 = vpop.f32.mrb[0].mxu0
        %v7671 = vpop.f32.mrb[0].mxu0
        %7672 = vdwg.mxu0
        %7673 = vmatprep.subr.bf16.mxu0 %v7440
        %7674 = vmatpush1.bf16.msra.mxu0 %v7439
        %7675 = vmatprep.subr.bf16.mxu0 %v7456
        %7676 = vmatpush1.bf16.msra.mxu0 %v7455
        %7677 = vmatprep.subr.bf16.mxu0 %v7472
        %7678 = vmatpush1.bf16.msra.mxu0 %v7471
        %7679 = vmatprep.subr.bf16.mxu0 %v7488
        %7680 = vmatpush1.bf16.msra.mxu0 %v7487
        %7681 = vmatprep.subr.bf16.mxu0 %v7594
        %7682 = vmatpush1.bf16.msra.mxu0 %v7591
        %7683 = vmatprep.subr.bf16.mxu0 0
        %7684 = vmatpush1.bf16.msra.mxu0 0
        %7685 = vmatprep.subr.bf16.mxu0 0
        %7686 = vmatpush1.bf16.msra.mxu0 0
        %7687 = vmatprep.subr.bf16.mxu0 0
        %7688 = vmatpush1.bf16.msra.mxu0 0
        %7689 = vmatprep.subr.bf16.mxu0 0
        %7690 = vmatpush1.bf16.msra.mxu0 0
        %7691 = vmatprep.subr.bf16.mxu0 0
        %7692 = vmatpush1.bf16.msra.mxu0 0
        %7693 = vmatprep.subr.bf16.mxu0 0
        %7694 = vmatpush1.bf16.msra.mxu0 0
        %7695 = vmatprep.subr.bf16.mxu0 0
        %7696 = vmatpush1.bf16.msra.mxu0 0
        %7697 = vmatprep.subr.bf16.mxu0 0
        %7698 = vmatpush1.bf16.msra.mxu0 0
        %7699 = vmatprep.subr.bf16.mxu0 0
        %7700 = vmatpush1.bf16.msra.mxu0 0
        %7701 = vmatprep.subr.bf16.mxu0 0
        %7702 = vmatpush1.bf16.msra.mxu0 0
        %7703 = vmatprep.subr.bf16.mxu0 0
        %7704 = vmatpush1.bf16.msra.mxu0 0
        %7705 = vmatprep.mubr.bf16.mxu0 0
        %7706 = vmatmul.mubr.bf16.gmra.mrb[0].mxu0 %v7582
        %v7707 = vpop.f32.mrb[0].mxu0
        %v7708 = vadd.f32 0.0, %v7707
        %v7709 = vpop.f32.mrb[0].mxu0
        %v7710 = vadd.f32 0.0, %v7709
        %v7711 = vpop.f32.mrb[0].mxu0
        %v7712 = vpop.f32.mrb[0].mxu0
        %7713 = vdwg.mxu0
        %7714 = vmatprep.subr.bf16.mxu0 %v7442
        %7715 = vmatpush1.bf16.msra.mxu0 %v7441
        %7716 = vmatprep.subr.bf16.mxu0 %v7458
        %7717 = vmatpush1.bf16.msra.mxu0 %v7457
        %7718 = vmatprep.subr.bf16.mxu0 %v7474
        %7719 = vmatpush1.bf16.msra.mxu0 %v7473
        %7720 = vmatprep.subr.bf16.mxu0 %v7490
        %7721 = vmatpush1.bf16.msra.mxu0 %v7489
        %7722 = vmatprep.subr.bf16.mxu0 %v7600
        %7723 = vmatpush1.bf16.msra.mxu0 %v7597
        %7724 = vmatprep.subr.bf16.mxu0 0
        %7725 = vmatpush1.bf16.msra.mxu0 0
        %7726 = vmatprep.subr.bf16.mxu0 0
        %7727 = vmatpush1.bf16.msra.mxu0 0
        %7728 = vmatprep.subr.bf16.mxu0 0
        %7729 = vmatpush1.bf16.msra.mxu0 0
        %7730 = vmatprep.subr.bf16.mxu0 0
        %7731 = vmatpush1.bf16.msra.mxu0 0
        %7732 = vmatprep.subr.bf16.mxu0 0
        %7733 = vmatpush1.bf16.msra.mxu0 0
        %7734 = vmatprep.subr.bf16.mxu0 0
        %7735 = vmatpush1.bf16.msra.mxu0 0
        %7736 = vmatprep.subr.bf16.mxu0 0
        %7737 = vmatpush1.bf16.msra.mxu0 0
        %7738 = vmatprep.subr.bf16.mxu0 0
        %7739 = vmatpush1.bf16.msra.mxu0 0
        %7740 = vmatprep.subr.bf16.mxu0 0
        %7741 = vmatpush1.bf16.msra.mxu0 0
        %7742 = vmatprep.subr.bf16.mxu0 0
        %7743 = vmatpush1.bf16.msra.mxu0 0
        %7744 = vmatprep.subr.bf16.mxu0 0
        %7745 = vmatpush1.bf16.msra.mxu0 0
        %7746 = vmatprep.mubr.bf16.mxu0 0
        %7747 = vmatmul.mubr.bf16.gmra.mrb[0].mxu0 %v7582
        %v7748 = vpop.f32.mrb[0].mxu0
        %v7749 = vadd.f32 0.0, %v7748
        %v7750 = vpop.f32.mrb[0].mxu0
        %v7751 = vadd.f32 0.0, %v7750
        %v7752 = vpop.f32.mrb[0].mxu0
        %v7753 = vpop.f32.mrb[0].mxu0
        %7754 = vdwg.mxu0
        %7755 = vmatprep.subr.bf16.mxu0 %v7444
        %7756 = vmatpush1.bf16.msra.mxu0 %v7443
        %7757 = vmatprep.subr.bf16.mxu0 %v7460
        %7758 = vmatpush1.bf16.msra.mxu0 %v7459
        %7759 = vmatprep.subr.bf16.mxu0 %v7476
        %7760 = vmatpush1.bf16.msra.mxu0 %v7475
        %7761 = vmatprep.subr.bf16.mxu0 %v7492
        %7762 = vmatpush1.bf16.msra.mxu0 %v7491
        %7763 = vmatprep.subr.bf16.mxu0 %v7606
        %7764 = vmatpush1.bf16.msra.mxu0 %v7603
        %7765 = vmatprep.subr.bf16.mxu0 0
        %7766 = vmatpush1.bf16.msra.mxu0 0
        %7767 = vmatprep.subr.bf16.mxu0 0
        %7768 = vmatpush1.bf16.msra.mxu0 0
        %7769 = vmatprep.subr.bf16.mxu0 0
        %7770 = vmatpush1.bf16.msra.mxu0 0
        %7771 = vmatprep.subr.bf16.mxu0 0
        %7772 = vmatpush1.bf16.msra.mxu0 0
        %7773 = vmatprep.subr.bf16.mxu0 0
        %7774 = vmatpush1.bf16.msra.mxu0 0
        %7775 = vmatprep.subr.bf16.mxu0 0
        %7776 = vmatpush1.bf16.msra.mxu0 0
        %7777 = vmatprep.subr.bf16.mxu0 0
        %7778 = vmatpush1.bf16.msra.mxu0 0
        %7779 = vmatprep.subr.bf16.mxu0 0
        %7780 = vmatpush1.bf16.msra.mxu0 0
        %7781 = vmatprep.subr.bf16.mxu0 0
        %7782 = vmatpush1.bf16.msra.mxu0 0
        %7783 = vmatprep.subr.bf16.mxu0 0
        %7784 = vmatpush1.bf16.msra.mxu0 0
        %7785 = vmatprep.subr.bf16.mxu0 0
        %7786 = vmatpush1.bf16.msra.mxu0 0
        %7787 = vmatprep.mubr.bf16.mxu0 0
        %7788 = vmatmul.mubr.bf16.gmra.mrb[0].mxu0 %v7582
        %v7789 = vpop.f32.mrb[0].mxu0
        %v7790 = vadd.f32 0.0, %v7789
        %v7791 = vpop.f32.mrb[0].mxu0
        %v7792 = vadd.f32 0.0, %v7791
        %v7793 = vpop.f32.mrb[0].mxu0
        %v7794 = vpop.f32.mrb[0].mxu0
        %7795 = vdwg.mxu0
        %7796 = vmatprep.subr.bf16.mxu0 %v7446
        %7797 = vmatpush1.bf16.msra.mxu0 %v7445
        %7798 = vmatprep.subr.bf16.mxu0 %v7462
        %7799 = vmatpush1.bf16.msra.mxu0 %v7461
        %7800 = vmatprep.subr.bf16.mxu0 %v7478
        %7801 = vmatpush1.bf16.msra.mxu0 %v7477
        %7802 = vmatprep.subr.bf16.mxu0 %v7494
        %7803 = vmatpush1.bf16.msra.mxu0 %v7493
        %7804 = vmatprep.subr.bf16.mxu0 %v7612
        %7805 = vmatpush1.bf16.msra.mxu0 %v7609
        %7806 = vmatprep.subr.bf16.mxu0 0
        %7807 = vmatpush1.bf16.msra.mxu0 0
        %7808 = vmatprep.subr.bf16.mxu0 0
        %7809 = vmatpush1.bf16.msra.mxu0 0
        %7810 = vmatprep.subr.bf16.mxu0 0
        %7811 = vmatpush1.bf16.msra.mxu0 0
        %7812 = vmatprep.subr.bf16.mxu0 0
        %7813 = vmatpush1.bf16.msra.mxu0 0
        %7814 = vmatprep.subr.bf16.mxu0 0
        %7815 = vmatpush1.bf16.msra.mxu0 0
        %7816 = vmatprep.subr.bf16.mxu0 0
        %7817 = vmatpush1.bf16.msra.mxu0 0
        %7818 = vmatprep.subr.bf16.mxu0 0
        %7819 = vmatpush1.bf16.msra.mxu0 0
        %7820 = vmatprep.subr.bf16.mxu0 0
        %7821 = vmatpush1.bf16.msra.mxu0 0
        %7822 = vmatprep.subr.bf16.mxu0 0
        %7823 = vmatpush1.bf16.msra.mxu0 0
        %7824 = vmatprep.subr.bf16.mxu0 0
        %7825 = vmatpush1.bf16.msra.mxu0 0
        %7826 = vmatprep.subr.bf16.mxu0 0
        %7827 = vmatpush1.bf16.msra.mxu0 0
        %7828 = vmatprep.mubr.bf16.mxu0 0
        %7829 = vmatmul.mubr.bf16.gmra.mrb[0].mxu0 %v7582
        %v7830 = vpop.f32.mrb[0].mxu0
        %v7831 = vadd.f32 0.0, %v7830
        %v7832 = vpop.f32.mrb[0].mxu0
        %v7833 = vadd.f32 0.0, %v7832
        %v7834 = vpop.f32.mrb[0].mxu0
        %v7835 = vpop.f32.mrb[0].mxu0
        %7836 = vdwg.mxu0
        %7837 = vmatprep.subr.bf16.mxu0 %v7448
        %7838 = vmatpush1.bf16.msra.mxu0 %v7447
        %7839 = vmatprep.subr.bf16.mxu0 %v7464
        %7840 = vmatpush1.bf16.msra.mxu0 %v7463
        %7841 = vmatprep.subr.bf16.mxu0 %v7480
        %7842 = vmatpush1.bf16.msra.mxu0 %v7479
        %7843 = vmatprep.subr.bf16.mxu0 %v7496
        %7844 = vmatpush1.bf16.msra.mxu0 %v7495
        %7845 = vmatprep.subr.bf16.mxu0 %v7618
        %7846 = vmatpush1.bf16.msra.mxu0 %v7615
        %7847 = vmatprep.subr.bf16.mxu0 0
        %7848 = vmatpush1.bf16.msra.mxu0 0
        %7849 = vmatprep.subr.bf16.mxu0 0
        %7850 = vmatpush1.bf16.msra.mxu0 0
        %7851 = vmatprep.subr.bf16.mxu0 0
        %7852 = vmatpush1.bf16.msra.mxu0 0
        %7853 = vmatprep.subr.bf16.mxu0 0
        %7854 = vmatpush1.bf16.msra.mxu0 0
        %7855 = vmatprep.subr.bf16.mxu0 0
        %7856 = vmatpush1.bf16.msra.mxu0 0
        %7857 = vmatprep.subr.bf16.mxu0 0
        %7858 = vmatpush1.bf16.msra.mxu0 0
        %7859 = vmatprep.subr.bf16.mxu0 0
        %7860 = vmatpush1.bf16.msra.mxu0 0
        %7861 = vmatprep.subr.bf16.mxu0 0
        %7862 = vmatpush1.bf16.msra.mxu0 0
        %7863 = vmatprep.subr.bf16.mxu0 0
        %7864 = vmatpush1.bf16.msra.mxu0 0
        %7865 = vmatprep.subr.bf16.mxu0 0
        %7866 = vmatpush1.bf16.msra.mxu0 0
        %7867 = vmatprep.subr.bf16.mxu0 0
        %7868 = vmatpush1.bf16.msra.mxu0 0
        %7869 = vmatprep.mubr.bf16.mxu0 0
        %7870 = vmatmul.mubr.bf16.gmra.mrb[0].mxu0 %v7582
        %v7871 = vpop.f32.mrb[0].mxu0
        %v7872 = vadd.f32 0.0, %v7871
        %v7873 = vpop.f32.mrb[0].mxu0
        %v7874 = vadd.f32 0.0, %v7873
        %v7875 = vpop.f32.mrb[0].mxu0
        %v7876 = vpop.f32.mrb[0].mxu0
        %7877 = vdwg.mxu0
        %7878 = vmatprep.subr.bf16.mxu0 %v7450
        %7879 = vmatpush1.bf16.msra.mxu0 %v7449
        %7880 = vmatprep.subr.bf16.mxu0 %v7466
        %7881 = vmatpush1.bf16.msra.mxu0 %v7465
        %7882 = vmatprep.subr.bf16.mxu0 %v7482
        %7883 = vmatpush1.bf16.msra.mxu0 %v7481
        %7884 = vmatprep.subr.bf16.mxu0 %v7498
        %7885 = vmatpush1.bf16.msra.mxu0 %v7497
        %7886 = vmatprep.subr.bf16.mxu0 %v7624
        %7887 = vmatpush1.bf16.msra.mxu0 %v7621
        %7888 = vmatprep.subr.bf16.mxu0 0
        %7889 = vmatpush1.bf16.msra.mxu0 0
        %7890 = vmatprep.subr.bf16.mxu0 0
        %7891 = vmatpush1.bf16.msra.mxu0 0
        %7892 = vmatprep.subr.bf16.mxu0 0
        %7893 = vmatpush1.bf16.msra.mxu0 0
        %7894 = vmatprep.subr.bf16.mxu0 0
        %7895 = vmatpush1.bf16.msra.mxu0 0
        %7896 = vmatprep.subr.bf16.mxu0 0
        %7897 = vmatpush1.bf16.msra.mxu0 0
        %7898 = vmatprep.subr.bf16.mxu0 0
        %7899 = vmatpush1.bf16.msra.mxu0 0
        %7900 = vmatprep.subr.bf16.mxu0 0
        %7901 = vmatpush1.bf16.msra.mxu0 0
        %7902 = vmatprep.subr.bf16.mxu0 0
        %7903 = vmatpush1.bf16.msra.mxu0 0
        %7904 = vmatprep.subr.bf16.mxu0 0
        %7905 = vmatpush1.bf16.msra.mxu0 0
        %7906 = vmatprep.subr.bf16.mxu0 0
        %7907 = vmatpush1.bf16.msra.mxu0 0
        %7908 = vmatprep.subr.bf16.mxu0 0
        %7909 = vmatpush1.bf16.msra.mxu0 0
        %7910 = vmatprep.mubr.bf16.mxu0 0
        %7911 = vmatmul.mubr.bf16.gmra.mrb[0].mxu0 %v7582
        %v7912 = vpop.f32.mrb[0].mxu0
        %v7913 = vadd.f32 0.0, %v7912
        %v7914 = vpop.f32.mrb[0].mxu0
        %v7915 = vadd.f32 0.0, %v7914
        %v7916 = vpop.f32.mrb[0].mxu0
        %v7917 = vpop.f32.mrb[0].mxu0
        %7918 = vdwg.mxu0
        %7919 = vmatprep.subr.bf16.mxu0 %v7452
        %7920 = vmatpush1.bf16.msra.mxu0 %v7451
        %7921 = vmatprep.subr.bf16.mxu0 %v7468
        %7922 = vmatpush1.bf16.msra.mxu0 %v7467
        %7923 = vmatprep.subr.bf16.mxu0 %v7484
        %7924 = vmatpush1.bf16.msra.mxu0 %v7483
        %7925 = vmatprep.subr.bf16.mxu0 %v7500
        %7926 = vmatpush1.bf16.msra.mxu0 %v7499
        %7927 = vmatprep.subr.bf16.mxu0 %v7630
        %7928 = vmatpush1.bf16.msra.mxu0 %v7627
        %7929 = vmatprep.subr.bf16.mxu0 0
        %7930 = vmatpush1.bf16.msra.mxu0 0
        %7931 = vmatprep.subr.bf16.mxu0 0
        %7932 = vmatpush1.bf16.msra.mxu0 0
        %7933 = vmatprep.subr.bf16.mxu0 0
        %7934 = vmatpush1.bf16.msra.mxu0 0
        %7935 = vmatprep.subr.bf16.mxu0 0
        %7936 = vmatpush1.bf16.msra.mxu0 0
        %7937 = vmatprep.subr.bf16.mxu0 0
        %7938 = vmatpush1.bf16.msra.mxu0 0
        %7939 = vmatprep.subr.bf16.mxu0 0
        %7940 = vmatpush1.bf16.msra.mxu0 0
        %7941 = vmatprep.subr.bf16.mxu0 0
        %7942 = vmatpush1.bf16.msra.mxu0 0
        %7943 = vmatprep.subr.bf16.mxu0 0
        %7944 = vmatpush1.bf16.msra.mxu0 0
        %7945 = vmatprep.subr.bf16.mxu0 0
        %7946 = vmatpush1.bf16.msra.mxu0 0
        %7947 = vmatprep.subr.bf16.mxu0 0
        %7948 = vmatpush1.bf16.msra.mxu0 0
        %7949 = vmatprep.subr.bf16.mxu0 0
        %7950 = vmatpush1.bf16.msra.mxu0 0
        %7951 = vmatprep.mubr.bf16.mxu0 0
        %7952 = vmatmul.mubr.bf16.gmra.mrb[0].mxu0 %v7582
        %v7953 = vpop.f32.mrb[0].mxu0
        %v7954 = vadd.f32 0.0, %v7953
        %v7955 = vpop.f32.mrb[0].mxu0
        %v7956 = vadd.f32 0.0, %v7955
        %v7957 = vpop.f32.mrb[0].mxu0
        %v7958 = vpop.f32.mrb[0].mxu0
        %7959 = vdwg.mxu0
        %v7960 = vadd.f32 %v5252, %v7667
        %v7961 = vadd.f32 %v5254, %v7669
        %v7962 = vadd.f32 %v5293, %v7708
        %v7963 = vadd.f32 %v5295, %v7710
        %v7964 = vadd.f32 %v5334, %v7749
        %v7965 = vadd.f32 %v5336, %v7751
        %v7966 = vadd.f32 %v5375, %v7790
        %v7967 = vadd.f32 %v5377, %v7792
        %v7968 = vadd.f32 %v5416, %v7831
        %v7969 = vadd.f32 %v5418, %v7833
        %v7970 = vadd.f32 %v5457, %v7872
        %v7971 = vadd.f32 %v5459, %v7874
        %v7972 = vadd.f32 %v5498, %v7913
        %v7973 = vadd.f32 %v5500, %v7915
        %v7974 = vadd.f32 %v5539, %v7954
        %v7975 = vadd.f32 %v5541, %v7956
        %v7976 = vld [vmem:[%s2] sm:$0xff]
        %7978 = vset.pattern.permute.xlu0 0
        %7979 = vperm.xlu0 %7978, %v7976
        %v7980 = vpop.permute.xlu0 %7979
        %v7982 = vadd.f32 %v7960, %v7980
        %v7983 = vadd.f32 %v7961, %v7980
        %v7984 = vadd.f32 %v7962, %v7980
        %v7985 = vadd.f32 %v7963, %v7980
        %v7986 = vadd.f32 %v7964, %v7980
        %v7987 = vadd.f32 %v7965, %v7980
        %v7988 = vadd.f32 %v7966, %v7980
        %v7989 = vadd.f32 %v7967, %v7980
        %v7990 = vadd.f32 %v7968, %v7980
        %v7991 = vadd.f32 %v7969, %v7980
        %v7992 = vadd.f32 %v7970, %v7980
        %v7993 = vadd.f32 %v7971, %v7980
        %v7994 = vadd.f32 %v7972, %v7980
        %v7995 = vadd.f32 %v7973, %v7980
        %v7996 = vadd.f32 %v7974, %v7980
        %v7997 = vadd.f32 %v7975, %v7980
        %v7998 = vadd.f32 %v7982, %v7983
        %v7999 = vadd.f32 %v7998, %v7984
        %v8000 = vadd.f32 %v7999, %v7985
        %v8001 = vadd.f32 %v8000, %v7986
        %v8002 = vadd.f32 %v8001, %v7987
        %v8003 = vadd.f32 %v8002, %v7988
        %v8004 = vadd.f32 %v8003, %v7989
        %v8005 = vadd.f32 %v8004, %v7990
        %v8006 = vadd.f32 %v8005, %v7991
        %v8007 = vadd.f32 %v8006, %v7992
        %v8008 = vadd.f32 %v8007, %v7993
        %v8009 = vadd.f32 %v8008, %v7994
        %v8010 = vadd.f32 %v8009, %v7995
        %v8011 = vadd.f32 %v8010, %v7996
        %v8012 = vadd.f32 %v8011, %v7997
        %8013 = vadd.xlane.f32.xlu0 %v8012
        %v8014 = vpop.xlane.xlu0 %8013
        %vm8015 = vcmask 7168
        %8016 = vst.msk [vmem:[%s299] sm:$0xff] %vm8015, %v8014
        %v8017 = vmul.f32 %v7982, %v7982
        %v8018 = vmul.f32 %v7983, %v7983
        %v8019 = vmul.f32 %v7984, %v7984
        %v8020 = vmul.f32 %v7985, %v7985
        %v8021 = vmul.f32 %v7986, %v7986
        %v8022 = vmul.f32 %v7987, %v7987
        %v8023 = vmul.f32 %v7988, %v7988
        %v8024 = vmul.f32 %v7989, %v7989
        %v8025 = vmul.f32 %v7990, %v7990
        %v8026 = vmul.f32 %v7991, %v7991
        %v8027 = vmul.f32 %v7992, %v7992
        %v8028 = vmul.f32 %v7993, %v7993
        %v8029 = vmul.f32 %v7994, %v7994
        %v8030 = vmul.f32 %v7995, %v7995
        %v8031 = vmul.f32 %v7996, %v7996
        %v8032 = vmul.f32 %v7997, %v7997
        %v8033 = vadd.f32 %v8017, %v8018
        %v8034 = vadd.f32 %v8033, %v8019
        %v8035 = vadd.f32 %v8034, %v8020
        %v8036 = vadd.f32 %v8035, %v8021
        %v8037 = vadd.f32 %v8036, %v8022
        %v8038 = vadd.f32 %v8037, %v8023
        %v8039 = vadd.f32 %v8038, %v8024
        %v8040 = vadd.f32 %v8039, %v8025
        %v8041 = vadd.f32 %v8040, %v8026
        %v8042 = vadd.f32 %v8041, %v8027
        %v8043 = vadd.f32 %v8042, %v8028
        %v8044 = vadd.f32 %v8043, %v8029
        %v8045 = vadd.f32 %v8044, %v8030
        %v8046 = vadd.f32 %v8045, %v8031
        %v8047 = vadd.f32 %v8046, %v8032
        %8048 = vadd.xlane.f32.xlu0 %v8047
        %v8049 = vpop.xlane.xlu0 %8048
        %8050 = vst.msk [vmem:[%s303] sm:$0xff] %vm8015, %v8049
        %8051 = vst [vmem:[%s283] sm:$0xff] %v7982
        %8052 = vst [vmem:[%s283 + $0x8] sm:$0xff] %v7983
        %8053 = vst [vmem:[%s283 + $0x10] sm:$0xff] %v7984
        %8054 = vst [vmem:[%s283 + $0x18] sm:$0xff] %v7985
        %8055 = vst [vmem:[%s283 + $0x20] sm:$0xff] %v7986
        %8056 = vst [vmem:[%s283 + $0x28] sm:$0xff] %v7987
        %8057 = vst [vmem:[%s283 + $0x30] sm:$0xff] %v7988
        %8058 = vst [vmem:[%s283 + $0x38] sm:$0xff] %v7989
        %8059 = vst [vmem:[%s283 + $0x40] sm:$0xff] %v7990
        %8060 = vst [vmem:[%s283 + $0x48] sm:$0xff] %v7991
        %8061 = vst [vmem:[%s283 + $0x50] sm:$0xff] %v7992
        %8062 = vst [vmem:[%s283 + $0x58] sm:$0xff] %v7993
        %8063 = vst [vmem:[%s283 + $0x60] sm:$0xff] %v7994
        %8064 = vst [vmem:[%s283 + $0x68] sm:$0xff] %v7995
        %8065 = vst [vmem:[%s283 + $0x70] sm:$0xff] %v7996
        %8066 = vst [vmem:[%s283 + $0x78] sm:$0xff] %v7997
        %s8067 = sand.u32 %s122, 1
        %s8068 = scalar_lea.sflag [#allocation6], %s8067
        %s8069 = sand.u32 %s122, 1
        %s8070 = smul.addr %s8069, 128
        %s8071 = scalar_lea.vmem [#allocation9], %s8070
        %p8072 = scmp.lt.s32.totalorder %s25, 1
        %s8073 = scalar_select %p8072, %s25, 1
        %s8074 = smul.addr %s8073, 8
        %s8075 = scalar_lea.vmem %s5, %s8074
        %p8076 = scmp.lt.s32.totalorder %s25, 1
        %s8077 = scalar_select %p8076, %s25, 1
        %s8078 = smul.addr %s8077, 8
        %s8079 = scalar_lea.vmem %s6, %s8078
        // Predicated region
        $region45: #{tpu_custom_call.1} parent=35 // pred_check
          %p8080 = pneg %p132
        $region46: #{tpu_custom_call.1} parent=35 // pred_check_branch
          %8082 = sbr.rel (%p8080) target = $region48
        $region47: #{tpu_custom_call.1} parent=35 // pred_region
          %s8084 = ssub.s32 2048, 2048
          %8085 = vsyncadd %s8068, %s8084
          %s8086 = smul.addr %s25, 16
          %s8087 = smul.addr %s8086, 128
          %s8088 = scalar_lea.hbm %s4, %s8087
          %s8090 = sshll.u32 %s8071, 4
          %s8091 = int_to_ptr.vmem [resolvable:$true] %s8090
          %8093 = dma.vmem_to_hbm [thread:$0]  %s8091, 2048, %s8088, %s8068
        $region48: #{tpu_custom_call.1} parent=35 // pred_fallthru
          _
        // Predicated region
        $region49: #{tpu_custom_call.1} parent=35 // pred_check
          %p8094 = pneg %p158
        $region50: #{tpu_custom_call.1} parent=35 // pred_check_branch
          %8096 = sbr.rel (%p8094) target = $region52
        $region51: #{tpu_custom_call.1} parent=35 // pred_region
          _
        $region52: #{tpu_custom_call.1} parent=35 // pred_fallthru
          _
        // Predicated region
        $region53: #{tpu_custom_call.1} parent=35 // pred_check
          %p8097 = pneg %p184
        $region54: #{tpu_custom_call.1} parent=35 // pred_check_branch
          %8099 = sbr.rel (%p8097) target = $region56
        $region55: #{tpu_custom_call.1} parent=35 // pred_region
          _
        $region56: #{tpu_custom_call.1} parent=35 // pred_fallthru
          _
      $region36: #{tpu_custom_call.1} parent=5 // pred_fallthru
        _
      %p8100 = scmp.le.s32.totalorder 2, %s20
      // Predicated region
      $region57: #{tpu_custom_call.1} parent=5 // pred_check
        %p8101 = pneg %p8100
      $region58: #{tpu_custom_call.1} parent=5 // pred_check_branch
        %8103 = sbr.rel (%p8101) target = $region60
      $region59: #{tpu_custom_call.1} parent=5 // pred_region
        %s8104 = ssub.s32 %s20, 2
        // Predicated region
        $region61: #{tpu_custom_call.1} parent=59 // pred_check
          %p8105 = pneg %p138
        $region62: #{tpu_custom_call.1} parent=59 // pred_check_branch
          %8107 = sbr.rel (%p8105) target = $region64
        $region63: #{tpu_custom_call.1} parent=59 // pred_region
          %s8108 = sand.u32 %s123, 1
          %s8109 = scalar_lea.sflag [#allocation6], %s8108
          %s8110 = sand.u32 %s123, 1
          %s8111 = smul.addr %s8110, 128
          %s8112 = scalar_lea.vmem [#allocation9], %s8111
          %8113 = dma.done %s8109, 2048
        $region64: #{tpu_custom_call.1} parent=59 // pred_fallthru
          _
        // Predicated region
        $region65: #{tpu_custom_call.1} parent=59 // pred_check
          %p8114 = pneg %p164
        $region66: #{tpu_custom_call.1} parent=59 // pred_check_branch
          %8116 = sbr.rel (%p8114) target = $region68
        $region67: #{tpu_custom_call.1} parent=59 // pred_region
          %p8117 = scmp.lt.s32.totalorder %s26, 1
          %s8118 = scalar_select %p8117, %s26, 1
          %s8119 = smul.addr %s8118, 8
          %s8120 = scalar_lea.vmem %s5, %s8119
        $region68: #{tpu_custom_call.1} parent=59 // pred_fallthru
          _
        // Predicated region
        $region69: #{tpu_custom_call.1} parent=59 // pred_check
          %p8121 = pneg %p190
        $region70: #{tpu_custom_call.1} parent=59 // pred_check_branch
          %8123 = sbr.rel (%p8121) target = $region72
        $region71: #{tpu_custom_call.1} parent=59 // pred_region
          %p8124 = scmp.lt.s32.totalorder %s26, 1
          %s8125 = scalar_select %p8124, %s26, 1
          %s8126 = smul.addr %s8125, 8
          %s8127 = scalar_lea.vmem %s6, %s8126
        $region72: #{tpu_custom_call.1} parent=59 // pred_fallthru
          _
      $region60: #{tpu_custom_call.1} parent=5 // pred_fallthru
        _
    $region6: #{tpu_custom_call.1} parent=1 // loop_footer
      %s24 = sadd.s32 1, %s20
    $region7: #{tpu_custom_call.1} parent=1 // loop_footer_branch
      %19 = sbr.rel target = $region3
    $region8: #{tpu_custom_call.1} parent=1 // loop_exit
      _
    %8128 = vsyncpa [#allocation5], 1
    %s8129 = scalar_lea.sflag [#allocation5], 1
    %8130 = vsyncpa %s8129, 1
    %8131 = vsyncpa [#allocation8], 1
    %8132 = vsyncpa [#allocation6], 1
    %s8133 = scalar_lea.sflag [#allocation6], 1
    %8134 = vsyncpa %s8133, 1

</llo_original>
